<compile_context>
chip_gen: v7x
topology: tpu7x:2x2x1
jax: 0.10.0
libtpu: 0.0.40
codegen_flags: <defaults>
</compile_context>

<pallas_src>
import functools

import jax
import jax.numpy as jnp
import numpy as np
from jax import lax
from jax.experimental import pallas as pl
from jax.experimental.pallas import tpu as pltpu

EPS = 1e-5  # nn.LayerNorm default


# ---------------------------------------------------------------- helpers ----
def _round_up(v, m):
    return ((v + m - 1) // m) * m


def _layernorm(x, w, b):
    mu = jnp.mean(x, axis=-1, keepdims=True)
    var = jnp.mean((x - mu) ** 2, axis=-1, keepdims=True)
    return (x - mu) * lax.rsqrt(var + EPS) * w + b


def _gelu_tanh(x):
    # tanh-approximate gelu, computed entirely in x.dtype (bf16 on v6e/v7x,
    # f32 elsewhere) so the EUP gets bf16 throughput where available.
    dt = x.dtype
    c = jnp.asarray(np.sqrt(2.0 / np.pi), dt)
    a = jnp.asarray(0.044715, dt)
    half = jnp.asarray(0.5, dt)
    one = jnp.asarray(1.0, dt)
    return half * x * (one + jnp.tanh(c * (x + a * x * x * x)))


def _dot(a, b):
    # plain (M,K) @ (K,N) on the MXU, f32 accumulation
    return jnp.dot(a, b, preferred_element_type=jnp.float32)


def _dot_ct(a, b):
    # contract last dim of both operands: (Tq,D)x(S,D) -> (Tq,S); avoids
    # materializing K^T.
    return lax.dot_general(a, b, (((1,), (1,)), ((), ())),
                           preferred_element_type=jnp.float32)


def _vmem_limit_bytes():
    cap = 128 * 1024 * 1024
    try:
        info = pltpu.get_tpu_info()
        cap = int(getattr(info, "vmem_capacity_bytes", cap))
    except Exception:
        pass
    # ~80% of physical VMEM: ~102 MiB on v5e/v6e, ~51 MiB on v7x.
    return int(cap * 0.8)


def _gelu_compute_dtype(matmul_dtype):
    # bf16 gelu only where the VPU/EUP have bf16 (v6e / v7x); f32 otherwise.
    if matmul_dtype == jnp.float32:
        return jnp.float32
    try:
        kind = jax.devices()[0].device_kind.lower()
    except Exception:
        return jnp.float32
    if any(old in kind for old in ("v2", "v3", "v4", "v5")):
        return jnp.float32
    return matmul_dtype


# ----------------------------------------------------------------- kernel ----
def encoder_layer_kernel(num_heads, seq_len, gelu_dtype,
                         xq_ref, xkv_ref,
                         ln1_w_ref, ln1_b_ref,
                         wq_ref, bq_ref, wkv_ref, bkv_ref,
                         wout_ref, bout_ref,
                         ln2_w_ref, ln2_b_ref,
                         wfc1_ref, bfc1_ref, wfc2_ref, bfc2_ref,
                         o_ref):
    x_q = xq_ref[0]                                   # (Tq, E) f32 query tile
    x_kv = xkv_ref[0]                                 # (S_pad, E) f32 full seq
    Tq, E = x_q.shape
    S_pad = x_kv.shape[0]
    D = E // num_heads
    mm_dtype = wq_ref.dtype                           # matmul operand dtype
    scale = np.float32(1.0 / np.sqrt(D))

    # ------------- attention branch: x + MHA(LN1(x)) -------------
    # K/V from the full (padded) sequence.
    xn_kv = _layernorm(x_kv, ln1_w_ref[0], ln1_b_ref[0]).astype(mm_dtype)
    kv = _dot(xn_kv, wkv_ref[...]) + bkv_ref[0]       # (S_pad, 2E) f32
    k = kv[:, :E]
    v = kv[:, E:]

    # Q from this query tile only; fold 1/sqrt(D) into q.
    xn_q = _layernorm(x_q, ln1_w_ref[0], ln1_b_ref[0]).astype(mm_dtype)
    q = (_dot(xn_q, wq_ref[...]) + bq_ref[0]) * scale  # (Tq, E) f32

    # Key mask for sequence padding (static branch; free when no padding).
    if seq_len < S_pad:
        key_valid = lax.broadcasted_iota(jnp.int32, (1, S_pad), 1) < seq_len
    else:
        key_valid = None

    # Per-head attention with the output projection fused into the head loop.
    # All accumulations are full-E lane width; no (S, E) attention scratch and
    # no separate (S,E)x(E,E) out-proj matmul.
    acc = jnp.zeros((Tq, E), jnp.float32)
    # TODO(synk): for H >= 12 switch to lax.fori_loop + pl.ds head slicing if a
    #             bundle dump shows vreg spills from this static unroll.
    for h in range(num_heads):
        sl = slice(h * D, (h + 1) * D)
        qh = q[:, sl].astype(mm_dtype)
        kh = k[:, sl].astype(mm_dtype)
        vh = v[:, sl].astype(mm_dtype)
        s = _dot_ct(qh, kh)                            # (Tq, S_pad) f32
        if key_valid is not None:
            s = jnp.where(key_valid, s, np.float32(-1e30))
        s = s - jnp.max(s, axis=-1, keepdims=True)
        p = jnp.exp(s)
        p = p * pl.reciprocal(jnp.sum(p, axis=-1, keepdims=True), approx=True)
        pv = _dot(p.astype(mm_dtype), vh)              # (Tq, D) f32
        acc = acc + _dot(pv.astype(mm_dtype), wout_ref[sl, :])   # (Tq, E)

    x1 = x_q + acc + bout_ref[0]

    # ------------- MLP branch: x1 + MLP(LN2(x1)) -------------
    xn2 = _layernorm(x1, ln2_w_ref[0], ln2_b_ref[0]).astype(mm_dtype)
    h1 = _dot(xn2, wfc1_ref[...]) + bfc1_ref[0]        # (Tq, mlp) f32
    hmid = _gelu_tanh(h1.astype(gelu_dtype))           # bf16 gelu on v6e/v7x
    mlp = _dot(hmid.astype(mm_dtype), wfc2_ref[...]) + bfc2_ref[0]

    o_ref[0] = (x1 + mlp).astype(o_ref.dtype)
    # TODO(synk): dropout (attention-prob + MLP dropout) is identity here (eval mode).


# ---------------------------------------------------------------- wrapper ----
def transformer_encoder_layer(x, params, num_heads, *,
                              matmul_dtype=jnp.bfloat16,
                              q_block=128,
                              out_dtype=None):
    """params follow PyTorch conventions (W: (out, in)); weights are
    pre-transposed / split / cast on the host so the kernel never transposes a
    weight tile and never projects Q for rows it does not own."""
    B, S, E = x.shape
    mlp_dim = params["fc1_w"].shape[0]
    out_dtype = x.dtype if out_dtype is None else out_dtype
    gelu_dtype = _gelu_compute_dtype(matmul_dtype)

    # ---- sequence padding + query tiling (16-aligned for bf16 sublanes) ----
    align = 16
    Tq = min(_round_up(q_block, align), _round_up(S, align))
    S_pad = _round_up(S, Tq)
    n_q = S_pad // Tq
    x_p = x if S_pad == S else jnp.pad(x, ((0, 0), (0, S_pad - S), (0, 0)))

    # ---- host-side weight prep (pre-transpose, split QKV, cast) ----
    wq = params["in_proj_w"][:E, :].T.astype(matmul_dtype)       # (E, E)
    wkv = params["in_proj_w"][E:, :].T.astype(matmul_dtype)      # (E, 2E)
    bq = params["in_proj_b"][:, :E]                              # (1, E)
    bkv = params["in_proj_b"][:, E:]                             # (1, 2E)
    wout = params["out_proj_w"].T.astype(matmul_dtype)           # (E, E)
    wfc1 = params["fc1_w"].T.astype(matmul_dtype)                # (E, mlp)
    wfc2 = params["fc2_w"].T.astype(matmul_dtype)                # (mlp, E)

    kernel = functools.partial(encoder_layer_kernel, num_heads, S, gelu_dtype)

    def run(single_buffer_weights):
        def const_spec(shape):
            n = len(shape)
            idx = lambda b, qi, _n=n: (0,) * _n
            if single_buffer_weights:
                try:
                    # Constant index_map: one buffer is enough (fetched once).
                    return pl.BlockSpec(shape, idx, pipeline_mode=pl.Buffered(1))
                except TypeError:
                    pass
            return pl.BlockSpec(shape, idx)

        in_specs = [
            pl.BlockSpec((1, Tq, E), lambda b, qi: (b, qi, 0)),    # x (Q / residual)
            pl.BlockSpec((1, S_pad, E), lambda b, qi: (b, 0, 0)),  # x (K/V side)
            const_spec((1, E)), const_spec((1, E)),                # ln1 w, b
            const_spec((E, E)), const_spec((1, E)),                # Wq, bq
            const_spec((E, 2 * E)), const_spec((1, 2 * E)),        # Wkv, bkv
            const_spec((E, E)), const_spec((1, E)),                # Wout, bout
            const_spec((1, E)), const_spec((1, E)),                # ln2 w, b
            const_spec((E, mlp_dim)), const_spec((1, mlp_dim)),    # fc1, b
            const_spec((mlp_dim, E)), const_spec((1, E)),          # fc2, b
        ]
        out_specs = pl.BlockSpec((1, Tq, E), lambda b, qi: (b, qi, 0))

        return pl.pallas_call(
            kernel,
            out_shape=jax.ShapeDtypeStruct((B, S_pad, E), out_dtype),
            grid_spec=pltpu.PrefetchScalarGridSpec(
                num_scalar_prefetch=0,
                grid=(B, n_q),
                in_specs=in_specs,
                out_specs=out_specs,
            ),
            compiler_params=pltpu.CompilerParams(
                dimension_semantics=("parallel", "parallel"),
                vmem_limit_bytes=_vmem_limit_bytes(),
            ),
        )(x_p, x_p,
          params["ln1_w"], params["ln1_b"],
          wq, bq, wkv, bkv,
          wout, params["out_proj_b"],
          params["ln2_w"], params["ln2_b"],
          wfc1, params["fc1_b"],
          wfc2, params["fc2_b"])

    try:
        out = run(True)
    except Exception:
        # pl.Buffered(1) not supported by this jax version -> default buffering.
        out = run(False)

    return out[:, :S, :] if S_pad != S else out


# ------------------------------------------------------------ pure-JAX ref ---
def reference_forward(x, params, num_heads):
    B, S, E = x.shape
    D = E // num_heads

    def ln(v, w, b):
        mu = jnp.mean(v, axis=-1, keepdims=True)
        var = jnp.mean((v - mu) ** 2, axis=-1, keepdims=True)
        return (v - mu) / jnp.sqrt(var + EPS) * w[0] + b[0]

    xn = ln(x, params["ln1_w"], params["ln1_b"])
    qkv = xn @ params["in_proj_w"].T + params["in_proj_b"][0]
    q, k, v = qkv[..., :E], qkv[..., E:2 * E], qkv[..., 2 * E:]
    q = q.reshape(B, S, num_heads, D).transpose(0, 2, 1, 3)
    k = k.reshape(B, S, num_heads, D).transpose(0, 2, 1, 3)
    v = v.reshape(B, S, num_heads, D).transpose(0, 2, 1, 3)
    s = jnp.einsum("bhqd,bhkd->bhqk", q, k) / np.sqrt(D)
    p = jax.nn.softmax(s, axis=-1)
    o = jnp.einsum("bhqk,bhkd->bhqd", p, v).transpose(0, 2, 1, 3).reshape(B, S, E)
    o = o @ params["out_proj_w"].T + params["out_proj_b"][0]
    x1 = x + o

    xn2 = ln(x1, params["ln2_w"], params["ln2_b"])
    h = xn2 @ params["fc1_w"].T + params["fc1_b"][0]
    h = 0.5 * h * (1.0 + jax.scipy.special.erf(h / np.sqrt(2.0)))   # exact gelu
    mlp = h @ params["fc2_w"].T + params["fc2_b"][0]
    return x1 + mlp


# ------------------------------------------------------------------- main ----
if __name__ == "__main__":
    # Lane-dense small config: E multiple of 128, S multiple of 16.
    B, S, E, H, MLP_DIM = 2, 16, 128, 4, 256

    key = jax.random.PRNGKey(0)
    keys = jax.random.split(key, 8)
    params = {
        "ln1_w": jnp.ones((1, E), jnp.float32),
        "ln1_b": jnp.zeros((1, E), jnp.float32),
        "in_proj_w": jax.random.normal(keys[0], (3 * E, E), jnp.float32) * 0.05,
        "in_proj_b": jax.random.normal(keys[1], (1, 3 * E), jnp.float32) * 0.01,
        "out_proj_w": jax.random.normal(keys[2], (E, E), jnp.float32) * 0.05,
        "out_proj_b": jax.random.normal(keys[3], (1, E), jnp.float32) * 0.01,
        "ln2_w": jnp.ones((1, E), jnp.float32),
        "ln2_b": jnp.zeros((1, E), jnp.float32),
        "fc1_w": jax.random.normal(keys[4], (MLP_DIM, E), jnp.float32) * 0.05,
        "fc1_b": jax.random.normal(keys[5], (1, MLP_DIM), jnp.float32) * 0.01,
        "fc2_w": jax.random.normal(keys[6], (E, MLP_DIM), jnp.float32) * 0.05,
        "fc2_b": jax.random.normal(keys[7], (1, E), jnp.float32) * 0.01,
    }
    x = jax.random.normal(jax.random.PRNGKey(1), (B, S, E), jnp.float32)

    ref = jax.block_until_ready(reference_forward(x, params, H))

    # f32 matmul path: tight check (tanh-gelu + approx-reciprocal deviations only).
    out_f32 = jax.block_until_ready(
        transformer_encoder_layer(x, params, H, matmul_dtype=jnp.float32))
    np.testing.assert_allclose(np.asarray(out_f32), np.asarray(ref),
                               rtol=5e-3, atol=5e-3)

    # bf16 matmul path (default): looser tolerance for bf16 operands (+ bf16 gelu
    # on v6e/v7x).
    out_bf16 = jax.block_until_ready(
        transformer_encoder_layer(x, params, H, matmul_dtype=jnp.bfloat16))
    np.testing.assert_allclose(np.asarray(out_bf16), np.asarray(ref),
                               rtol=3e-2, atol=3e-2)

    # Ragged + Q-tiled path: S=40 with q_block=16 -> 3 query tiles, padded keys
    # masked in-kernel, B=1 (exercises the second "parallel" grid axis).
    S2 = 40
    x2 = jax.random.normal(jax.random.PRNGKey(2), (1, S2, E), jnp.float32)
    ref2 = jax.block_until_ready(reference_forward(x2, params, H))
    out2 = jax.block_until_ready(
        transformer_encoder_layer(x2, params, H, q_block=16))
    np.testing.assert_allclose(np.asarray(out2), np.asarray(ref2),
                               rtol=3e-2, atol=3e-2)

    print("KERNEL_OK")
</pallas_src>

<mosaic_0001>
module attributes {stable_mosaic.version = 11 : i64} {
  func.func @encoder_layer_kernel(%arg0: i32, %arg1: i32, %arg2: memref<1x16x128xf32, #tpu.memory_space<vmem>>, %arg3: memref<1x16x128xf32, #tpu.memory_space<vmem>>, %arg4: memref<1x128xf32, #tpu.memory_space<vmem>>, %arg5: memref<1x128xf32, #tpu.memory_space<vmem>>, %arg6: memref<128x128xf32, #tpu.memory_space<vmem>>, %arg7: memref<1x128xf32, #tpu.memory_space<vmem>>, %arg8: memref<128x256xf32, #tpu.memory_space<vmem>>, %arg9: memref<1x256xf32, #tpu.memory_space<vmem>>, %arg10: memref<128x128xf32, #tpu.memory_space<vmem>>, %arg11: memref<1x128xf32, #tpu.memory_space<vmem>>, %arg12: memref<1x128xf32, #tpu.memory_space<vmem>>, %arg13: memref<1x128xf32, #tpu.memory_space<vmem>>, %arg14: memref<128x256xf32, #tpu.memory_space<vmem>>, %arg15: memref<1x256xf32, #tpu.memory_space<vmem>>, %arg16: memref<256x128xf32, #tpu.memory_space<vmem>>, %arg17: memref<1x128xf32, #tpu.memory_space<vmem>>, %arg18: memref<1x16x128xf32, #tpu.memory_space<vmem>>) attributes {dimension_semantics = [#tpu.dimension_semantics<parallel>, #tpu.dimension_semantics<parallel>], iteration_bounds = array<i64: 2, 1>, scalar_prefetch = 0 : i64, scratch_operands = 0 : i64, tpu.core_type = #tpu.core_type<tc>, window_params = [{transform_indices = @transform_0, window_bounds = array<i64: 1, 16, 128>}, {transform_indices = @transform_1, window_bounds = array<i64: 1, 16, 128>}, {pipeline_mode = #tpu.pipeline_mode<synchronous>, transform_indices = @transform_2, window_bounds = array<i64: 1, 128>}, {pipeline_mode = #tpu.pipeline_mode<synchronous>, transform_indices = @transform_3, window_bounds = array<i64: 1, 128>}, {pipeline_mode = #tpu.pipeline_mode<synchronous>, transform_indices = @transform_4, window_bounds = array<i64: 128, 128>}, {pipeline_mode = #tpu.pipeline_mode<synchronous>, transform_indices = @transform_5, window_bounds = array<i64: 1, 128>}, {pipeline_mode = #tpu.pipeline_mode<synchronous>, transform_indices = @transform_6, window_bounds = array<i64: 128, 256>}, {pipeline_mode = #tpu.pipeline_mode<synchronous>, transform_indices = @transform_7, window_bounds = array<i64: 1, 256>}, {pipeline_mode = #tpu.pipeline_mode<synchronous>, transform_indices = @transform_8, window_bounds = array<i64: 128, 128>}, {pipeline_mode = #tpu.pipeline_mode<synchronous>, transform_indices = @transform_9, window_bounds = array<i64: 1, 128>}, {pipeline_mode = #tpu.pipeline_mode<synchronous>, transform_indices = @transform_10, window_bounds = array<i64: 1, 128>}, {pipeline_mode = #tpu.pipeline_mode<synchronous>, transform_indices = @transform_11, window_bounds = array<i64: 1, 128>}, {pipeline_mode = #tpu.pipeline_mode<synchronous>, transform_indices = @transform_12, window_bounds = array<i64: 128, 256>}, {pipeline_mode = #tpu.pipeline_mode<synchronous>, transform_indices = @transform_13, window_bounds = array<i64: 1, 256>}, {pipeline_mode = #tpu.pipeline_mode<synchronous>, transform_indices = @transform_14, window_bounds = array<i64: 256, 128>}, {pipeline_mode = #tpu.pipeline_mode<synchronous>, transform_indices = @transform_15, window_bounds = array<i64: 1, 128>}, {transform_indices = @transform_16, window_bounds = array<i64: 1, 16, 128>}]} {
    %c0 = arith.constant 0 : index
    %c0_0 = arith.constant 0 : index
    %c0_1 = arith.constant 0 : index
    %0 = vector.load %arg2[%c0, %c0_0, %c0_1] : memref<1x16x128xf32, #tpu.memory_space<vmem>>, vector<1x16x128xf32>
    %1 = vector.shape_cast %0 : vector<1x16x128xf32> to vector<16x128xf32>
    %c0_2 = arith.constant 0 : index
    %c0_3 = arith.constant 0 : index
    %c0_4 = arith.constant 0 : index
    %2 = vector.load %arg3[%c0_2, %c0_3, %c0_4] : memref<1x16x128xf32, #tpu.memory_space<vmem>>, vector<1x16x128xf32>
    %3 = vector.shape_cast %2 : vector<1x16x128xf32> to vector<16x128xf32>
    %c0_5 = arith.constant 0 : index
    %c0_6 = arith.constant 0 : index
    %4 = vector.load %arg4[%c0_5, %c0_6] : memref<1x128xf32, #tpu.memory_space<vmem>>, vector<1x128xf32>
    %5 = vector.shape_cast %4 : vector<1x128xf32> to vector<128xf32>
    %c0_7 = arith.constant 0 : index
    %c0_8 = arith.constant 0 : index
    %6 = vector.load %arg5[%c0_7, %c0_8] : memref<1x128xf32, #tpu.memory_space<vmem>>, vector<1x128xf32>
    %7 = vector.shape_cast %6 : vector<1x128xf32> to vector<128xf32>
    %cst = arith.constant dense<0.000000e+00> : vector<16xf32>
    %8 = vector.multi_reduction <add>, %3, %cst [1] : vector<16x128xf32> to vector<16xf32>
    %9 = vector.shape_cast %8 : vector<16xf32> to vector<16x1xf32>
    %cst_9 = arith.constant 1.280000e+02 : f32
    %10 = vector.broadcast %cst_9 : f32 to vector<16x1xf32>
    %11 = arith.divf %9, %10 : vector<16x1xf32>
    %12 = vector.broadcast %11 : vector<16x1xf32> to vector<16x128xf32>
    %13 = arith.subf %3, %12 : vector<16x128xf32>
    %14 = arith.mulf %13, %13 : vector<16x128xf32>
    %cst_10 = arith.constant dense<0.000000e+00> : vector<16xf32>
    %15 = vector.multi_reduction <add>, %14, %cst_10 [1] : vector<16x128xf32> to vector<16xf32>
    %16 = vector.shape_cast %15 : vector<16xf32> to vector<16x1xf32>
    %cst_11 = arith.constant 1.280000e+02 : f32
    %17 = vector.broadcast %cst_11 : f32 to vector<16x1xf32>
    %18 = arith.divf %16, %17 : vector<16x1xf32>
    %19 = vector.broadcast %11 : vector<16x1xf32> to vector<16x128xf32>
    %20 = arith.subf %3, %19 : vector<16x128xf32>
    %cst_12 = arith.constant 9.99999974E-6 : f32
    %21 = vector.broadcast %cst_12 : f32 to vector<16x1xf32>
    %22 = arith.addf %18, %21 : vector<16x1xf32>
    %23 = math.rsqrt %22 : vector<16x1xf32>
    %24 = vector.broadcast %23 : vector<16x1xf32> to vector<16x128xf32>
    %25 = arith.mulf %20, %24 : vector<16x128xf32>
    %26 = vector.shape_cast %5 : vector<128xf32> to vector<1x128xf32>
    %27 = vector.broadcast %26 : vector<1x128xf32> to vector<16x128xf32>
    %28 = arith.mulf %25, %27 : vector<16x128xf32>
    %29 = vector.shape_cast %7 : vector<128xf32> to vector<1x128xf32>
    %30 = vector.broadcast %29 : vector<1x128xf32> to vector<16x128xf32>
    %31 = arith.addf %28, %30 : vector<16x128xf32>
    %c0_13 = arith.constant 0 : index
    %c0_14 = arith.constant 0 : index
    %32 = vector.load %arg8[%c0_13, %c0_14] : memref<128x256xf32, #tpu.memory_space<vmem>>, vector<128x256xf32>
    %cst_15 = arith.constant dense<0.000000e+00> : vector<16x256xf32>
    %33 = tpu.matmul %31, %32, %cst_15 {dimension_numbers = #tpu.dot_dimension_numbers<[1], [0], [0], [1], [0, 0, 1, 1], [], []>} : vector<16x128xf32>, vector<128x256xf32>, vector<16x256xf32> -> vector<16x256xf32>
    %c0_16 = arith.constant 0 : index
    %c0_17 = arith.constant 0 : index
    %34 = vector.load %arg9[%c0_16, %c0_17] : memref<1x256xf32, #tpu.memory_space<vmem>>, vector<1x256xf32>
    %35 = vector.shape_cast %34 : vector<1x256xf32> to vector<256xf32>
    %36 = vector.shape_cast %35 : vector<256xf32> to vector<1x256xf32>
    %37 = vector.broadcast %36 : vector<1x256xf32> to vector<16x256xf32>
    %38 = arith.addf %33, %37 : vector<16x256xf32>
    %39 = vector.extract_strided_slice %38 {offsets = [0, 0], sizes = [16, 128], strides = [1, 1]} : vector<16x256xf32> to vector<16x128xf32>
    %40 = vector.extract_strided_slice %38 {offsets = [0, 128], sizes = [16, 128], strides = [1, 1]} : vector<16x256xf32> to vector<16x128xf32>
    %c0_18 = arith.constant 0 : index
    %c0_19 = arith.constant 0 : index
    %41 = vector.load %arg4[%c0_18, %c0_19] : memref<1x128xf32, #tpu.memory_space<vmem>>, vector<1x128xf32>
    %42 = vector.shape_cast %41 : vector<1x128xf32> to vector<128xf32>
    %c0_20 = arith.constant 0 : index
    %c0_21 = arith.constant 0 : index
    %43 = vector.load %arg5[%c0_20, %c0_21] : memref<1x128xf32, #tpu.memory_space<vmem>>, vector<1x128xf32>
    %44 = vector.shape_cast %43 : vector<1x128xf32> to vector<128xf32>
    %cst_22 = arith.constant dense<0.000000e+00> : vector<16xf32>
    %45 = vector.multi_reduction <add>, %1, %cst_22 [1] : vector<16x128xf32> to vector<16xf32>
    %46 = vector.shape_cast %45 : vector<16xf32> to vector<16x1xf32>
    %cst_23 = arith.constant 1.280000e+02 : f32
    %47 = vector.broadcast %cst_23 : f32 to vector<16x1xf32>
    %48 = arith.divf %46, %47 : vector<16x1xf32>
    %49 = vector.broadcast %48 : vector<16x1xf32> to vector<16x128xf32>
    %50 = arith.subf %1, %49 : vector<16x128xf32>
    %51 = arith.mulf %50, %50 : vector<16x128xf32>
    %cst_24 = arith.constant dense<0.000000e+00> : vector<16xf32>
    %52 = vector.multi_reduction <add>, %51, %cst_24 [1] : vector<16x128xf32> to vector<16xf32>
    %53 = vector.shape_cast %52 : vector<16xf32> to vector<16x1xf32>
    %cst_25 = arith.constant 1.280000e+02 : f32
    %54 = vector.broadcast %cst_25 : f32 to vector<16x1xf32>
    %55 = arith.divf %53, %54 : vector<16x1xf32>
    %56 = vector.broadcast %48 : vector<16x1xf32> to vector<16x128xf32>
    %57 = arith.subf %1, %56 : vector<16x128xf32>
    %cst_26 = arith.constant 9.99999974E-6 : f32
    %58 = vector.broadcast %cst_26 : f32 to vector<16x1xf32>
    %59 = arith.addf %55, %58 : vector<16x1xf32>
    %60 = math.rsqrt %59 : vector<16x1xf32>
    %61 = vector.broadcast %60 : vector<16x1xf32> to vector<16x128xf32>
    %62 = arith.mulf %57, %61 : vector<16x128xf32>
    %63 = vector.shape_cast %42 : vector<128xf32> to vector<1x128xf32>
    %64 = vector.broadcast %63 : vector<1x128xf32> to vector<16x128xf32>
    %65 = arith.mulf %62, %64 : vector<16x128xf32>
    %66 = vector.shape_cast %44 : vector<128xf32> to vector<1x128xf32>
    %67 = vector.broadcast %66 : vector<1x128xf32> to vector<16x128xf32>
    %68 = arith.addf %65, %67 : vector<16x128xf32>
    %c0_27 = arith.constant 0 : index
    %c0_28 = arith.constant 0 : index
    %69 = vector.load %arg6[%c0_27, %c0_28] : memref<128x128xf32, #tpu.memory_space<vmem>>, vector<128x128xf32>
    %cst_29 = arith.constant dense<0.000000e+00> : vector<16x128xf32>
    %70 = tpu.matmul %68, %69, %cst_29 {dimension_numbers = #tpu.dot_dimension_numbers<[1], [0], [0], [1], [0, 0, 1, 1], [], []>} : vector<16x128xf32>, vector<128x128xf32>, vector<16x128xf32> -> vector<16x128xf32>
    %c0_30 = arith.constant 0 : index
    %c0_31 = arith.constant 0 : index
    %71 = vector.load %arg7[%c0_30, %c0_31] : memref<1x128xf32, #tpu.memory_space<vmem>>, vector<1x128xf32>
    %72 = vector.shape_cast %71 : vector<1x128xf32> to vector<128xf32>
    %73 = vector.shape_cast %72 : vector<128xf32> to vector<1x128xf32>
    %74 = vector.broadcast %73 : vector<1x128xf32> to vector<16x128xf32>
    %75 = arith.addf %70, %74 : vector<16x128xf32>
    %cst_32 = arith.constant 0.176776692 : f32
    %76 = vector.broadcast %cst_32 : f32 to vector<16x128xf32>
    %77 = arith.mulf %75, %76 : vector<16x128xf32>
    %cst_33 = arith.constant 0.000000e+00 : f32
    %78 = vector.broadcast %cst_33 : f32 to vector<16x128xf32>
    %79 = vector.extract_strided_slice %77 {offsets = [0, 0], sizes = [16, 32], strides = [1, 1]} : vector<16x128xf32> to vector<16x32xf32>
    %80 = vector.extract_strided_slice %39 {offsets = [0, 0], sizes = [16, 32], strides = [1, 1]} : vector<16x128xf32> to vector<16x32xf32>
    %81 = vector.extract_strided_slice %40 {offsets = [0, 0], sizes = [16, 32], strides = [1, 1]} : vector<16x128xf32> to vector<16x32xf32>
    %cst_34 = arith.constant dense<0.000000e+00> : vector<16x16xf32>
    %82 = tpu.matmul %79, %80, %cst_34 {dimension_numbers = #tpu.dot_dimension_numbers<[1], [1], [0], [0], [0, 0, 1, 0], [], []>} : vector<16x32xf32>, vector<16x32xf32>, vector<16x16xf32> -> vector<16x16xf32>
    %cst_35 = arith.constant dense<0xFF800000> : vector<16xf32>
    %83 = vector.multi_reduction <maximumf>, %82, %cst_35 [1] : vector<16x16xf32> to vector<16xf32>
    %84 = vector.shape_cast %83 : vector<16xf32> to vector<16x1xf32>
    %85 = vector.broadcast %84 : vector<16x1xf32> to vector<16x16xf32>
    %86 = arith.subf %82, %85 : vector<16x16xf32>
    %87 = math.exp %86 : vector<16x16xf32>
    %cst_36 = arith.constant dense<0.000000e+00> : vector<16xf32>
    %88 = vector.multi_reduction <add>, %87, %cst_36 [1] : vector<16x16xf32> to vector<16xf32>
    %89 = vector.shape_cast %88 : vector<16xf32> to vector<16x1xf32>
    %90 = tpu.reciprocal %89 {approx = true} : vector<16x1xf32> -> vector<16x1xf32>
    %91 = vector.broadcast %90 : vector<16x1xf32> to vector<16x16xf32>
    %92 = arith.mulf %87, %91 : vector<16x16xf32>
    %cst_37 = arith.constant dense<0.000000e+00> : vector<16x32xf32>
    %93 = tpu.matmul %92, %81, %cst_37 {dimension_numbers = #tpu.dot_dimension_numbers<[1], [0], [0], [1], [0, 0, 1, 1], [], []>} : vector<16x16xf32>, vector<16x32xf32>, vector<16x32xf32> -> vector<16x32xf32>
    %c0_38 = arith.constant 0 : index
    %c0_39 = arith.constant 0 : index
    %94 = vector.load %arg10[%c0_38, %c0_39] : memref<128x128xf32, #tpu.memory_space<vmem>>, vector<32x128xf32>
    %cst_40 = arith.constant dense<0.000000e+00> : vector<16x128xf32>
    %95 = tpu.matmul %93, %94, %cst_40 {dimension_numbers = #tpu.dot_dimension_numbers<[1], [0], [0], [1], [0, 0, 1, 1], [], []>} : vector<16x32xf32>, vector<32x128xf32>, vector<16x128xf32> -> vector<16x128xf32>
    %96 = arith.addf %78, %95 : vector<16x128xf32>
    %97 = vector.extract_strided_slice %77 {offsets = [0, 32], sizes = [16, 32], strides = [1, 1]} : vector<16x128xf32> to vector<16x32xf32>
    %98 = vector.extract_strided_slice %39 {offsets = [0, 32], sizes = [16, 32], strides = [1, 1]} : vector<16x128xf32> to vector<16x32xf32>
    %99 = vector.extract_strided_slice %40 {offsets = [0, 32], sizes = [16, 32], strides = [1, 1]} : vector<16x128xf32> to vector<16x32xf32>
    %cst_41 = arith.constant dense<0.000000e+00> : vector<16x16xf32>
    %100 = tpu.matmul %97, %98, %cst_41 {dimension_numbers = #tpu.dot_dimension_numbers<[1], [1], [0], [0], [0, 0, 1, 0], [], []>} : vector<16x32xf32>, vector<16x32xf32>, vector<16x16xf32> -> vector<16x16xf32>
    %cst_42 = arith.constant dense<0xFF800000> : vector<16xf32>
    %101 = vector.multi_reduction <maximumf>, %100, %cst_42 [1] : vector<16x16xf32> to vector<16xf32>
    %102 = vector.shape_cast %101 : vector<16xf32> to vector<16x1xf32>
    %103 = vector.broadcast %102 : vector<16x1xf32> to vector<16x16xf32>
    %104 = arith.subf %100, %103 : vector<16x16xf32>
    %105 = math.exp %104 : vector<16x16xf32>
    %cst_43 = arith.constant dense<0.000000e+00> : vector<16xf32>
    %106 = vector.multi_reduction <add>, %105, %cst_43 [1] : vector<16x16xf32> to vector<16xf32>
    %107 = vector.shape_cast %106 : vector<16xf32> to vector<16x1xf32>
    %108 = tpu.reciprocal %107 {approx = true} : vector<16x1xf32> -> vector<16x1xf32>
    %109 = vector.broadcast %108 : vector<16x1xf32> to vector<16x16xf32>
    %110 = arith.mulf %105, %109 : vector<16x16xf32>
    %cst_44 = arith.constant dense<0.000000e+00> : vector<16x32xf32>
    %111 = tpu.matmul %110, %99, %cst_44 {dimension_numbers = #tpu.dot_dimension_numbers<[1], [0], [0], [1], [0, 0, 1, 1], [], []>} : vector<16x16xf32>, vector<16x32xf32>, vector<16x32xf32> -> vector<16x32xf32>
    %c32 = arith.constant 32 : index
    %c0_45 = arith.constant 0 : index
    %112 = vector.load %arg10[%c32, %c0_45] : memref<128x128xf32, #tpu.memory_space<vmem>>, vector<32x128xf32>
    %cst_46 = arith.constant dense<0.000000e+00> : vector<16x128xf32>
    %113 = tpu.matmul %111, %112, %cst_46 {dimension_numbers = #tpu.dot_dimension_numbers<[1], [0], [0], [1], [0, 0, 1, 1], [], []>} : vector<16x32xf32>, vector<32x128xf32>, vector<16x128xf32> -> vector<16x128xf32>
    %114 = arith.addf %96, %113 : vector<16x128xf32>
    %115 = vector.extract_strided_slice %77 {offsets = [0, 64], sizes = [16, 32], strides = [1, 1]} : vector<16x128xf32> to vector<16x32xf32>
    %116 = vector.extract_strided_slice %39 {offsets = [0, 64], sizes = [16, 32], strides = [1, 1]} : vector<16x128xf32> to vector<16x32xf32>
    %117 = vector.extract_strided_slice %40 {offsets = [0, 64], sizes = [16, 32], strides = [1, 1]} : vector<16x128xf32> to vector<16x32xf32>
    %cst_47 = arith.constant dense<0.000000e+00> : vector<16x16xf32>
    %118 = tpu.matmul %115, %116, %cst_47 {dimension_numbers = #tpu.dot_dimension_numbers<[1], [1], [0], [0], [0, 0, 1, 0], [], []>} : vector<16x32xf32>, vector<16x32xf32>, vector<16x16xf32> -> vector<16x16xf32>
    %cst_48 = arith.constant dense<0xFF800000> : vector<16xf32>
    %119 = vector.multi_reduction <maximumf>, %118, %cst_48 [1] : vector<16x16xf32> to vector<16xf32>
    %120 = vector.shape_cast %119 : vector<16xf32> to vector<16x1xf32>
    %121 = vector.broadcast %120 : vector<16x1xf32> to vector<16x16xf32>
    %122 = arith.subf %118, %121 : vector<16x16xf32>
    %123 = math.exp %122 : vector<16x16xf32>
    %cst_49 = arith.constant dense<0.000000e+00> : vector<16xf32>
    %124 = vector.multi_reduction <add>, %123, %cst_49 [1] : vector<16x16xf32> to vector<16xf32>
    %125 = vector.shape_cast %124 : vector<16xf32> to vector<16x1xf32>
    %126 = tpu.reciprocal %125 {approx = true} : vector<16x1xf32> -> vector<16x1xf32>
    %127 = vector.broadcast %126 : vector<16x1xf32> to vector<16x16xf32>
    %128 = arith.mulf %123, %127 : vector<16x16xf32>
    %cst_50 = arith.constant dense<0.000000e+00> : vector<16x32xf32>
    %129 = tpu.matmul %128, %117, %cst_50 {dimension_numbers = #tpu.dot_dimension_numbers<[1], [0], [0], [1], [0, 0, 1, 1], [], []>} : vector<16x16xf32>, vector<16x32xf32>, vector<16x32xf32> -> vector<16x32xf32>
    %c64 = arith.constant 64 : index
    %c0_51 = arith.constant 0 : index
    %130 = vector.load %arg10[%c64, %c0_51] : memref<128x128xf32, #tpu.memory_space<vmem>>, vector<32x128xf32>
    %cst_52 = arith.constant dense<0.000000e+00> : vector<16x128xf32>
    %131 = tpu.matmul %129, %130, %cst_52 {dimension_numbers = #tpu.dot_dimension_numbers<[1], [0], [0], [1], [0, 0, 1, 1], [], []>} : vector<16x32xf32>, vector<32x128xf32>, vector<16x128xf32> -> vector<16x128xf32>
    %132 = arith.addf %114, %131 : vector<16x128xf32>
    %133 = vector.extract_strided_slice %77 {offsets = [0, 96], sizes = [16, 32], strides = [1, 1]} : vector<16x128xf32> to vector<16x32xf32>
    %134 = vector.extract_strided_slice %39 {offsets = [0, 96], sizes = [16, 32], strides = [1, 1]} : vector<16x128xf32> to vector<16x32xf32>
    %135 = vector.extract_strided_slice %40 {offsets = [0, 96], sizes = [16, 32], strides = [1, 1]} : vector<16x128xf32> to vector<16x32xf32>
    %cst_53 = arith.constant dense<0.000000e+00> : vector<16x16xf32>
    %136 = tpu.matmul %133, %134, %cst_53 {dimension_numbers = #tpu.dot_dimension_numbers<[1], [1], [0], [0], [0, 0, 1, 0], [], []>} : vector<16x32xf32>, vector<16x32xf32>, vector<16x16xf32> -> vector<16x16xf32>
    %cst_54 = arith.constant dense<0xFF800000> : vector<16xf32>
    %137 = vector.multi_reduction <maximumf>, %136, %cst_54 [1] : vector<16x16xf32> to vector<16xf32>
    %138 = vector.shape_cast %137 : vector<16xf32> to vector<16x1xf32>
    %139 = vector.broadcast %138 : vector<16x1xf32> to vector<16x16xf32>
    %140 = arith.subf %136, %139 : vector<16x16xf32>
    %141 = math.exp %140 : vector<16x16xf32>
    %cst_55 = arith.constant dense<0.000000e+00> : vector<16xf32>
    %142 = vector.multi_reduction <add>, %141, %cst_55 [1] : vector<16x16xf32> to vector<16xf32>
    %143 = vector.shape_cast %142 : vector<16xf32> to vector<16x1xf32>
    %144 = tpu.reciprocal %143 {approx = true} : vector<16x1xf32> -> vector<16x1xf32>
    %145 = vector.broadcast %144 : vector<16x1xf32> to vector<16x16xf32>
    %146 = arith.mulf %141, %145 : vector<16x16xf32>
    %cst_56 = arith.constant dense<0.000000e+00> : vector<16x32xf32>
    %147 = tpu.matmul %146, %135, %cst_56 {dimension_numbers = #tpu.dot_dimension_numbers<[1], [0], [0], [1], [0, 0, 1, 1], [], []>} : vector<16x16xf32>, vector<16x32xf32>, vector<16x32xf32> -> vector<16x32xf32>
    %c96 = arith.constant 96 : index
    %c0_57 = arith.constant 0 : index
    %148 = vector.load %arg10[%c96, %c0_57] : memref<128x128xf32, #tpu.memory_space<vmem>>, vector<32x128xf32>
    %cst_58 = arith.constant dense<0.000000e+00> : vector<16x128xf32>
    %149 = tpu.matmul %147, %148, %cst_58 {dimension_numbers = #tpu.dot_dimension_numbers<[1], [0], [0], [1], [0, 0, 1, 1], [], []>} : vector<16x32xf32>, vector<32x128xf32>, vector<16x128xf32> -> vector<16x128xf32>
    %150 = arith.addf %132, %149 : vector<16x128xf32>
    %151 = arith.addf %1, %150 : vector<16x128xf32>
    %c0_59 = arith.constant 0 : index
    %c0_60 = arith.constant 0 : index
    %152 = vector.load %arg11[%c0_59, %c0_60] : memref<1x128xf32, #tpu.memory_space<vmem>>, vector<1x128xf32>
    %153 = vector.shape_cast %152 : vector<1x128xf32> to vector<128xf32>
    %154 = vector.shape_cast %153 : vector<128xf32> to vector<1x128xf32>
    %155 = vector.broadcast %154 : vector<1x128xf32> to vector<16x128xf32>
    %156 = arith.addf %151, %155 : vector<16x128xf32>
    %c0_61 = arith.constant 0 : index
    %c0_62 = arith.constant 0 : index
    %157 = vector.load %arg12[%c0_61, %c0_62] : memref<1x128xf32, #tpu.memory_space<vmem>>, vector<1x128xf32>
    %158 = vector.shape_cast %157 : vector<1x128xf32> to vector<128xf32>
    %c0_63 = arith.constant 0 : index
    %c0_64 = arith.constant 0 : index
    %159 = vector.load %arg13[%c0_63, %c0_64] : memref<1x128xf32, #tpu.memory_space<vmem>>, vector<1x128xf32>
    %160 = vector.shape_cast %159 : vector<1x128xf32> to vector<128xf32>
    %cst_65 = arith.constant dense<0.000000e+00> : vector<16xf32>
    %161 = vector.multi_reduction <add>, %156, %cst_65 [1] : vector<16x128xf32> to vector<16xf32>
    %162 = vector.shape_cast %161 : vector<16xf32> to vector<16x1xf32>
    %cst_66 = arith.constant 1.280000e+02 : f32
    %163 = vector.broadcast %cst_66 : f32 to vector<16x1xf32>
    %164 = arith.divf %162, %163 : vector<16x1xf32>
    %165 = vector.broadcast %164 : vector<16x1xf32> to vector<16x128xf32>
    %166 = arith.subf %156, %165 : vector<16x128xf32>
    %167 = arith.mulf %166, %166 : vector<16x128xf32>
    %cst_67 = arith.constant dense<0.000000e+00> : vector<16xf32>
    %168 = vector.multi_reduction <add>, %167, %cst_67 [1] : vector<16x128xf32> to vector<16xf32>
    %169 = vector.shape_cast %168 : vector<16xf32> to vector<16x1xf32>
    %cst_68 = arith.constant 1.280000e+02 : f32
    %170 = vector.broadcast %cst_68 : f32 to vector<16x1xf32>
    %171 = arith.divf %169, %170 : vector<16x1xf32>
    %172 = vector.broadcast %164 : vector<16x1xf32> to vector<16x128xf32>
    %173 = arith.subf %156, %172 : vector<16x128xf32>
    %cst_69 = arith.constant 9.99999974E-6 : f32
    %174 = vector.broadcast %cst_69 : f32 to vector<16x1xf32>
    %175 = arith.addf %171, %174 : vector<16x1xf32>
    %176 = math.rsqrt %175 : vector<16x1xf32>
    %177 = vector.broadcast %176 : vector<16x1xf32> to vector<16x128xf32>
    %178 = arith.mulf %173, %177 : vector<16x128xf32>
    %179 = vector.shape_cast %158 : vector<128xf32> to vector<1x128xf32>
    %180 = vector.broadcast %179 : vector<1x128xf32> to vector<16x128xf32>
    %181 = arith.mulf %178, %180 : vector<16x128xf32>
    %182 = vector.shape_cast %160 : vector<128xf32> to vector<1x128xf32>
    %183 = vector.broadcast %182 : vector<1x128xf32> to vector<16x128xf32>
    %184 = arith.addf %181, %183 : vector<16x128xf32>
    %c0_70 = arith.constant 0 : index
    %c0_71 = arith.constant 0 : index
    %185 = vector.load %arg14[%c0_70, %c0_71] : memref<128x256xf32, #tpu.memory_space<vmem>>, vector<128x256xf32>
    %cst_72 = arith.constant dense<0.000000e+00> : vector<16x256xf32>
    %186 = tpu.matmul %184, %185, %cst_72 {dimension_numbers = #tpu.dot_dimension_numbers<[1], [0], [0], [1], [0, 0, 1, 1], [], []>} : vector<16x128xf32>, vector<128x256xf32>, vector<16x256xf32> -> vector<16x256xf32>
    %c0_73 = arith.constant 0 : index
    %c0_74 = arith.constant 0 : index
    %187 = vector.load %arg15[%c0_73, %c0_74] : memref<1x256xf32, #tpu.memory_space<vmem>>, vector<1x256xf32>
    %188 = vector.shape_cast %187 : vector<1x256xf32> to vector<256xf32>
    %189 = vector.shape_cast %188 : vector<256xf32> to vector<1x256xf32>
    %190 = vector.broadcast %189 : vector<1x256xf32> to vector<16x256xf32>
    %191 = arith.addf %186, %190 : vector<16x256xf32>
    %cst_75 = arith.constant 5.000000e-01 : f32
    %192 = vector.broadcast %cst_75 : f32 to vector<16x256xf32>
    %193 = arith.mulf %192, %191 : vector<16x256xf32>
    %cst_76 = arith.constant 4.471500e-02 : f32
    %194 = vector.broadcast %cst_76 : f32 to vector<16x256xf32>
    %195 = arith.mulf %194, %191 : vector<16x256xf32>
    %196 = arith.mulf %195, %191 : vector<16x256xf32>
    %197 = arith.mulf %196, %191 : vector<16x256xf32>
    %198 = arith.addf %191, %197 : vector<16x256xf32>
    %cst_77 = arith.constant 0.797884583 : f32
    %199 = vector.broadcast %cst_77 : f32 to vector<16x256xf32>
    %200 = arith.mulf %199, %198 : vector<16x256xf32>
    %201 = math.tanh %200 : vector<16x256xf32>
    %cst_78 = arith.constant 1.000000e+00 : f32
    %202 = vector.broadcast %cst_78 : f32 to vector<16x256xf32>
    %203 = arith.addf %202, %201 : vector<16x256xf32>
    %204 = arith.mulf %193, %203 : vector<16x256xf32>
    %c0_79 = arith.constant 0 : index
    %c0_80 = arith.constant 0 : index
    %205 = vector.load %arg16[%c0_79, %c0_80] : memref<256x128xf32, #tpu.memory_space<vmem>>, vector<256x128xf32>
    %cst_81 = arith.constant dense<0.000000e+00> : vector<16x128xf32>
    %206 = tpu.matmul %204, %205, %cst_81 {dimension_numbers = #tpu.dot_dimension_numbers<[1], [0], [0], [1], [0, 0, 1, 1], [], []>} : vector<16x256xf32>, vector<256x128xf32>, vector<16x128xf32> -> vector<16x128xf32>
    %c0_82 = arith.constant 0 : index
    %c0_83 = arith.constant 0 : index
    %207 = vector.load %arg17[%c0_82, %c0_83] : memref<1x128xf32, #tpu.memory_space<vmem>>, vector<1x128xf32>
    %208 = vector.shape_cast %207 : vector<1x128xf32> to vector<128xf32>
    %209 = vector.shape_cast %208 : vector<128xf32> to vector<1x128xf32>
    %210 = vector.broadcast %209 : vector<1x128xf32> to vector<16x128xf32>
    %211 = arith.addf %206, %210 : vector<16x128xf32>
    %212 = arith.addf %156, %211 : vector<16x128xf32>
    %c0_84 = arith.constant 0 : index
    %c0_85 = arith.constant 0 : index
    %c0_86 = arith.constant 0 : index
    %213 = vector.load %arg18[%c0_84, %c0_85, %c0_86] : memref<1x16x128xf32, #tpu.memory_space<vmem>>, vector<1x16x128xf32>
    %214 = vector.shape_cast %213 : vector<1x16x128xf32> to vector<16x128xf32>
    %215 = vector.shape_cast %212 : vector<16x128xf32> to vector<1x16x128xf32>
    tpu.vector_store %arg18[%c0_84, %c0_85, %c0_86], %215 {strides = array<i32>} : memref<1x16x128xf32, #tpu.memory_space<vmem>>, vector<1x16x128xf32>,
    return
  }
  func.func @transform_0(%arg0: i32, %arg1: i32) -> (i32, i32, i32) {
    %c0_i32 = arith.constant 0 : i32
    %c0_i32_0 = arith.constant 0 : i32
    return %arg0, %arg1, %c0_i32 : i32, i32, i32
  }
  func.func @transform_1(%arg0: i32, %arg1: i32) -> (i32, i32, i32) {
    %c0_i32 = arith.constant 0 : i32
    %c0_i32_0 = arith.constant 0 : i32
    %c0_i32_1 = arith.constant 0 : i32
    return %arg0, %c0_i32, %c0_i32_0 : i32, i32, i32
  }
  func.func @transform_2(%arg0: i32, %arg1: i32) -> (i32, i32) {
    %c0_i32 = arith.constant 0 : i32
    %c0_i32_0 = arith.constant 0 : i32
    %c0_i32_1 = arith.constant 0 : i32
    return %c0_i32, %c0_i32_0 : i32, i32
  }
  func.func @transform_3(%arg0: i32, %arg1: i32) -> (i32, i32) {
    %c0_i32 = arith.constant 0 : i32
    %c0_i32_0 = arith.constant 0 : i32
    %c0_i32_1 = arith.constant 0 : i32
    return %c0_i32, %c0_i32_0 : i32, i32
  }
  func.func @transform_4(%arg0: i32, %arg1: i32) -> (i32, i32) {
    %c0_i32 = arith.constant 0 : i32
    %c0_i32_0 = arith.constant 0 : i32
    %c0_i32_1 = arith.constant 0 : i32
    return %c0_i32, %c0_i32_0 : i32, i32
  }
  func.func @transform_5(%arg0: i32, %arg1: i32) -> (i32, i32) {
    %c0_i32 = arith.constant 0 : i32
    %c0_i32_0 = arith.constant 0 : i32
    %c0_i32_1 = arith.constant 0 : i32
    return %c0_i32, %c0_i32_0 : i32, i32
  }
  func.func @transform_6(%arg0: i32, %arg1: i32) -> (i32, i32) {
    %c0_i32 = arith.constant 0 : i32
    %c0_i32_0 = arith.constant 0 : i32
    %c0_i32_1 = arith.constant 0 : i32
    return %c0_i32, %c0_i32_0 : i32, i32
  }
  func.func @transform_7(%arg0: i32, %arg1: i32) -> (i32, i32) {
    %c0_i32 = arith.constant 0 : i32
    %c0_i32_0 = arith.constant 0 : i32
    %c0_i32_1 = arith.constant 0 : i32
    return %c0_i32, %c0_i32_0 : i32, i32
  }
  func.func @transform_8(%arg0: i32, %arg1: i32) -> (i32, i32) {
    %c0_i32 = arith.constant 0 : i32
    %c0_i32_0 = arith.constant 0 : i32
    %c0_i32_1 = arith.constant 0 : i32
    return %c0_i32, %c0_i32_0 : i32, i32
  }
  func.func @transform_9(%arg0: i32, %arg1: i32) -> (i32, i32) {
    %c0_i32 = arith.constant 0 : i32
    %c0_i32_0 = arith.constant 0 : i32
    %c0_i32_1 = arith.constant 0 : i32
    return %c0_i32, %c0_i32_0 : i32, i32
  }
  func.func @transform_10(%arg0: i32, %arg1: i32) -> (i32, i32) {
    %c0_i32 = arith.constant 0 : i32
    %c0_i32_0 = arith.constant 0 : i32
    %c0_i32_1 = arith.constant 0 : i32
    return %c0_i32, %c0_i32_0 : i32, i32
  }
  func.func @transform_11(%arg0: i32, %arg1: i32) -> (i32, i32) {
    %c0_i32 = arith.constant 0 : i32
    %c0_i32_0 = arith.constant 0 : i32
    %c0_i32_1 = arith.constant 0 : i32
    return %c0_i32, %c0_i32_0 : i32, i32
  }
  func.func @transform_12(%arg0: i32, %arg1: i32) -> (i32, i32) {
    %c0_i32 = arith.constant 0 : i32
    %c0_i32_0 = arith.constant 0 : i32
    %c0_i32_1 = arith.constant 0 : i32
    return %c0_i32, %c0_i32_0 : i32, i32
  }
  func.func @transform_13(%arg0: i32, %arg1: i32) -> (i32, i32) {
    %c0_i32 = arith.constant 0 : i32
    %c0_i32_0 = arith.constant 0 : i32
    %c0_i32_1 = arith.constant 0 : i32
    return %c0_i32, %c0_i32_0 : i32, i32
  }
  func.func @transform_14(%arg0: i32, %arg1: i32) -> (i32, i32) {
    %c0_i32 = arith.constant 0 : i32
    %c0_i32_0 = arith.constant 0 : i32
    %c0_i32_1 = arith.constant 0 : i32
    return %c0_i32, %c0_i32_0 : i32, i32
  }
  func.func @transform_15(%arg0: i32, %arg1: i32) -> (i32, i32) {
    %c0_i32 = arith.constant 0 : i32
    %c0_i32_0 = arith.constant 0 : i32
    %c0_i32_1 = arith.constant 0 : i32
    return %c0_i32, %c0_i32_0 : i32, i32
  }
  func.func @transform_16(%arg0: i32, %arg1: i32) -> (i32, i32, i32) {
    %c0_i32 = arith.constant 0 : i32
    %c0_i32_0 = arith.constant 0 : i32
    return %arg0, %arg1, %c0_i32 : i32, i32, i32
  }
}

module attributes {stable_mosaic.version = 11 : i64} {
  func.func @encoder_layer_kernel(%arg0: i32, %arg1: i32, %arg2: memref<1x16x128xf32, #tpu.memory_space<vmem>>, %arg3: memref<1x16x128xf32, #tpu.memory_space<vmem>>, %arg4: memref<1x128xf32, #tpu.memory_space<vmem>>, %arg5: memref<1x128xf32, #tpu.memory_space<vmem>>, %arg6: memref<128x128xf32, #tpu.memory_space<vmem>>, %arg7: memref<1x128xf32, #tpu.memory_space<vmem>>, %arg8: memref<128x256xf32, #tpu.memory_space<vmem>>, %arg9: memref<1x256xf32, #tpu.memory_space<vmem>>, %arg10: memref<128x128xf32, #tpu.memory_space<vmem>>, %arg11: memref<1x128xf32, #tpu.memory_space<vmem>>, %arg12: memref<1x128xf32, #tpu.memory_space<vmem>>, %arg13: memref<1x128xf32, #tpu.memory_space<vmem>>, %arg14: memref<128x256xf32, #tpu.memory_space<vmem>>, %arg15: memref<1x256xf32, #tpu.memory_space<vmem>>, %arg16: memref<256x128xf32, #tpu.memory_space<vmem>>, %arg17: memref<1x128xf32, #tpu.memory_space<vmem>>, %arg18: memref<1x16x128xf32, #tpu.memory_space<vmem>>) attributes {dimension_semantics = [#tpu.dimension_semantics<parallel>, #tpu.dimension_semantics<parallel>], iteration_bounds = array<i64: 2, 1>, scalar_prefetch = 0 : i64, scratch_operands = 0 : i64, tpu.core_type = #tpu.core_type<tc>, window_params = [{transform_indices = @transform_0, window_bounds = array<i64: 1, 16, 128>}, {transform_indices = @transform_1, window_bounds = array<i64: 1, 16, 128>}, {pipeline_mode = #tpu.pipeline_mode<synchronous>, transform_indices = @transform_2, window_bounds = array<i64: 1, 128>}, {pipeline_mode = #tpu.pipeline_mode<synchronous>, transform_indices = @transform_3, window_bounds = array<i64: 1, 128>}, {pipeline_mode = #tpu.pipeline_mode<synchronous>, transform_indices = @transform_4, window_bounds = array<i64: 128, 128>}, {pipeline_mode = #tpu.pipeline_mode<synchronous>, transform_indices = @transform_5, window_bounds = array<i64: 1, 128>}, {pipeline_mode = #tpu.pipeline_mode<synchronous>, transform_indices = @transform_6, window_bounds = array<i64: 128, 256>}, {pipeline_mode = #tpu.pipeline_mode<synchronous>, transform_indices = @transform_7, window_bounds = array<i64: 1, 256>}, {pipeline_mode = #tpu.pipeline_mode<synchronous>, transform_indices = @transform_8, window_bounds = array<i64: 128, 128>}, {pipeline_mode = #tpu.pipeline_mode<synchronous>, transform_indices = @transform_9, window_bounds = array<i64: 1, 128>}, {pipeline_mode = #tpu.pipeline_mode<synchronous>, transform_indices = @transform_10, window_bounds = array<i64: 1, 128>}, {pipeline_mode = #tpu.pipeline_mode<synchronous>, transform_indices = @transform_11, window_bounds = array<i64: 1, 128>}, {pipeline_mode = #tpu.pipeline_mode<synchronous>, transform_indices = @transform_12, window_bounds = array<i64: 128, 256>}, {pipeline_mode = #tpu.pipeline_mode<synchronous>, transform_indices = @transform_13, window_bounds = array<i64: 1, 256>}, {pipeline_mode = #tpu.pipeline_mode<synchronous>, transform_indices = @transform_14, window_bounds = array<i64: 256, 128>}, {pipeline_mode = #tpu.pipeline_mode<synchronous>, transform_indices = @transform_15, window_bounds = array<i64: 1, 128>}, {transform_indices = @transform_16, window_bounds = array<i64: 1, 16, 128>}]} {
    %c0 = arith.constant 0 : index
    %c0_0 = arith.constant 0 : index
    %c0_1 = arith.constant 0 : index
    %0 = vector.load %arg2[%c0, %c0_0, %c0_1] : memref<1x16x128xf32, #tpu.memory_space<vmem>>, vector<1x16x128xf32>
    %1 = vector.shape_cast %0 : vector<1x16x128xf32> to vector<16x128xf32>
    %c0_2 = arith.constant 0 : index
    %c0_3 = arith.constant 0 : index
    %c0_4 = arith.constant 0 : index
    %2 = vector.load %arg3[%c0_2, %c0_3, %c0_4] : memref<1x16x128xf32, #tpu.memory_space<vmem>>, vector<1x16x128xf32>
    %3 = vector.shape_cast %2 : vector<1x16x128xf32> to vector<16x128xf32>
    %c0_5 = arith.constant 0 : index
    %c0_6 = arith.constant 0 : index
    %4 = vector.load %arg4[%c0_5, %c0_6] : memref<1x128xf32, #tpu.memory_space<vmem>>, vector<1x128xf32>
    %5 = vector.shape_cast %4 : vector<1x128xf32> to vector<128xf32>
    %c0_7 = arith.constant 0 : index
    %c0_8 = arith.constant 0 : index
    %6 = vector.load %arg5[%c0_7, %c0_8] : memref<1x128xf32, #tpu.memory_space<vmem>>, vector<1x128xf32>
    %7 = vector.shape_cast %6 : vector<1x128xf32> to vector<128xf32>
    %cst = arith.constant dense<0.000000e+00> : vector<16xf32>
    %8 = vector.multi_reduction <add>, %3, %cst [1] : vector<16x128xf32> to vector<16xf32>
    %9 = vector.shape_cast %8 : vector<16xf32> to vector<16x1xf32>
    %cst_9 = arith.constant 1.280000e+02 : f32
    %10 = vector.broadcast %cst_9 : f32 to vector<16x1xf32>
    %11 = arith.divf %9, %10 : vector<16x1xf32>
    %12 = vector.broadcast %11 : vector<16x1xf32> to vector<16x128xf32>
    %13 = arith.subf %3, %12 : vector<16x128xf32>
    %14 = arith.mulf %13, %13 : vector<16x128xf32>
    %cst_10 = arith.constant dense<0.000000e+00> : vector<16xf32>
    %15 = vector.multi_reduction <add>, %14, %cst_10 [1] : vector<16x128xf32> to vector<16xf32>
    %16 = vector.shape_cast %15 : vector<16xf32> to vector<16x1xf32>
    %cst_11 = arith.constant 1.280000e+02 : f32
    %17 = vector.broadcast %cst_11 : f32 to vector<16x1xf32>
    %18 = arith.divf %16, %17 : vector<16x1xf32>
    %19 = vector.broadcast %11 : vector<16x1xf32> to vector<16x128xf32>
    %20 = arith.subf %3, %19 : vector<16x128xf32>
    %cst_12 = arith.constant 9.99999974E-6 : f32
    %21 = vector.broadcast %cst_12 : f32 to vector<16x1xf32>
    %22 = arith.addf %18, %21 : vector<16x1xf32>
    %23 = math.rsqrt %22 : vector<16x1xf32>
    %24 = vector.broadcast %23 : vector<16x1xf32> to vector<16x128xf32>
    %25 = arith.mulf %20, %24 : vector<16x128xf32>
    %26 = vector.shape_cast %5 : vector<128xf32> to vector<1x128xf32>
    %27 = vector.broadcast %26 : vector<1x128xf32> to vector<16x128xf32>
    %28 = arith.mulf %25, %27 : vector<16x128xf32>
    %29 = vector.shape_cast %7 : vector<128xf32> to vector<1x128xf32>
    %30 = vector.broadcast %29 : vector<1x128xf32> to vector<16x128xf32>
    %31 = arith.addf %28, %30 : vector<16x128xf32>
    %c0_13 = arith.constant 0 : index
    %c0_14 = arith.constant 0 : index
    %32 = vector.load %arg8[%c0_13, %c0_14] : memref<128x256xf32, #tpu.memory_space<vmem>>, vector<128x256xf32>
    %cst_15 = arith.constant dense<0.000000e+00> : vector<16x256xf32>
    %33 = tpu.matmul %31, %32, %cst_15 {dimension_numbers = #tpu.dot_dimension_numbers<[1], [0], [0], [1], [0, 0, 1, 1], [], []>} : vector<16x128xf32>, vector<128x256xf32>, vector<16x256xf32> -> vector<16x256xf32>
    %c0_16 = arith.constant 0 : index
    %c0_17 = arith.constant 0 : index
    %34 = vector.load %arg9[%c0_16, %c0_17] : memref<1x256xf32, #tpu.memory_space<vmem>>, vector<1x256xf32>
    %35 = vector.shape_cast %34 : vector<1x256xf32> to vector<256xf32>
    %36 = vector.shape_cast %35 : vector<256xf32> to vector<1x256xf32>
    %37 = vector.broadcast %36 : vector<1x256xf32> to vector<16x256xf32>
    %38 = arith.addf %33, %37 : vector<16x256xf32>
    %39 = vector.extract_strided_slice %38 {offsets = [0, 0], sizes = [16, 128], strides = [1, 1]} : vector<16x256xf32> to vector<16x128xf32>
    %40 = vector.extract_strided_slice %38 {offsets = [0, 128], sizes = [16, 128], strides = [1, 1]} : vector<16x256xf32> to vector<16x128xf32>
    %c0_18 = arith.constant 0 : index
    %c0_19 = arith.constant 0 : index
    %41 = vector.load %arg4[%c0_18, %c0_19] : memref<1x128xf32, #tpu.memory_space<vmem>>, vector<1x128xf32>
    %42 = vector.shape_cast %41 : vector<1x128xf32> to vector<128xf32>
    %c0_20 = arith.constant 0 : index
    %c0_21 = arith.constant 0 : index
    %43 = vector.load %arg5[%c0_20, %c0_21] : memref<1x128xf32, #tpu.memory_space<vmem>>, vector<1x128xf32>
    %44 = vector.shape_cast %43 : vector<1x128xf32> to vector<128xf32>
    %cst_22 = arith.constant dense<0.000000e+00> : vector<16xf32>
    %45 = vector.multi_reduction <add>, %1, %cst_22 [1] : vector<16x128xf32> to vector<16xf32>
    %46 = vector.shape_cast %45 : vector<16xf32> to vector<16x1xf32>
    %cst_23 = arith.constant 1.280000e+02 : f32
    %47 = vector.broadcast %cst_23 : f32 to vector<16x1xf32>
    %48 = arith.divf %46, %47 : vector<16x1xf32>
    %49 = vector.broadcast %48 : vector<16x1xf32> to vector<16x128xf32>
    %50 = arith.subf %1, %49 : vector<16x128xf32>
    %51 = arith.mulf %50, %50 : vector<16x128xf32>
    %cst_24 = arith.constant dense<0.000000e+00> : vector<16xf32>
    %52 = vector.multi_reduction <add>, %51, %cst_24 [1] : vector<16x128xf32> to vector<16xf32>
    %53 = vector.shape_cast %52 : vector<16xf32> to vector<16x1xf32>
    %cst_25 = arith.constant 1.280000e+02 : f32
    %54 = vector.broadcast %cst_25 : f32 to vector<16x1xf32>
    %55 = arith.divf %53, %54 : vector<16x1xf32>
    %56 = vector.broadcast %48 : vector<16x1xf32> to vector<16x128xf32>
    %57 = arith.subf %1, %56 : vector<16x128xf32>
    %cst_26 = arith.constant 9.99999974E-6 : f32
    %58 = vector.broadcast %cst_26 : f32 to vector<16x1xf32>
    %59 = arith.addf %55, %58 : vector<16x1xf32>
    %60 = math.rsqrt %59 : vector<16x1xf32>
    %61 = vector.broadcast %60 : vector<16x1xf32> to vector<16x128xf32>
    %62 = arith.mulf %57, %61 : vector<16x128xf32>
    %63 = vector.shape_cast %42 : vector<128xf32> to vector<1x128xf32>
    %64 = vector.broadcast %63 : vector<1x128xf32> to vector<16x128xf32>
    %65 = arith.mulf %62, %64 : vector<16x128xf32>
    %66 = vector.shape_cast %44 : vector<128xf32> to vector<1x128xf32>
    %67 = vector.broadcast %66 : vector<1x128xf32> to vector<16x128xf32>
    %68 = arith.addf %65, %67 : vector<16x128xf32>
    %c0_27 = arith.constant 0 : index
    %c0_28 = arith.constant 0 : index
    %69 = vector.load %arg6[%c0_27, %c0_28] : memref<128x128xf32, #tpu.memory_space<vmem>>, vector<128x128xf32>
    %cst_29 = arith.constant dense<0.000000e+00> : vector<16x128xf32>
    %70 = tpu.matmul %68, %69, %cst_29 {dimension_numbers = #tpu.dot_dimension_numbers<[1], [0], [0], [1], [0, 0, 1, 1], [], []>} : vector<16x128xf32>, vector<128x128xf32>, vector<16x128xf32> -> vector<16x128xf32>
    %c0_30 = arith.constant 0 : index
    %c0_31 = arith.constant 0 : index
    %71 = vector.load %arg7[%c0_30, %c0_31] : memref<1x128xf32, #tpu.memory_space<vmem>>, vector<1x128xf32>
    %72 = vector.shape_cast %71 : vector<1x128xf32> to vector<128xf32>
    %73 = vector.shape_cast %72 : vector<128xf32> to vector<1x128xf32>
    %74 = vector.broadcast %73 : vector<1x128xf32> to vector<16x128xf32>
    %75 = arith.addf %70, %74 : vector<16x128xf32>
    %cst_32 = arith.constant 0.176776692 : f32
    %76 = vector.broadcast %cst_32 : f32 to vector<16x128xf32>
    %77 = arith.mulf %75, %76 : vector<16x128xf32>
    %cst_33 = arith.constant 0.000000e+00 : f32
    %78 = vector.broadcast %cst_33 : f32 to vector<16x128xf32>
    %79 = vector.extract_strided_slice %77 {offsets = [0, 0], sizes = [16, 32], strides = [1, 1]} : vector<16x128xf32> to vector<16x32xf32>
    %80 = vector.extract_strided_slice %39 {offsets = [0, 0], sizes = [16, 32], strides = [1, 1]} : vector<16x128xf32> to vector<16x32xf32>
    %81 = vector.extract_strided_slice %40 {offsets = [0, 0], sizes = [16, 32], strides = [1, 1]} : vector<16x128xf32> to vector<16x32xf32>
    %cst_34 = arith.constant dense<0.000000e+00> : vector<16x16xf32>
    %82 = tpu.matmul %79, %80, %cst_34 {dimension_numbers = #tpu.dot_dimension_numbers<[1], [1], [0], [0], [0, 0, 1, 0], [], []>} : vector<16x32xf32>, vector<16x32xf32>, vector<16x16xf32> -> vector<16x16xf32>
    %cst_35 = arith.constant dense<0xFF800000> : vector<16xf32>
    %83 = vector.multi_reduction <maximumf>, %82, %cst_35 [1] : vector<16x16xf32> to vector<16xf32>
    %84 = vector.shape_cast %83 : vector<16xf32> to vector<16x1xf32>
    %85 = vector.broadcast %84 : vector<16x1xf32> to vector<16x16xf32>
    %86 = arith.subf %82, %85 : vector<16x16xf32>
    %87 = math.exp %86 : vector<16x16xf32>
    %cst_36 = arith.constant dense<0.000000e+00> : vector<16xf32>
    %88 = vector.multi_reduction <add>, %87, %cst_36 [1] : vector<16x16xf32> to vector<16xf32>
    %89 = vector.shape_cast %88 : vector<16xf32> to vector<16x1xf32>
    %90 = tpu.reciprocal %89 {approx = true} : vector<16x1xf32> -> vector<16x1xf32>
    %91 = vector.broadcast %90 : vector<16x1xf32> to vector<16x16xf32>
    %92 = arith.mulf %87, %91 : vector<16x16xf32>
    %cst_37 = arith.constant dense<0.000000e+00> : vector<16x32xf32>
    %93 = tpu.matmul %92, %81, %cst_37 {dimension_numbers = #tpu.dot_dimension_numbers<[1], [0], [0], [1], [0, 0, 1, 1], [], []>} : vector<16x16xf32>, vector<16x32xf32>, vector<16x32xf32> -> vector<16x32xf32>
    %c0_38 = arith.constant 0 : index
    %c0_39 = arith.constant 0 : index
    %94 = vector.load %arg10[%c0_38, %c0_39] : memref<128x128xf32, #tpu.memory_space<vmem>>, vector<32x128xf32>
    %cst_40 = arith.constant dense<0.000000e+00> : vector<16x128xf32>
    %95 = tpu.matmul %93, %94, %cst_40 {dimension_numbers = #tpu.dot_dimension_numbers<[1], [0], [0], [1], [0, 0, 1, 1], [], []>} : vector<16x32xf32>, vector<32x128xf32>, vector<16x128xf32> -> vector<16x128xf32>
    %96 = arith.addf %78, %95 : vector<16x128xf32>
    %97 = vector.extract_strided_slice %77 {offsets = [0, 32], sizes = [16, 32], strides = [1, 1]} : vector<16x128xf32> to vector<16x32xf32>
    %98 = vector.extract_strided_slice %39 {offsets = [0, 32], sizes = [16, 32], strides = [1, 1]} : vector<16x128xf32> to vector<16x32xf32>
    %99 = vector.extract_strided_slice %40 {offsets = [0, 32], sizes = [16, 32], strides = [1, 1]} : vector<16x128xf32> to vector<16x32xf32>
    %cst_41 = arith.constant dense<0.000000e+00> : vector<16x16xf32>
    %100 = tpu.matmul %97, %98, %cst_41 {dimension_numbers = #tpu.dot_dimension_numbers<[1], [1], [0], [0], [0, 0, 1, 0], [], []>} : vector<16x32xf32>, vector<16x32xf32>, vector<16x16xf32> -> vector<16x16xf32>
    %cst_42 = arith.constant dense<0xFF800000> : vector<16xf32>
    %101 = vector.multi_reduction <maximumf>, %100, %cst_42 [1] : vector<16x16xf32> to vector<16xf32>
    %102 = vector.shape_cast %101 : vector<16xf32> to vector<16x1xf32>
    %103 = vector.broadcast %102 : vector<16x1xf32> to vector<16x16xf32>
    %104 = arith.subf %100, %103 : vector<16x16xf32>
    %105 = math.exp %104 : vector<16x16xf32>
    %cst_43 = arith.constant dense<0.000000e+00> : vector<16xf32>
    %106 = vector.multi_reduction <add>, %105, %cst_43 [1] : vector<16x16xf32> to vector<16xf32>
    %107 = vector.shape_cast %106 : vector<16xf32> to vector<16x1xf32>
    %108 = tpu.reciprocal %107 {approx = true} : vector<16x1xf32> -> vector<16x1xf32>
    %109 = vector.broadcast %108 : vector<16x1xf32> to vector<16x16xf32>
    %110 = arith.mulf %105, %109 : vector<16x16xf32>
    %cst_44 = arith.constant dense<0.000000e+00> : vector<16x32xf32>
    %111 = tpu.matmul %110, %99, %cst_44 {dimension_numbers = #tpu.dot_dimension_numbers<[1], [0], [0], [1], [0, 0, 1, 1], [], []>} : vector<16x16xf32>, vector<16x32xf32>, vector<16x32xf32> -> vector<16x32xf32>
    %c32 = arith.constant 32 : index
    %c0_45 = arith.constant 0 : index
    %112 = vector.load %arg10[%c32, %c0_45] : memref<128x128xf32, #tpu.memory_space<vmem>>, vector<32x128xf32>
    %cst_46 = arith.constant dense<0.000000e+00> : vector<16x128xf32>
    %113 = tpu.matmul %111, %112, %cst_46 {dimension_numbers = #tpu.dot_dimension_numbers<[1], [0], [0], [1], [0, 0, 1, 1], [], []>} : vector<16x32xf32>, vector<32x128xf32>, vector<16x128xf32> -> vector<16x128xf32>
    %114 = arith.addf %96, %113 : vector<16x128xf32>
    %115 = vector.extract_strided_slice %77 {offsets = [0, 64], sizes = [16, 32], strides = [1, 1]} : vector<16x128xf32> to vector<16x32xf32>
    %116 = vector.extract_strided_slice %39 {offsets = [0, 64], sizes = [16, 32], strides = [1, 1]} : vector<16x128xf32> to vector<16x32xf32>
    %117 = vector.extract_strided_slice %40 {offsets = [0, 64], sizes = [16, 32], strides = [1, 1]} : vector<16x128xf32> to vector<16x32xf32>
    %cst_47 = arith.constant dense<0.000000e+00> : vector<16x16xf32>
    %118 = tpu.matmul %115, %116, %cst_47 {dimension_numbers = #tpu.dot_dimension_numbers<[1], [1], [0], [0], [0, 0, 1, 0], [], []>} : vector<16x32xf32>, vector<16x32xf32>, vector<16x16xf32> -> vector<16x16xf32>
    %cst_48 = arith.constant dense<0xFF800000> : vector<16xf32>
    %119 = vector.multi_reduction <maximumf>, %118, %cst_48 [1] : vector<16x16xf32> to vector<16xf32>
    %120 = vector.shape_cast %119 : vector<16xf32> to vector<16x1xf32>
    %121 = vector.broadcast %120 : vector<16x1xf32> to vector<16x16xf32>
    %122 = arith.subf %118, %121 : vector<16x16xf32>
    %123 = math.exp %122 : vector<16x16xf32>
    %cst_49 = arith.constant dense<0.000000e+00> : vector<16xf32>
    %124 = vector.multi_reduction <add>, %123, %cst_49 [1] : vector<16x16xf32> to vector<16xf32>
    %125 = vector.shape_cast %124 : vector<16xf32> to vector<16x1xf32>
    %126 = tpu.reciprocal %125 {approx = true} : vector<16x1xf32> -> vector<16x1xf32>
    %127 = vector.broadcast %126 : vector<16x1xf32> to vector<16x16xf32>
    %128 = arith.mulf %123, %127 : vector<16x16xf32>
    %cst_50 = arith.constant dense<0.000000e+00> : vector<16x32xf32>
    %129 = tpu.matmul %128, %117, %cst_50 {dimension_numbers = #tpu.dot_dimension_numbers<[1], [0], [0], [1], [0, 0, 1, 1], [], []>} : vector<16x16xf32>, vector<16x32xf32>, vector<16x32xf32> -> vector<16x32xf32>
    %c64 = arith.constant 64 : index
    %c0_51 = arith.constant 0 : index
    %130 = vector.load %arg10[%c64, %c0_51] : memref<128x128xf32, #tpu.memory_space<vmem>>, vector<32x128xf32>
    %cst_52 = arith.constant dense<0.000000e+00> : vector<16x128xf32>
    %131 = tpu.matmul %129, %130, %cst_52 {dimension_numbers = #tpu.dot_dimension_numbers<[1], [0], [0], [1], [0, 0, 1, 1], [], []>} : vector<16x32xf32>, vector<32x128xf32>, vector<16x128xf32> -> vector<16x128xf32>
    %132 = arith.addf %114, %131 : vector<16x128xf32>
    %133 = vector.extract_strided_slice %77 {offsets = [0, 96], sizes = [16, 32], strides = [1, 1]} : vector<16x128xf32> to vector<16x32xf32>
    %134 = vector.extract_strided_slice %39 {offsets = [0, 96], sizes = [16, 32], strides = [1, 1]} : vector<16x128xf32> to vector<16x32xf32>
    %135 = vector.extract_strided_slice %40 {offsets = [0, 96], sizes = [16, 32], strides = [1, 1]} : vector<16x128xf32> to vector<16x32xf32>
    %cst_53 = arith.constant dense<0.000000e+00> : vector<16x16xf32>
    %136 = tpu.matmul %133, %134, %cst_53 {dimension_numbers = #tpu.dot_dimension_numbers<[1], [1], [0], [0], [0, 0, 1, 0], [], []>} : vector<16x32xf32>, vector<16x32xf32>, vector<16x16xf32> -> vector<16x16xf32>
    %cst_54 = arith.constant dense<0xFF800000> : vector<16xf32>
    %137 = vector.multi_reduction <maximumf>, %136, %cst_54 [1] : vector<16x16xf32> to vector<16xf32>
    %138 = vector.shape_cast %137 : vector<16xf32> to vector<16x1xf32>
    %139 = vector.broadcast %138 : vector<16x1xf32> to vector<16x16xf32>
    %140 = arith.subf %136, %139 : vector<16x16xf32>
    %141 = math.exp %140 : vector<16x16xf32>
    %cst_55 = arith.constant dense<0.000000e+00> : vector<16xf32>
    %142 = vector.multi_reduction <add>, %141, %cst_55 [1] : vector<16x16xf32> to vector<16xf32>
    %143 = vector.shape_cast %142 : vector<16xf32> to vector<16x1xf32>
    %144 = tpu.reciprocal %143 {approx = true} : vector<16x1xf32> -> vector<16x1xf32>
    %145 = vector.broadcast %144 : vector<16x1xf32> to vector<16x16xf32>
    %146 = arith.mulf %141, %145 : vector<16x16xf32>
    %cst_56 = arith.constant dense<0.000000e+00> : vector<16x32xf32>
    %147 = tpu.matmul %146, %135, %cst_56 {dimension_numbers = #tpu.dot_dimension_numbers<[1], [0], [0], [1], [0, 0, 1, 1], [], []>} : vector<16x16xf32>, vector<16x32xf32>, vector<16x32xf32> -> vector<16x32xf32>
    %c96 = arith.constant 96 : index
    %c0_57 = arith.constant 0 : index
    %148 = vector.load %arg10[%c96, %c0_57] : memref<128x128xf32, #tpu.memory_space<vmem>>, vector<32x128xf32>
    %cst_58 = arith.constant dense<0.000000e+00> : vector<16x128xf32>
    %149 = tpu.matmul %147, %148, %cst_58 {dimension_numbers = #tpu.dot_dimension_numbers<[1], [0], [0], [1], [0, 0, 1, 1], [], []>} : vector<16x32xf32>, vector<32x128xf32>, vector<16x128xf32> -> vector<16x128xf32>
    %150 = arith.addf %132, %149 : vector<16x128xf32>
    %151 = arith.addf %1, %150 : vector<16x128xf32>
    %c0_59 = arith.constant 0 : index
    %c0_60 = arith.constant 0 : index
    %152 = vector.load %arg11[%c0_59, %c0_60] : memref<1x128xf32, #tpu.memory_space<vmem>>, vector<1x128xf32>
    %153 = vector.shape_cast %152 : vector<1x128xf32> to vector<128xf32>
    %154 = vector.shape_cast %153 : vector<128xf32> to vector<1x128xf32>
    %155 = vector.broadcast %154 : vector<1x128xf32> to vector<16x128xf32>
    %156 = arith.addf %151, %155 : vector<16x128xf32>
    %c0_61 = arith.constant 0 : index
    %c0_62 = arith.constant 0 : index
    %157 = vector.load %arg12[%c0_61, %c0_62] : memref<1x128xf32, #tpu.memory_space<vmem>>, vector<1x128xf32>
    %158 = vector.shape_cast %157 : vector<1x128xf32> to vector<128xf32>
    %c0_63 = arith.constant 0 : index
    %c0_64 = arith.constant 0 : index
    %159 = vector.load %arg13[%c0_63, %c0_64] : memref<1x128xf32, #tpu.memory_space<vmem>>, vector<1x128xf32>
    %160 = vector.shape_cast %159 : vector<1x128xf32> to vector<128xf32>
    %cst_65 = arith.constant dense<0.000000e+00> : vector<16xf32>
    %161 = vector.multi_reduction <add>, %156, %cst_65 [1] : vector<16x128xf32> to vector<16xf32>
    %162 = vector.shape_cast %161 : vector<16xf32> to vector<16x1xf32>
    %cst_66 = arith.constant 1.280000e+02 : f32
    %163 = vector.broadcast %cst_66 : f32 to vector<16x1xf32>
    %164 = arith.divf %162, %163 : vector<16x1xf32>
    %165 = vector.broadcast %164 : vector<16x1xf32> to vector<16x128xf32>
    %166 = arith.subf %156, %165 : vector<16x128xf32>
    %167 = arith.mulf %166, %166 : vector<16x128xf32>
    %cst_67 = arith.constant dense<0.000000e+00> : vector<16xf32>
    %168 = vector.multi_reduction <add>, %167, %cst_67 [1] : vector<16x128xf32> to vector<16xf32>
    %169 = vector.shape_cast %168 : vector<16xf32> to vector<16x1xf32>
    %cst_68 = arith.constant 1.280000e+02 : f32
    %170 = vector.broadcast %cst_68 : f32 to vector<16x1xf32>
    %171 = arith.divf %169, %170 : vector<16x1xf32>
    %172 = vector.broadcast %164 : vector<16x1xf32> to vector<16x128xf32>
    %173 = arith.subf %156, %172 : vector<16x128xf32>
    %cst_69 = arith.constant 9.99999974E-6 : f32
    %174 = vector.broadcast %cst_69 : f32 to vector<16x1xf32>
    %175 = arith.addf %171, %174 : vector<16x1xf32>
    %176 = math.rsqrt %175 : vector<16x1xf32>
    %177 = vector.broadcast %176 : vector<16x1xf32> to vector<16x128xf32>
    %178 = arith.mulf %173, %177 : vector<16x128xf32>
    %179 = vector.shape_cast %158 : vector<128xf32> to vector<1x128xf32>
    %180 = vector.broadcast %179 : vector<1x128xf32> to vector<16x128xf32>
    %181 = arith.mulf %178, %180 : vector<16x128xf32>
    %182 = vector.shape_cast %160 : vector<128xf32> to vector<1x128xf32>
    %183 = vector.broadcast %182 : vector<1x128xf32> to vector<16x128xf32>
    %184 = arith.addf %181, %183 : vector<16x128xf32>
    %c0_70 = arith.constant 0 : index
    %c0_71 = arith.constant 0 : index
    %185 = vector.load %arg14[%c0_70, %c0_71] : memref<128x256xf32, #tpu.memory_space<vmem>>, vector<128x256xf32>
    %cst_72 = arith.constant dense<0.000000e+00> : vector<16x256xf32>
    %186 = tpu.matmul %184, %185, %cst_72 {dimension_numbers = #tpu.dot_dimension_numbers<[1], [0], [0], [1], [0, 0, 1, 1], [], []>} : vector<16x128xf32>, vector<128x256xf32>, vector<16x256xf32> -> vector<16x256xf32>
    %c0_73 = arith.constant 0 : index
    %c0_74 = arith.constant 0 : index
    %187 = vector.load %arg15[%c0_73, %c0_74] : memref<1x256xf32, #tpu.memory_space<vmem>>, vector<1x256xf32>
    %188 = vector.shape_cast %187 : vector<1x256xf32> to vector<256xf32>
    %189 = vector.shape_cast %188 : vector<256xf32> to vector<1x256xf32>
    %190 = vector.broadcast %189 : vector<1x256xf32> to vector<16x256xf32>
    %191 = arith.addf %186, %190 : vector<16x256xf32>
    %cst_75 = arith.constant 5.000000e-01 : f32
    %192 = vector.broadcast %cst_75 : f32 to vector<16x256xf32>
    %193 = arith.mulf %192, %191 : vector<16x256xf32>
    %cst_76 = arith.constant 4.471500e-02 : f32
    %194 = vector.broadcast %cst_76 : f32 to vector<16x256xf32>
    %195 = arith.mulf %194, %191 : vector<16x256xf32>
    %196 = arith.mulf %195, %191 : vector<16x256xf32>
    %197 = arith.mulf %196, %191 : vector<16x256xf32>
    %198 = arith.addf %191, %197 : vector<16x256xf32>
    %cst_77 = arith.constant 0.797884583 : f32
    %199 = vector.broadcast %cst_77 : f32 to vector<16x256xf32>
    %200 = arith.mulf %199, %198 : vector<16x256xf32>
    %201 = math.tanh %200 : vector<16x256xf32>
    %cst_78 = arith.constant 1.000000e+00 : f32
    %202 = vector.broadcast %cst_78 : f32 to vector<16x256xf32>
    %203 = arith.addf %202, %201 : vector<16x256xf32>
    %204 = arith.mulf %193, %203 : vector<16x256xf32>
    %c0_79 = arith.constant 0 : index
    %c0_80 = arith.constant 0 : index
    %205 = vector.load %arg16[%c0_79, %c0_80] : memref<256x128xf32, #tpu.memory_space<vmem>>, vector<256x128xf32>
    %cst_81 = arith.constant dense<0.000000e+00> : vector<16x128xf32>
    %206 = tpu.matmul %204, %205, %cst_81 {dimension_numbers = #tpu.dot_dimension_numbers<[1], [0], [0], [1], [0, 0, 1, 1], [], []>} : vector<16x256xf32>, vector<256x128xf32>, vector<16x128xf32> -> vector<16x128xf32>
    %c0_82 = arith.constant 0 : index
    %c0_83 = arith.constant 0 : index
    %207 = vector.load %arg17[%c0_82, %c0_83] : memref<1x128xf32, #tpu.memory_space<vmem>>, vector<1x128xf32>
    %208 = vector.shape_cast %207 : vector<1x128xf32> to vector<128xf32>
    %209 = vector.shape_cast %208 : vector<128xf32> to vector<1x128xf32>
    %210 = vector.broadcast %209 : vector<1x128xf32> to vector<16x128xf32>
    %211 = arith.addf %206, %210 : vector<16x128xf32>
    %212 = arith.addf %156, %211 : vector<16x128xf32>
    %c0_84 = arith.constant 0 : index
    %c0_85 = arith.constant 0 : index
    %c0_86 = arith.constant 0 : index
    %213 = vector.load %arg18[%c0_84, %c0_85, %c0_86] : memref<1x16x128xf32, #tpu.memory_space<vmem>>, vector<1x16x128xf32>
    %214 = vector.shape_cast %213 : vector<1x16x128xf32> to vector<16x128xf32>
    %215 = vector.shape_cast %212 : vector<16x128xf32> to vector<1x16x128xf32>
    tpu.vector_store %arg18[%c0_84, %c0_85, %c0_86], %215 {strides = array<i32>} : memref<1x16x128xf32, #tpu.memory_space<vmem>>, vector<1x16x128xf32>,
    return
  }
  func.func @transform_0(%arg0: i32, %arg1: i32) -> (i32, i32, i32) {
    %c0_i32 = arith.constant 0 : i32
    %c0_i32_0 = arith.constant 0 : i32
    return %arg0, %arg1, %c0_i32 : i32, i32, i32
  }
  func.func @transform_1(%arg0: i32, %arg1: i32) -> (i32, i32, i32) {
    %c0_i32 = arith.constant 0 : i32
    %c0_i32_0 = arith.constant 0 : i32
    %c0_i32_1 = arith.constant 0 : i32
    return %arg0, %c0_i32, %c0_i32_0 : i32, i32, i32
  }
  func.func @transform_2(%arg0: i32, %arg1: i32) -> (i32, i32) {
    %c0_i32 = arith.constant 0 : i32
    %c0_i32_0 = arith.constant 0 : i32
    %c0_i32_1 = arith.constant 0 : i32
    return %c0_i32, %c0_i32_0 : i32, i32
  }
  func.func @transform_3(%arg0: i32, %arg1: i32) -> (i32, i32) {
    %c0_i32 = arith.constant 0 : i32
    %c0_i32_0 = arith.constant 0 : i32
    %c0_i32_1 = arith.constant 0 : i32
    return %c0_i32, %c0_i32_0 : i32, i32
  }
  func.func @transform_4(%arg0: i32, %arg1: i32) -> (i32, i32) {
    %c0_i32 = arith.constant 0 : i32
    %c0_i32_0 = arith.constant 0 : i32
    %c0_i32_1 = arith.constant 0 : i32
    return %c0_i32, %c0_i32_0 : i32, i32
  }
  func.func @transform_5(%arg0: i32, %arg1: i32) -> (i32, i32) {
    %c0_i32 = arith.constant 0 : i32
    %c0_i32_0 = arith.constant 0 : i32
    %c0_i32_1 = arith.constant 0 : i32
    return %c0_i32, %c0_i32_0 : i32, i32
  }
  func.func @transform_6(%arg0: i32, %arg1: i32) -> (i32, i32) {
    %c0_i32 = arith.constant 0 : i32
    %c0_i32_0 = arith.constant 0 : i32
    %c0_i32_1 = arith.constant 0 : i32
    return %c0_i32, %c0_i32_0 : i32, i32
  }
  func.func @transform_7(%arg0: i32, %arg1: i32) -> (i32, i32) {
    %c0_i32 = arith.constant 0 : i32
    %c0_i32_0 = arith.constant 0 : i32
    %c0_i32_1 = arith.constant 0 : i32
    return %c0_i32, %c0_i32_0 : i32, i32
  }
  func.func @transform_8(%arg0: i32, %arg1: i32) -> (i32, i32) {
    %c0_i32 = arith.constant 0 : i32
    %c0_i32_0 = arith.constant 0 : i32
    %c0_i32_1 = arith.constant 0 : i32
    return %c0_i32, %c0_i32_0 : i32, i32
  }
  func.func @transform_9(%arg0: i32, %arg1: i32) -> (i32, i32) {
    %c0_i32 = arith.constant 0 : i32
    %c0_i32_0 = arith.constant 0 : i32
    %c0_i32_1 = arith.constant 0 : i32
    return %c0_i32, %c0_i32_0 : i32, i32
  }
  func.func @transform_10(%arg0: i32, %arg1: i32) -> (i32, i32) {
    %c0_i32 = arith.constant 0 : i32
    %c0_i32_0 = arith.constant 0 : i32
    %c0_i32_1 = arith.constant 0 : i32
    return %c0_i32, %c0_i32_0 : i32, i32
  }
  func.func @transform_11(%arg0: i32, %arg1: i32) -> (i32, i32) {
    %c0_i32 = arith.constant 0 : i32
    %c0_i32_0 = arith.constant 0 : i32
    %c0_i32_1 = arith.constant 0 : i32
    return %c0_i32, %c0_i32_0 : i32, i32
  }
  func.func @transform_12(%arg0: i32, %arg1: i32) -> (i32, i32) {
    %c0_i32 = arith.constant 0 : i32
    %c0_i32_0 = arith.constant 0 : i32
    %c0_i32_1 = arith.constant 0 : i32
    return %c0_i32, %c0_i32_0 : i32, i32
  }
  func.func @transform_13(%arg0: i32, %arg1: i32) -> (i32, i32) {
    %c0_i32 = arith.constant 0 : i32
    %c0_i32_0 = arith.constant 0 : i32
    %c0_i32_1 = arith.constant 0 : i32
    return %c0_i32, %c0_i32_0 : i32, i32
  }
  func.func @transform_14(%arg0: i32, %arg1: i32) -> (i32, i32) {
    %c0_i32 = arith.constant 0 : i32
    %c0_i32_0 = arith.constant 0 : i32
    %c0_i32_1 = arith.constant 0 : i32
    return %c0_i32, %c0_i32_0 : i32, i32
  }
  func.func @transform_15(%arg0: i32, %arg1: i32) -> (i32, i32) {
    %c0_i32 = arith.constant 0 : i32
    %c0_i32_0 = arith.constant 0 : i32
    %c0_i32_1 = arith.constant 0 : i32
    return %c0_i32, %c0_i32_0 : i32, i32
  }
  func.func @transform_16(%arg0: i32, %arg1: i32) -> (i32, i32, i32) {
    %c0_i32 = arith.constant 0 : i32
    %c0_i32_0 = arith.constant 0 : i32
    return %arg0, %arg1, %c0_i32 : i32, i32, i32
  }
}

</mosaic_0001>

<llo_original>
// kernel: tpu_custom_call.1
$region0: #{tpu_custom_call.1}
  #allocation0 [shape = 'u32[]', space=smem, size = 0x4, offset = 0x4, fixed_abs, tag = 'smem constant byte address 0x4 - core index']
  #allocation1 [shape = 'u32[144,128]{1,0:T(1,128)}', space=vmem, size = 0x12000, scoped, tag = 'internal scratch']
  %s0 = inlined_call_operand.hbm [shape: f32[2,16,128], index: 0, kind: input, shape index: {}]
  %s1 = inlined_call_operand.hbm [shape: f32[2,16,128], index: 1, kind: input, shape index: {}]
  %s2 = inlined_call_operand.hbm [shape: f32[1,128], index: 2, kind: input, shape index: {}]
  %s3 = inlined_call_operand.hbm [shape: f32[1,128], index: 3, kind: input, shape index: {}]
  %s4 = inlined_call_operand.hbm [shape: f32[128,128], index: 4, kind: input, shape index: {}]
  %s5 = inlined_call_operand.hbm [shape: f32[1,128], index: 5, kind: input, shape index: {}]
  %s6 = inlined_call_operand.hbm [shape: f32[128,256], index: 6, kind: input, shape index: {}]
  %s7 = inlined_call_operand.hbm [shape: f32[1,256], index: 7, kind: input, shape index: {}]
  %s8 = inlined_call_operand.hbm [shape: f32[128,128], index: 8, kind: input, shape index: {}]
  %s9 = inlined_call_operand.hbm [shape: f32[1,128], index: 9, kind: input, shape index: {}]
  %s10 = inlined_call_operand.hbm [shape: f32[1,128], index: 10, kind: input, shape index: {}]
  %s11 = inlined_call_operand.hbm [shape: f32[1,128], index: 11, kind: input, shape index: {}]
  %s12 = inlined_call_operand.hbm [shape: f32[128,256], index: 12, kind: input, shape index: {}]
  %s13 = inlined_call_operand.hbm [shape: f32[1,256], index: 13, kind: input, shape index: {}]
  %s14 = inlined_call_operand.hbm [shape: f32[256,128], index: 14, kind: input, shape index: {}]
  %s15 = inlined_call_operand.hbm [shape: f32[1,128], index: 15, kind: input, shape index: {}]
  %s16 = inlined_call_operand.hbm [shape: f32[2,16,128], index: 16, kind: output, shape index: {}]
  %s17 = sld [smem:[#allocation0]]
  $region161: #{tpu_custom_call.1} parent=0
    _
  %s19 = ssub.s32 1, %s17
  %s20 = scalar_select 0, %s19, %s17
  $region1: #{tpu_custom_call.1} parent=0
    #allocation2 [shape = 'u8[16384]{0}', space=vmem, size = 0x4000, scoped, tag = 'input window, operand 0']
    #allocation3 [shape = 's32[2]{0}', space=sflag, size = 0x8, scoped, tag = 'scoped memory for tpu_custom_call.1']
    #allocation4 [shape = 's32[2]{0}', space=sflag, size = 0x8, scoped, tag = 'scoped memory for tpu_custom_call.1']
    #allocation5 [shape = 'u8[16384]{0}', space=vmem, size = 0x4000, scoped, tag = 'input window, operand 1']
    #allocation6 [shape = 's32[2]{0}', space=sflag, size = 0x8, scoped, tag = 'scoped memory for tpu_custom_call.1']
    #allocation7 [shape = 'u8[512]{0}', space=vmem, size = 0x400, scoped, tag = 'input window, operand 2, single buffered']
    #allocation8 [shape = 'u8[512]{0}', space=vmem, size = 0x400, scoped, tag = 'input window, operand 3, single buffered']
    #allocation9 [shape = 's32[1]{0}', space=sflag, size = 0x4, scoped, tag = 'scoped memory for tpu_custom_call.1']
    #allocation10 [shape = 'u8[65536]{0}', space=vmem, size = 0x10000, scoped, tag = 'input window, operand 4, single buffered']
    #allocation11 [shape = 'u8[512]{0}', space=vmem, size = 0x400, scoped, tag = 'input window, operand 5, single buffered']
    #allocation12 [shape = 's32[1]{0}', space=sflag, size = 0x4, scoped, tag = 'scoped memory for tpu_custom_call.1']
    #allocation13 [shape = 'u8[131072]{0}', space=vmem, size = 0x20000, scoped, tag = 'input window, operand 6, single buffered']
    #allocation14 [shape = 'u8[1024]{0}', space=vmem, size = 0x400, scoped, tag = 'input window, operand 7, single buffered']
    #allocation15 [shape = 's32[1]{0}', space=sflag, size = 0x4, scoped, tag = 'scoped memory for tpu_custom_call.1']
    #allocation16 [shape = 'u8[65536]{0}', space=vmem, size = 0x10000, scoped, tag = 'input window, operand 8, single buffered']
    #allocation17 [shape = 'u8[512]{0}', space=vmem, size = 0x400, scoped, tag = 'input window, operand 9, single buffered']
    #allocation18 [shape = 's32[1]{0}', space=sflag, size = 0x4, scoped, tag = 'scoped memory for tpu_custom_call.1']
    #allocation19 [shape = 'u8[512]{0}', space=vmem, size = 0x400, scoped, tag = 'input window, operand 10, single buffered']
    #allocation20 [shape = 'u8[512]{0}', space=vmem, size = 0x400, scoped, tag = 'input window, operand 11, single buffered']
    #allocation21 [shape = 's32[1]{0}', space=sflag, size = 0x4, scoped, tag = 'scoped memory for tpu_custom_call.1']
    #allocation22 [shape = 'u8[131072]{0}', space=vmem, size = 0x20000, scoped, tag = 'input window, operand 12, single buffered']
    #allocation23 [shape = 'u8[1024]{0}', space=vmem, size = 0x400, scoped, tag = 'input window, operand 13, single buffered']
    #allocation24 [shape = 's32[1]{0}', space=sflag, size = 0x4, scoped, tag = 'scoped memory for tpu_custom_call.1']
    #allocation25 [shape = 'u8[131072]{0}', space=vmem, size = 0x20000, scoped, tag = 'input window, operand 14, single buffered']
    #allocation26 [shape = 'u8[512]{0}', space=vmem, size = 0x400, scoped, tag = 'input window, operand 15, single buffered']
    #allocation27 [shape = 's32[1]{0}', space=sflag, size = 0x4, scoped, tag = 'scoped memory for tpu_custom_call.1']
    #allocation28 [shape = 'u8[16384]{0}', space=vmem, size = 0x4000, scoped, tag = 'output window, operand 0']
    %21 = vsyncpa [#allocation3], 0
    %s22 = scalar_lea.sflag [#allocation3], 1
    %23 = vsyncpa %s22, 0
    %24 = vsyncpa [#allocation6], 0
    %s25 = scalar_lea.sflag [#allocation6], 1
    %26 = vsyncpa %s25, 0
    %27 = vsyncpa [#allocation9], 0
    %28 = vsyncpa [#allocation12], 0
    %29 = vsyncpa [#allocation15], 0
    %30 = vsyncpa [#allocation18], 0
    %31 = vsyncpa [#allocation21], 0
    %32 = vsyncpa [#allocation24], 0
    %33 = vsyncpa [#allocation27], 0
    %34 = vsyncpa [#allocation4], 0
    %s35 = scalar_lea.sflag [#allocation4], 1
    %36 = vsyncpa %s35, 0
    loop: start=0, step=1, limit=4
    $region2: #{tpu_custom_call.1} parent=1 // loop_pre_header
      _
    $region3: #{tpu_custom_call.1} parent=1 // loop_header
      %s38 = sphi 0, %s42
      %p39 = scmp.ge.s32.totalorder %s38, 4
      %s45 = sphi 0, %s57
      %s46 = sphi 0, %s53
      %s47 = sphi 0, %s45
      %s48 = sphi 0, %s46
      %s49 = sphi 0, %s47
      %s50 = sphi 0, %s48
      %s62 = sphi 0, %s64
      %s65 = sphi 0, %s62
      %s66 = sphi 0, %s65
      %s82 = sphi 0, %s66
      %s88 = sphi 0, %s90
      %s91 = sphi 0, %s88
      %s92 = sphi 0, %s91
      %s108 = sphi 0, %s92
      %s112 = sphi 0, %s112
      %s114 = sphi 0, %s112
      %s115 = sphi 0, %s114
      %s129 = sphi 0, %s115
      %s133 = sphi 0, %s133
      %s135 = sphi 0, %s133
      %s136 = sphi 0, %s135
      %s150 = sphi 0, %s136
      %s154 = sphi 0, %s154
      %s156 = sphi 0, %s154
      %s157 = sphi 0, %s156
      %s171 = sphi 0, %s157
      %s175 = sphi 0, %s175
      %s177 = sphi 0, %s175
      %s178 = sphi 0, %s177
      %s192 = sphi 0, %s178
      %s196 = sphi 0, %s196
      %s198 = sphi 0, %s196
      %s199 = sphi 0, %s198
      %s213 = sphi 0, %s199
      %s217 = sphi 0, %s217
      %s219 = sphi 0, %s217
      %s220 = sphi 0, %s219
      %s234 = sphi 0, %s220
      %s238 = sphi 0, %s238
      %s240 = sphi 0, %s238
      %s241 = sphi 0, %s240
      %s255 = sphi 0, %s241
      %s259 = sphi 0, %s259
      %s261 = sphi 0, %s259
      %s262 = sphi 0, %s261
      %s276 = sphi 0, %s262
      %s280 = sphi 0, %s280
      %s282 = sphi 0, %s280
      %s283 = sphi 0, %s282
      %s297 = sphi 0, %s283
      %s301 = sphi 0, %s301
      %s303 = sphi 0, %s301
      %s304 = sphi 0, %s303
      %s318 = sphi 0, %s304
      %s322 = sphi 0, %s322
      %s324 = sphi 0, %s322
      %s325 = sphi 0, %s324
      %s339 = sphi 0, %s325
      %s343 = sphi 0, %s343
      %s345 = sphi 0, %s343
      %s346 = sphi 0, %s345
      %s360 = sphi 0, %s346
      %s364 = sphi 0, %s364
      %s366 = sphi 0, %s364
      %s367 = sphi 0, %s366
      %s381 = sphi 0, %s367
      %s385 = sphi 0, %s385
      %s387 = sphi 0, %s385
      %s388 = sphi 0, %s387
      %s402 = sphi 0, %s388
      %s410 = sphi 0, %s412
      %s413 = sphi 0, %s410
      %s414 = sphi 0, %s413
      %s430 = sphi 0, %s414
    $region4: #{tpu_custom_call.1} parent=1 // loop_header_branch
      %41 = sbr.rel (%p39) target = $region8
    $region5: #{tpu_custom_call.1} parent=1 // loop_body
      %s43 = ssub.s32 %s38, 1
      %s44 = ssub.s32 %s38, 2
      %s51 = sadd.s32 1, %s46
      %p52 = scmp.ge.s32.totalorder %s51, 1
      %s53 = scalar_select %p52, 0, %s51
      %s54 = sadd.s32 1, %s45
      %s55 = scalar_select %p52, %s54, %s45
      %p56 = scmp.ge.s32.totalorder %s55, 2
      %s57 = scalar_select %p56, 0, %s55
      %s58 = ssub.s32 %s45, %s57
      %s59 = ssub.s32 %s46, %s53
      %s60 = sor.u32 %s58, %s59
      %p61 = scmp.eq.s32.totalorder %s60, 0
      %s63 = sadd.s32 %s62, 1
      %s64 = scalar_select %p61, %s62, %s63
      %p67 = pneg %p61
      %p68 = scmp.eq.s32.totalorder %s38, 1
      %p69 = por %p67, %p68
      %p70 = scmp.ne.s32.totalorder %s62, %s65
      %p71 = scmp.eq.s32.totalorder %s38, 0
      %p72 = por %p70, %p71
      %p73 = scmp.ne.s32.totalorder %s62, %s65
      %p74 = scmp.eq.s32.totalorder %s43, 1
      %p75 = por %p73, %p74
      %p76 = scmp.ne.s32.totalorder %s65, %s66
      %p77 = scmp.eq.s32.totalorder %s43, 0
      %p78 = por %p76, %p77
      %p79 = scmp.ne.s32.totalorder %s65, %s66
      %p80 = scmp.eq.s32.totalorder %s44, 1
      %p81 = por %p79, %p80
      %p83 = scmp.ne.s32.totalorder %s66, %s82
      %p84 = scmp.eq.s32.totalorder %s44, 0
      %p85 = por %p83, %p84
      %s86 = ssub.s32 %s45, %s57
      %p87 = scmp.eq.s32.totalorder %s86, 0
      %s89 = sadd.s32 %s88, 1
      %s90 = scalar_select %p87, %s88, %s89
      %p93 = pneg %p87
      %p94 = scmp.eq.s32.totalorder %s38, 1
      %p95 = por %p93, %p94
      %p96 = scmp.ne.s32.totalorder %s88, %s91
      %p97 = scmp.eq.s32.totalorder %s38, 0
      %p98 = por %p96, %p97
      %p99 = scmp.ne.s32.totalorder %s88, %s91
      %p100 = scmp.eq.s32.totalorder %s43, 1
      %p101 = por %p99, %p100
      %p102 = scmp.ne.s32.totalorder %s91, %s92
      %p103 = scmp.eq.s32.totalorder %s43, 0
      %p104 = por %p102, %p103
      %p105 = scmp.ne.s32.totalorder %s91, %s92
      %p106 = scmp.eq.s32.totalorder %s44, 1
      %p107 = por %p105, %p106
      %p109 = scmp.ne.s32.totalorder %s92, %s108
      %p110 = scmp.eq.s32.totalorder %s44, 0
      %p111 = por %p109, %p110
      %s113 = sadd.s32 %s112, 1
      %p116 = scmp.eq.s32.totalorder %s38, 1
      %p117 = scmp.ne.s32.totalorder %s112, %s114
      %p118 = scmp.eq.s32.totalorder %s38, 0
      %p119 = por %p117, %p118
      %p120 = scmp.ne.s32.totalorder %s112, %s114
      %p121 = scmp.eq.s32.totalorder %s43, 1
      %p122 = por %p120, %p121
      %p123 = scmp.ne.s32.totalorder %s114, %s115
      %p124 = scmp.eq.s32.totalorder %s43, 0
      %p125 = por %p123, %p124
      %p126 = scmp.ne.s32.totalorder %s114, %s115
      %p127 = scmp.eq.s32.totalorder %s44, 1
      %p128 = por %p126, %p127
      %p130 = scmp.ne.s32.totalorder %s115, %s129
      %p131 = scmp.eq.s32.totalorder %s44, 0
      %p132 = por %p130, %p131
      %s134 = sadd.s32 %s133, 1
      %p137 = scmp.eq.s32.totalorder %s38, 1
      %p138 = scmp.ne.s32.totalorder %s133, %s135
      %p139 = scmp.eq.s32.totalorder %s38, 0
      %p140 = por %p138, %p139
      %p141 = scmp.ne.s32.totalorder %s133, %s135
      %p142 = scmp.eq.s32.totalorder %s43, 1
      %p143 = por %p141, %p142
      %p144 = scmp.ne.s32.totalorder %s135, %s136
      %p145 = scmp.eq.s32.totalorder %s43, 0
      %p146 = por %p144, %p145
      %p147 = scmp.ne.s32.totalorder %s135, %s136
      %p148 = scmp.eq.s32.totalorder %s44, 1
      %p149 = por %p147, %p148
      %p151 = scmp.ne.s32.totalorder %s136, %s150
      %p152 = scmp.eq.s32.totalorder %s44, 0
      %p153 = por %p151, %p152
      %s155 = sadd.s32 %s154, 1
      %p158 = scmp.eq.s32.totalorder %s38, 1
      %p159 = scmp.ne.s32.totalorder %s154, %s156
      %p160 = scmp.eq.s32.totalorder %s38, 0
      %p161 = por %p159, %p160
      %p162 = scmp.ne.s32.totalorder %s154, %s156
      %p163 = scmp.eq.s32.totalorder %s43, 1
      %p164 = por %p162, %p163
      %p165 = scmp.ne.s32.totalorder %s156, %s157
      %p166 = scmp.eq.s32.totalorder %s43, 0
      %p167 = por %p165, %p166
      %p168 = scmp.ne.s32.totalorder %s156, %s157
      %p169 = scmp.eq.s32.totalorder %s44, 1
      %p170 = por %p168, %p169
      %p172 = scmp.ne.s32.totalorder %s157, %s171
      %p173 = scmp.eq.s32.totalorder %s44, 0
      %p174 = por %p172, %p173
      %s176 = sadd.s32 %s175, 1
      %p179 = scmp.eq.s32.totalorder %s38, 1
      %p180 = scmp.ne.s32.totalorder %s175, %s177
      %p181 = scmp.eq.s32.totalorder %s38, 0
      %p182 = por %p180, %p181
      %p183 = scmp.ne.s32.totalorder %s175, %s177
      %p184 = scmp.eq.s32.totalorder %s43, 1
      %p185 = por %p183, %p184
      %p186 = scmp.ne.s32.totalorder %s177, %s178
      %p187 = scmp.eq.s32.totalorder %s43, 0
      %p188 = por %p186, %p187
      %p189 = scmp.ne.s32.totalorder %s177, %s178
      %p190 = scmp.eq.s32.totalorder %s44, 1
      %p191 = por %p189, %p190
      %p193 = scmp.ne.s32.totalorder %s178, %s192
      %p194 = scmp.eq.s32.totalorder %s44, 0
      %p195 = por %p193, %p194
      %s197 = sadd.s32 %s196, 1
      %p200 = scmp.eq.s32.totalorder %s38, 1
      %p201 = scmp.ne.s32.totalorder %s196, %s198
      %p202 = scmp.eq.s32.totalorder %s38, 0
      %p203 = por %p201, %p202
      %p204 = scmp.ne.s32.totalorder %s196, %s198
      %p205 = scmp.eq.s32.totalorder %s43, 1
      %p206 = por %p204, %p205
      %p207 = scmp.ne.s32.totalorder %s198, %s199
      %p208 = scmp.eq.s32.totalorder %s43, 0
      %p209 = por %p207, %p208
      %p210 = scmp.ne.s32.totalorder %s198, %s199
      %p211 = scmp.eq.s32.totalorder %s44, 1
      %p212 = por %p210, %p211
      %p214 = scmp.ne.s32.totalorder %s199, %s213
      %p215 = scmp.eq.s32.totalorder %s44, 0
      %p216 = por %p214, %p215
      %s218 = sadd.s32 %s217, 1
      %p221 = scmp.eq.s32.totalorder %s38, 1
      %p222 = scmp.ne.s32.totalorder %s217, %s219
      %p223 = scmp.eq.s32.totalorder %s38, 0
      %p224 = por %p222, %p223
      %p225 = scmp.ne.s32.totalorder %s217, %s219
      %p226 = scmp.eq.s32.totalorder %s43, 1
      %p227 = por %p225, %p226
      %p228 = scmp.ne.s32.totalorder %s219, %s220
      %p229 = scmp.eq.s32.totalorder %s43, 0
      %p230 = por %p228, %p229
      %p231 = scmp.ne.s32.totalorder %s219, %s220
      %p232 = scmp.eq.s32.totalorder %s44, 1
      %p233 = por %p231, %p232
      %p235 = scmp.ne.s32.totalorder %s220, %s234
      %p236 = scmp.eq.s32.totalorder %s44, 0
      %p237 = por %p235, %p236
      %s239 = sadd.s32 %s238, 1
      %p242 = scmp.eq.s32.totalorder %s38, 1
      %p243 = scmp.ne.s32.totalorder %s238, %s240
      %p244 = scmp.eq.s32.totalorder %s38, 0
      %p245 = por %p243, %p244
      %p246 = scmp.ne.s32.totalorder %s238, %s240
      %p247 = scmp.eq.s32.totalorder %s43, 1
      %p248 = por %p246, %p247
      %p249 = scmp.ne.s32.totalorder %s240, %s241
      %p250 = scmp.eq.s32.totalorder %s43, 0
      %p251 = por %p249, %p250
      %p252 = scmp.ne.s32.totalorder %s240, %s241
      %p253 = scmp.eq.s32.totalorder %s44, 1
      %p254 = por %p252, %p253
      %p256 = scmp.ne.s32.totalorder %s241, %s255
      %p257 = scmp.eq.s32.totalorder %s44, 0
      %p258 = por %p256, %p257
      %s260 = sadd.s32 %s259, 1
      %p263 = scmp.eq.s32.totalorder %s38, 1
      %p264 = scmp.ne.s32.totalorder %s259, %s261
      %p265 = scmp.eq.s32.totalorder %s38, 0
      %p266 = por %p264, %p265
      %p267 = scmp.ne.s32.totalorder %s259, %s261
      %p268 = scmp.eq.s32.totalorder %s43, 1
      %p269 = por %p267, %p268
      %p270 = scmp.ne.s32.totalorder %s261, %s262
      %p271 = scmp.eq.s32.totalorder %s43, 0
      %p272 = por %p270, %p271
      %p273 = scmp.ne.s32.totalorder %s261, %s262
      %p274 = scmp.eq.s32.totalorder %s44, 1
      %p275 = por %p273, %p274
      %p277 = scmp.ne.s32.totalorder %s262, %s276
      %p278 = scmp.eq.s32.totalorder %s44, 0
      %p279 = por %p277, %p278
      %s281 = sadd.s32 %s280, 1
      %p284 = scmp.eq.s32.totalorder %s38, 1
      %p285 = scmp.ne.s32.totalorder %s280, %s282
      %p286 = scmp.eq.s32.totalorder %s38, 0
      %p287 = por %p285, %p286
      %p288 = scmp.ne.s32.totalorder %s280, %s282
      %p289 = scmp.eq.s32.totalorder %s43, 1
      %p290 = por %p288, %p289
      %p291 = scmp.ne.s32.totalorder %s282, %s283
      %p292 = scmp.eq.s32.totalorder %s43, 0
      %p293 = por %p291, %p292
      %p294 = scmp.ne.s32.totalorder %s282, %s283
      %p295 = scmp.eq.s32.totalorder %s44, 1
      %p296 = por %p294, %p295
      %p298 = scmp.ne.s32.totalorder %s283, %s297
      %p299 = scmp.eq.s32.totalorder %s44, 0
      %p300 = por %p298, %p299
      %s302 = sadd.s32 %s301, 1
      %p305 = scmp.eq.s32.totalorder %s38, 1
      %p306 = scmp.ne.s32.totalorder %s301, %s303
      %p307 = scmp.eq.s32.totalorder %s38, 0
      %p308 = por %p306, %p307
      %p309 = scmp.ne.s32.totalorder %s301, %s303
      %p310 = scmp.eq.s32.totalorder %s43, 1
      %p311 = por %p309, %p310
      %p312 = scmp.ne.s32.totalorder %s303, %s304
      %p313 = scmp.eq.s32.totalorder %s43, 0
      %p314 = por %p312, %p313
      %p315 = scmp.ne.s32.totalorder %s303, %s304
      %p316 = scmp.eq.s32.totalorder %s44, 1
      %p317 = por %p315, %p316
      %p319 = scmp.ne.s32.totalorder %s304, %s318
      %p320 = scmp.eq.s32.totalorder %s44, 0
      %p321 = por %p319, %p320
      %s323 = sadd.s32 %s322, 1
      %p326 = scmp.eq.s32.totalorder %s38, 1
      %p327 = scmp.ne.s32.totalorder %s322, %s324
      %p328 = scmp.eq.s32.totalorder %s38, 0
      %p329 = por %p327, %p328
      %p330 = scmp.ne.s32.totalorder %s322, %s324
      %p331 = scmp.eq.s32.totalorder %s43, 1
      %p332 = por %p330, %p331
      %p333 = scmp.ne.s32.totalorder %s324, %s325
      %p334 = scmp.eq.s32.totalorder %s43, 0
      %p335 = por %p333, %p334
      %p336 = scmp.ne.s32.totalorder %s324, %s325
      %p337 = scmp.eq.s32.totalorder %s44, 1
      %p338 = por %p336, %p337
      %p340 = scmp.ne.s32.totalorder %s325, %s339
      %p341 = scmp.eq.s32.totalorder %s44, 0
      %p342 = por %p340, %p341
      %s344 = sadd.s32 %s343, 1
      %p347 = scmp.eq.s32.totalorder %s38, 1
      %p348 = scmp.ne.s32.totalorder %s343, %s345
      %p349 = scmp.eq.s32.totalorder %s38, 0
      %p350 = por %p348, %p349
      %p351 = scmp.ne.s32.totalorder %s343, %s345
      %p352 = scmp.eq.s32.totalorder %s43, 1
      %p353 = por %p351, %p352
      %p354 = scmp.ne.s32.totalorder %s345, %s346
      %p355 = scmp.eq.s32.totalorder %s43, 0
      %p356 = por %p354, %p355
      %p357 = scmp.ne.s32.totalorder %s345, %s346
      %p358 = scmp.eq.s32.totalorder %s44, 1
      %p359 = por %p357, %p358
      %p361 = scmp.ne.s32.totalorder %s346, %s360
      %p362 = scmp.eq.s32.totalorder %s44, 0
      %p363 = por %p361, %p362
      %s365 = sadd.s32 %s364, 1
      %p368 = scmp.eq.s32.totalorder %s38, 1
      %p369 = scmp.ne.s32.totalorder %s364, %s366
      %p370 = scmp.eq.s32.totalorder %s38, 0
      %p371 = por %p369, %p370
      %p372 = scmp.ne.s32.totalorder %s364, %s366
      %p373 = scmp.eq.s32.totalorder %s43, 1
      %p374 = por %p372, %p373
      %p375 = scmp.ne.s32.totalorder %s366, %s367
      %p376 = scmp.eq.s32.totalorder %s43, 0
      %p377 = por %p375, %p376
      %p378 = scmp.ne.s32.totalorder %s366, %s367
      %p379 = scmp.eq.s32.totalorder %s44, 1
      %p380 = por %p378, %p379
      %p382 = scmp.ne.s32.totalorder %s367, %s381
      %p383 = scmp.eq.s32.totalorder %s44, 0
      %p384 = por %p382, %p383
      %s386 = sadd.s32 %s385, 1
      %p389 = scmp.eq.s32.totalorder %s38, 1
      %p390 = scmp.ne.s32.totalorder %s385, %s387
      %p391 = scmp.eq.s32.totalorder %s38, 0
      %p392 = por %p390, %p391
      %p393 = scmp.ne.s32.totalorder %s385, %s387
      %p394 = scmp.eq.s32.totalorder %s43, 1
      %p395 = por %p393, %p394
      %p396 = scmp.ne.s32.totalorder %s387, %s388
      %p397 = scmp.eq.s32.totalorder %s43, 0
      %p398 = por %p396, %p397
      %p399 = scmp.ne.s32.totalorder %s387, %s388
      %p400 = scmp.eq.s32.totalorder %s44, 1
      %p401 = por %p399, %p400
      %p403 = scmp.ne.s32.totalorder %s388, %s402
      %p404 = scmp.eq.s32.totalorder %s44, 0
      %p405 = por %p403, %p404
      %s406 = ssub.s32 %s45, %s57
      %s407 = ssub.s32 %s46, %s53
      %s408 = sor.u32 %s406, %s407
      %p409 = scmp.eq.s32.totalorder %s408, 0
      %s411 = sadd.s32 %s410, 1
      %s412 = scalar_select %p409, %s410, %s411
      %p415 = pneg %p409
      %p416 = scmp.eq.s32.totalorder %s38, 1
      %p417 = por %p415, %p416
      %p418 = scmp.ne.s32.totalorder %s410, %s413
      %p419 = scmp.eq.s32.totalorder %s38, 0
      %p420 = por %p418, %p419
      %p421 = scmp.ne.s32.totalorder %s410, %s413
      %p422 = scmp.eq.s32.totalorder %s43, 1
      %p423 = por %p421, %p422
      %p424 = scmp.ne.s32.totalorder %s413, %s414
      %p425 = scmp.eq.s32.totalorder %s43, 0
      %p426 = por %p424, %p425
      %p427 = scmp.ne.s32.totalorder %s413, %s414
      %p428 = scmp.eq.s32.totalorder %s44, 1
      %p429 = por %p427, %p428
      %p431 = scmp.ne.s32.totalorder %s414, %s430
      %p432 = scmp.eq.s32.totalorder %s44, 0
      %p433 = por %p431, %p432
      %p434 = scmp.le.s32.totalorder 1, %s38
      %p435 = scmp.lt.s32.totalorder %s38, 3
      %p436 = pnand %p434, %p435
      %p437 = pneg %p436
      // Predicated region
      $region9: #{tpu_custom_call.1} parent=5 // pred_check
        _
      $region10: #{tpu_custom_call.1} parent=5 // pred_check_branch
        %439 = sbr.rel (%p436) target = $region12
      $region11: #{tpu_custom_call.1} parent=5 // pred_region
        %s440 = ssub.s32 %s38, 1
        // Predicated region
        $region13: #{tpu_custom_call.1} parent=11 // pred_check
          %p441 = pneg %p125
        $region14: #{tpu_custom_call.1} parent=11 // pred_check_branch
          %443 = sbr.rel (%p441) target = $region16
        $region15: #{tpu_custom_call.1} parent=11 // pred_region
          %s445 = ssub.s32 16, 16
          %446 = vsyncadd [#allocation6], %s445
          %s448 = sshll.u32 [#allocation7], 4
          %s449 = int_to_ptr.vmem [resolvable:$true] %s448
          %451 = dma.hbm_to_vmem [thread:$0]  %s2, 16, %s449, [#allocation6]
        $region16: #{tpu_custom_call.1} parent=11 // pred_fallthru
          _
        // Predicated region
        $region17: #{tpu_custom_call.1} parent=11 // pred_check
          %p452 = pneg %p146
        $region18: #{tpu_custom_call.1} parent=11 // pred_check_branch
          %454 = sbr.rel (%p452) target = $region20
        $region19: #{tpu_custom_call.1} parent=11 // pred_region
          %s456 = ssub.s32 16, 16
          %457 = vsyncadd [#allocation9], %s456
          %s459 = sshll.u32 [#allocation8], 4
          %s460 = int_to_ptr.vmem [resolvable:$true] %s459
          %462 = dma.hbm_to_vmem [thread:$0]  %s3, 16, %s460, [#allocation9]
        $region20: #{tpu_custom_call.1} parent=11 // pred_fallthru
          _
        // Predicated region
        $region21: #{tpu_custom_call.1} parent=11 // pred_check
          %p463 = pneg %p167
        $region22: #{tpu_custom_call.1} parent=11 // pred_check_branch
          %465 = sbr.rel (%p463) target = $region24
        $region23: #{tpu_custom_call.1} parent=11 // pred_region
          %s467 = ssub.s32 2048, 2048
          %468 = vsyncadd [#allocation9], %s467
          %s469 = sshll.u32 [#allocation10], 4
          %s470 = int_to_ptr.vmem [resolvable:$true] %s469
          %475 = dma.hbm_to_vmem [thread:$0]  %s4, 2048, %s470, [#allocation9], 128, 128, 8
        $region24: #{tpu_custom_call.1} parent=11 // pred_fallthru
          _
        // Predicated region
        $region25: #{tpu_custom_call.1} parent=11 // pred_check
          %p476 = pneg %p188
        $region26: #{tpu_custom_call.1} parent=11 // pred_check_branch
          %478 = sbr.rel (%p476) target = $region28
        $region27: #{tpu_custom_call.1} parent=11 // pred_region
          %s480 = ssub.s32 16, 16
          %481 = vsyncadd [#allocation12], %s480
          %s483 = sshll.u32 [#allocation11], 4
          %s484 = int_to_ptr.vmem [resolvable:$true] %s483
          %486 = dma.hbm_to_vmem [thread:$0]  %s5, 16, %s484, [#allocation12]
        $region28: #{tpu_custom_call.1} parent=11 // pred_fallthru
          _
        // Predicated region
        $region29: #{tpu_custom_call.1} parent=11 // pred_check
          %p487 = pneg %p209
        $region30: #{tpu_custom_call.1} parent=11 // pred_check_branch
          %489 = sbr.rel (%p487) target = $region32
        $region31: #{tpu_custom_call.1} parent=11 // pred_region
          %s491 = ssub.s32 4096, 4096
          %492 = vsyncadd [#allocation12], %s491
          %s493 = sshll.u32 [#allocation13], 4
          %s494 = int_to_ptr.vmem [resolvable:$true] %s493
          %499 = dma.hbm_to_vmem [thread:$0]  %s6, 4096, %s494, [#allocation12], 256, 256, 16
        $region32: #{tpu_custom_call.1} parent=11 // pred_fallthru
          _
        // Predicated region
        $region33: #{tpu_custom_call.1} parent=11 // pred_check
          %p500 = pneg %p230
        $region34: #{tpu_custom_call.1} parent=11 // pred_check_branch
          %502 = sbr.rel (%p500) target = $region36
        $region35: #{tpu_custom_call.1} parent=11 // pred_region
          %s504 = ssub.s32 32, 32
          %505 = vsyncadd [#allocation15], %s504
          %s507 = sshll.u32 [#allocation14], 4
          %s508 = int_to_ptr.vmem [resolvable:$true] %s507
          %510 = dma.hbm_to_vmem [thread:$0]  %s7, 32, %s508, [#allocation15]
        $region36: #{tpu_custom_call.1} parent=11 // pred_fallthru
          _
        // Predicated region
        $region37: #{tpu_custom_call.1} parent=11 // pred_check
          %p511 = pneg %p251
        $region38: #{tpu_custom_call.1} parent=11 // pred_check_branch
          %513 = sbr.rel (%p511) target = $region40
        $region39: #{tpu_custom_call.1} parent=11 // pred_region
          %s515 = ssub.s32 2048, 2048
          %516 = vsyncadd [#allocation15], %s515
          %s517 = sshll.u32 [#allocation16], 4
          %s518 = int_to_ptr.vmem [resolvable:$true] %s517
          %523 = dma.hbm_to_vmem [thread:$0]  %s8, 2048, %s518, [#allocation15], 128, 128, 8
        $region40: #{tpu_custom_call.1} parent=11 // pred_fallthru
          _
        // Predicated region
        $region41: #{tpu_custom_call.1} parent=11 // pred_check
          %p524 = pneg %p272
        $region42: #{tpu_custom_call.1} parent=11 // pred_check_branch
          %526 = sbr.rel (%p524) target = $region44
        $region43: #{tpu_custom_call.1} parent=11 // pred_region
          %s528 = ssub.s32 16, 16
          %529 = vsyncadd [#allocation18], %s528
          %s531 = sshll.u32 [#allocation17], 4
          %s532 = int_to_ptr.vmem [resolvable:$true] %s531
          %534 = dma.hbm_to_vmem [thread:$0]  %s9, 16, %s532, [#allocation18]
        $region44: #{tpu_custom_call.1} parent=11 // pred_fallthru
          _
        // Predicated region
        $region45: #{tpu_custom_call.1} parent=11 // pred_check
          %p535 = pneg %p293
        $region46: #{tpu_custom_call.1} parent=11 // pred_check_branch
          %537 = sbr.rel (%p535) target = $region48
        $region47: #{tpu_custom_call.1} parent=11 // pred_region
          %s539 = ssub.s32 16, 16
          %540 = vsyncadd [#allocation18], %s539
          %s542 = sshll.u32 [#allocation19], 4
          %s543 = int_to_ptr.vmem [resolvable:$true] %s542
          %545 = dma.hbm_to_vmem [thread:$0]  %s10, 16, %s543, [#allocation18]
        $region48: #{tpu_custom_call.1} parent=11 // pred_fallthru
          _
        // Predicated region
        $region49: #{tpu_custom_call.1} parent=11 // pred_check
          %p546 = pneg %p314
        $region50: #{tpu_custom_call.1} parent=11 // pred_check_branch
          %548 = sbr.rel (%p546) target = $region52
        $region51: #{tpu_custom_call.1} parent=11 // pred_region
          %s550 = ssub.s32 16, 16
          %551 = vsyncadd [#allocation21], %s550
          %s553 = sshll.u32 [#allocation20], 4
          %s554 = int_to_ptr.vmem [resolvable:$true] %s553
          %556 = dma.hbm_to_vmem [thread:$0]  %s11, 16, %s554, [#allocation21]
        $region52: #{tpu_custom_call.1} parent=11 // pred_fallthru
          _
        // Predicated region
        $region53: #{tpu_custom_call.1} parent=11 // pred_check
          %p557 = pneg %p335
        $region54: #{tpu_custom_call.1} parent=11 // pred_check_branch
          %559 = sbr.rel (%p557) target = $region56
        $region55: #{tpu_custom_call.1} parent=11 // pred_region
          %s561 = ssub.s32 4096, 4096
          %562 = vsyncadd [#allocation21], %s561
          %s563 = sshll.u32 [#allocation22], 4
          %s564 = int_to_ptr.vmem [resolvable:$true] %s563
          %569 = dma.hbm_to_vmem [thread:$0]  %s12, 4096, %s564, [#allocation21], 256, 256, 16
        $region56: #{tpu_custom_call.1} parent=11 // pred_fallthru
          _
        // Predicated region
        $region57: #{tpu_custom_call.1} parent=11 // pred_check
          %p570 = pneg %p356
        $region58: #{tpu_custom_call.1} parent=11 // pred_check_branch
          %572 = sbr.rel (%p570) target = $region60
        $region59: #{tpu_custom_call.1} parent=11 // pred_region
          %s574 = ssub.s32 32, 32
          %575 = vsyncadd [#allocation24], %s574
          %s577 = sshll.u32 [#allocation23], 4
          %s578 = int_to_ptr.vmem [resolvable:$true] %s577
          %580 = dma.hbm_to_vmem [thread:$0]  %s13, 32, %s578, [#allocation24]
        $region60: #{tpu_custom_call.1} parent=11 // pred_fallthru
          _
        // Predicated region
        $region61: #{tpu_custom_call.1} parent=11 // pred_check
          %p581 = pneg %p377
        $region62: #{tpu_custom_call.1} parent=11 // pred_check_branch
          %583 = sbr.rel (%p581) target = $region64
        $region63: #{tpu_custom_call.1} parent=11 // pred_region
          %s585 = ssub.s32 4096, 4096
          %586 = vsyncadd [#allocation24], %s585
          %s587 = sshll.u32 [#allocation25], 4
          %s588 = int_to_ptr.vmem [resolvable:$true] %s587
          %593 = dma.hbm_to_vmem [thread:$0]  %s14, 4096, %s588, [#allocation24], 128, 128, 8
        $region64: #{tpu_custom_call.1} parent=11 // pred_fallthru
          _
        // Predicated region
        $region65: #{tpu_custom_call.1} parent=11 // pred_check
          %p594 = pneg %p398
        $region66: #{tpu_custom_call.1} parent=11 // pred_check_branch
          %596 = sbr.rel (%p594) target = $region68
        $region67: #{tpu_custom_call.1} parent=11 // pred_region
          %s598 = ssub.s32 16, 16
          %599 = vsyncadd [#allocation27], %s598
          %s601 = sshll.u32 [#allocation26], 4
          %s602 = int_to_ptr.vmem [resolvable:$true] %s601
          %604 = dma.hbm_to_vmem [thread:$0]  %s15, 16, %s602, [#allocation27]
        $region68: #{tpu_custom_call.1} parent=11 // pred_fallthru
          _
      $region12: #{tpu_custom_call.1} parent=5 // pred_fallthru
        _
      %p605 = scmp.lt.s32.totalorder %s38, 2
      // Predicated region
      $region69: #{tpu_custom_call.1} parent=5 // pred_check
        %p606 = pneg %p605
      $region70: #{tpu_custom_call.1} parent=5 // pred_check_branch
        %608 = sbr.rel (%p606) target = $region72
      $region71: #{tpu_custom_call.1} parent=5 // pred_region
        // Predicated region
        $region73: #{tpu_custom_call.1} parent=71 // pred_check
          %p609 = pneg %p72
        $region74: #{tpu_custom_call.1} parent=71 // pred_check_branch
          %611 = sbr.rel (%p609) target = $region76
        $region75: #{tpu_custom_call.1} parent=71 // pred_region
          %s612 = sand.u32 %s62, 1
          %s613 = scalar_lea.sflag [#allocation3], %s612
          %s614 = sand.u32 %s62, 1
          %s615 = smul.addr %s614, 16
          %s616 = scalar_lea.vmem [#allocation2], %s615
          %s617 = smul.u32 2, %s46
          %s619 = ssub.s32 256, 256
          %620 = vsyncadd %s613, %s619
          %s621 = smul.addr %s45, 2
          %s622 = sadd.s32 %s617, %s621
          %s623 = smul.addr %s622, 128
          %s624 = scalar_lea.hbm %s0, %s623
          %s625 = sshll.u32 %s616, 4
          %s626 = int_to_ptr.vmem [resolvable:$true] %s625
          %631 = dma.hbm_to_vmem [thread:$0]  %s624, 256, %s626, %s613, 128, 128, 8
        $region76: #{tpu_custom_call.1} parent=71 // pred_fallthru
          _
        // Predicated region
        $region77: #{tpu_custom_call.1} parent=71 // pred_check
          %p632 = pneg %p98
        $region78: #{tpu_custom_call.1} parent=71 // pred_check_branch
          %634 = sbr.rel (%p632) target = $region80
        $region79: #{tpu_custom_call.1} parent=71 // pred_region
          %s635 = sand.u32 %s38, 1
          %s636 = scalar_lea.sflag [#allocation6], %s635
          %s637 = sand.u32 %s88, 1
          %s638 = smul.addr %s637, 16
          %s639 = scalar_lea.vmem [#allocation5], %s638
          %s641 = ssub.s32 256, 256
          %642 = vsyncadd %s636, %s641
          %s643 = smul.addr %s45, 2
          %s644 = smul.addr %s643, 128
          %s645 = scalar_lea.hbm %s1, %s644
          %s646 = sshll.u32 %s639, 4
          %s647 = int_to_ptr.vmem [resolvable:$true] %s646
          %652 = dma.hbm_to_vmem [thread:$0]  %s645, 256, %s647, %s636, 128, 128, 8
        $region80: #{tpu_custom_call.1} parent=71 // pred_fallthru
          _
      $region72: #{tpu_custom_call.1} parent=5 // pred_fallthru
        _
      %p653 = scmp.le.s32.totalorder 1, %s38
      %p654 = scmp.lt.s32.totalorder %s38, 3
      %p655 = pnand %p653, %p654
      %p656 = pneg %p655
      // Predicated region
      $region81: #{tpu_custom_call.1} parent=5 // pred_check
        _
      $region82: #{tpu_custom_call.1} parent=5 // pred_check_branch
        %658 = sbr.rel (%p655) target = $region84
      $region83: #{tpu_custom_call.1} parent=5 // pred_region
        %s659 = ssub.s32 %s38, 1
        %s660 = sand.u32 %s65, 1
        %s661 = scalar_lea.sflag [#allocation3], %s660
        %s662 = sand.u32 %s65, 1
        %s663 = smul.addr %s662, 16
        %s664 = scalar_lea.vmem [#allocation2], %s663
        // Predicated region
        $region85: #{tpu_custom_call.1} parent=83 // pred_check
          %p665 = pneg %p78
        $region86: #{tpu_custom_call.1} parent=83 // pred_check_branch
          %667 = sbr.rel (%p665) target = $region88
        $region87: #{tpu_custom_call.1} parent=83 // pred_region
          %668 = dma.done %s661, 256
        $region88: #{tpu_custom_call.1} parent=83 // pred_fallthru
          _
        %s669 = sand.u32 %s43, 1
        %s670 = scalar_lea.sflag [#allocation6], %s669
        %s671 = sand.u32 %s91, 1
        %s672 = smul.addr %s671, 16
        %s673 = scalar_lea.vmem [#allocation5], %s672
        // Predicated region
        $region89: #{tpu_custom_call.1} parent=83 // pred_check
          %p674 = pneg %p104
        $region90: #{tpu_custom_call.1} parent=83 // pred_check_branch
          %676 = sbr.rel (%p674) target = $region92
        $region91: #{tpu_custom_call.1} parent=83 // pred_region
          %677 = dma.done %s670, 256
        $region92: #{tpu_custom_call.1} parent=83 // pred_fallthru
          _
        // Predicated region
        $region93: #{tpu_custom_call.1} parent=83 // pred_check
          %p678 = pneg %p125
        $region94: #{tpu_custom_call.1} parent=83 // pred_check_branch
          %680 = sbr.rel (%p678) target = $region96
        $region95: #{tpu_custom_call.1} parent=83 // pred_region
          %681 = dma.done [#allocation6], 16
        $region96: #{tpu_custom_call.1} parent=83 // pred_fallthru
          _
        // Predicated region
        $region97: #{tpu_custom_call.1} parent=83 // pred_check
          %p682 = pneg %p146
        $region98: #{tpu_custom_call.1} parent=83 // pred_check_branch
          %684 = sbr.rel (%p682) target = $region100
        $region99: #{tpu_custom_call.1} parent=83 // pred_region
          %685 = dma.done [#allocation9], 16
        $region100: #{tpu_custom_call.1} parent=83 // pred_fallthru
          _
        // Predicated region
        $region101: #{tpu_custom_call.1} parent=83 // pred_check
          %p686 = pneg %p167
        $region102: #{tpu_custom_call.1} parent=83 // pred_check_branch
          %688 = sbr.rel (%p686) target = $region104
        $region103: #{tpu_custom_call.1} parent=83 // pred_region
          %689 = dma.done [#allocation9], 2048
        $region104: #{tpu_custom_call.1} parent=83 // pred_fallthru
          _
        // Predicated region
        $region105: #{tpu_custom_call.1} parent=83 // pred_check
          %p690 = pneg %p188
        $region106: #{tpu_custom_call.1} parent=83 // pred_check_branch
          %692 = sbr.rel (%p690) target = $region108
        $region107: #{tpu_custom_call.1} parent=83 // pred_region
          %693 = dma.done [#allocation12], 16
        $region108: #{tpu_custom_call.1} parent=83 // pred_fallthru
          _
        // Predicated region
        $region109: #{tpu_custom_call.1} parent=83 // pred_check
          %p694 = pneg %p209
        $region110: #{tpu_custom_call.1} parent=83 // pred_check_branch
          %696 = sbr.rel (%p694) target = $region112
        $region111: #{tpu_custom_call.1} parent=83 // pred_region
          %697 = dma.done [#allocation12], 4096
        $region112: #{tpu_custom_call.1} parent=83 // pred_fallthru
          _
        // Predicated region
        $region113: #{tpu_custom_call.1} parent=83 // pred_check
          %p698 = pneg %p230
        $region114: #{tpu_custom_call.1} parent=83 // pred_check_branch
          %700 = sbr.rel (%p698) target = $region116
        $region115: #{tpu_custom_call.1} parent=83 // pred_region
          %701 = dma.done [#allocation15], 32
        $region116: #{tpu_custom_call.1} parent=83 // pred_fallthru
          _
        // Predicated region
        $region117: #{tpu_custom_call.1} parent=83 // pred_check
          %p702 = pneg %p251
        $region118: #{tpu_custom_call.1} parent=83 // pred_check_branch
          %704 = sbr.rel (%p702) target = $region120
        $region119: #{tpu_custom_call.1} parent=83 // pred_region
          %705 = dma.done [#allocation15], 2048
        $region120: #{tpu_custom_call.1} parent=83 // pred_fallthru
          _
        // Predicated region
        $region121: #{tpu_custom_call.1} parent=83 // pred_check
          %p706 = pneg %p272
        $region122: #{tpu_custom_call.1} parent=83 // pred_check_branch
          %708 = sbr.rel (%p706) target = $region124
        $region123: #{tpu_custom_call.1} parent=83 // pred_region
          %709 = dma.done [#allocation18], 16
        $region124: #{tpu_custom_call.1} parent=83 // pred_fallthru
          _
        // Predicated region
        $region125: #{tpu_custom_call.1} parent=83 // pred_check
          %p710 = pneg %p293
        $region126: #{tpu_custom_call.1} parent=83 // pred_check_branch
          %712 = sbr.rel (%p710) target = $region128
        $region127: #{tpu_custom_call.1} parent=83 // pred_region
          %713 = dma.done [#allocation18], 16
        $region128: #{tpu_custom_call.1} parent=83 // pred_fallthru
          _
        // Predicated region
        $region129: #{tpu_custom_call.1} parent=83 // pred_check
          %p714 = pneg %p314
        $region130: #{tpu_custom_call.1} parent=83 // pred_check_branch
          %716 = sbr.rel (%p714) target = $region132
        $region131: #{tpu_custom_call.1} parent=83 // pred_region
          %717 = dma.done [#allocation21], 16
        $region132: #{tpu_custom_call.1} parent=83 // pred_fallthru
          _
        // Predicated region
        $region133: #{tpu_custom_call.1} parent=83 // pred_check
          %p718 = pneg %p335
        $region134: #{tpu_custom_call.1} parent=83 // pred_check_branch
          %720 = sbr.rel (%p718) target = $region136
        $region135: #{tpu_custom_call.1} parent=83 // pred_region
          %721 = dma.done [#allocation21], 4096
        $region136: #{tpu_custom_call.1} parent=83 // pred_fallthru
          _
        // Predicated region
        $region137: #{tpu_custom_call.1} parent=83 // pred_check
          %p722 = pneg %p356
        $region138: #{tpu_custom_call.1} parent=83 // pred_check_branch
          %724 = sbr.rel (%p722) target = $region140
        $region139: #{tpu_custom_call.1} parent=83 // pred_region
          %725 = dma.done [#allocation24], 32
        $region140: #{tpu_custom_call.1} parent=83 // pred_fallthru
          _
        // Predicated region
        $region141: #{tpu_custom_call.1} parent=83 // pred_check
          %p726 = pneg %p377
        $region142: #{tpu_custom_call.1} parent=83 // pred_check_branch
          %728 = sbr.rel (%p726) target = $region144
        $region143: #{tpu_custom_call.1} parent=83 // pred_region
          %729 = dma.done [#allocation24], 4096
        $region144: #{tpu_custom_call.1} parent=83 // pred_fallthru
          _
        // Predicated region
        $region145: #{tpu_custom_call.1} parent=83 // pred_check
          %p730 = pneg %p398
        $region146: #{tpu_custom_call.1} parent=83 // pred_check_branch
          %732 = sbr.rel (%p730) target = $region148
        $region147: #{tpu_custom_call.1} parent=83 // pred_region
          %733 = dma.done [#allocation27], 16
        $region148: #{tpu_custom_call.1} parent=83 // pred_fallthru
          _
        %s734 = sand.u32 %s65, 1
        %s735 = scalar_lea.sflag [#allocation3], %s734
        %s736 = sand.u32 %s65, 1
        %s737 = smul.addr %s736, 16
        %s738 = scalar_lea.vmem [#allocation2], %s737
        %p739 = pneg %p78
        %p740 = pneg %p75
        %s741 = sand.u32 %s43, 1
        %s742 = scalar_lea.sflag [#allocation6], %s741
        %s743 = sand.u32 %s91, 1
        %s744 = smul.addr %s743, 16
        %s745 = scalar_lea.vmem [#allocation5], %s744
        %p746 = pneg %p104
        %p747 = pneg %p101
        %p748 = pneg %p125
        %p749 = pneg %p122
        %p750 = pneg %p146
        %p751 = pneg %p143
        %p752 = pneg %p167
        %p753 = pneg %p164
        %p754 = pneg %p188
        %p755 = pneg %p185
        %p756 = pneg %p209
        %p757 = pneg %p206
        %p758 = pneg %p230
        %p759 = pneg %p227
        %p760 = pneg %p251
        %p761 = pneg %p248
        %p762 = pneg %p272
        %p763 = pneg %p269
        %p764 = pneg %p293
        %p765 = pneg %p290
        %p766 = pneg %p314
        %p767 = pneg %p311
        %p768 = pneg %p335
        %p769 = pneg %p332
        %p770 = pneg %p356
        %p771 = pneg %p353
        %p772 = pneg %p377
        %p773 = pneg %p374
        %p774 = pneg %p398
        %p775 = pneg %p395
        %p776 = pneg %p426
        %p777 = pneg %p423
        %s778 = sand.u32 %s413, 1
        %s779 = scalar_lea.sflag [#allocation4], %s778
        %s780 = sand.u32 %s413, 1
        %s781 = smul.addr %s780, 16
        %s782 = scalar_lea.vmem [#allocation28], %s781
        %s783 = smul.u32 2, %s48
        %s784 = smul.u32 2, %s48
        %v785 = vld [vmem:[%s664] sm:$0xff]
        %v786 = vld [vmem:[%s664 + $0x8] sm:$0xff]
        %v787 = vld [vmem:[%s673] sm:$0xff]
        %v788 = vld [vmem:[%s673 + $0x8] sm:$0xff]
        %v789 = vld [vmem:[#allocation7] sm:$0x1]
        %v790 = vld [vmem:[#allocation8] sm:$0x1]
        %791 = vadd.xlane.f32.xlu0 %v787
        %v792 = vpop.xlane.xlu0 %791
        %793 = vadd.xlane.f32.xlu0 %v788
        %v794 = vpop.xlane.xlu0 %793
        %v795 = vrcp.pop 128.0
        %v796 = vmul.f32 %v792, %v795
        %v797 = vmul.f32 %v794, %v795
        %v798 = vsub.f32 %v787, %v796
        %v799 = vsub.f32 %v788, %v797
        %v800 = vmul.f32 %v798, %v798
        %v801 = vmul.f32 %v799, %v799
        %802 = vadd.xlane.f32.xlu0 %v800
        %v803 = vpop.xlane.xlu0 %802
        %804 = vadd.xlane.f32.xlu0 %v801
        %v805 = vpop.xlane.xlu0 %804
        %v806 = vmul.f32 %v803, %v795
        %v807 = vmul.f32 %v805, %v795
        %v808 = vadd.f32 %v806, 1e-05
        %v809 = vadd.f32 %v807, 1e-05
        %v810 = vrsqrt.pop %v808
        %v811 = vrsqrt.pop %v809
        %v812 = vmul.f32 %v798, %v810
        %v813 = vmul.f32 %v799, %v811
        %v815 = vlaneseq
        %v816 = vshrl.u32 %v815, 7
        %v817 = vsub.s32 0, %v816
        %v818 = vrot.slane %v789, %v817
        %v820 = vmul.f32 %v812, %v818
        %v821 = vmul.f32 %v813, %v818
        %v823 = vlaneseq
        %v824 = vshrl.u32 %v823, 7
        %v825 = vsub.s32 0, %v824
        %v826 = vrot.slane %v790, %v825
        %v828 = vadd.f32 %v820, %v826
        %v829 = vadd.f32 %v821, %v826
        %v830 = vld [vmem:[#allocation13] sm:$0xff]
        %v831 = vld [vmem:[#allocation13 + $0x8] sm:$0xff]
        %v832 = vld [vmem:[#allocation13 + $0x10] sm:$0xff]
        %v833 = vld [vmem:[#allocation13 + $0x18] sm:$0xff]
        %v834 = vld [vmem:[#allocation13 + $0x20] sm:$0xff]
        %v835 = vld [vmem:[#allocation13 + $0x28] sm:$0xff]
        %v836 = vld [vmem:[#allocation13 + $0x30] sm:$0xff]
        %v837 = vld [vmem:[#allocation13 + $0x38] sm:$0xff]
        %v838 = vld [vmem:[#allocation13 + $0x40] sm:$0xff]
        %v839 = vld [vmem:[#allocation13 + $0x48] sm:$0xff]
        %v840 = vld [vmem:[#allocation13 + $0x50] sm:$0xff]
        %v841 = vld [vmem:[#allocation13 + $0x58] sm:$0xff]
        %v842 = vld [vmem:[#allocation13 + $0x60] sm:$0xff]
        %v843 = vld [vmem:[#allocation13 + $0x68] sm:$0xff]
        %v844 = vld [vmem:[#allocation13 + $0x70] sm:$0xff]
        %v845 = vld [vmem:[#allocation13 + $0x78] sm:$0xff]
        %v846 = vld [vmem:[#allocation13 + $0x80] sm:$0xff]
        %v847 = vld [vmem:[#allocation13 + $0x88] sm:$0xff]
        %v848 = vld [vmem:[#allocation13 + $0x90] sm:$0xff]
        %v849 = vld [vmem:[#allocation13 + $0x98] sm:$0xff]
        %v850 = vld [vmem:[#allocation13 + $0xa0] sm:$0xff]
        %v851 = vld [vmem:[#allocation13 + $0xa8] sm:$0xff]
        %v852 = vld [vmem:[#allocation13 + $0xb0] sm:$0xff]
        %v853 = vld [vmem:[#allocation13 + $0xb8] sm:$0xff]
        %v854 = vld [vmem:[#allocation13 + $0xc0] sm:$0xff]
        %v855 = vld [vmem:[#allocation13 + $0xc8] sm:$0xff]
        %v856 = vld [vmem:[#allocation13 + $0xd0] sm:$0xff]
        %v857 = vld [vmem:[#allocation13 + $0xd8] sm:$0xff]
        %v858 = vld [vmem:[#allocation13 + $0xe0] sm:$0xff]
        %v859 = vld [vmem:[#allocation13 + $0xe8] sm:$0xff]
        %v860 = vld [vmem:[#allocation13 + $0xf0] sm:$0xff]
        %v861 = vld [vmem:[#allocation13 + $0xf8] sm:$0xff]
        %v862 = vld [vmem:[#allocation14] sm:$0x3]
        %v864 = vlaneseq
        %v865 = vshrl.u32 %v864, 7
        %v866 = vsub.s32 0, %v865
        %v867 = vrot.slane %v862, %v866
        %v868 = vlaneseq
        %v869 = vshrl.u32 %v868, 7
        %v870 = vsub.s32 1, %v869
        %v871 = vrot.slane %v862, %v870
        %874 = vmatprep.subr.mxu0 %v831
        %875 = vmatpush1.msra.mxu0 %v830
        %876 = vmatprep.subr.mxu0 %v833
        %877 = vmatpush1.msra.mxu0 %v832
        %878 = vmatprep.subr.mxu0 %v835
        %879 = vmatpush1.msra.mxu0 %v834
        %880 = vmatprep.subr.mxu0 %v837
        %881 = vmatpush1.msra.mxu0 %v836
        %882 = vmatprep.subr.mxu0 %v839
        %883 = vmatpush1.msra.mxu0 %v838
        %884 = vmatprep.subr.mxu0 %v841
        %885 = vmatpush1.msra.mxu0 %v840
        %886 = vmatprep.subr.mxu0 %v843
        %887 = vmatpush1.msra.mxu0 %v842
        %888 = vmatprep.subr.mxu0 %v845
        %889 = vmatpush1.msra.mxu0 %v844
        %890 = vmatprep.subr.mxu0 %v847
        %891 = vmatpush1.msra.mxu0 %v846
        %892 = vmatprep.subr.mxu0 %v849
        %893 = vmatpush1.msra.mxu0 %v848
        %894 = vmatprep.subr.mxu0 %v851
        %895 = vmatpush1.msra.mxu0 %v850
        %896 = vmatprep.subr.mxu0 %v853
        %897 = vmatpush1.msra.mxu0 %v852
        %898 = vmatprep.subr.mxu0 %v855
        %899 = vmatpush1.msra.mxu0 %v854
        %900 = vmatprep.subr.mxu0 %v857
        %901 = vmatpush1.msra.mxu0 %v856
        %902 = vmatprep.subr.mxu0 %v859
        %903 = vmatpush1.msra.mxu0 %v858
        %904 = vmatprep.subr.mxu0 %v861
        %905 = vmatpush1.msra.mxu0 %v860
        %906 = vmatprep.subr.mxu0 0.0
        %907 = vmatpush1.msra.mxu0 0.0
        %908 = vmatprep.subr.mxu0 0.0
        %909 = vmatpush1.msra.mxu0 0.0
        %910 = vmatprep.subr.mxu0 0.0
        %911 = vmatpush1.msra.mxu0 0.0
        %912 = vmatprep.subr.mxu0 0.0
        %913 = vmatpush1.msra.mxu0 0.0
        %914 = vmatprep.subr.mxu0 0.0
        %915 = vmatpush1.msra.mxu0 0.0
        %916 = vmatprep.subr.mxu0 0.0
        %917 = vmatpush1.msra.mxu0 0.0
        %918 = vmatprep.subr.mxu0 0.0
        %919 = vmatpush1.msra.mxu0 0.0
        %920 = vmatprep.subr.mxu0 0.0
        %921 = vmatpush1.msra.mxu0 0.0
        %922 = vmatprep.subr.mxu0 0.0
        %923 = vmatpush1.msra.mxu0 0.0
        %924 = vmatprep.subr.mxu0 0.0
        %925 = vmatpush1.msra.mxu0 0.0
        %926 = vmatprep.subr.mxu0 0.0
        %927 = vmatpush1.msra.mxu0 0.0
        %928 = vmatprep.subr.mxu0 0.0
        %929 = vmatpush1.msra.mxu0 0.0
        %930 = vmatprep.subr.mxu0 0.0
        %931 = vmatpush1.msra.mxu0 0.0
        %932 = vmatprep.subr.mxu0 0.0
        %933 = vmatpush1.msra.mxu0 0.0
        %934 = vmatprep.subr.mxu0 0.0
        %935 = vmatpush1.msra.mxu0 0.0
        %936 = vmatprep.subr.mxu0 0.0
        %937 = vmatpush1.msra.mxu0 0.0
        %938 = vmatprep.mubr.f32.mxu0 0.0
        %939 = vmatmul.mubr.f32.gmra.mrb[0].mxu0 %v828
        %v940 = vpop.f32.mrb[0].mxu0
        %v941 = vadd.f32 %v867, %v940
        %v942 = vpop.f32.mrb[0].mxu0
        %v943 = vadd.f32 %v871, %v942
        %944 = vmatprep.mubr.f32.mxu0 0.0
        %945 = vmatmul.mubr.f32.gmra.mrb[0].mxu0 %v829
        %v946 = vpop.f32.mrb[0].mxu0
        %v947 = vadd.f32 %v867, %v946
        %v948 = vpop.f32.mrb[0].mxu0
        %v949 = vadd.f32 %v871, %v948
        %950 = vdwg.mxu0
        %951 = vadd.xlane.f32.xlu0 %v785
        %v952 = vpop.xlane.xlu0 %951
        %953 = vadd.xlane.f32.xlu0 %v786
        %v954 = vpop.xlane.xlu0 %953
        %v955 = vmul.f32 %v952, %v795
        %v956 = vmul.f32 %v954, %v795
        %v957 = vsub.f32 %v785, %v955
        %v958 = vsub.f32 %v786, %v956
        %v959 = vmul.f32 %v957, %v957
        %v960 = vmul.f32 %v958, %v958
        %961 = vadd.xlane.f32.xlu0 %v959
        %v962 = vpop.xlane.xlu0 %961
        %963 = vadd.xlane.f32.xlu0 %v960
        %v964 = vpop.xlane.xlu0 %963
        %v965 = vmul.f32 %v962, %v795
        %v966 = vmul.f32 %v964, %v795
        %v967 = vadd.f32 %v965, 1e-05
        %v968 = vadd.f32 %v966, 1e-05
        %v969 = vrsqrt.pop %v967
        %v970 = vrsqrt.pop %v968
        %v971 = vmul.f32 %v957, %v969
        %v972 = vmul.f32 %v958, %v970
        %v973 = vmul.f32 %v971, %v818
        %v974 = vmul.f32 %v972, %v818
        %v975 = vadd.f32 %v973, %v826
        %v976 = vadd.f32 %v974, %v826
        %v977 = vld [vmem:[#allocation10] sm:$0xff]
        %v978 = vld [vmem:[#allocation10 + $0x8] sm:$0xff]
        %v979 = vld [vmem:[#allocation10 + $0x10] sm:$0xff]
        %v980 = vld [vmem:[#allocation10 + $0x18] sm:$0xff]
        %v981 = vld [vmem:[#allocation10 + $0x20] sm:$0xff]
        %v982 = vld [vmem:[#allocation10 + $0x28] sm:$0xff]
        %v983 = vld [vmem:[#allocation10 + $0x30] sm:$0xff]
        %v984 = vld [vmem:[#allocation10 + $0x38] sm:$0xff]
        %v985 = vld [vmem:[#allocation10 + $0x40] sm:$0xff]
        %v986 = vld [vmem:[#allocation10 + $0x48] sm:$0xff]
        %v987 = vld [vmem:[#allocation10 + $0x50] sm:$0xff]
        %v988 = vld [vmem:[#allocation10 + $0x58] sm:$0xff]
        %v989 = vld [vmem:[#allocation10 + $0x60] sm:$0xff]
        %v990 = vld [vmem:[#allocation10 + $0x68] sm:$0xff]
        %v991 = vld [vmem:[#allocation10 + $0x70] sm:$0xff]
        %v992 = vld [vmem:[#allocation10 + $0x78] sm:$0xff]
        %v993 = vld [vmem:[#allocation11] sm:$0x1]
        %v995 = vlaneseq
        %v996 = vshrl.u32 %v995, 7
        %v997 = vsub.s32 0, %v996
        %v998 = vrot.slane %v993, %v997
        %1000 = vmatprep.subr.mxu0 0.0
        %1001 = vmatpush1.msra.mxu0 %v977
        %1002 = vmatprep.subr.mxu0 0.0
        %1003 = vmatpush1.msra.mxu0 %v978
        %1004 = vmatprep.subr.mxu0 0.0
        %1005 = vmatpush1.msra.mxu0 %v979
        %1006 = vmatprep.subr.mxu0 0.0
        %1007 = vmatpush1.msra.mxu0 %v980
        %1008 = vmatprep.subr.mxu0 0.0
        %1009 = vmatpush1.msra.mxu0 %v981
        %1010 = vmatprep.subr.mxu0 0.0
        %1011 = vmatpush1.msra.mxu0 %v982
        %1012 = vmatprep.subr.mxu0 0.0
        %1013 = vmatpush1.msra.mxu0 %v983
        %1014 = vmatprep.subr.mxu0 0.0
        %1015 = vmatpush1.msra.mxu0 %v984
        %1016 = vmatprep.subr.mxu0 0.0
        %1017 = vmatpush1.msra.mxu0 %v985
        %1018 = vmatprep.subr.mxu0 0.0
        %1019 = vmatpush1.msra.mxu0 %v986
        %1020 = vmatprep.subr.mxu0 0.0
        %1021 = vmatpush1.msra.mxu0 %v987
        %1022 = vmatprep.subr.mxu0 0.0
        %1023 = vmatpush1.msra.mxu0 %v988
        %1024 = vmatprep.subr.mxu0 0.0
        %1025 = vmatpush1.msra.mxu0 %v989
        %1026 = vmatprep.subr.mxu0 0.0
        %1027 = vmatpush1.msra.mxu0 %v990
        %1028 = vmatprep.subr.mxu0 0.0
        %1029 = vmatpush1.msra.mxu0 %v991
        %1030 = vmatprep.subr.mxu0 0.0
        %1031 = vmatpush1.msra.mxu0 %v992
        %1032 = vmatprep.subr.mxu0 0.0
        %1033 = vmatpush1.msra.mxu0 0.0
        %1034 = vmatprep.subr.mxu0 0.0
        %1035 = vmatpush1.msra.mxu0 0.0
        %1036 = vmatprep.subr.mxu0 0.0
        %1037 = vmatpush1.msra.mxu0 0.0
        %1038 = vmatprep.subr.mxu0 0.0
        %1039 = vmatpush1.msra.mxu0 0.0
        %1040 = vmatprep.subr.mxu0 0.0
        %1041 = vmatpush1.msra.mxu0 0.0
        %1042 = vmatprep.subr.mxu0 0.0
        %1043 = vmatpush1.msra.mxu0 0.0
        %1044 = vmatprep.subr.mxu0 0.0
        %1045 = vmatpush1.msra.mxu0 0.0
        %1046 = vmatprep.subr.mxu0 0.0
        %1047 = vmatpush1.msra.mxu0 0.0
        %1048 = vmatprep.subr.mxu0 0.0
        %1049 = vmatpush1.msra.mxu0 0.0
        %1050 = vmatprep.subr.mxu0 0.0
        %1051 = vmatpush1.msra.mxu0 0.0
        %1052 = vmatprep.subr.mxu0 0.0
        %1053 = vmatpush1.msra.mxu0 0.0
        %1054 = vmatprep.subr.mxu0 0.0
        %1055 = vmatpush1.msra.mxu0 0.0
        %1056 = vmatprep.subr.mxu0 0.0
        %1057 = vmatpush1.msra.mxu0 0.0
        %1058 = vmatprep.subr.mxu0 0.0
        %1059 = vmatpush1.msra.mxu0 0.0
        %1060 = vmatprep.subr.mxu0 0.0
        %1061 = vmatpush1.msra.mxu0 0.0
        %1062 = vmatprep.subr.mxu0 0.0
        %1063 = vmatpush1.msra.mxu0 0.0
        %1064 = vmatprep.mubr.f32.mxu0 0.0
        %1065 = vmatmul.mubr.f32.gmra.mrb[0].mxu0 %v975
        %v1066 = vpop.f32.mrb[0].mxu0
        %v1067 = vadd.f32 %v998, %v1066
        %v1068 = vpop.f32.mrb[0].mxu0
        %1069 = vmatprep.mubr.f32.mxu0 0.0
        %1070 = vmatmul.mubr.f32.gmra.mrb[0].mxu0 %v976
        %v1071 = vpop.f32.mrb[0].mxu0
        %v1072 = vadd.f32 %v998, %v1071
        %v1073 = vpop.f32.mrb[0].mxu0
        %1074 = vdwg.mxu0
        %v1075 = vmul.f32 %v1067, 0.17677669
        %v1076 = vmul.f32 %v1072, 0.17677669
        %vm1077 = vcmask 261120
        %v1079 = vsel %vm1077, %v1075, 0
        %v1082 = vsel %vm1077, %v1076, 0
        %v1085 = vsel %vm1077, %v941, 0
        %v1088 = vsel %vm1077, %v947, 0
        %1090 = vmatprep.subr.mxu0 0.0
        %1091 = vmatpush1.xpose.msra.mxu0 %v1085
        %1092 = vmatprep.subr.mxu0 0.0
        %1093 = vmatpush1.xpose.msra.mxu0 %v1088
        %1094 = vmatprep.subr.mxu0 0.0
        %1095 = vmatpush1.xpose.msra.mxu0 0.0
        %1096 = vmatprep.subr.mxu0 0.0
        %1097 = vmatpush1.xpose.msra.mxu0 0.0
        %1098 = vmatprep.subr.mxu0 0.0
        %1099 = vmatpush1.xpose.msra.mxu0 0.0
        %1100 = vmatprep.subr.mxu0 0.0
        %1101 = vmatpush1.xpose.msra.mxu0 0.0
        %1102 = vmatprep.subr.mxu0 0.0
        %1103 = vmatpush1.xpose.msra.mxu0 0.0
        %1104 = vmatprep.subr.mxu0 0.0
        %1105 = vmatpush1.xpose.msra.mxu0 0.0
        %1106 = vmatprep.subr.mxu0 0.0
        %1107 = vmatpush1.xpose.msra.mxu0 0.0
        %1108 = vmatprep.subr.mxu0 0.0
        %1109 = vmatpush1.xpose.msra.mxu0 0.0
        %1110 = vmatprep.subr.mxu0 0.0
        %1111 = vmatpush1.xpose.msra.mxu0 0.0
        %1112 = vmatprep.subr.mxu0 0.0
        %1113 = vmatpush1.xpose.msra.mxu0 0.0
        %1114 = vmatprep.subr.mxu0 0.0
        %1115 = vmatpush1.xpose.msra.mxu0 0.0
        %1116 = vmatprep.subr.mxu0 0.0
        %1117 = vmatpush1.xpose.msra.mxu0 0.0
        %1118 = vmatprep.subr.mxu0 0.0
        %1119 = vmatpush1.xpose.msra.mxu0 0.0
        %1120 = vmatprep.subr.mxu0 0.0
        %1121 = vmatpush1.xpose.msra.mxu0 0.0
        %1122 = vmatprep.subr.mxu0 0.0
        %1123 = vmatpush1.xpose.msra.mxu0 0.0
        %1124 = vmatprep.subr.mxu0 0.0
        %1125 = vmatpush1.xpose.msra.mxu0 0.0
        %1126 = vmatprep.subr.mxu0 0.0
        %1127 = vmatpush1.xpose.msra.mxu0 0.0
        %1128 = vmatprep.subr.mxu0 0.0
        %1129 = vmatpush1.xpose.msra.mxu0 0.0
        %1130 = vmatprep.subr.mxu0 0.0
        %1131 = vmatpush1.xpose.msra.mxu0 0.0
        %1132 = vmatprep.subr.mxu0 0.0
        %1133 = vmatpush1.xpose.msra.mxu0 0.0
        %1134 = vmatprep.subr.mxu0 0.0
        %1135 = vmatpush1.xpose.msra.mxu0 0.0
        %1136 = vmatprep.subr.mxu0 0.0
        %1137 = vmatpush1.xpose.msra.mxu0 0.0
        %1138 = vmatprep.subr.mxu0 0.0
        %1139 = vmatpush1.xpose.msra.mxu0 0.0
        %1140 = vmatprep.subr.mxu0 0.0
        %1141 = vmatpush1.xpose.msra.mxu0 0.0
        %1142 = vmatprep.subr.mxu0 0.0
        %1143 = vmatpush1.xpose.msra.mxu0 0.0
        %1144 = vmatprep.subr.mxu0 0.0
        %1145 = vmatpush1.xpose.msra.mxu0 0.0
        %1146 = vmatprep.subr.mxu0 0.0
        %1147 = vmatpush1.xpose.msra.mxu0 0.0
        %1148 = vmatprep.subr.mxu0 0.0
        %1149 = vmatpush1.xpose.msra.mxu0 0.0
        %1150 = vmatprep.subr.mxu0 0.0
        %1151 = vmatpush1.xpose.msra.mxu0 0.0
        %1152 = vmatprep.subr.mxu0 0.0
        %1153 = vmatpush1.xpose.msra.mxu0 0.0
        %1154 = vmatprep.mubr.f32.mxu0 0.0
        %1155 = vmatmul.mubr.f32.gmra.mrb[0].mxu0 %v1079
        %v1156 = vpop.f32.mrb[0].mxu0
        %v1157 = vadd.f32 0.0, %v1156
        %v1158 = vpop.f32.mrb[0].mxu0
        %1159 = vmatprep.mubr.f32.mxu0 0.0
        %1160 = vmatmul.mubr.f32.gmra.mrb[0].mxu0 %v1082
        %v1161 = vpop.f32.mrb[0].mxu0
        %v1162 = vadd.f32 0.0, %v1161
        %v1163 = vpop.f32.mrb[0].mxu0
        %1164 = vdwg.mxu0
        %vm1165 = vcmask 130048
        %v1166 = vsel %vm1165, %v1157, -inf
        %1167 = vmax.xlane.f32.xlu0 %v1166
        %v1168 = vpop.xlane.xlu0 %1167
        %v1169 = vsel %vm1165, %v1162, -inf
        %1170 = vmax.xlane.f32.xlu0 %v1169
        %v1171 = vpop.xlane.xlu0 %1170
        %v1172 = vsub.f32 %v1157, %v1168
        %v1173 = vsub.f32 %v1162, %v1171
        %v1174 = vmul.f32 %v1172, 1.442695
        %v1175 = vpow.pop %v1174
        %v1176 = vmul.f32 %v1173, 1.442695
        %v1177 = vpow.pop %v1176
        %v1178 = vsel %vm1165, %v1175, 0.0
        %1179 = vadd.xlane.f32.xlu0 %v1178
        %v1180 = vpop.xlane.xlu0 %1179
        %v1181 = vsel %vm1165, %v1177, 0.0
        %1182 = vadd.xlane.f32.xlu0 %v1181
        %v1183 = vpop.xlane.xlu0 %1182
        %v1184 = vrcp.pop %v1180
        %v1185 = vrcp.pop %v1183
        %v1186 = vmul.f32 %v1175, %v1184
        %v1187 = vmul.f32 %v1177, %v1185
        %v1189 = vsel %vm1165, %v1186, 0
        %v1192 = vsel %vm1165, %v1187, 0
        %1194 = vmatprep.subr.mxu0 0.0
        %1195 = vmatpush1.msra.mxu0 %v943
        %1196 = vmatprep.subr.mxu0 0.0
        %1197 = vmatpush1.msra.mxu0 %v949
        %1198 = vmatprep.subr.mxu0 0.0
        %1199 = vmatpush1.msra.mxu0 0.0
        %1200 = vmatprep.subr.mxu0 0.0
        %1201 = vmatpush1.msra.mxu0 0.0
        %1202 = vmatprep.subr.mxu0 0.0
        %1203 = vmatpush1.msra.mxu0 0.0
        %1204 = vmatprep.subr.mxu0 0.0
        %1205 = vmatpush1.msra.mxu0 0.0
        %1206 = vmatprep.subr.mxu0 0.0
        %1207 = vmatpush1.msra.mxu0 0.0
        %1208 = vmatprep.subr.mxu0 0.0
        %1209 = vmatpush1.msra.mxu0 0.0
        %1210 = vmatprep.subr.mxu0 0.0
        %1211 = vmatpush1.msra.mxu0 0.0
        %1212 = vmatprep.subr.mxu0 0.0
        %1213 = vmatpush1.msra.mxu0 0.0
        %1214 = vmatprep.subr.mxu0 0.0
        %1215 = vmatpush1.msra.mxu0 0.0
        %1216 = vmatprep.subr.mxu0 0.0
        %1217 = vmatpush1.msra.mxu0 0.0
        %1218 = vmatprep.subr.mxu0 0.0
        %1219 = vmatpush1.msra.mxu0 0.0
        %1220 = vmatprep.subr.mxu0 0.0
        %1221 = vmatpush1.msra.mxu0 0.0
        %1222 = vmatprep.subr.mxu0 0.0
        %1223 = vmatpush1.msra.mxu0 0.0
        %1224 = vmatprep.subr.mxu0 0.0
        %1225 = vmatpush1.msra.mxu0 0.0
        %1226 = vmatprep.subr.mxu0 0.0
        %1227 = vmatpush1.msra.mxu0 0.0
        %1228 = vmatprep.subr.mxu0 0.0
        %1229 = vmatpush1.msra.mxu0 0.0
        %1230 = vmatprep.subr.mxu0 0.0
        %1231 = vmatpush1.msra.mxu0 0.0
        %1232 = vmatprep.subr.mxu0 0.0
        %1233 = vmatpush1.msra.mxu0 0.0
        %1234 = vmatprep.subr.mxu0 0.0
        %1235 = vmatpush1.msra.mxu0 0.0
        %1236 = vmatprep.subr.mxu0 0.0
        %1237 = vmatpush1.msra.mxu0 0.0
        %1238 = vmatprep.subr.mxu0 0.0
        %1239 = vmatpush1.msra.mxu0 0.0
        %1240 = vmatprep.subr.mxu0 0.0
        %1241 = vmatpush1.msra.mxu0 0.0
        %1242 = vmatprep.subr.mxu0 0.0
        %1243 = vmatpush1.msra.mxu0 0.0
        %1244 = vmatprep.subr.mxu0 0.0
        %1245 = vmatpush1.msra.mxu0 0.0
        %1246 = vmatprep.subr.mxu0 0.0
        %1247 = vmatpush1.msra.mxu0 0.0
        %1248 = vmatprep.subr.mxu0 0.0
        %1249 = vmatpush1.msra.mxu0 0.0
        %1250 = vmatprep.subr.mxu0 0.0
        %1251 = vmatpush1.msra.mxu0 0.0
        %1252 = vmatprep.subr.mxu0 0.0
        %1253 = vmatpush1.msra.mxu0 0.0
        %1254 = vmatprep.subr.mxu0 0.0
        %1255 = vmatpush1.msra.mxu0 0.0
        %1256 = vmatprep.subr.mxu0 0.0
        %1257 = vmatpush1.msra.mxu0 0.0
        %1258 = vmatprep.mubr.f32.mxu0 0.0
        %1259 = vmatmul.mubr.f32.gmra.mrb[0].mxu0 %v1189
        %v1260 = vpop.f32.mrb[0].mxu0
        %v1261 = vadd.f32 0.0, %v1260
        %v1262 = vpop.f32.mrb[0].mxu0
        %1263 = vmatprep.mubr.f32.mxu0 0.0
        %1264 = vmatmul.mubr.f32.gmra.mrb[0].mxu0 %v1192
        %v1265 = vpop.f32.mrb[0].mxu0
        %v1266 = vadd.f32 0.0, %v1265
        %v1267 = vpop.f32.mrb[0].mxu0
        %1268 = vdwg.mxu0
        %v1269 = vld [vmem:[#allocation16] sm:$0xff]
        %v1270 = vld [vmem:[#allocation16 + $0x8] sm:$0xff]
        %v1271 = vld [vmem:[#allocation16 + $0x10] sm:$0xff]
        %v1272 = vld [vmem:[#allocation16 + $0x18] sm:$0xff]
        %1273 = vrot.lane.b32.xlu0 %v1075, 96
        %v1274 = vpop.permute.xlu0 %1273
        %1275 = vrot.lane.b32.xlu0 %v1076, 96
        %v1276 = vpop.permute.xlu0 %1275
        %1277 = vrot.lane.b32.xlu0 %v941, 96
        %v1278 = vpop.permute.xlu0 %1277
        %1279 = vrot.lane.b32.xlu0 %v947, 96
        %v1280 = vpop.permute.xlu0 %1279
        %v1281 = vsel %vm1077, %v1274, 0
        %v1283 = vsel %vm1077, %v1276, 0
        %v1285 = vsel %vm1077, %v1278, 0
        %v1287 = vsel %vm1077, %v1280, 0
        %1289 = vmatprep.subr.mxu0 0.0
        %1290 = vmatpush1.xpose.msra.mxu0 %v1285
        %1291 = vmatprep.subr.mxu0 0.0
        %1292 = vmatpush1.xpose.msra.mxu0 %v1287
        %1293 = vmatprep.subr.mxu0 0.0
        %1294 = vmatpush1.xpose.msra.mxu0 0.0
        %1295 = vmatprep.subr.mxu0 0.0
        %1296 = vmatpush1.xpose.msra.mxu0 0.0
        %1297 = vmatprep.subr.mxu0 0.0
        %1298 = vmatpush1.xpose.msra.mxu0 0.0
        %1299 = vmatprep.subr.mxu0 0.0
        %1300 = vmatpush1.xpose.msra.mxu0 0.0
        %1301 = vmatprep.subr.mxu0 0.0
        %1302 = vmatpush1.xpose.msra.mxu0 0.0
        %1303 = vmatprep.subr.mxu0 0.0
        %1304 = vmatpush1.xpose.msra.mxu0 0.0
        %1305 = vmatprep.subr.mxu0 0.0
        %1306 = vmatpush1.xpose.msra.mxu0 0.0
        %1307 = vmatprep.subr.mxu0 0.0
        %1308 = vmatpush1.xpose.msra.mxu0 0.0
        %1309 = vmatprep.subr.mxu0 0.0
        %1310 = vmatpush1.xpose.msra.mxu0 0.0
        %1311 = vmatprep.subr.mxu0 0.0
        %1312 = vmatpush1.xpose.msra.mxu0 0.0
        %1313 = vmatprep.subr.mxu0 0.0
        %1314 = vmatpush1.xpose.msra.mxu0 0.0
        %1315 = vmatprep.subr.mxu0 0.0
        %1316 = vmatpush1.xpose.msra.mxu0 0.0
        %1317 = vmatprep.subr.mxu0 0.0
        %1318 = vmatpush1.xpose.msra.mxu0 0.0
        %1319 = vmatprep.subr.mxu0 0.0
        %1320 = vmatpush1.xpose.msra.mxu0 0.0
        %1321 = vmatprep.subr.mxu0 0.0
        %1322 = vmatpush1.xpose.msra.mxu0 0.0
        %1323 = vmatprep.subr.mxu0 0.0
        %1324 = vmatpush1.xpose.msra.mxu0 0.0
        %1325 = vmatprep.subr.mxu0 0.0
        %1326 = vmatpush1.xpose.msra.mxu0 0.0
        %1327 = vmatprep.subr.mxu0 0.0
        %1328 = vmatpush1.xpose.msra.mxu0 0.0
        %1329 = vmatprep.subr.mxu0 0.0
        %1330 = vmatpush1.xpose.msra.mxu0 0.0
        %1331 = vmatprep.subr.mxu0 0.0
        %1332 = vmatpush1.xpose.msra.mxu0 0.0
        %1333 = vmatprep.subr.mxu0 0.0
        %1334 = vmatpush1.xpose.msra.mxu0 0.0
        %1335 = vmatprep.subr.mxu0 0.0
        %1336 = vmatpush1.xpose.msra.mxu0 0.0
        %1337 = vmatprep.subr.mxu0 0.0
        %1338 = vmatpush1.xpose.msra.mxu0 0.0
        %1339 = vmatprep.subr.mxu0 0.0
        %1340 = vmatpush1.xpose.msra.mxu0 0.0
        %1341 = vmatprep.subr.mxu0 0.0
        %1342 = vmatpush1.xpose.msra.mxu0 0.0
        %1343 = vmatprep.subr.mxu0 0.0
        %1344 = vmatpush1.xpose.msra.mxu0 0.0
        %1345 = vmatprep.subr.mxu0 0.0
        %1346 = vmatpush1.xpose.msra.mxu0 0.0
        %1347 = vmatprep.subr.mxu0 0.0
        %1348 = vmatpush1.xpose.msra.mxu0 0.0
        %1349 = vmatprep.subr.mxu0 0.0
        %1350 = vmatpush1.xpose.msra.mxu0 0.0
        %1351 = vmatprep.subr.mxu0 0.0
        %1352 = vmatpush1.xpose.msra.mxu0 0.0
        %1353 = vmatprep.mubr.f32.mxu0 0.0
        %1354 = vmatmul.mubr.f32.gmra.mrb[0].mxu0 %v1281
        %v1355 = vpop.f32.mrb[0].mxu0
        %v1356 = vadd.f32 0.0, %v1355
        %v1357 = vpop.f32.mrb[0].mxu0
        %1358 = vmatprep.mubr.f32.mxu0 0.0
        %1359 = vmatmul.mubr.f32.gmra.mrb[0].mxu0 %v1283
        %v1360 = vpop.f32.mrb[0].mxu0
        %v1361 = vadd.f32 0.0, %v1360
        %v1362 = vpop.f32.mrb[0].mxu0
        %1363 = vdwg.mxu0
        %v1364 = vsel %vm1165, %v1356, -inf
        %1365 = vmax.xlane.f32.xlu0 %v1364
        %v1366 = vpop.xlane.xlu0 %1365
        %v1367 = vsel %vm1165, %v1361, -inf
        %1368 = vmax.xlane.f32.xlu0 %v1367
        %v1369 = vpop.xlane.xlu0 %1368
        %v1370 = vsub.f32 %v1356, %v1366
        %v1371 = vsub.f32 %v1361, %v1369
        %v1372 = vmul.f32 %v1370, 1.442695
        %v1373 = vpow.pop %v1372
        %v1374 = vmul.f32 %v1371, 1.442695
        %v1375 = vpow.pop %v1374
        %v1376 = vsel %vm1165, %v1373, 0.0
        %1377 = vadd.xlane.f32.xlu0 %v1376
        %v1378 = vpop.xlane.xlu0 %1377
        %v1379 = vsel %vm1165, %v1375, 0.0
        %1380 = vadd.xlane.f32.xlu0 %v1379
        %v1381 = vpop.xlane.xlu0 %1380
        %v1382 = vrcp.pop %v1378
        %v1383 = vrcp.pop %v1381
        %v1384 = vmul.f32 %v1373, %v1382
        %v1385 = vmul.f32 %v1375, %v1383
        %1388 = vrot.lane.b32.xlu0 %v943, 96
        %v1389 = vpop.permute.xlu0 %1388
        %1390 = vrot.lane.b32.xlu0 %v949, 96
        %v1391 = vpop.permute.xlu0 %1390
        %v1395 = vsel %vm1165, %v1384, 0
        %v1398 = vsel %vm1165, %v1385, 0
        %1400 = vmatprep.subr.mxu0 0.0
        %1401 = vmatpush1.msra.mxu0 %v1389
        %1402 = vmatprep.subr.mxu0 0.0
        %1403 = vmatpush1.msra.mxu0 %v1391
        %1404 = vmatprep.subr.mxu0 0.0
        %1405 = vmatpush1.msra.mxu0 0.0
        %1406 = vmatprep.subr.mxu0 0.0
        %1407 = vmatpush1.msra.mxu0 0.0
        %1408 = vmatprep.subr.mxu0 0.0
        %1409 = vmatpush1.msra.mxu0 0.0
        %1410 = vmatprep.subr.mxu0 0.0
        %1411 = vmatpush1.msra.mxu0 0.0
        %1412 = vmatprep.subr.mxu0 0.0
        %1413 = vmatpush1.msra.mxu0 0.0
        %1414 = vmatprep.subr.mxu0 0.0
        %1415 = vmatpush1.msra.mxu0 0.0
        %1416 = vmatprep.subr.mxu0 0.0
        %1417 = vmatpush1.msra.mxu0 0.0
        %1418 = vmatprep.subr.mxu0 0.0
        %1419 = vmatpush1.msra.mxu0 0.0
        %1420 = vmatprep.subr.mxu0 0.0
        %1421 = vmatpush1.msra.mxu0 0.0
        %1422 = vmatprep.subr.mxu0 0.0
        %1423 = vmatpush1.msra.mxu0 0.0
        %1424 = vmatprep.subr.mxu0 0.0
        %1425 = vmatpush1.msra.mxu0 0.0
        %1426 = vmatprep.subr.mxu0 0.0
        %1427 = vmatpush1.msra.mxu0 0.0
        %1428 = vmatprep.subr.mxu0 0.0
        %1429 = vmatpush1.msra.mxu0 0.0
        %1430 = vmatprep.subr.mxu0 0.0
        %1431 = vmatpush1.msra.mxu0 0.0
        %1432 = vmatprep.subr.mxu0 0.0
        %1433 = vmatpush1.msra.mxu0 0.0
        %1434 = vmatprep.subr.mxu0 0.0
        %1435 = vmatpush1.msra.mxu0 0.0
        %1436 = vmatprep.subr.mxu0 0.0
        %1437 = vmatpush1.msra.mxu0 0.0
        %1438 = vmatprep.subr.mxu0 0.0
        %1439 = vmatpush1.msra.mxu0 0.0
        %1440 = vmatprep.subr.mxu0 0.0
        %1441 = vmatpush1.msra.mxu0 0.0
        %1442 = vmatprep.subr.mxu0 0.0
        %1443 = vmatpush1.msra.mxu0 0.0
        %1444 = vmatprep.subr.mxu0 0.0
        %1445 = vmatpush1.msra.mxu0 0.0
        %1446 = vmatprep.subr.mxu0 0.0
        %1447 = vmatpush1.msra.mxu0 0.0
        %1448 = vmatprep.subr.mxu0 0.0
        %1449 = vmatpush1.msra.mxu0 0.0
        %1450 = vmatprep.subr.mxu0 0.0
        %1451 = vmatpush1.msra.mxu0 0.0
        %1452 = vmatprep.subr.mxu0 0.0
        %1453 = vmatpush1.msra.mxu0 0.0
        %1454 = vmatprep.subr.mxu0 0.0
        %1455 = vmatpush1.msra.mxu0 0.0
        %1456 = vmatprep.subr.mxu0 0.0
        %1457 = vmatpush1.msra.mxu0 0.0
        %1458 = vmatprep.subr.mxu0 0.0
        %1459 = vmatpush1.msra.mxu0 0.0
        %1460 = vmatprep.subr.mxu0 0.0
        %1461 = vmatpush1.msra.mxu0 0.0
        %1462 = vmatprep.subr.mxu0 0.0
        %1463 = vmatpush1.msra.mxu0 0.0
        %1464 = vmatprep.mubr.f32.mxu0 0.0
        %1465 = vmatmul.mubr.f32.gmra.mrb[0].mxu0 %v1395
        %v1466 = vpop.f32.mrb[0].mxu0
        %v1467 = vadd.f32 0.0, %v1466
        %v1468 = vpop.f32.mrb[0].mxu0
        %1469 = vmatprep.mubr.f32.mxu0 0.0
        %1470 = vmatmul.mubr.f32.gmra.mrb[0].mxu0 %v1398
        %v1471 = vpop.f32.mrb[0].mxu0
        %v1472 = vadd.f32 0.0, %v1471
        %v1473 = vpop.f32.mrb[0].mxu0
        %1474 = vdwg.mxu0
        %v1475 = vld [vmem:[#allocation16 + $0x20] sm:$0xff]
        %v1476 = vld [vmem:[#allocation16 + $0x28] sm:$0xff]
        %v1477 = vld [vmem:[#allocation16 + $0x30] sm:$0xff]
        %v1478 = vld [vmem:[#allocation16 + $0x38] sm:$0xff]
        %v1480 = vsel %vm1077, %v1467, 0
        %v1483 = vsel %vm1077, %v1472, 0
        %1485 = vmatprep.subr.mxu0 0.0
        %1486 = vmatpush1.msra.mxu0 %v1475
        %1487 = vmatprep.subr.mxu0 0.0
        %1488 = vmatpush1.msra.mxu0 %v1476
        %1489 = vmatprep.subr.mxu0 0.0
        %1490 = vmatpush1.msra.mxu0 %v1477
        %1491 = vmatprep.subr.mxu0 0.0
        %1492 = vmatpush1.msra.mxu0 %v1478
        %1493 = vmatprep.subr.mxu0 0.0
        %1494 = vmatpush1.msra.mxu0 0.0
        %1495 = vmatprep.subr.mxu0 0.0
        %1496 = vmatpush1.msra.mxu0 0.0
        %1497 = vmatprep.subr.mxu0 0.0
        %1498 = vmatpush1.msra.mxu0 0.0
        %1499 = vmatprep.subr.mxu0 0.0
        %1500 = vmatpush1.msra.mxu0 0.0
        %1501 = vmatprep.subr.mxu0 0.0
        %1502 = vmatpush1.msra.mxu0 0.0
        %1503 = vmatprep.subr.mxu0 0.0
        %1504 = vmatpush1.msra.mxu0 0.0
        %1505 = vmatprep.subr.mxu0 0.0
        %1506 = vmatpush1.msra.mxu0 0.0
        %1507 = vmatprep.subr.mxu0 0.0
        %1508 = vmatpush1.msra.mxu0 0.0
        %1509 = vmatprep.subr.mxu0 0.0
        %1510 = vmatpush1.msra.mxu0 0.0
        %1511 = vmatprep.subr.mxu0 0.0
        %1512 = vmatpush1.msra.mxu0 0.0
        %1513 = vmatprep.subr.mxu0 0.0
        %1514 = vmatpush1.msra.mxu0 0.0
        %1515 = vmatprep.subr.mxu0 0.0
        %1516 = vmatpush1.msra.mxu0 0.0
        %1517 = vmatprep.subr.mxu0 0.0
        %1518 = vmatpush1.msra.mxu0 0.0
        %1519 = vmatprep.subr.mxu0 0.0
        %1520 = vmatpush1.msra.mxu0 0.0
        %1521 = vmatprep.subr.mxu0 0.0
        %1522 = vmatpush1.msra.mxu0 0.0
        %1523 = vmatprep.subr.mxu0 0.0
        %1524 = vmatpush1.msra.mxu0 0.0
        %1525 = vmatprep.subr.mxu0 0.0
        %1526 = vmatpush1.msra.mxu0 0.0
        %1527 = vmatprep.subr.mxu0 0.0
        %1528 = vmatpush1.msra.mxu0 0.0
        %1529 = vmatprep.subr.mxu0 0.0
        %1530 = vmatpush1.msra.mxu0 0.0
        %1531 = vmatprep.subr.mxu0 0.0
        %1532 = vmatpush1.msra.mxu0 0.0
        %1533 = vmatprep.subr.mxu0 0.0
        %1534 = vmatpush1.msra.mxu0 0.0
        %1535 = vmatprep.subr.mxu0 0.0
        %1536 = vmatpush1.msra.mxu0 0.0
        %1537 = vmatprep.subr.mxu0 0.0
        %1538 = vmatpush1.msra.mxu0 0.0
        %1539 = vmatprep.subr.mxu0 0.0
        %1540 = vmatpush1.msra.mxu0 0.0
        %1541 = vmatprep.subr.mxu0 0.0
        %1542 = vmatpush1.msra.mxu0 0.0
        %1543 = vmatprep.subr.mxu0 0.0
        %1544 = vmatpush1.msra.mxu0 0.0
        %1545 = vmatprep.subr.mxu0 0.0
        %1546 = vmatpush1.msra.mxu0 0.0
        %1547 = vmatprep.subr.mxu0 0.0
        %1548 = vmatpush1.msra.mxu0 0.0
        %1549 = vmatprep.mubr.f32.mxu0 0.0
        %1550 = vmatmul.mubr.f32.gmra.mrb[0].mxu0 %v1480
        %v1551 = vpop.f32.mrb[0].mxu0
        %v1552 = vadd.f32 0.0, %v1551
        %v1553 = vpop.f32.mrb[0].mxu0
        %1554 = vmatprep.mubr.f32.mxu0 0.0
        %1555 = vmatmul.mubr.f32.gmra.mrb[0].mxu0 %v1483
        %v1556 = vpop.f32.mrb[0].mxu0
        %v1557 = vadd.f32 0.0, %v1556
        %v1558 = vpop.f32.mrb[0].mxu0
        %1559 = vdwg.mxu0
        %v1561 = vsel %vm1077, %v1261, 0
        %v1564 = vsel %vm1077, %v1266, 0
        %1566 = vmatprep.subr.mxu0 0.0
        %1567 = vmatpush1.msra.mxu0 %v1269
        %1568 = vmatprep.subr.mxu0 0.0
        %1569 = vmatpush1.msra.mxu0 %v1270
        %1570 = vmatprep.subr.mxu0 0.0
        %1571 = vmatpush1.msra.mxu0 %v1271
        %1572 = vmatprep.subr.mxu0 0.0
        %1573 = vmatpush1.msra.mxu0 %v1272
        %1574 = vmatprep.subr.mxu0 0.0
        %1575 = vmatpush1.msra.mxu0 0.0
        %1576 = vmatprep.subr.mxu0 0.0
        %1577 = vmatpush1.msra.mxu0 0.0
        %1578 = vmatprep.subr.mxu0 0.0
        %1579 = vmatpush1.msra.mxu0 0.0
        %1580 = vmatprep.subr.mxu0 0.0
        %1581 = vmatpush1.msra.mxu0 0.0
        %1582 = vmatprep.subr.mxu0 0.0
        %1583 = vmatpush1.msra.mxu0 0.0
        %1584 = vmatprep.subr.mxu0 0.0
        %1585 = vmatpush1.msra.mxu0 0.0
        %1586 = vmatprep.subr.mxu0 0.0
        %1587 = vmatpush1.msra.mxu0 0.0
        %1588 = vmatprep.subr.mxu0 0.0
        %1589 = vmatpush1.msra.mxu0 0.0
        %1590 = vmatprep.subr.mxu0 0.0
        %1591 = vmatpush1.msra.mxu0 0.0
        %1592 = vmatprep.subr.mxu0 0.0
        %1593 = vmatpush1.msra.mxu0 0.0
        %1594 = vmatprep.subr.mxu0 0.0
        %1595 = vmatpush1.msra.mxu0 0.0
        %1596 = vmatprep.subr.mxu0 0.0
        %1597 = vmatpush1.msra.mxu0 0.0
        %1598 = vmatprep.subr.mxu0 0.0
        %1599 = vmatpush1.msra.mxu0 0.0
        %1600 = vmatprep.subr.mxu0 0.0
        %1601 = vmatpush1.msra.mxu0 0.0
        %1602 = vmatprep.subr.mxu0 0.0
        %1603 = vmatpush1.msra.mxu0 0.0
        %1604 = vmatprep.subr.mxu0 0.0
        %1605 = vmatpush1.msra.mxu0 0.0
        %1606 = vmatprep.subr.mxu0 0.0
        %1607 = vmatpush1.msra.mxu0 0.0
        %1608 = vmatprep.subr.mxu0 0.0
        %1609 = vmatpush1.msra.mxu0 0.0
        %1610 = vmatprep.subr.mxu0 0.0
        %1611 = vmatpush1.msra.mxu0 0.0
        %1612 = vmatprep.subr.mxu0 0.0
        %1613 = vmatpush1.msra.mxu0 0.0
        %1614 = vmatprep.subr.mxu0 0.0
        %1615 = vmatpush1.msra.mxu0 0.0
        %1616 = vmatprep.subr.mxu0 0.0
        %1617 = vmatpush1.msra.mxu0 0.0
        %1618 = vmatprep.subr.mxu0 0.0
        %1619 = vmatpush1.msra.mxu0 0.0
        %1620 = vmatprep.subr.mxu0 0.0
        %1621 = vmatpush1.msra.mxu0 0.0
        %1622 = vmatprep.subr.mxu0 0.0
        %1623 = vmatpush1.msra.mxu0 0.0
        %1624 = vmatprep.subr.mxu0 0.0
        %1625 = vmatpush1.msra.mxu0 0.0
        %1626 = vmatprep.subr.mxu0 0.0
        %1627 = vmatpush1.msra.mxu0 0.0
        %1628 = vmatprep.subr.mxu0 0.0
        %1629 = vmatpush1.msra.mxu0 0.0
        %1630 = vmatprep.mubr.f32.mxu0 0.0
        %1631 = vmatmul.mubr.f32.gmra.mrb[0].mxu0 %v1561
        %v1632 = vpop.f32.mrb[0].mxu0
        %v1633 = vadd.f32 %v1552, %v1632
        %v1634 = vpop.f32.mrb[0].mxu0
        %1635 = vmatprep.mubr.f32.mxu0 0.0
        %1636 = vmatmul.mubr.f32.gmra.mrb[0].mxu0 %v1564
        %v1637 = vpop.f32.mrb[0].mxu0
        %v1638 = vadd.f32 %v1557, %v1637
        %v1639 = vpop.f32.mrb[0].mxu0
        %1640 = vdwg.mxu0
        %1641 = vrot.lane.b32.xlu0 %v1075, 64
        %v1642 = vpop.permute.xlu0 %1641
        %1643 = vrot.lane.b32.xlu0 %v1076, 64
        %v1644 = vpop.permute.xlu0 %1643
        %1645 = vrot.lane.b32.xlu0 %v941, 64
        %v1646 = vpop.permute.xlu0 %1645
        %1647 = vrot.lane.b32.xlu0 %v947, 64
        %v1648 = vpop.permute.xlu0 %1647
        %v1649 = vsel %vm1077, %v1642, 0
        %v1651 = vsel %vm1077, %v1644, 0
        %v1653 = vsel %vm1077, %v1646, 0
        %v1655 = vsel %vm1077, %v1648, 0
        %1657 = vmatprep.subr.mxu0 0.0
        %1658 = vmatpush1.xpose.msra.mxu0 %v1653
        %1659 = vmatprep.subr.mxu0 0.0
        %1660 = vmatpush1.xpose.msra.mxu0 %v1655
        %1661 = vmatprep.subr.mxu0 0.0
        %1662 = vmatpush1.xpose.msra.mxu0 0.0
        %1663 = vmatprep.subr.mxu0 0.0
        %1664 = vmatpush1.xpose.msra.mxu0 0.0
        %1665 = vmatprep.subr.mxu0 0.0
        %1666 = vmatpush1.xpose.msra.mxu0 0.0
        %1667 = vmatprep.subr.mxu0 0.0
        %1668 = vmatpush1.xpose.msra.mxu0 0.0
        %1669 = vmatprep.subr.mxu0 0.0
        %1670 = vmatpush1.xpose.msra.mxu0 0.0
        %1671 = vmatprep.subr.mxu0 0.0
        %1672 = vmatpush1.xpose.msra.mxu0 0.0
        %1673 = vmatprep.subr.mxu0 0.0
        %1674 = vmatpush1.xpose.msra.mxu0 0.0
        %1675 = vmatprep.subr.mxu0 0.0
        %1676 = vmatpush1.xpose.msra.mxu0 0.0
        %1677 = vmatprep.subr.mxu0 0.0
        %1678 = vmatpush1.xpose.msra.mxu0 0.0
        %1679 = vmatprep.subr.mxu0 0.0
        %1680 = vmatpush1.xpose.msra.mxu0 0.0
        %1681 = vmatprep.subr.mxu0 0.0
        %1682 = vmatpush1.xpose.msra.mxu0 0.0
        %1683 = vmatprep.subr.mxu0 0.0
        %1684 = vmatpush1.xpose.msra.mxu0 0.0
        %1685 = vmatprep.subr.mxu0 0.0
        %1686 = vmatpush1.xpose.msra.mxu0 0.0
        %1687 = vmatprep.subr.mxu0 0.0
        %1688 = vmatpush1.xpose.msra.mxu0 0.0
        %1689 = vmatprep.subr.mxu0 0.0
        %1690 = vmatpush1.xpose.msra.mxu0 0.0
        %1691 = vmatprep.subr.mxu0 0.0
        %1692 = vmatpush1.xpose.msra.mxu0 0.0
        %1693 = vmatprep.subr.mxu0 0.0
        %1694 = vmatpush1.xpose.msra.mxu0 0.0
        %1695 = vmatprep.subr.mxu0 0.0
        %1696 = vmatpush1.xpose.msra.mxu0 0.0
        %1697 = vmatprep.subr.mxu0 0.0
        %1698 = vmatpush1.xpose.msra.mxu0 0.0
        %1699 = vmatprep.subr.mxu0 0.0
        %1700 = vmatpush1.xpose.msra.mxu0 0.0
        %1701 = vmatprep.subr.mxu0 0.0
        %1702 = vmatpush1.xpose.msra.mxu0 0.0
        %1703 = vmatprep.subr.mxu0 0.0
        %1704 = vmatpush1.xpose.msra.mxu0 0.0
        %1705 = vmatprep.subr.mxu0 0.0
        %1706 = vmatpush1.xpose.msra.mxu0 0.0
        %1707 = vmatprep.subr.mxu0 0.0
        %1708 = vmatpush1.xpose.msra.mxu0 0.0
        %1709 = vmatprep.subr.mxu0 0.0
        %1710 = vmatpush1.xpose.msra.mxu0 0.0
        %1711 = vmatprep.subr.mxu0 0.0
        %1712 = vmatpush1.xpose.msra.mxu0 0.0
        %1713 = vmatprep.subr.mxu0 0.0
        %1714 = vmatpush1.xpose.msra.mxu0 0.0
        %1715 = vmatprep.subr.mxu0 0.0
        %1716 = vmatpush1.xpose.msra.mxu0 0.0
        %1717 = vmatprep.subr.mxu0 0.0
        %1718 = vmatpush1.xpose.msra.mxu0 0.0
        %1719 = vmatprep.subr.mxu0 0.0
        %1720 = vmatpush1.xpose.msra.mxu0 0.0
        %1721 = vmatprep.mubr.f32.mxu0 0.0
        %1722 = vmatmul.mubr.f32.gmra.mrb[0].mxu0 %v1649
        %v1723 = vpop.f32.mrb[0].mxu0
        %v1724 = vadd.f32 0.0, %v1723
        %v1725 = vpop.f32.mrb[0].mxu0
        %1726 = vmatprep.mubr.f32.mxu0 0.0
        %1727 = vmatmul.mubr.f32.gmra.mrb[0].mxu0 %v1651
        %v1728 = vpop.f32.mrb[0].mxu0
        %v1729 = vadd.f32 0.0, %v1728
        %v1730 = vpop.f32.mrb[0].mxu0
        %1731 = vdwg.mxu0
        %v1732 = vsel %vm1165, %v1724, -inf
        %1733 = vmax.xlane.f32.xlu0 %v1732
        %v1734 = vpop.xlane.xlu0 %1733
        %v1735 = vsel %vm1165, %v1729, -inf
        %1736 = vmax.xlane.f32.xlu0 %v1735
        %v1737 = vpop.xlane.xlu0 %1736
        %v1738 = vsub.f32 %v1724, %v1734
        %v1739 = vsub.f32 %v1729, %v1737
        %v1740 = vmul.f32 %v1738, 1.442695
        %v1741 = vpow.pop %v1740
        %v1742 = vmul.f32 %v1739, 1.442695
        %v1743 = vpow.pop %v1742
        %v1744 = vsel %vm1165, %v1741, 0.0
        %1745 = vadd.xlane.f32.xlu0 %v1744
        %v1746 = vpop.xlane.xlu0 %1745
        %v1747 = vsel %vm1165, %v1743, 0.0
        %1748 = vadd.xlane.f32.xlu0 %v1747
        %v1749 = vpop.xlane.xlu0 %1748
        %v1750 = vrcp.pop %v1746
        %v1751 = vrcp.pop %v1749
        %v1752 = vmul.f32 %v1741, %v1750
        %v1753 = vmul.f32 %v1743, %v1751
        %1754 = vrot.lane.b32.xlu0 %v943, 64
        %v1755 = vpop.permute.xlu0 %1754
        %1756 = vrot.lane.b32.xlu0 %v949, 64
        %v1757 = vpop.permute.xlu0 %1756
        %v1761 = vsel %vm1165, %v1752, 0
        %v1764 = vsel %vm1165, %v1753, 0
        %1766 = vmatprep.subr.mxu0 0.0
        %1767 = vmatpush1.msra.mxu0 %v1755
        %1768 = vmatprep.subr.mxu0 0.0
        %1769 = vmatpush1.msra.mxu0 %v1757
        %1770 = vmatprep.subr.mxu0 0.0
        %1771 = vmatpush1.msra.mxu0 0.0
        %1772 = vmatprep.subr.mxu0 0.0
        %1773 = vmatpush1.msra.mxu0 0.0
        %1774 = vmatprep.subr.mxu0 0.0
        %1775 = vmatpush1.msra.mxu0 0.0
        %1776 = vmatprep.subr.mxu0 0.0
        %1777 = vmatpush1.msra.mxu0 0.0
        %1778 = vmatprep.subr.mxu0 0.0
        %1779 = vmatpush1.msra.mxu0 0.0
        %1780 = vmatprep.subr.mxu0 0.0
        %1781 = vmatpush1.msra.mxu0 0.0
        %1782 = vmatprep.subr.mxu0 0.0
        %1783 = vmatpush1.msra.mxu0 0.0
        %1784 = vmatprep.subr.mxu0 0.0
        %1785 = vmatpush1.msra.mxu0 0.0
        %1786 = vmatprep.subr.mxu0 0.0
        %1787 = vmatpush1.msra.mxu0 0.0
        %1788 = vmatprep.subr.mxu0 0.0
        %1789 = vmatpush1.msra.mxu0 0.0
        %1790 = vmatprep.subr.mxu0 0.0
        %1791 = vmatpush1.msra.mxu0 0.0
        %1792 = vmatprep.subr.mxu0 0.0
        %1793 = vmatpush1.msra.mxu0 0.0
        %1794 = vmatprep.subr.mxu0 0.0
        %1795 = vmatpush1.msra.mxu0 0.0
        %1796 = vmatprep.subr.mxu0 0.0
        %1797 = vmatpush1.msra.mxu0 0.0
        %1798 = vmatprep.subr.mxu0 0.0
        %1799 = vmatpush1.msra.mxu0 0.0
        %1800 = vmatprep.subr.mxu0 0.0
        %1801 = vmatpush1.msra.mxu0 0.0
        %1802 = vmatprep.subr.mxu0 0.0
        %1803 = vmatpush1.msra.mxu0 0.0
        %1804 = vmatprep.subr.mxu0 0.0
        %1805 = vmatpush1.msra.mxu0 0.0
        %1806 = vmatprep.subr.mxu0 0.0
        %1807 = vmatpush1.msra.mxu0 0.0
        %1808 = vmatprep.subr.mxu0 0.0
        %1809 = vmatpush1.msra.mxu0 0.0
        %1810 = vmatprep.subr.mxu0 0.0
        %1811 = vmatpush1.msra.mxu0 0.0
        %1812 = vmatprep.subr.mxu0 0.0
        %1813 = vmatpush1.msra.mxu0 0.0
        %1814 = vmatprep.subr.mxu0 0.0
        %1815 = vmatpush1.msra.mxu0 0.0
        %1816 = vmatprep.subr.mxu0 0.0
        %1817 = vmatpush1.msra.mxu0 0.0
        %1818 = vmatprep.subr.mxu0 0.0
        %1819 = vmatpush1.msra.mxu0 0.0
        %1820 = vmatprep.subr.mxu0 0.0
        %1821 = vmatpush1.msra.mxu0 0.0
        %1822 = vmatprep.subr.mxu0 0.0
        %1823 = vmatpush1.msra.mxu0 0.0
        %1824 = vmatprep.subr.mxu0 0.0
        %1825 = vmatpush1.msra.mxu0 0.0
        %1826 = vmatprep.subr.mxu0 0.0
        %1827 = vmatpush1.msra.mxu0 0.0
        %1828 = vmatprep.subr.mxu0 0.0
        %1829 = vmatpush1.msra.mxu0 0.0
        %1830 = vmatprep.mubr.f32.mxu0 0.0
        %1831 = vmatmul.mubr.f32.gmra.mrb[0].mxu0 %v1761
        %v1832 = vpop.f32.mrb[0].mxu0
        %v1833 = vadd.f32 0.0, %v1832
        %v1834 = vpop.f32.mrb[0].mxu0
        %1835 = vmatprep.mubr.f32.mxu0 0.0
        %1836 = vmatmul.mubr.f32.gmra.mrb[0].mxu0 %v1764
        %v1837 = vpop.f32.mrb[0].mxu0
        %v1838 = vadd.f32 0.0, %v1837
        %v1839 = vpop.f32.mrb[0].mxu0
        %1840 = vdwg.mxu0
        %v1841 = vld [vmem:[#allocation16 + $0x40] sm:$0xff]
        %v1842 = vld [vmem:[#allocation16 + $0x48] sm:$0xff]
        %v1843 = vld [vmem:[#allocation16 + $0x50] sm:$0xff]
        %v1844 = vld [vmem:[#allocation16 + $0x58] sm:$0xff]
        %v1846 = vsel %vm1077, %v1833, 0
        %v1849 = vsel %vm1077, %v1838, 0
        %1851 = vmatprep.subr.mxu0 0.0
        %1852 = vmatpush1.msra.mxu0 %v1841
        %1853 = vmatprep.subr.mxu0 0.0
        %1854 = vmatpush1.msra.mxu0 %v1842
        %1855 = vmatprep.subr.mxu0 0.0
        %1856 = vmatpush1.msra.mxu0 %v1843
        %1857 = vmatprep.subr.mxu0 0.0
        %1858 = vmatpush1.msra.mxu0 %v1844
        %1859 = vmatprep.subr.mxu0 0.0
        %1860 = vmatpush1.msra.mxu0 0.0
        %1861 = vmatprep.subr.mxu0 0.0
        %1862 = vmatpush1.msra.mxu0 0.0
        %1863 = vmatprep.subr.mxu0 0.0
        %1864 = vmatpush1.msra.mxu0 0.0
        %1865 = vmatprep.subr.mxu0 0.0
        %1866 = vmatpush1.msra.mxu0 0.0
        %1867 = vmatprep.subr.mxu0 0.0
        %1868 = vmatpush1.msra.mxu0 0.0
        %1869 = vmatprep.subr.mxu0 0.0
        %1870 = vmatpush1.msra.mxu0 0.0
        %1871 = vmatprep.subr.mxu0 0.0
        %1872 = vmatpush1.msra.mxu0 0.0
        %1873 = vmatprep.subr.mxu0 0.0
        %1874 = vmatpush1.msra.mxu0 0.0
        %1875 = vmatprep.subr.mxu0 0.0
        %1876 = vmatpush1.msra.mxu0 0.0
        %1877 = vmatprep.subr.mxu0 0.0
        %1878 = vmatpush1.msra.mxu0 0.0
        %1879 = vmatprep.subr.mxu0 0.0
        %1880 = vmatpush1.msra.mxu0 0.0
        %1881 = vmatprep.subr.mxu0 0.0
        %1882 = vmatpush1.msra.mxu0 0.0
        %1883 = vmatprep.subr.mxu0 0.0
        %1884 = vmatpush1.msra.mxu0 0.0
        %1885 = vmatprep.subr.mxu0 0.0
        %1886 = vmatpush1.msra.mxu0 0.0
        %1887 = vmatprep.subr.mxu0 0.0
        %1888 = vmatpush1.msra.mxu0 0.0
        %1889 = vmatprep.subr.mxu0 0.0
        %1890 = vmatpush1.msra.mxu0 0.0
        %1891 = vmatprep.subr.mxu0 0.0
        %1892 = vmatpush1.msra.mxu0 0.0
        %1893 = vmatprep.subr.mxu0 0.0
        %1894 = vmatpush1.msra.mxu0 0.0
        %1895 = vmatprep.subr.mxu0 0.0
        %1896 = vmatpush1.msra.mxu0 0.0
        %1897 = vmatprep.subr.mxu0 0.0
        %1898 = vmatpush1.msra.mxu0 0.0
        %1899 = vmatprep.subr.mxu0 0.0
        %1900 = vmatpush1.msra.mxu0 0.0
        %1901 = vmatprep.subr.mxu0 0.0
        %1902 = vmatpush1.msra.mxu0 0.0
        %1903 = vmatprep.subr.mxu0 0.0
        %1904 = vmatpush1.msra.mxu0 0.0
        %1905 = vmatprep.subr.mxu0 0.0
        %1906 = vmatpush1.msra.mxu0 0.0
        %1907 = vmatprep.subr.mxu0 0.0
        %1908 = vmatpush1.msra.mxu0 0.0
        %1909 = vmatprep.subr.mxu0 0.0
        %1910 = vmatpush1.msra.mxu0 0.0
        %1911 = vmatprep.subr.mxu0 0.0
        %1912 = vmatpush1.msra.mxu0 0.0
        %1913 = vmatprep.subr.mxu0 0.0
        %1914 = vmatpush1.msra.mxu0 0.0
        %1915 = vmatprep.mubr.f32.mxu0 0.0
        %1916 = vmatmul.mubr.f32.gmra.mrb[0].mxu0 %v1846
        %v1917 = vpop.f32.mrb[0].mxu0
        %v1918 = vadd.f32 0.0, %v1917
        %v1919 = vpop.f32.mrb[0].mxu0
        %1920 = vmatprep.mubr.f32.mxu0 0.0
        %1921 = vmatmul.mubr.f32.gmra.mrb[0].mxu0 %v1849
        %v1922 = vpop.f32.mrb[0].mxu0
        %v1923 = vadd.f32 0.0, %v1922
        %v1924 = vpop.f32.mrb[0].mxu0
        %1925 = vdwg.mxu0
        %v1926 = vadd.f32 %v1633, %v1918
        %v1927 = vadd.f32 %v1638, %v1923
        %1928 = vrot.lane.b32.xlu0 %v1075, 32
        %v1929 = vpop.permute.xlu0 %1928
        %1930 = vrot.lane.b32.xlu0 %v1076, 32
        %v1931 = vpop.permute.xlu0 %1930
        %1932 = vrot.lane.b32.xlu0 %v941, 32
        %v1933 = vpop.permute.xlu0 %1932
        %1934 = vrot.lane.b32.xlu0 %v947, 32
        %v1935 = vpop.permute.xlu0 %1934
        %v1936 = vsel %vm1077, %v1929, 0
        %v1938 = vsel %vm1077, %v1931, 0
        %v1940 = vsel %vm1077, %v1933, 0
        %v1942 = vsel %vm1077, %v1935, 0
        %1944 = vmatprep.subr.mxu0 0.0
        %1945 = vmatpush1.xpose.msra.mxu0 %v1940
        %1946 = vmatprep.subr.mxu0 0.0
        %1947 = vmatpush1.xpose.msra.mxu0 %v1942
        %1948 = vmatprep.subr.mxu0 0.0
        %1949 = vmatpush1.xpose.msra.mxu0 0.0
        %1950 = vmatprep.subr.mxu0 0.0
        %1951 = vmatpush1.xpose.msra.mxu0 0.0
        %1952 = vmatprep.subr.mxu0 0.0
        %1953 = vmatpush1.xpose.msra.mxu0 0.0
        %1954 = vmatprep.subr.mxu0 0.0
        %1955 = vmatpush1.xpose.msra.mxu0 0.0
        %1956 = vmatprep.subr.mxu0 0.0
        %1957 = vmatpush1.xpose.msra.mxu0 0.0
        %1958 = vmatprep.subr.mxu0 0.0
        %1959 = vmatpush1.xpose.msra.mxu0 0.0
        %1960 = vmatprep.subr.mxu0 0.0
        %1961 = vmatpush1.xpose.msra.mxu0 0.0
        %1962 = vmatprep.subr.mxu0 0.0
        %1963 = vmatpush1.xpose.msra.mxu0 0.0
        %1964 = vmatprep.subr.mxu0 0.0
        %1965 = vmatpush1.xpose.msra.mxu0 0.0
        %1966 = vmatprep.subr.mxu0 0.0
        %1967 = vmatpush1.xpose.msra.mxu0 0.0
        %1968 = vmatprep.subr.mxu0 0.0
        %1969 = vmatpush1.xpose.msra.mxu0 0.0
        %1970 = vmatprep.subr.mxu0 0.0
        %1971 = vmatpush1.xpose.msra.mxu0 0.0
        %1972 = vmatprep.subr.mxu0 0.0
        %1973 = vmatpush1.xpose.msra.mxu0 0.0
        %1974 = vmatprep.subr.mxu0 0.0
        %1975 = vmatpush1.xpose.msra.mxu0 0.0
        %1976 = vmatprep.subr.mxu0 0.0
        %1977 = vmatpush1.xpose.msra.mxu0 0.0
        %1978 = vmatprep.subr.mxu0 0.0
        %1979 = vmatpush1.xpose.msra.mxu0 0.0
        %1980 = vmatprep.subr.mxu0 0.0
        %1981 = vmatpush1.xpose.msra.mxu0 0.0
        %1982 = vmatprep.subr.mxu0 0.0
        %1983 = vmatpush1.xpose.msra.mxu0 0.0
        %1984 = vmatprep.subr.mxu0 0.0
        %1985 = vmatpush1.xpose.msra.mxu0 0.0
        %1986 = vmatprep.subr.mxu0 0.0
        %1987 = vmatpush1.xpose.msra.mxu0 0.0
        %1988 = vmatprep.subr.mxu0 0.0
        %1989 = vmatpush1.xpose.msra.mxu0 0.0
        %1990 = vmatprep.subr.mxu0 0.0
        %1991 = vmatpush1.xpose.msra.mxu0 0.0
        %1992 = vmatprep.subr.mxu0 0.0
        %1993 = vmatpush1.xpose.msra.mxu0 0.0
        %1994 = vmatprep.subr.mxu0 0.0
        %1995 = vmatpush1.xpose.msra.mxu0 0.0
        %1996 = vmatprep.subr.mxu0 0.0
        %1997 = vmatpush1.xpose.msra.mxu0 0.0
        %1998 = vmatprep.subr.mxu0 0.0
        %1999 = vmatpush1.xpose.msra.mxu0 0.0
        %2000 = vmatprep.subr.mxu0 0.0
        %2001 = vmatpush1.xpose.msra.mxu0 0.0
        %2002 = vmatprep.subr.mxu0 0.0
        %2003 = vmatpush1.xpose.msra.mxu0 0.0
        %2004 = vmatprep.subr.mxu0 0.0
        %2005 = vmatpush1.xpose.msra.mxu0 0.0
        %2006 = vmatprep.subr.mxu0 0.0
        %2007 = vmatpush1.xpose.msra.mxu0 0.0
        %2008 = vmatprep.mubr.f32.mxu0 0.0
        %2009 = vmatmul.mubr.f32.gmra.mrb[0].mxu0 %v1936
        %v2010 = vpop.f32.mrb[0].mxu0
        %v2011 = vadd.f32 0.0, %v2010
        %v2012 = vpop.f32.mrb[0].mxu0
        %2013 = vmatprep.mubr.f32.mxu0 0.0
        %2014 = vmatmul.mubr.f32.gmra.mrb[0].mxu0 %v1938
        %v2015 = vpop.f32.mrb[0].mxu0
        %v2016 = vadd.f32 0.0, %v2015
        %v2017 = vpop.f32.mrb[0].mxu0
        %2018 = vdwg.mxu0
        %v2019 = vsel %vm1165, %v2011, -inf
        %2020 = vmax.xlane.f32.xlu0 %v2019
        %v2021 = vpop.xlane.xlu0 %2020
        %v2022 = vsel %vm1165, %v2016, -inf
        %2023 = vmax.xlane.f32.xlu0 %v2022
        %v2024 = vpop.xlane.xlu0 %2023
        %v2025 = vsub.f32 %v2011, %v2021
        %v2026 = vsub.f32 %v2016, %v2024
        %v2027 = vmul.f32 %v2025, 1.442695
        %v2028 = vpow.pop %v2027
        %v2029 = vmul.f32 %v2026, 1.442695
        %v2030 = vpow.pop %v2029
        %v2031 = vsel %vm1165, %v2028, 0.0
        %2032 = vadd.xlane.f32.xlu0 %v2031
        %v2033 = vpop.xlane.xlu0 %2032
        %v2034 = vsel %vm1165, %v2030, 0.0
        %2035 = vadd.xlane.f32.xlu0 %v2034
        %v2036 = vpop.xlane.xlu0 %2035
        %v2037 = vrcp.pop %v2033
        %v2038 = vrcp.pop %v2036
        %v2039 = vmul.f32 %v2028, %v2037
        %v2040 = vmul.f32 %v2030, %v2038
        %2041 = vrot.lane.b32.xlu0 %v943, 32
        %v2042 = vpop.permute.xlu0 %2041
        %2043 = vrot.lane.b32.xlu0 %v949, 32
        %v2044 = vpop.permute.xlu0 %2043
        %v2048 = vsel %vm1165, %v2039, 0
        %v2051 = vsel %vm1165, %v2040, 0
        %2053 = vmatprep.subr.mxu0 0.0
        %2054 = vmatpush1.msra.mxu0 %v2042
        %2055 = vmatprep.subr.mxu0 0.0
        %2056 = vmatpush1.msra.mxu0 %v2044
        %2057 = vmatprep.subr.mxu0 0.0
        %2058 = vmatpush1.msra.mxu0 0.0
        %2059 = vmatprep.subr.mxu0 0.0
        %2060 = vmatpush1.msra.mxu0 0.0
        %2061 = vmatprep.subr.mxu0 0.0
        %2062 = vmatpush1.msra.mxu0 0.0
        %2063 = vmatprep.subr.mxu0 0.0
        %2064 = vmatpush1.msra.mxu0 0.0
        %2065 = vmatprep.subr.mxu0 0.0
        %2066 = vmatpush1.msra.mxu0 0.0
        %2067 = vmatprep.subr.mxu0 0.0
        %2068 = vmatpush1.msra.mxu0 0.0
        %2069 = vmatprep.subr.mxu0 0.0
        %2070 = vmatpush1.msra.mxu0 0.0
        %2071 = vmatprep.subr.mxu0 0.0
        %2072 = vmatpush1.msra.mxu0 0.0
        %2073 = vmatprep.subr.mxu0 0.0
        %2074 = vmatpush1.msra.mxu0 0.0
        %2075 = vmatprep.subr.mxu0 0.0
        %2076 = vmatpush1.msra.mxu0 0.0
        %2077 = vmatprep.subr.mxu0 0.0
        %2078 = vmatpush1.msra.mxu0 0.0
        %2079 = vmatprep.subr.mxu0 0.0
        %2080 = vmatpush1.msra.mxu0 0.0
        %2081 = vmatprep.subr.mxu0 0.0
        %2082 = vmatpush1.msra.mxu0 0.0
        %2083 = vmatprep.subr.mxu0 0.0
        %2084 = vmatpush1.msra.mxu0 0.0
        %2085 = vmatprep.subr.mxu0 0.0
        %2086 = vmatpush1.msra.mxu0 0.0
        %2087 = vmatprep.subr.mxu0 0.0
        %2088 = vmatpush1.msra.mxu0 0.0
        %2089 = vmatprep.subr.mxu0 0.0
        %2090 = vmatpush1.msra.mxu0 0.0
        %2091 = vmatprep.subr.mxu0 0.0
        %2092 = vmatpush1.msra.mxu0 0.0
        %2093 = vmatprep.subr.mxu0 0.0
        %2094 = vmatpush1.msra.mxu0 0.0
        %2095 = vmatprep.subr.mxu0 0.0
        %2096 = vmatpush1.msra.mxu0 0.0
        %2097 = vmatprep.subr.mxu0 0.0
        %2098 = vmatpush1.msra.mxu0 0.0
        %2099 = vmatprep.subr.mxu0 0.0
        %2100 = vmatpush1.msra.mxu0 0.0
        %2101 = vmatprep.subr.mxu0 0.0
        %2102 = vmatpush1.msra.mxu0 0.0
        %2103 = vmatprep.subr.mxu0 0.0
        %2104 = vmatpush1.msra.mxu0 0.0
        %2105 = vmatprep.subr.mxu0 0.0
        %2106 = vmatpush1.msra.mxu0 0.0
        %2107 = vmatprep.subr.mxu0 0.0
        %2108 = vmatpush1.msra.mxu0 0.0
        %2109 = vmatprep.subr.mxu0 0.0
        %2110 = vmatpush1.msra.mxu0 0.0
        %2111 = vmatprep.subr.mxu0 0.0
        %2112 = vmatpush1.msra.mxu0 0.0
        %2113 = vmatprep.subr.mxu0 0.0
        %2114 = vmatpush1.msra.mxu0 0.0
        %2115 = vmatprep.subr.mxu0 0.0
        %2116 = vmatpush1.msra.mxu0 0.0
        %2117 = vmatprep.mubr.f32.mxu0 0.0
        %2118 = vmatmul.mubr.f32.gmra.mrb[0].mxu0 %v2048
        %v2119 = vpop.f32.mrb[0].mxu0
        %v2120 = vadd.f32 0.0, %v2119
        %v2121 = vpop.f32.mrb[0].mxu0
        %2122 = vmatprep.mubr.f32.mxu0 0.0
        %2123 = vmatmul.mubr.f32.gmra.mrb[0].mxu0 %v2051
        %v2124 = vpop.f32.mrb[0].mxu0
        %v2125 = vadd.f32 0.0, %v2124
        %v2126 = vpop.f32.mrb[0].mxu0
        %2127 = vdwg.mxu0
        %v2128 = vld [vmem:[#allocation16 + $0x60] sm:$0xff]
        %v2129 = vld [vmem:[#allocation16 + $0x68] sm:$0xff]
        %v2130 = vld [vmem:[#allocation16 + $0x70] sm:$0xff]
        %v2131 = vld [vmem:[#allocation16 + $0x78] sm:$0xff]
        %v2133 = vsel %vm1077, %v2120, 0
        %v2136 = vsel %vm1077, %v2125, 0
        %2138 = vmatprep.subr.mxu0 0.0
        %2139 = vmatpush1.msra.mxu0 %v2128
        %2140 = vmatprep.subr.mxu0 0.0
        %2141 = vmatpush1.msra.mxu0 %v2129
        %2142 = vmatprep.subr.mxu0 0.0
        %2143 = vmatpush1.msra.mxu0 %v2130
        %2144 = vmatprep.subr.mxu0 0.0
        %2145 = vmatpush1.msra.mxu0 %v2131
        %2146 = vmatprep.subr.mxu0 0.0
        %2147 = vmatpush1.msra.mxu0 0.0
        %2148 = vmatprep.subr.mxu0 0.0
        %2149 = vmatpush1.msra.mxu0 0.0
        %2150 = vmatprep.subr.mxu0 0.0
        %2151 = vmatpush1.msra.mxu0 0.0
        %2152 = vmatprep.subr.mxu0 0.0
        %2153 = vmatpush1.msra.mxu0 0.0
        %2154 = vmatprep.subr.mxu0 0.0
        %2155 = vmatpush1.msra.mxu0 0.0
        %2156 = vmatprep.subr.mxu0 0.0
        %2157 = vmatpush1.msra.mxu0 0.0
        %2158 = vmatprep.subr.mxu0 0.0
        %2159 = vmatpush1.msra.mxu0 0.0
        %2160 = vmatprep.subr.mxu0 0.0
        %2161 = vmatpush1.msra.mxu0 0.0
        %2162 = vmatprep.subr.mxu0 0.0
        %2163 = vmatpush1.msra.mxu0 0.0
        %2164 = vmatprep.subr.mxu0 0.0
        %2165 = vmatpush1.msra.mxu0 0.0
        %2166 = vmatprep.subr.mxu0 0.0
        %2167 = vmatpush1.msra.mxu0 0.0
        %2168 = vmatprep.subr.mxu0 0.0
        %2169 = vmatpush1.msra.mxu0 0.0
        %2170 = vmatprep.subr.mxu0 0.0
        %2171 = vmatpush1.msra.mxu0 0.0
        %2172 = vmatprep.subr.mxu0 0.0
        %2173 = vmatpush1.msra.mxu0 0.0
        %2174 = vmatprep.subr.mxu0 0.0
        %2175 = vmatpush1.msra.mxu0 0.0
        %2176 = vmatprep.subr.mxu0 0.0
        %2177 = vmatpush1.msra.mxu0 0.0
        %2178 = vmatprep.subr.mxu0 0.0
        %2179 = vmatpush1.msra.mxu0 0.0
        %2180 = vmatprep.subr.mxu0 0.0
        %2181 = vmatpush1.msra.mxu0 0.0
        %2182 = vmatprep.subr.mxu0 0.0
        %2183 = vmatpush1.msra.mxu0 0.0
        %2184 = vmatprep.subr.mxu0 0.0
        %2185 = vmatpush1.msra.mxu0 0.0
        %2186 = vmatprep.subr.mxu0 0.0
        %2187 = vmatpush1.msra.mxu0 0.0
        %2188 = vmatprep.subr.mxu0 0.0
        %2189 = vmatpush1.msra.mxu0 0.0
        %2190 = vmatprep.subr.mxu0 0.0
        %2191 = vmatpush1.msra.mxu0 0.0
        %2192 = vmatprep.subr.mxu0 0.0
        %2193 = vmatpush1.msra.mxu0 0.0
        %2194 = vmatprep.subr.mxu0 0.0
        %2195 = vmatpush1.msra.mxu0 0.0
        %2196 = vmatprep.subr.mxu0 0.0
        %2197 = vmatpush1.msra.mxu0 0.0
        %2198 = vmatprep.subr.mxu0 0.0
        %2199 = vmatpush1.msra.mxu0 0.0
        %2200 = vmatprep.subr.mxu0 0.0
        %2201 = vmatpush1.msra.mxu0 0.0
        %2202 = vmatprep.mubr.f32.mxu0 0.0
        %2203 = vmatmul.mubr.f32.gmra.mrb[0].mxu0 %v2133
        %v2204 = vpop.f32.mrb[0].mxu0
        %v2205 = vadd.f32 0.0, %v2204
        %v2206 = vpop.f32.mrb[0].mxu0
        %2207 = vmatprep.mubr.f32.mxu0 0.0
        %2208 = vmatmul.mubr.f32.gmra.mrb[0].mxu0 %v2136
        %v2209 = vpop.f32.mrb[0].mxu0
        %v2210 = vadd.f32 0.0, %v2209
        %v2211 = vpop.f32.mrb[0].mxu0
        %2212 = vdwg.mxu0
        %v2213 = vadd.f32 %v1926, %v2205
        %v2214 = vadd.f32 %v1927, %v2210
        %v2215 = vadd.f32 %v785, %v2213
        %v2216 = vadd.f32 %v786, %v2214
        %v2217 = vld [vmem:[#allocation17] sm:$0x1]
        %v2219 = vlaneseq
        %v2220 = vshrl.u32 %v2219, 7
        %v2221 = vsub.s32 0, %v2220
        %v2222 = vrot.slane %v2217, %v2221
        %v2224 = vadd.f32 %v2215, %v2222
        %v2225 = vadd.f32 %v2216, %v2222
        %v2226 = vld [vmem:[#allocation19] sm:$0x1]
        %v2227 = vld [vmem:[#allocation20] sm:$0x1]
        %2228 = vadd.xlane.f32.xlu0 %v2224
        %v2229 = vpop.xlane.xlu0 %2228
        %2230 = vadd.xlane.f32.xlu0 %v2225
        %v2231 = vpop.xlane.xlu0 %2230
        %v2232 = vmul.f32 %v2229, %v795
        %v2233 = vmul.f32 %v2231, %v795
        %v2234 = vsub.f32 %v2224, %v2232
        %v2235 = vsub.f32 %v2225, %v2233
        %v2236 = vmul.f32 %v2234, %v2234
        %v2237 = vmul.f32 %v2235, %v2235
        %2238 = vadd.xlane.f32.xlu0 %v2236
        %v2239 = vpop.xlane.xlu0 %2238
        %2240 = vadd.xlane.f32.xlu0 %v2237
        %v2241 = vpop.xlane.xlu0 %2240
        %v2242 = vmul.f32 %v2239, %v795
        %v2243 = vmul.f32 %v2241, %v795
        %v2244 = vadd.f32 %v2242, 1e-05
        %v2245 = vadd.f32 %v2243, 1e-05
        %v2246 = vrsqrt.pop %v2244
        %v2247 = vrsqrt.pop %v2245
        %v2248 = vmul.f32 %v2234, %v2246
        %v2249 = vmul.f32 %v2235, %v2247
        %v2251 = vlaneseq
        %v2252 = vshrl.u32 %v2251, 7
        %v2253 = vsub.s32 0, %v2252
        %v2254 = vrot.slane %v2226, %v2253
        %v2256 = vmul.f32 %v2248, %v2254
        %v2257 = vmul.f32 %v2249, %v2254
        %v2259 = vlaneseq
        %v2260 = vshrl.u32 %v2259, 7
        %v2261 = vsub.s32 0, %v2260
        %v2262 = vrot.slane %v2227, %v2261
        %v2264 = vadd.f32 %v2256, %v2262
        %v2265 = vadd.f32 %v2257, %v2262
        %v2266 = vld [vmem:[#allocation22] sm:$0xff]
        %v2267 = vld [vmem:[#allocation22 + $0x8] sm:$0xff]
        %v2268 = vld [vmem:[#allocation22 + $0x10] sm:$0xff]
        %v2269 = vld [vmem:[#allocation22 + $0x18] sm:$0xff]
        %v2270 = vld [vmem:[#allocation22 + $0x20] sm:$0xff]
        %v2271 = vld [vmem:[#allocation22 + $0x28] sm:$0xff]
        %v2272 = vld [vmem:[#allocation22 + $0x30] sm:$0xff]
        %v2273 = vld [vmem:[#allocation22 + $0x38] sm:$0xff]
        %v2274 = vld [vmem:[#allocation22 + $0x40] sm:$0xff]
        %v2275 = vld [vmem:[#allocation22 + $0x48] sm:$0xff]
        %v2276 = vld [vmem:[#allocation22 + $0x50] sm:$0xff]
        %v2277 = vld [vmem:[#allocation22 + $0x58] sm:$0xff]
        %v2278 = vld [vmem:[#allocation22 + $0x60] sm:$0xff]
        %v2279 = vld [vmem:[#allocation22 + $0x68] sm:$0xff]
        %v2280 = vld [vmem:[#allocation22 + $0x70] sm:$0xff]
        %v2281 = vld [vmem:[#allocation22 + $0x78] sm:$0xff]
        %v2282 = vld [vmem:[#allocation22 + $0x80] sm:$0xff]
        %v2283 = vld [vmem:[#allocation22 + $0x88] sm:$0xff]
        %v2284 = vld [vmem:[#allocation22 + $0x90] sm:$0xff]
        %v2285 = vld [vmem:[#allocation22 + $0x98] sm:$0xff]
        %v2286 = vld [vmem:[#allocation22 + $0xa0] sm:$0xff]
        %v2287 = vld [vmem:[#allocation22 + $0xa8] sm:$0xff]
        %v2288 = vld [vmem:[#allocation22 + $0xb0] sm:$0xff]
        %v2289 = vld [vmem:[#allocation22 + $0xb8] sm:$0xff]
        %v2290 = vld [vmem:[#allocation22 + $0xc0] sm:$0xff]
        %v2291 = vld [vmem:[#allocation22 + $0xc8] sm:$0xff]
        %v2292 = vld [vmem:[#allocation22 + $0xd0] sm:$0xff]
        %v2293 = vld [vmem:[#allocation22 + $0xd8] sm:$0xff]
        %v2294 = vld [vmem:[#allocation22 + $0xe0] sm:$0xff]
        %v2295 = vld [vmem:[#allocation22 + $0xe8] sm:$0xff]
        %v2296 = vld [vmem:[#allocation22 + $0xf0] sm:$0xff]
        %v2297 = vld [vmem:[#allocation22 + $0xf8] sm:$0xff]
        %v2298 = vld [vmem:[#allocation23] sm:$0x3]
        %v2300 = vlaneseq
        %v2301 = vshrl.u32 %v2300, 7
        %v2302 = vsub.s32 0, %v2301
        %v2303 = vrot.slane %v2298, %v2302
        %v2304 = vlaneseq
        %v2305 = vshrl.u32 %v2304, 7
        %v2306 = vsub.s32 1, %v2305
        %v2307 = vrot.slane %v2298, %v2306
        %2310 = vmatprep.subr.mxu0 %v2267
        %2311 = vmatpush1.msra.mxu0 %v2266
        %2312 = vmatprep.subr.mxu0 %v2269
        %2313 = vmatpush1.msra.mxu0 %v2268
        %2314 = vmatprep.subr.mxu0 %v2271
        %2315 = vmatpush1.msra.mxu0 %v2270
        %2316 = vmatprep.subr.mxu0 %v2273
        %2317 = vmatpush1.msra.mxu0 %v2272
        %2318 = vmatprep.subr.mxu0 %v2275
        %2319 = vmatpush1.msra.mxu0 %v2274
        %2320 = vmatprep.subr.mxu0 %v2277
        %2321 = vmatpush1.msra.mxu0 %v2276
        %2322 = vmatprep.subr.mxu0 %v2279
        %2323 = vmatpush1.msra.mxu0 %v2278
        %2324 = vmatprep.subr.mxu0 %v2281
        %2325 = vmatpush1.msra.mxu0 %v2280
        %2326 = vmatprep.subr.mxu0 %v2283
        %2327 = vmatpush1.msra.mxu0 %v2282
        %2328 = vmatprep.subr.mxu0 %v2285
        %2329 = vmatpush1.msra.mxu0 %v2284
        %2330 = vmatprep.subr.mxu0 %v2287
        %2331 = vmatpush1.msra.mxu0 %v2286
        %2332 = vmatprep.subr.mxu0 %v2289
        %2333 = vmatpush1.msra.mxu0 %v2288
        %2334 = vmatprep.subr.mxu0 %v2291
        %2335 = vmatpush1.msra.mxu0 %v2290
        %2336 = vmatprep.subr.mxu0 %v2293
        %2337 = vmatpush1.msra.mxu0 %v2292
        %2338 = vmatprep.subr.mxu0 %v2295
        %2339 = vmatpush1.msra.mxu0 %v2294
        %2340 = vmatprep.subr.mxu0 %v2297
        %2341 = vmatpush1.msra.mxu0 %v2296
        %2342 = vmatprep.subr.mxu0 0.0
        %2343 = vmatpush1.msra.mxu0 0.0
        %2344 = vmatprep.subr.mxu0 0.0
        %2345 = vmatpush1.msra.mxu0 0.0
        %2346 = vmatprep.subr.mxu0 0.0
        %2347 = vmatpush1.msra.mxu0 0.0
        %2348 = vmatprep.subr.mxu0 0.0
        %2349 = vmatpush1.msra.mxu0 0.0
        %2350 = vmatprep.subr.mxu0 0.0
        %2351 = vmatpush1.msra.mxu0 0.0
        %2352 = vmatprep.subr.mxu0 0.0
        %2353 = vmatpush1.msra.mxu0 0.0
        %2354 = vmatprep.subr.mxu0 0.0
        %2355 = vmatpush1.msra.mxu0 0.0
        %2356 = vmatprep.subr.mxu0 0.0
        %2357 = vmatpush1.msra.mxu0 0.0
        %2358 = vmatprep.subr.mxu0 0.0
        %2359 = vmatpush1.msra.mxu0 0.0
        %2360 = vmatprep.subr.mxu0 0.0
        %2361 = vmatpush1.msra.mxu0 0.0
        %2362 = vmatprep.subr.mxu0 0.0
        %2363 = vmatpush1.msra.mxu0 0.0
        %2364 = vmatprep.subr.mxu0 0.0
        %2365 = vmatpush1.msra.mxu0 0.0
        %2366 = vmatprep.subr.mxu0 0.0
        %2367 = vmatpush1.msra.mxu0 0.0
        %2368 = vmatprep.subr.mxu0 0.0
        %2369 = vmatpush1.msra.mxu0 0.0
        %2370 = vmatprep.subr.mxu0 0.0
        %2371 = vmatpush1.msra.mxu0 0.0
        %2372 = vmatprep.subr.mxu0 0.0
        %2373 = vmatpush1.msra.mxu0 0.0
        %2374 = vmatprep.mubr.f32.mxu0 0.0
        %2375 = vmatmul.mubr.f32.gmra.mrb[0].mxu0 %v2264
        %v2376 = vpop.f32.mrb[0].mxu0
        %v2377 = vadd.f32 %v2303, %v2376
        %v2378 = vpop.f32.mrb[0].mxu0
        %v2379 = vadd.f32 %v2307, %v2378
        %2380 = vmatprep.mubr.f32.mxu0 0.0
        %2381 = vmatmul.mubr.f32.gmra.mrb[0].mxu0 %v2265
        %v2382 = vpop.f32.mrb[0].mxu0
        %v2383 = vadd.f32 %v2303, %v2382
        %v2384 = vpop.f32.mrb[0].mxu0
        %v2385 = vadd.f32 %v2307, %v2384
        %2386 = vdwg.mxu0
        %v2387 = vmul.f32 %v2377, 0.5
        %v2388 = vmul.f32 %v2379, 0.5
        %v2389 = vmul.f32 %v2383, 0.5
        %v2390 = vmul.f32 %v2385, 0.5
        %v2391 = vmul.f32 %v2377, 0.044715
        %v2392 = vmul.f32 %v2379, 0.044715
        %v2393 = vmul.f32 %v2383, 0.044715
        %v2394 = vmul.f32 %v2385, 0.044715
        %v2395 = vmul.f32 %v2391, %v2377
        %v2396 = vmul.f32 %v2392, %v2379
        %v2397 = vmul.f32 %v2393, %v2383
        %v2398 = vmul.f32 %v2394, %v2385
        %v2399 = vmul.f32 %v2395, %v2377
        %v2400 = vmul.f32 %v2396, %v2379
        %v2401 = vmul.f32 %v2397, %v2383
        %v2402 = vmul.f32 %v2398, %v2385
        %v2403 = vadd.f32 %v2377, %v2399
        %v2404 = vadd.f32 %v2379, %v2400
        %v2405 = vadd.f32 %v2383, %v2401
        %v2406 = vadd.f32 %v2385, %v2402
        %v2407 = vmul.f32 %v2403, 0.7978846
        %v2408 = vmul.f32 %v2404, 0.7978846
        %v2409 = vmul.f32 %v2405, 0.7978846
        %v2410 = vmul.f32 %v2406, 0.7978846
        %v2411 = vtanh.pop %v2407
        %v2412 = vtanh.pop %v2408
        %v2413 = vtanh.pop %v2409
        %v2414 = vtanh.pop %v2410
        %v2415 = vadd.f32 %v2411, 1.0
        %v2416 = vadd.f32 %v2412, 1.0
        %v2417 = vadd.f32 %v2413, 1.0
        %v2418 = vadd.f32 %v2414, 1.0
        %v2419 = vmul.f32 %v2387, %v2415
        %v2420 = vmul.f32 %v2388, %v2416
        %v2421 = vmul.f32 %v2389, %v2417
        %v2422 = vmul.f32 %v2390, %v2418
        %v2423 = vld [vmem:[#allocation25] sm:$0xff]
        %v2424 = vld [vmem:[#allocation25 + $0x8] sm:$0xff]
        %v2425 = vld [vmem:[#allocation25 + $0x10] sm:$0xff]
        %v2426 = vld [vmem:[#allocation25 + $0x18] sm:$0xff]
        %v2427 = vld [vmem:[#allocation25 + $0x20] sm:$0xff]
        %v2428 = vld [vmem:[#allocation25 + $0x28] sm:$0xff]
        %v2429 = vld [vmem:[#allocation25 + $0x30] sm:$0xff]
        %v2430 = vld [vmem:[#allocation25 + $0x38] sm:$0xff]
        %v2431 = vld [vmem:[#allocation25 + $0x40] sm:$0xff]
        %v2432 = vld [vmem:[#allocation25 + $0x48] sm:$0xff]
        %v2433 = vld [vmem:[#allocation25 + $0x50] sm:$0xff]
        %v2434 = vld [vmem:[#allocation25 + $0x58] sm:$0xff]
        %v2435 = vld [vmem:[#allocation25 + $0x60] sm:$0xff]
        %v2436 = vld [vmem:[#allocation25 + $0x68] sm:$0xff]
        %v2437 = vld [vmem:[#allocation25 + $0x70] sm:$0xff]
        %v2438 = vld [vmem:[#allocation25 + $0x78] sm:$0xff]
        %v2439 = vld [vmem:[#allocation25 + $0x80] sm:$0xff]
        %v2440 = vld [vmem:[#allocation25 + $0x88] sm:$0xff]
        %v2441 = vld [vmem:[#allocation25 + $0x90] sm:$0xff]
        %v2442 = vld [vmem:[#allocation25 + $0x98] sm:$0xff]
        %v2443 = vld [vmem:[#allocation25 + $0xa0] sm:$0xff]
        %v2444 = vld [vmem:[#allocation25 + $0xa8] sm:$0xff]
        %v2445 = vld [vmem:[#allocation25 + $0xb0] sm:$0xff]
        %v2446 = vld [vmem:[#allocation25 + $0xb8] sm:$0xff]
        %v2447 = vld [vmem:[#allocation25 + $0xc0] sm:$0xff]
        %v2448 = vld [vmem:[#allocation25 + $0xc8] sm:$0xff]
        %v2449 = vld [vmem:[#allocation25 + $0xd0] sm:$0xff]
        %v2450 = vld [vmem:[#allocation25 + $0xd8] sm:$0xff]
        %v2451 = vld [vmem:[#allocation25 + $0xe0] sm:$0xff]
        %v2452 = vld [vmem:[#allocation25 + $0xe8] sm:$0xff]
        %v2453 = vld [vmem:[#allocation25 + $0xf0] sm:$0xff]
        %v2454 = vld [vmem:[#allocation25 + $0xf8] sm:$0xff]
        %v2455 = vld [vmem:[#allocation26] sm:$0x1]
        %v2457 = vlaneseq
        %v2458 = vshrl.u32 %v2457, 7
        %v2459 = vsub.s32 0, %v2458
        %v2460 = vrot.slane %v2455, %v2459
        %2462 = vmatprep.subr.mxu0 0.0
        %2463 = vmatpush1.msra.mxu0 %v2423
        %2464 = vmatprep.subr.mxu0 0.0
        %2465 = vmatpush1.msra.mxu0 %v2424
        %2466 = vmatprep.subr.mxu0 0.0
        %2467 = vmatpush1.msra.mxu0 %v2425
        %2468 = vmatprep.subr.mxu0 0.0
        %2469 = vmatpush1.msra.mxu0 %v2426
        %2470 = vmatprep.subr.mxu0 0.0
        %2471 = vmatpush1.msra.mxu0 %v2427
        %2472 = vmatprep.subr.mxu0 0.0
        %2473 = vmatpush1.msra.mxu0 %v2428
        %2474 = vmatprep.subr.mxu0 0.0
        %2475 = vmatpush1.msra.mxu0 %v2429
        %2476 = vmatprep.subr.mxu0 0.0
        %2477 = vmatpush1.msra.mxu0 %v2430
        %2478 = vmatprep.subr.mxu0 0.0
        %2479 = vmatpush1.msra.mxu0 %v2431
        %2480 = vmatprep.subr.mxu0 0.0
        %2481 = vmatpush1.msra.mxu0 %v2432
        %2482 = vmatprep.subr.mxu0 0.0
        %2483 = vmatpush1.msra.mxu0 %v2433
        %2484 = vmatprep.subr.mxu0 0.0
        %2485 = vmatpush1.msra.mxu0 %v2434
        %2486 = vmatprep.subr.mxu0 0.0
        %2487 = vmatpush1.msra.mxu0 %v2435
        %2488 = vmatprep.subr.mxu0 0.0
        %2489 = vmatpush1.msra.mxu0 %v2436
        %2490 = vmatprep.subr.mxu0 0.0
        %2491 = vmatpush1.msra.mxu0 %v2437
        %2492 = vmatprep.subr.mxu0 0.0
        %2493 = vmatpush1.msra.mxu0 %v2438
        %2494 = vmatprep.subr.mxu0 0.0
        %2495 = vmatpush1.msra.mxu0 %v2439
        %2496 = vmatprep.subr.mxu0 0.0
        %2497 = vmatpush1.msra.mxu0 %v2440
        %2498 = vmatprep.subr.mxu0 0.0
        %2499 = vmatpush1.msra.mxu0 %v2441
        %2500 = vmatprep.subr.mxu0 0.0
        %2501 = vmatpush1.msra.mxu0 %v2442
        %2502 = vmatprep.subr.mxu0 0.0
        %2503 = vmatpush1.msra.mxu0 %v2443
        %2504 = vmatprep.subr.mxu0 0.0
        %2505 = vmatpush1.msra.mxu0 %v2444
        %2506 = vmatprep.subr.mxu0 0.0
        %2507 = vmatpush1.msra.mxu0 %v2445
        %2508 = vmatprep.subr.mxu0 0.0
        %2509 = vmatpush1.msra.mxu0 %v2446
        %2510 = vmatprep.subr.mxu0 0.0
        %2511 = vmatpush1.msra.mxu0 %v2447
        %2512 = vmatprep.subr.mxu0 0.0
        %2513 = vmatpush1.msra.mxu0 %v2448
        %2514 = vmatprep.subr.mxu0 0.0
        %2515 = vmatpush1.msra.mxu0 %v2449
        %2516 = vmatprep.subr.mxu0 0.0
        %2517 = vmatpush1.msra.mxu0 %v2450
        %2518 = vmatprep.subr.mxu0 0.0
        %2519 = vmatpush1.msra.mxu0 %v2451
        %2520 = vmatprep.subr.mxu0 0.0
        %2521 = vmatpush1.msra.mxu0 %v2452
        %2522 = vmatprep.subr.mxu0 0.0
        %2523 = vmatpush1.msra.mxu0 %v2453
        %2524 = vmatprep.subr.mxu0 0.0
        %2525 = vmatpush1.msra.mxu0 %v2454
        %2526 = vmatprep.mubr.f32.mxu0 %v2420
        %2527 = vmatmul.mubr.f32.gmra.mrb[0].mxu0 %v2419
        %v2528 = vpop.f32.mrb[0].mxu0
        %v2529 = vadd.f32 %v2460, %v2528
        %v2530 = vpop.f32.mrb[0].mxu0
        %2531 = vmatprep.mubr.f32.mxu0 %v2422
        %2532 = vmatmul.mubr.f32.gmra.mrb[0].mxu0 %v2421
        %v2533 = vpop.f32.mrb[0].mxu0
        %v2534 = vadd.f32 %v2460, %v2533
        %v2535 = vpop.f32.mrb[0].mxu0
        %2536 = vdwg.mxu0
        %v2537 = vadd.f32 %v2224, %v2529
        %v2538 = vadd.f32 %v2225, %v2534
        %2539 = vst [vmem:[%s782] sm:$0xff] %v2537
        %2540 = vst [vmem:[%s782 + $0x8] sm:$0xff] %v2538
        %s2541 = sand.u32 %s413, 1
        %s2542 = scalar_lea.sflag [#allocation4], %s2541
        %s2543 = sand.u32 %s413, 1
        %s2544 = smul.addr %s2543, 16
        %s2545 = scalar_lea.vmem [#allocation28], %s2544
        // Predicated region
        $region149: #{tpu_custom_call.1} parent=83 // pred_check
          %p2546 = pneg %p423
        $region150: #{tpu_custom_call.1} parent=83 // pred_check_branch
          %2548 = sbr.rel (%p2546) target = $region152
        $region151: #{tpu_custom_call.1} parent=83 // pred_region
          %s2549 = smul.u32 2, %s48
          %s2551 = ssub.s32 256, 256
          %2552 = vsyncadd %s2542, %s2551
          %s2553 = smul.addr %s47, 2
          %s2554 = sadd.s32 %s2549, %s2553
          %s2555 = smul.addr %s2554, 128
          %s2556 = scalar_lea.hbm %s16, %s2555
          %s2557 = sshll.u32 %s2545, 4
          %s2558 = int_to_ptr.vmem [resolvable:$true] %s2557
          %2563 = dma.vmem_to_hbm [thread:$0]  %s2558, 256, %s2556, %s2542, 128, 128, 8
        $region152: #{tpu_custom_call.1} parent=83 // pred_fallthru
          _
      $region84: #{tpu_custom_call.1} parent=5 // pred_fallthru
        _
      %p2564 = scmp.le.s32.totalorder 2, %s38
      // Predicated region
      $region153: #{tpu_custom_call.1} parent=5 // pred_check
        %p2565 = pneg %p2564
      $region154: #{tpu_custom_call.1} parent=5 // pred_check_branch
        %2567 = sbr.rel (%p2565) target = $region156
      $region155: #{tpu_custom_call.1} parent=5 // pred_region
        %s2568 = ssub.s32 %s38, 2
        // Predicated region
        $region157: #{tpu_custom_call.1} parent=155 // pred_check
          %p2569 = pneg %p429
        $region158: #{tpu_custom_call.1} parent=155 // pred_check_branch
          %2571 = sbr.rel (%p2569) target = $region160
        $region159: #{tpu_custom_call.1} parent=155 // pred_region
          %s2572 = sand.u32 %s414, 1
          %s2573 = scalar_lea.sflag [#allocation4], %s2572
          %s2574 = sand.u32 %s414, 1
          %s2575 = smul.addr %s2574, 16
          %s2576 = scalar_lea.vmem [#allocation28], %s2575
          %2577 = dma.done %s2573, 256
        $region160: #{tpu_custom_call.1} parent=155 // pred_fallthru
          _
      $region156: #{tpu_custom_call.1} parent=5 // pred_fallthru
        _
    $region6: #{tpu_custom_call.1} parent=1 // loop_footer
      %s42 = sadd.s32 1, %s38
    $region7: #{tpu_custom_call.1} parent=1 // loop_footer_branch
      %37 = sbr.rel target = $region3
    $region8: #{tpu_custom_call.1} parent=1 // loop_exit
      _
    %2578 = vsyncpa [#allocation3], 1
    %s2579 = scalar_lea.sflag [#allocation3], 1
    %2580 = vsyncpa %s2579, 1
    %2581 = vsyncpa [#allocation6], 1
    %s2582 = scalar_lea.sflag [#allocation6], 1
    %2583 = vsyncpa %s2582, 1
    %2584 = vsyncpa [#allocation9], 1
    %2585 = vsyncpa [#allocation12], 1
    %2586 = vsyncpa [#allocation15], 1
    %2587 = vsyncpa [#allocation18], 1
    %2588 = vsyncpa [#allocation21], 1
    %2589 = vsyncpa [#allocation24], 1
    %2590 = vsyncpa [#allocation27], 1
    %2591 = vsyncpa [#allocation4], 1
    %s2592 = scalar_lea.sflag [#allocation4], 1
    %2593 = vsyncpa %s2592, 1

// kernel: tpu_custom_call.1
$region0: #{tpu_custom_call.1}
  #allocation0 [shape = 'u32[]', space=smem, size = 0x4, offset = 0x4, fixed_abs, tag = 'smem constant byte address 0x4 - core index']
  #allocation1 [shape = 'u32[144,128]{1,0:T(1,128)}', space=vmem, size = 0x12000, scoped, tag = 'internal scratch']
  %s0 = inlined_call_operand.hbm [shape: f32[2,16,128], index: 0, kind: input, shape index: {}]
  %s1 = inlined_call_operand.hbm [shape: f32[2,16,128], index: 1, kind: input, shape index: {}]
  %s2 = inlined_call_operand.hbm [shape: f32[1,128], index: 2, kind: input, shape index: {}]
  %s3 = inlined_call_operand.hbm [shape: f32[1,128], index: 3, kind: input, shape index: {}]
  %s4 = inlined_call_operand.hbm [shape: f32[128,128], index: 4, kind: input, shape index: {}]
  %s5 = inlined_call_operand.hbm [shape: f32[1,128], index: 5, kind: input, shape index: {}]
  %s6 = inlined_call_operand.hbm [shape: f32[128,256], index: 6, kind: input, shape index: {}]
  %s7 = inlined_call_operand.hbm [shape: f32[1,256], index: 7, kind: input, shape index: {}]
  %s8 = inlined_call_operand.hbm [shape: f32[128,128], index: 8, kind: input, shape index: {}]
  %s9 = inlined_call_operand.hbm [shape: f32[1,128], index: 9, kind: input, shape index: {}]
  %s10 = inlined_call_operand.hbm [shape: f32[1,128], index: 10, kind: input, shape index: {}]
  %s11 = inlined_call_operand.hbm [shape: f32[1,128], index: 11, kind: input, shape index: {}]
  %s12 = inlined_call_operand.hbm [shape: f32[128,256], index: 12, kind: input, shape index: {}]
  %s13 = inlined_call_operand.hbm [shape: f32[1,256], index: 13, kind: input, shape index: {}]
  %s14 = inlined_call_operand.hbm [shape: f32[256,128], index: 14, kind: input, shape index: {}]
  %s15 = inlined_call_operand.hbm [shape: f32[1,128], index: 15, kind: input, shape index: {}]
  %s16 = inlined_call_operand.hbm [shape: f32[2,16,128], index: 16, kind: output, shape index: {}]
  %s17 = sld [smem:[#allocation0]]
  $region161: #{tpu_custom_call.1} parent=0
    _
  %s19 = ssub.s32 1, %s17
  %s20 = scalar_select 0, %s19, %s17
  $region1: #{tpu_custom_call.1} parent=0
    #allocation2 [shape = 'u8[16384]{0}', space=vmem, size = 0x4000, scoped, tag = 'input window, operand 0']
    #allocation3 [shape = 's32[2]{0}', space=sflag, size = 0x8, scoped, tag = 'scoped memory for tpu_custom_call.1']
    #allocation4 [shape = 's32[2]{0}', space=sflag, size = 0x8, scoped, tag = 'scoped memory for tpu_custom_call.1']
    #allocation5 [shape = 'u8[16384]{0}', space=vmem, size = 0x4000, scoped, tag = 'input window, operand 1']
    #allocation6 [shape = 's32[2]{0}', space=sflag, size = 0x8, scoped, tag = 'scoped memory for tpu_custom_call.1']
    #allocation7 [shape = 'u8[512]{0}', space=vmem, size = 0x400, scoped, tag = 'input window, operand 2, single buffered']
    #allocation8 [shape = 'u8[512]{0}', space=vmem, size = 0x400, scoped, tag = 'input window, operand 3, single buffered']
    #allocation9 [shape = 's32[1]{0}', space=sflag, size = 0x4, scoped, tag = 'scoped memory for tpu_custom_call.1']
    #allocation10 [shape = 'u8[65536]{0}', space=vmem, size = 0x10000, scoped, tag = 'input window, operand 4, single buffered']
    #allocation11 [shape = 'u8[512]{0}', space=vmem, size = 0x400, scoped, tag = 'input window, operand 5, single buffered']
    #allocation12 [shape = 's32[1]{0}', space=sflag, size = 0x4, scoped, tag = 'scoped memory for tpu_custom_call.1']
    #allocation13 [shape = 'u8[131072]{0}', space=vmem, size = 0x20000, scoped, tag = 'input window, operand 6, single buffered']
    #allocation14 [shape = 'u8[1024]{0}', space=vmem, size = 0x400, scoped, tag = 'input window, operand 7, single buffered']
    #allocation15 [shape = 's32[1]{0}', space=sflag, size = 0x4, scoped, tag = 'scoped memory for tpu_custom_call.1']
    #allocation16 [shape = 'u8[65536]{0}', space=vmem, size = 0x10000, scoped, tag = 'input window, operand 8, single buffered']
    #allocation17 [shape = 'u8[512]{0}', space=vmem, size = 0x400, scoped, tag = 'input window, operand 9, single buffered']
    #allocation18 [shape = 's32[1]{0}', space=sflag, size = 0x4, scoped, tag = 'scoped memory for tpu_custom_call.1']
    #allocation19 [shape = 'u8[512]{0}', space=vmem, size = 0x400, scoped, tag = 'input window, operand 10, single buffered']
    #allocation20 [shape = 'u8[512]{0}', space=vmem, size = 0x400, scoped, tag = 'input window, operand 11, single buffered']
    #allocation21 [shape = 's32[1]{0}', space=sflag, size = 0x4, scoped, tag = 'scoped memory for tpu_custom_call.1']
    #allocation22 [shape = 'u8[131072]{0}', space=vmem, size = 0x20000, scoped, tag = 'input window, operand 12, single buffered']
    #allocation23 [shape = 'u8[1024]{0}', space=vmem, size = 0x400, scoped, tag = 'input window, operand 13, single buffered']
    #allocation24 [shape = 's32[1]{0}', space=sflag, size = 0x4, scoped, tag = 'scoped memory for tpu_custom_call.1']
    #allocation25 [shape = 'u8[131072]{0}', space=vmem, size = 0x20000, scoped, tag = 'input window, operand 14, single buffered']
    #allocation26 [shape = 'u8[512]{0}', space=vmem, size = 0x400, scoped, tag = 'input window, operand 15, single buffered']
    #allocation27 [shape = 's32[1]{0}', space=sflag, size = 0x4, scoped, tag = 'scoped memory for tpu_custom_call.1']
    #allocation28 [shape = 'u8[16384]{0}', space=vmem, size = 0x4000, scoped, tag = 'output window, operand 0']
    %21 = vsyncpa [#allocation3], 0
    %s22 = scalar_lea.sflag [#allocation3], 1
    %23 = vsyncpa %s22, 0
    %24 = vsyncpa [#allocation6], 0
    %s25 = scalar_lea.sflag [#allocation6], 1
    %26 = vsyncpa %s25, 0
    %27 = vsyncpa [#allocation9], 0
    %28 = vsyncpa [#allocation12], 0
    %29 = vsyncpa [#allocation15], 0
    %30 = vsyncpa [#allocation18], 0
    %31 = vsyncpa [#allocation21], 0
    %32 = vsyncpa [#allocation24], 0
    %33 = vsyncpa [#allocation27], 0
    %34 = vsyncpa [#allocation4], 0
    %s35 = scalar_lea.sflag [#allocation4], 1
    %36 = vsyncpa %s35, 0
    loop: start=0, step=1, limit=4
    $region2: #{tpu_custom_call.1} parent=1 // loop_pre_header
      _
    $region3: #{tpu_custom_call.1} parent=1 // loop_header
      %s38 = sphi 0, %s42
      %p39 = scmp.ge.s32.totalorder %s38, 4
      %s45 = sphi 0, %s57
      %s46 = sphi 0, %s53
      %s47 = sphi 0, %s45
      %s48 = sphi 0, %s46
      %s49 = sphi 0, %s47
      %s50 = sphi 0, %s48
      %s62 = sphi 0, %s64
      %s65 = sphi 0, %s62
      %s66 = sphi 0, %s65
      %s82 = sphi 0, %s66
      %s88 = sphi 0, %s90
      %s91 = sphi 0, %s88
      %s92 = sphi 0, %s91
      %s108 = sphi 0, %s92
      %s112 = sphi 0, %s112
      %s114 = sphi 0, %s112
      %s115 = sphi 0, %s114
      %s129 = sphi 0, %s115
      %s133 = sphi 0, %s133
      %s135 = sphi 0, %s133
      %s136 = sphi 0, %s135
      %s150 = sphi 0, %s136
      %s154 = sphi 0, %s154
      %s156 = sphi 0, %s154
      %s157 = sphi 0, %s156
      %s171 = sphi 0, %s157
      %s175 = sphi 0, %s175
      %s177 = sphi 0, %s175
      %s178 = sphi 0, %s177
      %s192 = sphi 0, %s178
      %s196 = sphi 0, %s196
      %s198 = sphi 0, %s196
      %s199 = sphi 0, %s198
      %s213 = sphi 0, %s199
      %s217 = sphi 0, %s217
      %s219 = sphi 0, %s217
      %s220 = sphi 0, %s219
      %s234 = sphi 0, %s220
      %s238 = sphi 0, %s238
      %s240 = sphi 0, %s238
      %s241 = sphi 0, %s240
      %s255 = sphi 0, %s241
      %s259 = sphi 0, %s259
      %s261 = sphi 0, %s259
      %s262 = sphi 0, %s261
      %s276 = sphi 0, %s262
      %s280 = sphi 0, %s280
      %s282 = sphi 0, %s280
      %s283 = sphi 0, %s282
      %s297 = sphi 0, %s283
      %s301 = sphi 0, %s301
      %s303 = sphi 0, %s301
      %s304 = sphi 0, %s303
      %s318 = sphi 0, %s304
      %s322 = sphi 0, %s322
      %s324 = sphi 0, %s322
      %s325 = sphi 0, %s324
      %s339 = sphi 0, %s325
      %s343 = sphi 0, %s343
      %s345 = sphi 0, %s343
      %s346 = sphi 0, %s345
      %s360 = sphi 0, %s346
      %s364 = sphi 0, %s364
      %s366 = sphi 0, %s364
      %s367 = sphi 0, %s366
      %s381 = sphi 0, %s367
      %s385 = sphi 0, %s385
      %s387 = sphi 0, %s385
      %s388 = sphi 0, %s387
      %s402 = sphi 0, %s388
      %s410 = sphi 0, %s412
      %s413 = sphi 0, %s410
      %s414 = sphi 0, %s413
      %s430 = sphi 0, %s414
    $region4: #{tpu_custom_call.1} parent=1 // loop_header_branch
      %41 = sbr.rel (%p39) target = $region8
    $region5: #{tpu_custom_call.1} parent=1 // loop_body
      %s43 = ssub.s32 %s38, 1
      %s44 = ssub.s32 %s38, 2
      %s51 = sadd.s32 1, %s46
      %p52 = scmp.ge.s32.totalorder %s51, 1
      %s53 = scalar_select %p52, 0, %s51
      %s54 = sadd.s32 1, %s45
      %s55 = scalar_select %p52, %s54, %s45
      %p56 = scmp.ge.s32.totalorder %s55, 2
      %s57 = scalar_select %p56, 0, %s55
      %s58 = ssub.s32 %s45, %s57
      %s59 = ssub.s32 %s46, %s53
      %s60 = sor.u32 %s58, %s59
      %p61 = scmp.eq.s32.totalorder %s60, 0
      %s63 = sadd.s32 %s62, 1
      %s64 = scalar_select %p61, %s62, %s63
      %p67 = pneg %p61
      %p68 = scmp.eq.s32.totalorder %s38, 1
      %p69 = por %p67, %p68
      %p70 = scmp.ne.s32.totalorder %s62, %s65
      %p71 = scmp.eq.s32.totalorder %s38, 0
      %p72 = por %p70, %p71
      %p73 = scmp.ne.s32.totalorder %s62, %s65
      %p74 = scmp.eq.s32.totalorder %s43, 1
      %p75 = por %p73, %p74
      %p76 = scmp.ne.s32.totalorder %s65, %s66
      %p77 = scmp.eq.s32.totalorder %s43, 0
      %p78 = por %p76, %p77
      %p79 = scmp.ne.s32.totalorder %s65, %s66
      %p80 = scmp.eq.s32.totalorder %s44, 1
      %p81 = por %p79, %p80
      %p83 = scmp.ne.s32.totalorder %s66, %s82
      %p84 = scmp.eq.s32.totalorder %s44, 0
      %p85 = por %p83, %p84
      %s86 = ssub.s32 %s45, %s57
      %p87 = scmp.eq.s32.totalorder %s86, 0
      %s89 = sadd.s32 %s88, 1
      %s90 = scalar_select %p87, %s88, %s89
      %p93 = pneg %p87
      %p94 = scmp.eq.s32.totalorder %s38, 1
      %p95 = por %p93, %p94
      %p96 = scmp.ne.s32.totalorder %s88, %s91
      %p97 = scmp.eq.s32.totalorder %s38, 0
      %p98 = por %p96, %p97
      %p99 = scmp.ne.s32.totalorder %s88, %s91
      %p100 = scmp.eq.s32.totalorder %s43, 1
      %p101 = por %p99, %p100
      %p102 = scmp.ne.s32.totalorder %s91, %s92
      %p103 = scmp.eq.s32.totalorder %s43, 0
      %p104 = por %p102, %p103
      %p105 = scmp.ne.s32.totalorder %s91, %s92
      %p106 = scmp.eq.s32.totalorder %s44, 1
      %p107 = por %p105, %p106
      %p109 = scmp.ne.s32.totalorder %s92, %s108
      %p110 = scmp.eq.s32.totalorder %s44, 0
      %p111 = por %p109, %p110
      %s113 = sadd.s32 %s112, 1
      %p116 = scmp.eq.s32.totalorder %s38, 1
      %p117 = scmp.ne.s32.totalorder %s112, %s114
      %p118 = scmp.eq.s32.totalorder %s38, 0
      %p119 = por %p117, %p118
      %p120 = scmp.ne.s32.totalorder %s112, %s114
      %p121 = scmp.eq.s32.totalorder %s43, 1
      %p122 = por %p120, %p121
      %p123 = scmp.ne.s32.totalorder %s114, %s115
      %p124 = scmp.eq.s32.totalorder %s43, 0
      %p125 = por %p123, %p124
      %p126 = scmp.ne.s32.totalorder %s114, %s115
      %p127 = scmp.eq.s32.totalorder %s44, 1
      %p128 = por %p126, %p127
      %p130 = scmp.ne.s32.totalorder %s115, %s129
      %p131 = scmp.eq.s32.totalorder %s44, 0
      %p132 = por %p130, %p131
      %s134 = sadd.s32 %s133, 1
      %p137 = scmp.eq.s32.totalorder %s38, 1
      %p138 = scmp.ne.s32.totalorder %s133, %s135
      %p139 = scmp.eq.s32.totalorder %s38, 0
      %p140 = por %p138, %p139
      %p141 = scmp.ne.s32.totalorder %s133, %s135
      %p142 = scmp.eq.s32.totalorder %s43, 1
      %p143 = por %p141, %p142
      %p144 = scmp.ne.s32.totalorder %s135, %s136
      %p145 = scmp.eq.s32.totalorder %s43, 0
      %p146 = por %p144, %p145
      %p147 = scmp.ne.s32.totalorder %s135, %s136
      %p148 = scmp.eq.s32.totalorder %s44, 1
      %p149 = por %p147, %p148
      %p151 = scmp.ne.s32.totalorder %s136, %s150
      %p152 = scmp.eq.s32.totalorder %s44, 0
      %p153 = por %p151, %p152
      %s155 = sadd.s32 %s154, 1
      %p158 = scmp.eq.s32.totalorder %s38, 1
      %p159 = scmp.ne.s32.totalorder %s154, %s156
      %p160 = scmp.eq.s32.totalorder %s38, 0
      %p161 = por %p159, %p160
      %p162 = scmp.ne.s32.totalorder %s154, %s156
      %p163 = scmp.eq.s32.totalorder %s43, 1
      %p164 = por %p162, %p163
      %p165 = scmp.ne.s32.totalorder %s156, %s157
      %p166 = scmp.eq.s32.totalorder %s43, 0
      %p167 = por %p165, %p166
      %p168 = scmp.ne.s32.totalorder %s156, %s157
      %p169 = scmp.eq.s32.totalorder %s44, 1
      %p170 = por %p168, %p169
      %p172 = scmp.ne.s32.totalorder %s157, %s171
      %p173 = scmp.eq.s32.totalorder %s44, 0
      %p174 = por %p172, %p173
      %s176 = sadd.s32 %s175, 1
      %p179 = scmp.eq.s32.totalorder %s38, 1
      %p180 = scmp.ne.s32.totalorder %s175, %s177
      %p181 = scmp.eq.s32.totalorder %s38, 0
      %p182 = por %p180, %p181
      %p183 = scmp.ne.s32.totalorder %s175, %s177
      %p184 = scmp.eq.s32.totalorder %s43, 1
      %p185 = por %p183, %p184
      %p186 = scmp.ne.s32.totalorder %s177, %s178
      %p187 = scmp.eq.s32.totalorder %s43, 0
      %p188 = por %p186, %p187
      %p189 = scmp.ne.s32.totalorder %s177, %s178
      %p190 = scmp.eq.s32.totalorder %s44, 1
      %p191 = por %p189, %p190
      %p193 = scmp.ne.s32.totalorder %s178, %s192
      %p194 = scmp.eq.s32.totalorder %s44, 0
      %p195 = por %p193, %p194
      %s197 = sadd.s32 %s196, 1
      %p200 = scmp.eq.s32.totalorder %s38, 1
      %p201 = scmp.ne.s32.totalorder %s196, %s198
      %p202 = scmp.eq.s32.totalorder %s38, 0
      %p203 = por %p201, %p202
      %p204 = scmp.ne.s32.totalorder %s196, %s198
      %p205 = scmp.eq.s32.totalorder %s43, 1
      %p206 = por %p204, %p205
      %p207 = scmp.ne.s32.totalorder %s198, %s199
      %p208 = scmp.eq.s32.totalorder %s43, 0
      %p209 = por %p207, %p208
      %p210 = scmp.ne.s32.totalorder %s198, %s199
      %p211 = scmp.eq.s32.totalorder %s44, 1
      %p212 = por %p210, %p211
      %p214 = scmp.ne.s32.totalorder %s199, %s213
      %p215 = scmp.eq.s32.totalorder %s44, 0
      %p216 = por %p214, %p215
      %s218 = sadd.s32 %s217, 1
      %p221 = scmp.eq.s32.totalorder %s38, 1
      %p222 = scmp.ne.s32.totalorder %s217, %s219
      %p223 = scmp.eq.s32.totalorder %s38, 0
      %p224 = por %p222, %p223
      %p225 = scmp.ne.s32.totalorder %s217, %s219
      %p226 = scmp.eq.s32.totalorder %s43, 1
      %p227 = por %p225, %p226
      %p228 = scmp.ne.s32.totalorder %s219, %s220
      %p229 = scmp.eq.s32.totalorder %s43, 0
      %p230 = por %p228, %p229
      %p231 = scmp.ne.s32.totalorder %s219, %s220
      %p232 = scmp.eq.s32.totalorder %s44, 1
      %p233 = por %p231, %p232
      %p235 = scmp.ne.s32.totalorder %s220, %s234
      %p236 = scmp.eq.s32.totalorder %s44, 0
      %p237 = por %p235, %p236
      %s239 = sadd.s32 %s238, 1
      %p242 = scmp.eq.s32.totalorder %s38, 1
      %p243 = scmp.ne.s32.totalorder %s238, %s240
      %p244 = scmp.eq.s32.totalorder %s38, 0
      %p245 = por %p243, %p244
      %p246 = scmp.ne.s32.totalorder %s238, %s240
      %p247 = scmp.eq.s32.totalorder %s43, 1
      %p248 = por %p246, %p247
      %p249 = scmp.ne.s32.totalorder %s240, %s241
      %p250 = scmp.eq.s32.totalorder %s43, 0
      %p251 = por %p249, %p250
      %p252 = scmp.ne.s32.totalorder %s240, %s241
      %p253 = scmp.eq.s32.totalorder %s44, 1
      %p254 = por %p252, %p253
      %p256 = scmp.ne.s32.totalorder %s241, %s255
      %p257 = scmp.eq.s32.totalorder %s44, 0
      %p258 = por %p256, %p257
      %s260 = sadd.s32 %s259, 1
      %p263 = scmp.eq.s32.totalorder %s38, 1
      %p264 = scmp.ne.s32.totalorder %s259, %s261
      %p265 = scmp.eq.s32.totalorder %s38, 0
      %p266 = por %p264, %p265
      %p267 = scmp.ne.s32.totalorder %s259, %s261
      %p268 = scmp.eq.s32.totalorder %s43, 1
      %p269 = por %p267, %p268
      %p270 = scmp.ne.s32.totalorder %s261, %s262
      %p271 = scmp.eq.s32.totalorder %s43, 0
      %p272 = por %p270, %p271
      %p273 = scmp.ne.s32.totalorder %s261, %s262
      %p274 = scmp.eq.s32.totalorder %s44, 1
      %p275 = por %p273, %p274
      %p277 = scmp.ne.s32.totalorder %s262, %s276
      %p278 = scmp.eq.s32.totalorder %s44, 0
      %p279 = por %p277, %p278
      %s281 = sadd.s32 %s280, 1
      %p284 = scmp.eq.s32.totalorder %s38, 1
      %p285 = scmp.ne.s32.totalorder %s280, %s282
      %p286 = scmp.eq.s32.totalorder %s38, 0
      %p287 = por %p285, %p286
      %p288 = scmp.ne.s32.totalorder %s280, %s282
      %p289 = scmp.eq.s32.totalorder %s43, 1
      %p290 = por %p288, %p289
      %p291 = scmp.ne.s32.totalorder %s282, %s283
      %p292 = scmp.eq.s32.totalorder %s43, 0
      %p293 = por %p291, %p292
      %p294 = scmp.ne.s32.totalorder %s282, %s283
      %p295 = scmp.eq.s32.totalorder %s44, 1
      %p296 = por %p294, %p295
      %p298 = scmp.ne.s32.totalorder %s283, %s297
      %p299 = scmp.eq.s32.totalorder %s44, 0
      %p300 = por %p298, %p299
      %s302 = sadd.s32 %s301, 1
      %p305 = scmp.eq.s32.totalorder %s38, 1
      %p306 = scmp.ne.s32.totalorder %s301, %s303
      %p307 = scmp.eq.s32.totalorder %s38, 0
      %p308 = por %p306, %p307
      %p309 = scmp.ne.s32.totalorder %s301, %s303
      %p310 = scmp.eq.s32.totalorder %s43, 1
      %p311 = por %p309, %p310
      %p312 = scmp.ne.s32.totalorder %s303, %s304
      %p313 = scmp.eq.s32.totalorder %s43, 0
      %p314 = por %p312, %p313
      %p315 = scmp.ne.s32.totalorder %s303, %s304
      %p316 = scmp.eq.s32.totalorder %s44, 1
      %p317 = por %p315, %p316
      %p319 = scmp.ne.s32.totalorder %s304, %s318
      %p320 = scmp.eq.s32.totalorder %s44, 0
      %p321 = por %p319, %p320
      %s323 = sadd.s32 %s322, 1
      %p326 = scmp.eq.s32.totalorder %s38, 1
      %p327 = scmp.ne.s32.totalorder %s322, %s324
      %p328 = scmp.eq.s32.totalorder %s38, 0
      %p329 = por %p327, %p328
      %p330 = scmp.ne.s32.totalorder %s322, %s324
      %p331 = scmp.eq.s32.totalorder %s43, 1
      %p332 = por %p330, %p331
      %p333 = scmp.ne.s32.totalorder %s324, %s325
      %p334 = scmp.eq.s32.totalorder %s43, 0
      %p335 = por %p333, %p334
      %p336 = scmp.ne.s32.totalorder %s324, %s325
      %p337 = scmp.eq.s32.totalorder %s44, 1
      %p338 = por %p336, %p337
      %p340 = scmp.ne.s32.totalorder %s325, %s339
      %p341 = scmp.eq.s32.totalorder %s44, 0
      %p342 = por %p340, %p341
      %s344 = sadd.s32 %s343, 1
      %p347 = scmp.eq.s32.totalorder %s38, 1
      %p348 = scmp.ne.s32.totalorder %s343, %s345
      %p349 = scmp.eq.s32.totalorder %s38, 0
      %p350 = por %p348, %p349
      %p351 = scmp.ne.s32.totalorder %s343, %s345
      %p352 = scmp.eq.s32.totalorder %s43, 1
      %p353 = por %p351, %p352
      %p354 = scmp.ne.s32.totalorder %s345, %s346
      %p355 = scmp.eq.s32.totalorder %s43, 0
      %p356 = por %p354, %p355
      %p357 = scmp.ne.s32.totalorder %s345, %s346
      %p358 = scmp.eq.s32.totalorder %s44, 1
      %p359 = por %p357, %p358
      %p361 = scmp.ne.s32.totalorder %s346, %s360
      %p362 = scmp.eq.s32.totalorder %s44, 0
      %p363 = por %p361, %p362
      %s365 = sadd.s32 %s364, 1
      %p368 = scmp.eq.s32.totalorder %s38, 1
      %p369 = scmp.ne.s32.totalorder %s364, %s366
      %p370 = scmp.eq.s32.totalorder %s38, 0
      %p371 = por %p369, %p370
      %p372 = scmp.ne.s32.totalorder %s364, %s366
      %p373 = scmp.eq.s32.totalorder %s43, 1
      %p374 = por %p372, %p373
      %p375 = scmp.ne.s32.totalorder %s366, %s367
      %p376 = scmp.eq.s32.totalorder %s43, 0
      %p377 = por %p375, %p376
      %p378 = scmp.ne.s32.totalorder %s366, %s367
      %p379 = scmp.eq.s32.totalorder %s44, 1
      %p380 = por %p378, %p379
      %p382 = scmp.ne.s32.totalorder %s367, %s381
      %p383 = scmp.eq.s32.totalorder %s44, 0
      %p384 = por %p382, %p383
      %s386 = sadd.s32 %s385, 1
      %p389 = scmp.eq.s32.totalorder %s38, 1
      %p390 = scmp.ne.s32.totalorder %s385, %s387
      %p391 = scmp.eq.s32.totalorder %s38, 0
      %p392 = por %p390, %p391
      %p393 = scmp.ne.s32.totalorder %s385, %s387
      %p394 = scmp.eq.s32.totalorder %s43, 1
      %p395 = por %p393, %p394
      %p396 = scmp.ne.s32.totalorder %s387, %s388
      %p397 = scmp.eq.s32.totalorder %s43, 0
      %p398 = por %p396, %p397
      %p399 = scmp.ne.s32.totalorder %s387, %s388
      %p400 = scmp.eq.s32.totalorder %s44, 1
      %p401 = por %p399, %p400
      %p403 = scmp.ne.s32.totalorder %s388, %s402
      %p404 = scmp.eq.s32.totalorder %s44, 0
      %p405 = por %p403, %p404
      %s406 = ssub.s32 %s45, %s57
      %s407 = ssub.s32 %s46, %s53
      %s408 = sor.u32 %s406, %s407
      %p409 = scmp.eq.s32.totalorder %s408, 0
      %s411 = sadd.s32 %s410, 1
      %s412 = scalar_select %p409, %s410, %s411
      %p415 = pneg %p409
      %p416 = scmp.eq.s32.totalorder %s38, 1
      %p417 = por %p415, %p416
      %p418 = scmp.ne.s32.totalorder %s410, %s413
      %p419 = scmp.eq.s32.totalorder %s38, 0
      %p420 = por %p418, %p419
      %p421 = scmp.ne.s32.totalorder %s410, %s413
      %p422 = scmp.eq.s32.totalorder %s43, 1
      %p423 = por %p421, %p422
      %p424 = scmp.ne.s32.totalorder %s413, %s414
      %p425 = scmp.eq.s32.totalorder %s43, 0
      %p426 = por %p424, %p425
      %p427 = scmp.ne.s32.totalorder %s413, %s414
      %p428 = scmp.eq.s32.totalorder %s44, 1
      %p429 = por %p427, %p428
      %p431 = scmp.ne.s32.totalorder %s414, %s430
      %p432 = scmp.eq.s32.totalorder %s44, 0
      %p433 = por %p431, %p432
      %p434 = scmp.le.s32.totalorder 1, %s38
      %p435 = scmp.lt.s32.totalorder %s38, 3
      %p436 = pnand %p434, %p435
      %p437 = pneg %p436
      // Predicated region
      $region9: #{tpu_custom_call.1} parent=5 // pred_check
        _
      $region10: #{tpu_custom_call.1} parent=5 // pred_check_branch
        %439 = sbr.rel (%p436) target = $region12
      $region11: #{tpu_custom_call.1} parent=5 // pred_region
        %s440 = ssub.s32 %s38, 1
        // Predicated region
        $region13: #{tpu_custom_call.1} parent=11 // pred_check
          %p441 = pneg %p125
        $region14: #{tpu_custom_call.1} parent=11 // pred_check_branch
          %443 = sbr.rel (%p441) target = $region16
        $region15: #{tpu_custom_call.1} parent=11 // pred_region
          %s445 = ssub.s32 16, 16
          %446 = vsyncadd [#allocation6], %s445
          %s448 = sshll.u32 [#allocation7], 4
          %s449 = int_to_ptr.vmem [resolvable:$true] %s448
          %451 = dma.hbm_to_vmem [thread:$0]  %s2, 16, %s449, [#allocation6]
        $region16: #{tpu_custom_call.1} parent=11 // pred_fallthru
          _
        // Predicated region
        $region17: #{tpu_custom_call.1} parent=11 // pred_check
          %p452 = pneg %p146
        $region18: #{tpu_custom_call.1} parent=11 // pred_check_branch
          %454 = sbr.rel (%p452) target = $region20
        $region19: #{tpu_custom_call.1} parent=11 // pred_region
          %s456 = ssub.s32 16, 16
          %457 = vsyncadd [#allocation9], %s456
          %s459 = sshll.u32 [#allocation8], 4
          %s460 = int_to_ptr.vmem [resolvable:$true] %s459
          %462 = dma.hbm_to_vmem [thread:$0]  %s3, 16, %s460, [#allocation9]
        $region20: #{tpu_custom_call.1} parent=11 // pred_fallthru
          _
        // Predicated region
        $region21: #{tpu_custom_call.1} parent=11 // pred_check
          %p463 = pneg %p167
        $region22: #{tpu_custom_call.1} parent=11 // pred_check_branch
          %465 = sbr.rel (%p463) target = $region24
        $region23: #{tpu_custom_call.1} parent=11 // pred_region
          %s467 = ssub.s32 2048, 2048
          %468 = vsyncadd [#allocation9], %s467
          %s469 = sshll.u32 [#allocation10], 4
          %s470 = int_to_ptr.vmem [resolvable:$true] %s469
          %475 = dma.hbm_to_vmem [thread:$0]  %s4, 2048, %s470, [#allocation9], 128, 128, 8
        $region24: #{tpu_custom_call.1} parent=11 // pred_fallthru
          _
        // Predicated region
        $region25: #{tpu_custom_call.1} parent=11 // pred_check
          %p476 = pneg %p188
        $region26: #{tpu_custom_call.1} parent=11 // pred_check_branch
          %478 = sbr.rel (%p476) target = $region28
        $region27: #{tpu_custom_call.1} parent=11 // pred_region
          %s480 = ssub.s32 16, 16
          %481 = vsyncadd [#allocation12], %s480
          %s483 = sshll.u32 [#allocation11], 4
          %s484 = int_to_ptr.vmem [resolvable:$true] %s483
          %486 = dma.hbm_to_vmem [thread:$0]  %s5, 16, %s484, [#allocation12]
        $region28: #{tpu_custom_call.1} parent=11 // pred_fallthru
          _
        // Predicated region
        $region29: #{tpu_custom_call.1} parent=11 // pred_check
          %p487 = pneg %p209
        $region30: #{tpu_custom_call.1} parent=11 // pred_check_branch
          %489 = sbr.rel (%p487) target = $region32
        $region31: #{tpu_custom_call.1} parent=11 // pred_region
          %s491 = ssub.s32 4096, 4096
          %492 = vsyncadd [#allocation12], %s491
          %s493 = sshll.u32 [#allocation13], 4
          %s494 = int_to_ptr.vmem [resolvable:$true] %s493
          %499 = dma.hbm_to_vmem [thread:$0]  %s6, 4096, %s494, [#allocation12], 256, 256, 16
        $region32: #{tpu_custom_call.1} parent=11 // pred_fallthru
          _
        // Predicated region
        $region33: #{tpu_custom_call.1} parent=11 // pred_check
          %p500 = pneg %p230
        $region34: #{tpu_custom_call.1} parent=11 // pred_check_branch
          %502 = sbr.rel (%p500) target = $region36
        $region35: #{tpu_custom_call.1} parent=11 // pred_region
          %s504 = ssub.s32 32, 32
          %505 = vsyncadd [#allocation15], %s504
          %s507 = sshll.u32 [#allocation14], 4
          %s508 = int_to_ptr.vmem [resolvable:$true] %s507
          %510 = dma.hbm_to_vmem [thread:$0]  %s7, 32, %s508, [#allocation15]
        $region36: #{tpu_custom_call.1} parent=11 // pred_fallthru
          _
        // Predicated region
        $region37: #{tpu_custom_call.1} parent=11 // pred_check
          %p511 = pneg %p251
        $region38: #{tpu_custom_call.1} parent=11 // pred_check_branch
          %513 = sbr.rel (%p511) target = $region40
        $region39: #{tpu_custom_call.1} parent=11 // pred_region
          %s515 = ssub.s32 2048, 2048
          %516 = vsyncadd [#allocation15], %s515
          %s517 = sshll.u32 [#allocation16], 4
          %s518 = int_to_ptr.vmem [resolvable:$true] %s517
          %523 = dma.hbm_to_vmem [thread:$0]  %s8, 2048, %s518, [#allocation15], 128, 128, 8
        $region40: #{tpu_custom_call.1} parent=11 // pred_fallthru
          _
        // Predicated region
        $region41: #{tpu_custom_call.1} parent=11 // pred_check
          %p524 = pneg %p272
        $region42: #{tpu_custom_call.1} parent=11 // pred_check_branch
          %526 = sbr.rel (%p524) target = $region44
        $region43: #{tpu_custom_call.1} parent=11 // pred_region
          %s528 = ssub.s32 16, 16
          %529 = vsyncadd [#allocation18], %s528
          %s531 = sshll.u32 [#allocation17], 4
          %s532 = int_to_ptr.vmem [resolvable:$true] %s531
          %534 = dma.hbm_to_vmem [thread:$0]  %s9, 16, %s532, [#allocation18]
        $region44: #{tpu_custom_call.1} parent=11 // pred_fallthru
          _
        // Predicated region
        $region45: #{tpu_custom_call.1} parent=11 // pred_check
          %p535 = pneg %p293
        $region46: #{tpu_custom_call.1} parent=11 // pred_check_branch
          %537 = sbr.rel (%p535) target = $region48
        $region47: #{tpu_custom_call.1} parent=11 // pred_region
          %s539 = ssub.s32 16, 16
          %540 = vsyncadd [#allocation18], %s539
          %s542 = sshll.u32 [#allocation19], 4
          %s543 = int_to_ptr.vmem [resolvable:$true] %s542
          %545 = dma.hbm_to_vmem [thread:$0]  %s10, 16, %s543, [#allocation18]
        $region48: #{tpu_custom_call.1} parent=11 // pred_fallthru
          _
        // Predicated region
        $region49: #{tpu_custom_call.1} parent=11 // pred_check
          %p546 = pneg %p314
        $region50: #{tpu_custom_call.1} parent=11 // pred_check_branch
          %548 = sbr.rel (%p546) target = $region52
        $region51: #{tpu_custom_call.1} parent=11 // pred_region
          %s550 = ssub.s32 16, 16
          %551 = vsyncadd [#allocation21], %s550
          %s553 = sshll.u32 [#allocation20], 4
          %s554 = int_to_ptr.vmem [resolvable:$true] %s553
          %556 = dma.hbm_to_vmem [thread:$0]  %s11, 16, %s554, [#allocation21]
        $region52: #{tpu_custom_call.1} parent=11 // pred_fallthru
          _
        // Predicated region
        $region53: #{tpu_custom_call.1} parent=11 // pred_check
          %p557 = pneg %p335
        $region54: #{tpu_custom_call.1} parent=11 // pred_check_branch
          %559 = sbr.rel (%p557) target = $region56
        $region55: #{tpu_custom_call.1} parent=11 // pred_region
          %s561 = ssub.s32 4096, 4096
          %562 = vsyncadd [#allocation21], %s561
          %s563 = sshll.u32 [#allocation22], 4
          %s564 = int_to_ptr.vmem [resolvable:$true] %s563
          %569 = dma.hbm_to_vmem [thread:$0]  %s12, 4096, %s564, [#allocation21], 256, 256, 16
        $region56: #{tpu_custom_call.1} parent=11 // pred_fallthru
          _
        // Predicated region
        $region57: #{tpu_custom_call.1} parent=11 // pred_check
          %p570 = pneg %p356
        $region58: #{tpu_custom_call.1} parent=11 // pred_check_branch
          %572 = sbr.rel (%p570) target = $region60
        $region59: #{tpu_custom_call.1} parent=11 // pred_region
          %s574 = ssub.s32 32, 32
          %575 = vsyncadd [#allocation24], %s574
          %s577 = sshll.u32 [#allocation23], 4
          %s578 = int_to_ptr.vmem [resolvable:$true] %s577
          %580 = dma.hbm_to_vmem [thread:$0]  %s13, 32, %s578, [#allocation24]
        $region60: #{tpu_custom_call.1} parent=11 // pred_fallthru
          _
        // Predicated region
        $region61: #{tpu_custom_call.1} parent=11 // pred_check
          %p581 = pneg %p377
        $region62: #{tpu_custom_call.1} parent=11 // pred_check_branch
          %583 = sbr.rel (%p581) target = $region64
        $region63: #{tpu_custom_call.1} parent=11 // pred_region
          %s585 = ssub.s32 4096, 4096
          %586 = vsyncadd [#allocation24], %s585
          %s587 = sshll.u32 [#allocation25], 4
          %s588 = int_to_ptr.vmem [resolvable:$true] %s587
          %593 = dma.hbm_to_vmem [thread:$0]  %s14, 4096, %s588, [#allocation24], 128, 128, 8
        $region64: #{tpu_custom_call.1} parent=11 // pred_fallthru
          _
        // Predicated region
        $region65: #{tpu_custom_call.1} parent=11 // pred_check
          %p594 = pneg %p398
        $region66: #{tpu_custom_call.1} parent=11 // pred_check_branch
          %596 = sbr.rel (%p594) target = $region68
        $region67: #{tpu_custom_call.1} parent=11 // pred_region
          %s598 = ssub.s32 16, 16
          %599 = vsyncadd [#allocation27], %s598
          %s601 = sshll.u32 [#allocation26], 4
          %s602 = int_to_ptr.vmem [resolvable:$true] %s601
          %604 = dma.hbm_to_vmem [thread:$0]  %s15, 16, %s602, [#allocation27]
        $region68: #{tpu_custom_call.1} parent=11 // pred_fallthru
          _
      $region12: #{tpu_custom_call.1} parent=5 // pred_fallthru
        _
      %p605 = scmp.lt.s32.totalorder %s38, 2
      // Predicated region
      $region69: #{tpu_custom_call.1} parent=5 // pred_check
        %p606 = pneg %p605
      $region70: #{tpu_custom_call.1} parent=5 // pred_check_branch
        %608 = sbr.rel (%p606) target = $region72
      $region71: #{tpu_custom_call.1} parent=5 // pred_region
        // Predicated region
        $region73: #{tpu_custom_call.1} parent=71 // pred_check
          %p609 = pneg %p72
        $region74: #{tpu_custom_call.1} parent=71 // pred_check_branch
          %611 = sbr.rel (%p609) target = $region76
        $region75: #{tpu_custom_call.1} parent=71 // pred_region
          %s612 = sand.u32 %s62, 1
          %s613 = scalar_lea.sflag [#allocation3], %s612
          %s614 = sand.u32 %s62, 1
          %s615 = smul.addr %s614, 16
          %s616 = scalar_lea.vmem [#allocation2], %s615
          %s617 = smul.u32 2, %s46
          %s619 = ssub.s32 256, 256
          %620 = vsyncadd %s613, %s619
          %s621 = smul.addr %s45, 2
          %s622 = sadd.s32 %s617, %s621
          %s623 = smul.addr %s622, 128
          %s624 = scalar_lea.hbm %s0, %s623
          %s625 = sshll.u32 %s616, 4
          %s626 = int_to_ptr.vmem [resolvable:$true] %s625
          %631 = dma.hbm_to_vmem [thread:$0]  %s624, 256, %s626, %s613, 128, 128, 8
        $region76: #{tpu_custom_call.1} parent=71 // pred_fallthru
          _
        // Predicated region
        $region77: #{tpu_custom_call.1} parent=71 // pred_check
          %p632 = pneg %p98
        $region78: #{tpu_custom_call.1} parent=71 // pred_check_branch
          %634 = sbr.rel (%p632) target = $region80
        $region79: #{tpu_custom_call.1} parent=71 // pred_region
          %s635 = sand.u32 %s38, 1
          %s636 = scalar_lea.sflag [#allocation6], %s635
          %s637 = sand.u32 %s88, 1
          %s638 = smul.addr %s637, 16
          %s639 = scalar_lea.vmem [#allocation5], %s638
          %s641 = ssub.s32 256, 256
          %642 = vsyncadd %s636, %s641
          %s643 = smul.addr %s45, 2
          %s644 = smul.addr %s643, 128
          %s645 = scalar_lea.hbm %s1, %s644
          %s646 = sshll.u32 %s639, 4
          %s647 = int_to_ptr.vmem [resolvable:$true] %s646
          %652 = dma.hbm_to_vmem [thread:$0]  %s645, 256, %s647, %s636, 128, 128, 8
        $region80: #{tpu_custom_call.1} parent=71 // pred_fallthru
          _
      $region72: #{tpu_custom_call.1} parent=5 // pred_fallthru
        _
      %p653 = scmp.le.s32.totalorder 1, %s38
      %p654 = scmp.lt.s32.totalorder %s38, 3
      %p655 = pnand %p653, %p654
      %p656 = pneg %p655
      // Predicated region
      $region81: #{tpu_custom_call.1} parent=5 // pred_check
        _
      $region82: #{tpu_custom_call.1} parent=5 // pred_check_branch
        %658 = sbr.rel (%p655) target = $region84
      $region83: #{tpu_custom_call.1} parent=5 // pred_region
        %s659 = ssub.s32 %s38, 1
        %s660 = sand.u32 %s65, 1
        %s661 = scalar_lea.sflag [#allocation3], %s660
        %s662 = sand.u32 %s65, 1
        %s663 = smul.addr %s662, 16
        %s664 = scalar_lea.vmem [#allocation2], %s663
        // Predicated region
        $region85: #{tpu_custom_call.1} parent=83 // pred_check
          %p665 = pneg %p78
        $region86: #{tpu_custom_call.1} parent=83 // pred_check_branch
          %667 = sbr.rel (%p665) target = $region88
        $region87: #{tpu_custom_call.1} parent=83 // pred_region
          %668 = dma.done %s661, 256
        $region88: #{tpu_custom_call.1} parent=83 // pred_fallthru
          _
        %s669 = sand.u32 %s43, 1
        %s670 = scalar_lea.sflag [#allocation6], %s669
        %s671 = sand.u32 %s91, 1
        %s672 = smul.addr %s671, 16
        %s673 = scalar_lea.vmem [#allocation5], %s672
        // Predicated region
        $region89: #{tpu_custom_call.1} parent=83 // pred_check
          %p674 = pneg %p104
        $region90: #{tpu_custom_call.1} parent=83 // pred_check_branch
          %676 = sbr.rel (%p674) target = $region92
        $region91: #{tpu_custom_call.1} parent=83 // pred_region
          %677 = dma.done %s670, 256
        $region92: #{tpu_custom_call.1} parent=83 // pred_fallthru
          _
        // Predicated region
        $region93: #{tpu_custom_call.1} parent=83 // pred_check
          %p678 = pneg %p125
        $region94: #{tpu_custom_call.1} parent=83 // pred_check_branch
          %680 = sbr.rel (%p678) target = $region96
        $region95: #{tpu_custom_call.1} parent=83 // pred_region
          %681 = dma.done [#allocation6], 16
        $region96: #{tpu_custom_call.1} parent=83 // pred_fallthru
          _
        // Predicated region
        $region97: #{tpu_custom_call.1} parent=83 // pred_check
          %p682 = pneg %p146
        $region98: #{tpu_custom_call.1} parent=83 // pred_check_branch
          %684 = sbr.rel (%p682) target = $region100
        $region99: #{tpu_custom_call.1} parent=83 // pred_region
          %685 = dma.done [#allocation9], 16
        $region100: #{tpu_custom_call.1} parent=83 // pred_fallthru
          _
        // Predicated region
        $region101: #{tpu_custom_call.1} parent=83 // pred_check
          %p686 = pneg %p167
        $region102: #{tpu_custom_call.1} parent=83 // pred_check_branch
          %688 = sbr.rel (%p686) target = $region104
        $region103: #{tpu_custom_call.1} parent=83 // pred_region
          %689 = dma.done [#allocation9], 2048
        $region104: #{tpu_custom_call.1} parent=83 // pred_fallthru
          _
        // Predicated region
        $region105: #{tpu_custom_call.1} parent=83 // pred_check
          %p690 = pneg %p188
        $region106: #{tpu_custom_call.1} parent=83 // pred_check_branch
          %692 = sbr.rel (%p690) target = $region108
        $region107: #{tpu_custom_call.1} parent=83 // pred_region
          %693 = dma.done [#allocation12], 16
        $region108: #{tpu_custom_call.1} parent=83 // pred_fallthru
          _
        // Predicated region
        $region109: #{tpu_custom_call.1} parent=83 // pred_check
          %p694 = pneg %p209
        $region110: #{tpu_custom_call.1} parent=83 // pred_check_branch
          %696 = sbr.rel (%p694) target = $region112
        $region111: #{tpu_custom_call.1} parent=83 // pred_region
          %697 = dma.done [#allocation12], 4096
        $region112: #{tpu_custom_call.1} parent=83 // pred_fallthru
          _
        // Predicated region
        $region113: #{tpu_custom_call.1} parent=83 // pred_check
          %p698 = pneg %p230
        $region114: #{tpu_custom_call.1} parent=83 // pred_check_branch
          %700 = sbr.rel (%p698) target = $region116
        $region115: #{tpu_custom_call.1} parent=83 // pred_region
          %701 = dma.done [#allocation15], 32
        $region116: #{tpu_custom_call.1} parent=83 // pred_fallthru
          _
        // Predicated region
        $region117: #{tpu_custom_call.1} parent=83 // pred_check
          %p702 = pneg %p251
        $region118: #{tpu_custom_call.1} parent=83 // pred_check_branch
          %704 = sbr.rel (%p702) target = $region120
        $region119: #{tpu_custom_call.1} parent=83 // pred_region
          %705 = dma.done [#allocation15], 2048
        $region120: #{tpu_custom_call.1} parent=83 // pred_fallthru
          _
        // Predicated region
        $region121: #{tpu_custom_call.1} parent=83 // pred_check
          %p706 = pneg %p272
        $region122: #{tpu_custom_call.1} parent=83 // pred_check_branch
          %708 = sbr.rel (%p706) target = $region124
        $region123: #{tpu_custom_call.1} parent=83 // pred_region
          %709 = dma.done [#allocation18], 16
        $region124: #{tpu_custom_call.1} parent=83 // pred_fallthru
          _
        // Predicated region
        $region125: #{tpu_custom_call.1} parent=83 // pred_check
          %p710 = pneg %p293
        $region126: #{tpu_custom_call.1} parent=83 // pred_check_branch
          %712 = sbr.rel (%p710) target = $region128
        $region127: #{tpu_custom_call.1} parent=83 // pred_region
          %713 = dma.done [#allocation18], 16
        $region128: #{tpu_custom_call.1} parent=83 // pred_fallthru
          _
        // Predicated region
        $region129: #{tpu_custom_call.1} parent=83 // pred_check
          %p714 = pneg %p314
        $region130: #{tpu_custom_call.1} parent=83 // pred_check_branch
          %716 = sbr.rel (%p714) target = $region132
        $region131: #{tpu_custom_call.1} parent=83 // pred_region
          %717 = dma.done [#allocation21], 16
        $region132: #{tpu_custom_call.1} parent=83 // pred_fallthru
          _
        // Predicated region
        $region133: #{tpu_custom_call.1} parent=83 // pred_check
          %p718 = pneg %p335
        $region134: #{tpu_custom_call.1} parent=83 // pred_check_branch
          %720 = sbr.rel (%p718) target = $region136
        $region135: #{tpu_custom_call.1} parent=83 // pred_region
          %721 = dma.done [#allocation21], 4096
        $region136: #{tpu_custom_call.1} parent=83 // pred_fallthru
          _
        // Predicated region
        $region137: #{tpu_custom_call.1} parent=83 // pred_check
          %p722 = pneg %p356
        $region138: #{tpu_custom_call.1} parent=83 // pred_check_branch
          %724 = sbr.rel (%p722) target = $region140
        $region139: #{tpu_custom_call.1} parent=83 // pred_region
          %725 = dma.done [#allocation24], 32
        $region140: #{tpu_custom_call.1} parent=83 // pred_fallthru
          _
        // Predicated region
        $region141: #{tpu_custom_call.1} parent=83 // pred_check
          %p726 = pneg %p377
        $region142: #{tpu_custom_call.1} parent=83 // pred_check_branch
          %728 = sbr.rel (%p726) target = $region144
        $region143: #{tpu_custom_call.1} parent=83 // pred_region
          %729 = dma.done [#allocation24], 4096
        $region144: #{tpu_custom_call.1} parent=83 // pred_fallthru
          _
        // Predicated region
        $region145: #{tpu_custom_call.1} parent=83 // pred_check
          %p730 = pneg %p398
        $region146: #{tpu_custom_call.1} parent=83 // pred_check_branch
          %732 = sbr.rel (%p730) target = $region148
        $region147: #{tpu_custom_call.1} parent=83 // pred_region
          %733 = dma.done [#allocation27], 16
        $region148: #{tpu_custom_call.1} parent=83 // pred_fallthru
          _
        %s734 = sand.u32 %s65, 1
        %s735 = scalar_lea.sflag [#allocation3], %s734
        %s736 = sand.u32 %s65, 1
        %s737 = smul.addr %s736, 16
        %s738 = scalar_lea.vmem [#allocation2], %s737
        %p739 = pneg %p78
        %p740 = pneg %p75
        %s741 = sand.u32 %s43, 1
        %s742 = scalar_lea.sflag [#allocation6], %s741
        %s743 = sand.u32 %s91, 1
        %s744 = smul.addr %s743, 16
        %s745 = scalar_lea.vmem [#allocation5], %s744
        %p746 = pneg %p104
        %p747 = pneg %p101
        %p748 = pneg %p125
        %p749 = pneg %p122
        %p750 = pneg %p146
        %p751 = pneg %p143
        %p752 = pneg %p167
        %p753 = pneg %p164
        %p754 = pneg %p188
        %p755 = pneg %p185
        %p756 = pneg %p209
        %p757 = pneg %p206
        %p758 = pneg %p230
        %p759 = pneg %p227
        %p760 = pneg %p251
        %p761 = pneg %p248
        %p762 = pneg %p272
        %p763 = pneg %p269
        %p764 = pneg %p293
        %p765 = pneg %p290
        %p766 = pneg %p314
        %p767 = pneg %p311
        %p768 = pneg %p335
        %p769 = pneg %p332
        %p770 = pneg %p356
        %p771 = pneg %p353
        %p772 = pneg %p377
        %p773 = pneg %p374
        %p774 = pneg %p398
        %p775 = pneg %p395
        %p776 = pneg %p426
        %p777 = pneg %p423
        %s778 = sand.u32 %s413, 1
        %s779 = scalar_lea.sflag [#allocation4], %s778
        %s780 = sand.u32 %s413, 1
        %s781 = smul.addr %s780, 16
        %s782 = scalar_lea.vmem [#allocation28], %s781
        %s783 = smul.u32 2, %s48
        %s784 = smul.u32 2, %s48
        %v785 = vld [vmem:[%s664] sm:$0xff]
        %v786 = vld [vmem:[%s664 + $0x8] sm:$0xff]
        %v787 = vld [vmem:[%s673] sm:$0xff]
        %v788 = vld [vmem:[%s673 + $0x8] sm:$0xff]
        %v789 = vld [vmem:[#allocation7] sm:$0x1]
        %v790 = vld [vmem:[#allocation8] sm:$0x1]
        %791 = vadd.xlane.f32.xlu0 %v787
        %v792 = vpop.xlane.xlu0 %791
        %793 = vadd.xlane.f32.xlu0 %v788
        %v794 = vpop.xlane.xlu0 %793
        %v795 = vrcp.pop 128.0
        %v796 = vmul.f32 %v792, %v795
        %v797 = vmul.f32 %v794, %v795
        %v798 = vsub.f32 %v787, %v796
        %v799 = vsub.f32 %v788, %v797
        %v800 = vmul.f32 %v798, %v798
        %v801 = vmul.f32 %v799, %v799
        %802 = vadd.xlane.f32.xlu0 %v800
        %v803 = vpop.xlane.xlu0 %802
        %804 = vadd.xlane.f32.xlu0 %v801
        %v805 = vpop.xlane.xlu0 %804
        %v806 = vmul.f32 %v803, %v795
        %v807 = vmul.f32 %v805, %v795
        %v808 = vadd.f32 %v806, 1e-05
        %v809 = vadd.f32 %v807, 1e-05
        %v810 = vrsqrt.pop %v808
        %v811 = vrsqrt.pop %v809
        %v812 = vmul.f32 %v798, %v810
        %v813 = vmul.f32 %v799, %v811
        %v815 = vlaneseq
        %v816 = vshrl.u32 %v815, 7
        %v817 = vsub.s32 0, %v816
        %v818 = vrot.slane %v789, %v817
        %v820 = vmul.f32 %v812, %v818
        %v821 = vmul.f32 %v813, %v818
        %v823 = vlaneseq
        %v824 = vshrl.u32 %v823, 7
        %v825 = vsub.s32 0, %v824
        %v826 = vrot.slane %v790, %v825
        %v828 = vadd.f32 %v820, %v826
        %v829 = vadd.f32 %v821, %v826
        %v830 = vld [vmem:[#allocation13] sm:$0xff]
        %v831 = vld [vmem:[#allocation13 + $0x8] sm:$0xff]
        %v832 = vld [vmem:[#allocation13 + $0x10] sm:$0xff]
        %v833 = vld [vmem:[#allocation13 + $0x18] sm:$0xff]
        %v834 = vld [vmem:[#allocation13 + $0x20] sm:$0xff]
        %v835 = vld [vmem:[#allocation13 + $0x28] sm:$0xff]
        %v836 = vld [vmem:[#allocation13 + $0x30] sm:$0xff]
        %v837 = vld [vmem:[#allocation13 + $0x38] sm:$0xff]
        %v838 = vld [vmem:[#allocation13 + $0x40] sm:$0xff]
        %v839 = vld [vmem:[#allocation13 + $0x48] sm:$0xff]
        %v840 = vld [vmem:[#allocation13 + $0x50] sm:$0xff]
        %v841 = vld [vmem:[#allocation13 + $0x58] sm:$0xff]
        %v842 = vld [vmem:[#allocation13 + $0x60] sm:$0xff]
        %v843 = vld [vmem:[#allocation13 + $0x68] sm:$0xff]
        %v844 = vld [vmem:[#allocation13 + $0x70] sm:$0xff]
        %v845 = vld [vmem:[#allocation13 + $0x78] sm:$0xff]
        %v846 = vld [vmem:[#allocation13 + $0x80] sm:$0xff]
        %v847 = vld [vmem:[#allocation13 + $0x88] sm:$0xff]
        %v848 = vld [vmem:[#allocation13 + $0x90] sm:$0xff]
        %v849 = vld [vmem:[#allocation13 + $0x98] sm:$0xff]
        %v850 = vld [vmem:[#allocation13 + $0xa0] sm:$0xff]
        %v851 = vld [vmem:[#allocation13 + $0xa8] sm:$0xff]
        %v852 = vld [vmem:[#allocation13 + $0xb0] sm:$0xff]
        %v853 = vld [vmem:[#allocation13 + $0xb8] sm:$0xff]
        %v854 = vld [vmem:[#allocation13 + $0xc0] sm:$0xff]
        %v855 = vld [vmem:[#allocation13 + $0xc8] sm:$0xff]
        %v856 = vld [vmem:[#allocation13 + $0xd0] sm:$0xff]
        %v857 = vld [vmem:[#allocation13 + $0xd8] sm:$0xff]
        %v858 = vld [vmem:[#allocation13 + $0xe0] sm:$0xff]
        %v859 = vld [vmem:[#allocation13 + $0xe8] sm:$0xff]
        %v860 = vld [vmem:[#allocation13 + $0xf0] sm:$0xff]
        %v861 = vld [vmem:[#allocation13 + $0xf8] sm:$0xff]
        %v862 = vld [vmem:[#allocation14] sm:$0x3]
        %v864 = vlaneseq
        %v865 = vshrl.u32 %v864, 7
        %v866 = vsub.s32 0, %v865
        %v867 = vrot.slane %v862, %v866
        %v868 = vlaneseq
        %v869 = vshrl.u32 %v868, 7
        %v870 = vsub.s32 1, %v869
        %v871 = vrot.slane %v862, %v870
        %874 = vmatprep.subr.mxu0 %v831
        %875 = vmatpush1.msra.mxu0 %v830
        %876 = vmatprep.subr.mxu0 %v833
        %877 = vmatpush1.msra.mxu0 %v832
        %878 = vmatprep.subr.mxu0 %v835
        %879 = vmatpush1.msra.mxu0 %v834
        %880 = vmatprep.subr.mxu0 %v837
        %881 = vmatpush1.msra.mxu0 %v836
        %882 = vmatprep.subr.mxu0 %v839
        %883 = vmatpush1.msra.mxu0 %v838
        %884 = vmatprep.subr.mxu0 %v841
        %885 = vmatpush1.msra.mxu0 %v840
        %886 = vmatprep.subr.mxu0 %v843
        %887 = vmatpush1.msra.mxu0 %v842
        %888 = vmatprep.subr.mxu0 %v845
        %889 = vmatpush1.msra.mxu0 %v844
        %890 = vmatprep.subr.mxu0 %v847
        %891 = vmatpush1.msra.mxu0 %v846
        %892 = vmatprep.subr.mxu0 %v849
        %893 = vmatpush1.msra.mxu0 %v848
        %894 = vmatprep.subr.mxu0 %v851
        %895 = vmatpush1.msra.mxu0 %v850
        %896 = vmatprep.subr.mxu0 %v853
        %897 = vmatpush1.msra.mxu0 %v852
        %898 = vmatprep.subr.mxu0 %v855
        %899 = vmatpush1.msra.mxu0 %v854
        %900 = vmatprep.subr.mxu0 %v857
        %901 = vmatpush1.msra.mxu0 %v856
        %902 = vmatprep.subr.mxu0 %v859
        %903 = vmatpush1.msra.mxu0 %v858
        %904 = vmatprep.subr.mxu0 %v861
        %905 = vmatpush1.msra.mxu0 %v860
        %906 = vmatprep.subr.mxu0 0.0
        %907 = vmatpush1.msra.mxu0 0.0
        %908 = vmatprep.subr.mxu0 0.0
        %909 = vmatpush1.msra.mxu0 0.0
        %910 = vmatprep.subr.mxu0 0.0
        %911 = vmatpush1.msra.mxu0 0.0
        %912 = vmatprep.subr.mxu0 0.0
        %913 = vmatpush1.msra.mxu0 0.0
        %914 = vmatprep.subr.mxu0 0.0
        %915 = vmatpush1.msra.mxu0 0.0
        %916 = vmatprep.subr.mxu0 0.0
        %917 = vmatpush1.msra.mxu0 0.0
        %918 = vmatprep.subr.mxu0 0.0
        %919 = vmatpush1.msra.mxu0 0.0
        %920 = vmatprep.subr.mxu0 0.0
        %921 = vmatpush1.msra.mxu0 0.0
        %922 = vmatprep.subr.mxu0 0.0
        %923 = vmatpush1.msra.mxu0 0.0
        %924 = vmatprep.subr.mxu0 0.0
        %925 = vmatpush1.msra.mxu0 0.0
        %926 = vmatprep.subr.mxu0 0.0
        %927 = vmatpush1.msra.mxu0 0.0
        %928 = vmatprep.subr.mxu0 0.0
        %929 = vmatpush1.msra.mxu0 0.0
        %930 = vmatprep.subr.mxu0 0.0
        %931 = vmatpush1.msra.mxu0 0.0
        %932 = vmatprep.subr.mxu0 0.0
        %933 = vmatpush1.msra.mxu0 0.0
        %934 = vmatprep.subr.mxu0 0.0
        %935 = vmatpush1.msra.mxu0 0.0
        %936 = vmatprep.subr.mxu0 0.0
        %937 = vmatpush1.msra.mxu0 0.0
        %938 = vmatprep.mubr.f32.mxu0 0.0
        %939 = vmatmul.mubr.f32.gmra.mrb[0].mxu0 %v828
        %v940 = vpop.f32.mrb[0].mxu0
        %v941 = vadd.f32 %v867, %v940
        %v942 = vpop.f32.mrb[0].mxu0
        %v943 = vadd.f32 %v871, %v942
        %944 = vmatprep.mubr.f32.mxu0 0.0
        %945 = vmatmul.mubr.f32.gmra.mrb[0].mxu0 %v829
        %v946 = vpop.f32.mrb[0].mxu0
        %v947 = vadd.f32 %v867, %v946
        %v948 = vpop.f32.mrb[0].mxu0
        %v949 = vadd.f32 %v871, %v948
        %950 = vdwg.mxu0
        %951 = vadd.xlane.f32.xlu0 %v785
        %v952 = vpop.xlane.xlu0 %951
        %953 = vadd.xlane.f32.xlu0 %v786
        %v954 = vpop.xlane.xlu0 %953
        %v955 = vmul.f32 %v952, %v795
        %v956 = vmul.f32 %v954, %v795
        %v957 = vsub.f32 %v785, %v955
        %v958 = vsub.f32 %v786, %v956
        %v959 = vmul.f32 %v957, %v957
        %v960 = vmul.f32 %v958, %v958
        %961 = vadd.xlane.f32.xlu0 %v959
        %v962 = vpop.xlane.xlu0 %961
        %963 = vadd.xlane.f32.xlu0 %v960
        %v964 = vpop.xlane.xlu0 %963
        %v965 = vmul.f32 %v962, %v795
        %v966 = vmul.f32 %v964, %v795
        %v967 = vadd.f32 %v965, 1e-05
        %v968 = vadd.f32 %v966, 1e-05
        %v969 = vrsqrt.pop %v967
        %v970 = vrsqrt.pop %v968
        %v971 = vmul.f32 %v957, %v969
        %v972 = vmul.f32 %v958, %v970
        %v973 = vmul.f32 %v971, %v818
        %v974 = vmul.f32 %v972, %v818
        %v975 = vadd.f32 %v973, %v826
        %v976 = vadd.f32 %v974, %v826
        %v977 = vld [vmem:[#allocation10] sm:$0xff]
        %v978 = vld [vmem:[#allocation10 + $0x8] sm:$0xff]
        %v979 = vld [vmem:[#allocation10 + $0x10] sm:$0xff]
        %v980 = vld [vmem:[#allocation10 + $0x18] sm:$0xff]
        %v981 = vld [vmem:[#allocation10 + $0x20] sm:$0xff]
        %v982 = vld [vmem:[#allocation10 + $0x28] sm:$0xff]
        %v983 = vld [vmem:[#allocation10 + $0x30] sm:$0xff]
        %v984 = vld [vmem:[#allocation10 + $0x38] sm:$0xff]
        %v985 = vld [vmem:[#allocation10 + $0x40] sm:$0xff]
        %v986 = vld [vmem:[#allocation10 + $0x48] sm:$0xff]
        %v987 = vld [vmem:[#allocation10 + $0x50] sm:$0xff]
        %v988 = vld [vmem:[#allocation10 + $0x58] sm:$0xff]
        %v989 = vld [vmem:[#allocation10 + $0x60] sm:$0xff]
        %v990 = vld [vmem:[#allocation10 + $0x68] sm:$0xff]
        %v991 = vld [vmem:[#allocation10 + $0x70] sm:$0xff]
        %v992 = vld [vmem:[#allocation10 + $0x78] sm:$0xff]
        %v993 = vld [vmem:[#allocation11] sm:$0x1]
        %v995 = vlaneseq
        %v996 = vshrl.u32 %v995, 7
        %v997 = vsub.s32 0, %v996
        %v998 = vrot.slane %v993, %v997
        %1000 = vmatprep.subr.mxu0 0.0
        %1001 = vmatpush1.msra.mxu0 %v977
        %1002 = vmatprep.subr.mxu0 0.0
        %1003 = vmatpush1.msra.mxu0 %v978
        %1004 = vmatprep.subr.mxu0 0.0
        %1005 = vmatpush1.msra.mxu0 %v979
        %1006 = vmatprep.subr.mxu0 0.0
        %1007 = vmatpush1.msra.mxu0 %v980
        %1008 = vmatprep.subr.mxu0 0.0
        %1009 = vmatpush1.msra.mxu0 %v981
        %1010 = vmatprep.subr.mxu0 0.0
        %1011 = vmatpush1.msra.mxu0 %v982
        %1012 = vmatprep.subr.mxu0 0.0
        %1013 = vmatpush1.msra.mxu0 %v983
        %1014 = vmatprep.subr.mxu0 0.0
        %1015 = vmatpush1.msra.mxu0 %v984
        %1016 = vmatprep.subr.mxu0 0.0
        %1017 = vmatpush1.msra.mxu0 %v985
        %1018 = vmatprep.subr.mxu0 0.0
        %1019 = vmatpush1.msra.mxu0 %v986
        %1020 = vmatprep.subr.mxu0 0.0
        %1021 = vmatpush1.msra.mxu0 %v987
        %1022 = vmatprep.subr.mxu0 0.0
        %1023 = vmatpush1.msra.mxu0 %v988
        %1024 = vmatprep.subr.mxu0 0.0
        %1025 = vmatpush1.msra.mxu0 %v989
        %1026 = vmatprep.subr.mxu0 0.0
        %1027 = vmatpush1.msra.mxu0 %v990
        %1028 = vmatprep.subr.mxu0 0.0
        %1029 = vmatpush1.msra.mxu0 %v991
        %1030 = vmatprep.subr.mxu0 0.0
        %1031 = vmatpush1.msra.mxu0 %v992
        %1032 = vmatprep.subr.mxu0 0.0
        %1033 = vmatpush1.msra.mxu0 0.0
        %1034 = vmatprep.subr.mxu0 0.0
        %1035 = vmatpush1.msra.mxu0 0.0
        %1036 = vmatprep.subr.mxu0 0.0
        %1037 = vmatpush1.msra.mxu0 0.0
        %1038 = vmatprep.subr.mxu0 0.0
        %1039 = vmatpush1.msra.mxu0 0.0
        %1040 = vmatprep.subr.mxu0 0.0
        %1041 = vmatpush1.msra.mxu0 0.0
        %1042 = vmatprep.subr.mxu0 0.0
        %1043 = vmatpush1.msra.mxu0 0.0
        %1044 = vmatprep.subr.mxu0 0.0
        %1045 = vmatpush1.msra.mxu0 0.0
        %1046 = vmatprep.subr.mxu0 0.0
        %1047 = vmatpush1.msra.mxu0 0.0
        %1048 = vmatprep.subr.mxu0 0.0
        %1049 = vmatpush1.msra.mxu0 0.0
        %1050 = vmatprep.subr.mxu0 0.0
        %1051 = vmatpush1.msra.mxu0 0.0
        %1052 = vmatprep.subr.mxu0 0.0
        %1053 = vmatpush1.msra.mxu0 0.0
        %1054 = vmatprep.subr.mxu0 0.0
        %1055 = vmatpush1.msra.mxu0 0.0
        %1056 = vmatprep.subr.mxu0 0.0
        %1057 = vmatpush1.msra.mxu0 0.0
        %1058 = vmatprep.subr.mxu0 0.0
        %1059 = vmatpush1.msra.mxu0 0.0
        %1060 = vmatprep.subr.mxu0 0.0
        %1061 = vmatpush1.msra.mxu0 0.0
        %1062 = vmatprep.subr.mxu0 0.0
        %1063 = vmatpush1.msra.mxu0 0.0
        %1064 = vmatprep.mubr.f32.mxu0 0.0
        %1065 = vmatmul.mubr.f32.gmra.mrb[0].mxu0 %v975
        %v1066 = vpop.f32.mrb[0].mxu0
        %v1067 = vadd.f32 %v998, %v1066
        %v1068 = vpop.f32.mrb[0].mxu0
        %1069 = vmatprep.mubr.f32.mxu0 0.0
        %1070 = vmatmul.mubr.f32.gmra.mrb[0].mxu0 %v976
        %v1071 = vpop.f32.mrb[0].mxu0
        %v1072 = vadd.f32 %v998, %v1071
        %v1073 = vpop.f32.mrb[0].mxu0
        %1074 = vdwg.mxu0
        %v1075 = vmul.f32 %v1067, 0.17677669
        %v1076 = vmul.f32 %v1072, 0.17677669
        %vm1077 = vcmask 261120
        %v1079 = vsel %vm1077, %v1075, 0
        %v1082 = vsel %vm1077, %v1076, 0
        %v1085 = vsel %vm1077, %v941, 0
        %v1088 = vsel %vm1077, %v947, 0
        %1090 = vmatprep.subr.mxu0 0.0
        %1091 = vmatpush1.xpose.msra.mxu0 %v1085
        %1092 = vmatprep.subr.mxu0 0.0
        %1093 = vmatpush1.xpose.msra.mxu0 %v1088
        %1094 = vmatprep.subr.mxu0 0.0
        %1095 = vmatpush1.xpose.msra.mxu0 0.0
        %1096 = vmatprep.subr.mxu0 0.0
        %1097 = vmatpush1.xpose.msra.mxu0 0.0
        %1098 = vmatprep.subr.mxu0 0.0
        %1099 = vmatpush1.xpose.msra.mxu0 0.0
        %1100 = vmatprep.subr.mxu0 0.0
        %1101 = vmatpush1.xpose.msra.mxu0 0.0
        %1102 = vmatprep.subr.mxu0 0.0
        %1103 = vmatpush1.xpose.msra.mxu0 0.0
        %1104 = vmatprep.subr.mxu0 0.0
        %1105 = vmatpush1.xpose.msra.mxu0 0.0
        %1106 = vmatprep.subr.mxu0 0.0
        %1107 = vmatpush1.xpose.msra.mxu0 0.0
        %1108 = vmatprep.subr.mxu0 0.0
        %1109 = vmatpush1.xpose.msra.mxu0 0.0
        %1110 = vmatprep.subr.mxu0 0.0
        %1111 = vmatpush1.xpose.msra.mxu0 0.0
        %1112 = vmatprep.subr.mxu0 0.0
        %1113 = vmatpush1.xpose.msra.mxu0 0.0
        %1114 = vmatprep.subr.mxu0 0.0
        %1115 = vmatpush1.xpose.msra.mxu0 0.0
        %1116 = vmatprep.subr.mxu0 0.0
        %1117 = vmatpush1.xpose.msra.mxu0 0.0
        %1118 = vmatprep.subr.mxu0 0.0
        %1119 = vmatpush1.xpose.msra.mxu0 0.0
        %1120 = vmatprep.subr.mxu0 0.0
        %1121 = vmatpush1.xpose.msra.mxu0 0.0
        %1122 = vmatprep.subr.mxu0 0.0
        %1123 = vmatpush1.xpose.msra.mxu0 0.0
        %1124 = vmatprep.subr.mxu0 0.0
        %1125 = vmatpush1.xpose.msra.mxu0 0.0
        %1126 = vmatprep.subr.mxu0 0.0
        %1127 = vmatpush1.xpose.msra.mxu0 0.0
        %1128 = vmatprep.subr.mxu0 0.0
        %1129 = vmatpush1.xpose.msra.mxu0 0.0
        %1130 = vmatprep.subr.mxu0 0.0
        %1131 = vmatpush1.xpose.msra.mxu0 0.0
        %1132 = vmatprep.subr.mxu0 0.0
        %1133 = vmatpush1.xpose.msra.mxu0 0.0
        %1134 = vmatprep.subr.mxu0 0.0
        %1135 = vmatpush1.xpose.msra.mxu0 0.0
        %1136 = vmatprep.subr.mxu0 0.0
        %1137 = vmatpush1.xpose.msra.mxu0 0.0
        %1138 = vmatprep.subr.mxu0 0.0
        %1139 = vmatpush1.xpose.msra.mxu0 0.0
        %1140 = vmatprep.subr.mxu0 0.0
        %1141 = vmatpush1.xpose.msra.mxu0 0.0
        %1142 = vmatprep.subr.mxu0 0.0
        %1143 = vmatpush1.xpose.msra.mxu0 0.0
        %1144 = vmatprep.subr.mxu0 0.0
        %1145 = vmatpush1.xpose.msra.mxu0 0.0
        %1146 = vmatprep.subr.mxu0 0.0
        %1147 = vmatpush1.xpose.msra.mxu0 0.0
        %1148 = vmatprep.subr.mxu0 0.0
        %1149 = vmatpush1.xpose.msra.mxu0 0.0
        %1150 = vmatprep.subr.mxu0 0.0
        %1151 = vmatpush1.xpose.msra.mxu0 0.0
        %1152 = vmatprep.subr.mxu0 0.0
        %1153 = vmatpush1.xpose.msra.mxu0 0.0
        %1154 = vmatprep.mubr.f32.mxu0 0.0
        %1155 = vmatmul.mubr.f32.gmra.mrb[0].mxu0 %v1079
        %v1156 = vpop.f32.mrb[0].mxu0
        %v1157 = vadd.f32 0.0, %v1156
        %v1158 = vpop.f32.mrb[0].mxu0
        %1159 = vmatprep.mubr.f32.mxu0 0.0
        %1160 = vmatmul.mubr.f32.gmra.mrb[0].mxu0 %v1082
        %v1161 = vpop.f32.mrb[0].mxu0
        %v1162 = vadd.f32 0.0, %v1161
        %v1163 = vpop.f32.mrb[0].mxu0
        %1164 = vdwg.mxu0
        %vm1165 = vcmask 130048
        %v1166 = vsel %vm1165, %v1157, -inf
        %1167 = vmax.xlane.f32.xlu0 %v1166
        %v1168 = vpop.xlane.xlu0 %1167
        %v1169 = vsel %vm1165, %v1162, -inf
        %1170 = vmax.xlane.f32.xlu0 %v1169
        %v1171 = vpop.xlane.xlu0 %1170
        %v1172 = vsub.f32 %v1157, %v1168
        %v1173 = vsub.f32 %v1162, %v1171
        %v1174 = vmul.f32 %v1172, 1.442695
        %v1175 = vpow.pop %v1174
        %v1176 = vmul.f32 %v1173, 1.442695
        %v1177 = vpow.pop %v1176
        %v1178 = vsel %vm1165, %v1175, 0.0
        %1179 = vadd.xlane.f32.xlu0 %v1178
        %v1180 = vpop.xlane.xlu0 %1179
        %v1181 = vsel %vm1165, %v1177, 0.0
        %1182 = vadd.xlane.f32.xlu0 %v1181
        %v1183 = vpop.xlane.xlu0 %1182
        %v1184 = vrcp.pop %v1180
        %v1185 = vrcp.pop %v1183
        %v1186 = vmul.f32 %v1175, %v1184
        %v1187 = vmul.f32 %v1177, %v1185
        %v1189 = vsel %vm1165, %v1186, 0
        %v1192 = vsel %vm1165, %v1187, 0
        %1194 = vmatprep.subr.mxu0 0.0
        %1195 = vmatpush1.msra.mxu0 %v943
        %1196 = vmatprep.subr.mxu0 0.0
        %1197 = vmatpush1.msra.mxu0 %v949
        %1198 = vmatprep.subr.mxu0 0.0
        %1199 = vmatpush1.msra.mxu0 0.0
        %1200 = vmatprep.subr.mxu0 0.0
        %1201 = vmatpush1.msra.mxu0 0.0
        %1202 = vmatprep.subr.mxu0 0.0
        %1203 = vmatpush1.msra.mxu0 0.0
        %1204 = vmatprep.subr.mxu0 0.0
        %1205 = vmatpush1.msra.mxu0 0.0
        %1206 = vmatprep.subr.mxu0 0.0
        %1207 = vmatpush1.msra.mxu0 0.0
        %1208 = vmatprep.subr.mxu0 0.0
        %1209 = vmatpush1.msra.mxu0 0.0
        %1210 = vmatprep.subr.mxu0 0.0
        %1211 = vmatpush1.msra.mxu0 0.0
        %1212 = vmatprep.subr.mxu0 0.0
        %1213 = vmatpush1.msra.mxu0 0.0
        %1214 = vmatprep.subr.mxu0 0.0
        %1215 = vmatpush1.msra.mxu0 0.0
        %1216 = vmatprep.subr.mxu0 0.0
        %1217 = vmatpush1.msra.mxu0 0.0
        %1218 = vmatprep.subr.mxu0 0.0
        %1219 = vmatpush1.msra.mxu0 0.0
        %1220 = vmatprep.subr.mxu0 0.0
        %1221 = vmatpush1.msra.mxu0 0.0
        %1222 = vmatprep.subr.mxu0 0.0
        %1223 = vmatpush1.msra.mxu0 0.0
        %1224 = vmatprep.subr.mxu0 0.0
        %1225 = vmatpush1.msra.mxu0 0.0
        %1226 = vmatprep.subr.mxu0 0.0
        %1227 = vmatpush1.msra.mxu0 0.0
        %1228 = vmatprep.subr.mxu0 0.0
        %1229 = vmatpush1.msra.mxu0 0.0
        %1230 = vmatprep.subr.mxu0 0.0
        %1231 = vmatpush1.msra.mxu0 0.0
        %1232 = vmatprep.subr.mxu0 0.0
        %1233 = vmatpush1.msra.mxu0 0.0
        %1234 = vmatprep.subr.mxu0 0.0
        %1235 = vmatpush1.msra.mxu0 0.0
        %1236 = vmatprep.subr.mxu0 0.0
        %1237 = vmatpush1.msra.mxu0 0.0
        %1238 = vmatprep.subr.mxu0 0.0
        %1239 = vmatpush1.msra.mxu0 0.0
        %1240 = vmatprep.subr.mxu0 0.0
        %1241 = vmatpush1.msra.mxu0 0.0
        %1242 = vmatprep.subr.mxu0 0.0
        %1243 = vmatpush1.msra.mxu0 0.0
        %1244 = vmatprep.subr.mxu0 0.0
        %1245 = vmatpush1.msra.mxu0 0.0
        %1246 = vmatprep.subr.mxu0 0.0
        %1247 = vmatpush1.msra.mxu0 0.0
        %1248 = vmatprep.subr.mxu0 0.0
        %1249 = vmatpush1.msra.mxu0 0.0
        %1250 = vmatprep.subr.mxu0 0.0
        %1251 = vmatpush1.msra.mxu0 0.0
        %1252 = vmatprep.subr.mxu0 0.0
        %1253 = vmatpush1.msra.mxu0 0.0
        %1254 = vmatprep.subr.mxu0 0.0
        %1255 = vmatpush1.msra.mxu0 0.0
        %1256 = vmatprep.subr.mxu0 0.0
        %1257 = vmatpush1.msra.mxu0 0.0
        %1258 = vmatprep.mubr.f32.mxu0 0.0
        %1259 = vmatmul.mubr.f32.gmra.mrb[0].mxu0 %v1189
        %v1260 = vpop.f32.mrb[0].mxu0
        %v1261 = vadd.f32 0.0, %v1260
        %v1262 = vpop.f32.mrb[0].mxu0
        %1263 = vmatprep.mubr.f32.mxu0 0.0
        %1264 = vmatmul.mubr.f32.gmra.mrb[0].mxu0 %v1192
        %v1265 = vpop.f32.mrb[0].mxu0
        %v1266 = vadd.f32 0.0, %v1265
        %v1267 = vpop.f32.mrb[0].mxu0
        %1268 = vdwg.mxu0
        %v1269 = vld [vmem:[#allocation16] sm:$0xff]
        %v1270 = vld [vmem:[#allocation16 + $0x8] sm:$0xff]
        %v1271 = vld [vmem:[#allocation16 + $0x10] sm:$0xff]
        %v1272 = vld [vmem:[#allocation16 + $0x18] sm:$0xff]
        %1273 = vrot.lane.b32.xlu0 %v1075, 96
        %v1274 = vpop.permute.xlu0 %1273
        %1275 = vrot.lane.b32.xlu0 %v1076, 96
        %v1276 = vpop.permute.xlu0 %1275
        %1277 = vrot.lane.b32.xlu0 %v941, 96
        %v1278 = vpop.permute.xlu0 %1277
        %1279 = vrot.lane.b32.xlu0 %v947, 96
        %v1280 = vpop.permute.xlu0 %1279
        %v1281 = vsel %vm1077, %v1274, 0
        %v1283 = vsel %vm1077, %v1276, 0
        %v1285 = vsel %vm1077, %v1278, 0
        %v1287 = vsel %vm1077, %v1280, 0
        %1289 = vmatprep.subr.mxu0 0.0
        %1290 = vmatpush1.xpose.msra.mxu0 %v1285
        %1291 = vmatprep.subr.mxu0 0.0
        %1292 = vmatpush1.xpose.msra.mxu0 %v1287
        %1293 = vmatprep.subr.mxu0 0.0
        %1294 = vmatpush1.xpose.msra.mxu0 0.0
        %1295 = vmatprep.subr.mxu0 0.0
        %1296 = vmatpush1.xpose.msra.mxu0 0.0
        %1297 = vmatprep.subr.mxu0 0.0
        %1298 = vmatpush1.xpose.msra.mxu0 0.0
        %1299 = vmatprep.subr.mxu0 0.0
        %1300 = vmatpush1.xpose.msra.mxu0 0.0
        %1301 = vmatprep.subr.mxu0 0.0
        %1302 = vmatpush1.xpose.msra.mxu0 0.0
        %1303 = vmatprep.subr.mxu0 0.0
        %1304 = vmatpush1.xpose.msra.mxu0 0.0
        %1305 = vmatprep.subr.mxu0 0.0
        %1306 = vmatpush1.xpose.msra.mxu0 0.0
        %1307 = vmatprep.subr.mxu0 0.0
        %1308 = vmatpush1.xpose.msra.mxu0 0.0
        %1309 = vmatprep.subr.mxu0 0.0
        %1310 = vmatpush1.xpose.msra.mxu0 0.0
        %1311 = vmatprep.subr.mxu0 0.0
        %1312 = vmatpush1.xpose.msra.mxu0 0.0
        %1313 = vmatprep.subr.mxu0 0.0
        %1314 = vmatpush1.xpose.msra.mxu0 0.0
        %1315 = vmatprep.subr.mxu0 0.0
        %1316 = vmatpush1.xpose.msra.mxu0 0.0
        %1317 = vmatprep.subr.mxu0 0.0
        %1318 = vmatpush1.xpose.msra.mxu0 0.0
        %1319 = vmatprep.subr.mxu0 0.0
        %1320 = vmatpush1.xpose.msra.mxu0 0.0
        %1321 = vmatprep.subr.mxu0 0.0
        %1322 = vmatpush1.xpose.msra.mxu0 0.0
        %1323 = vmatprep.subr.mxu0 0.0
        %1324 = vmatpush1.xpose.msra.mxu0 0.0
        %1325 = vmatprep.subr.mxu0 0.0
        %1326 = vmatpush1.xpose.msra.mxu0 0.0
        %1327 = vmatprep.subr.mxu0 0.0
        %1328 = vmatpush1.xpose.msra.mxu0 0.0
        %1329 = vmatprep.subr.mxu0 0.0
        %1330 = vmatpush1.xpose.msra.mxu0 0.0
        %1331 = vmatprep.subr.mxu0 0.0
        %1332 = vmatpush1.xpose.msra.mxu0 0.0
        %1333 = vmatprep.subr.mxu0 0.0
        %1334 = vmatpush1.xpose.msra.mxu0 0.0
        %1335 = vmatprep.subr.mxu0 0.0
        %1336 = vmatpush1.xpose.msra.mxu0 0.0
        %1337 = vmatprep.subr.mxu0 0.0
        %1338 = vmatpush1.xpose.msra.mxu0 0.0
        %1339 = vmatprep.subr.mxu0 0.0
        %1340 = vmatpush1.xpose.msra.mxu0 0.0
        %1341 = vmatprep.subr.mxu0 0.0
        %1342 = vmatpush1.xpose.msra.mxu0 0.0
        %1343 = vmatprep.subr.mxu0 0.0
        %1344 = vmatpush1.xpose.msra.mxu0 0.0
        %1345 = vmatprep.subr.mxu0 0.0
        %1346 = vmatpush1.xpose.msra.mxu0 0.0
        %1347 = vmatprep.subr.mxu0 0.0
        %1348 = vmatpush1.xpose.msra.mxu0 0.0
        %1349 = vmatprep.subr.mxu0 0.0
        %1350 = vmatpush1.xpose.msra.mxu0 0.0
        %1351 = vmatprep.subr.mxu0 0.0
        %1352 = vmatpush1.xpose.msra.mxu0 0.0
        %1353 = vmatprep.mubr.f32.mxu0 0.0
        %1354 = vmatmul.mubr.f32.gmra.mrb[0].mxu0 %v1281
        %v1355 = vpop.f32.mrb[0].mxu0
        %v1356 = vadd.f32 0.0, %v1355
        %v1357 = vpop.f32.mrb[0].mxu0
        %1358 = vmatprep.mubr.f32.mxu0 0.0
        %1359 = vmatmul.mubr.f32.gmra.mrb[0].mxu0 %v1283
        %v1360 = vpop.f32.mrb[0].mxu0
        %v1361 = vadd.f32 0.0, %v1360
        %v1362 = vpop.f32.mrb[0].mxu0
        %1363 = vdwg.mxu0
        %v1364 = vsel %vm1165, %v1356, -inf
        %1365 = vmax.xlane.f32.xlu0 %v1364
        %v1366 = vpop.xlane.xlu0 %1365
        %v1367 = vsel %vm1165, %v1361, -inf
        %1368 = vmax.xlane.f32.xlu0 %v1367
        %v1369 = vpop.xlane.xlu0 %1368
        %v1370 = vsub.f32 %v1356, %v1366
        %v1371 = vsub.f32 %v1361, %v1369
        %v1372 = vmul.f32 %v1370, 1.442695
        %v1373 = vpow.pop %v1372
        %v1374 = vmul.f32 %v1371, 1.442695
        %v1375 = vpow.pop %v1374
        %v1376 = vsel %vm1165, %v1373, 0.0
        %1377 = vadd.xlane.f32.xlu0 %v1376
        %v1378 = vpop.xlane.xlu0 %1377
        %v1379 = vsel %vm1165, %v1375, 0.0
        %1380 = vadd.xlane.f32.xlu0 %v1379
        %v1381 = vpop.xlane.xlu0 %1380
        %v1382 = vrcp.pop %v1378
        %v1383 = vrcp.pop %v1381
        %v1384 = vmul.f32 %v1373, %v1382
        %v1385 = vmul.f32 %v1375, %v1383
        %1388 = vrot.lane.b32.xlu0 %v943, 96
        %v1389 = vpop.permute.xlu0 %1388
        %1390 = vrot.lane.b32.xlu0 %v949, 96
        %v1391 = vpop.permute.xlu0 %1390
        %v1395 = vsel %vm1165, %v1384, 0
        %v1398 = vsel %vm1165, %v1385, 0
        %1400 = vmatprep.subr.mxu0 0.0
        %1401 = vmatpush1.msra.mxu0 %v1389
        %1402 = vmatprep.subr.mxu0 0.0
        %1403 = vmatpush1.msra.mxu0 %v1391
        %1404 = vmatprep.subr.mxu0 0.0
        %1405 = vmatpush1.msra.mxu0 0.0
        %1406 = vmatprep.subr.mxu0 0.0
        %1407 = vmatpush1.msra.mxu0 0.0
        %1408 = vmatprep.subr.mxu0 0.0
        %1409 = vmatpush1.msra.mxu0 0.0
        %1410 = vmatprep.subr.mxu0 0.0
        %1411 = vmatpush1.msra.mxu0 0.0
        %1412 = vmatprep.subr.mxu0 0.0
        %1413 = vmatpush1.msra.mxu0 0.0
        %1414 = vmatprep.subr.mxu0 0.0
        %1415 = vmatpush1.msra.mxu0 0.0
        %1416 = vmatprep.subr.mxu0 0.0
        %1417 = vmatpush1.msra.mxu0 0.0
        %1418 = vmatprep.subr.mxu0 0.0
        %1419 = vmatpush1.msra.mxu0 0.0
        %1420 = vmatprep.subr.mxu0 0.0
        %1421 = vmatpush1.msra.mxu0 0.0
        %1422 = vmatprep.subr.mxu0 0.0
        %1423 = vmatpush1.msra.mxu0 0.0
        %1424 = vmatprep.subr.mxu0 0.0
        %1425 = vmatpush1.msra.mxu0 0.0
        %1426 = vmatprep.subr.mxu0 0.0
        %1427 = vmatpush1.msra.mxu0 0.0
        %1428 = vmatprep.subr.mxu0 0.0
        %1429 = vmatpush1.msra.mxu0 0.0
        %1430 = vmatprep.subr.mxu0 0.0
        %1431 = vmatpush1.msra.mxu0 0.0
        %1432 = vmatprep.subr.mxu0 0.0
        %1433 = vmatpush1.msra.mxu0 0.0
        %1434 = vmatprep.subr.mxu0 0.0
        %1435 = vmatpush1.msra.mxu0 0.0
        %1436 = vmatprep.subr.mxu0 0.0
        %1437 = vmatpush1.msra.mxu0 0.0
        %1438 = vmatprep.subr.mxu0 0.0
        %1439 = vmatpush1.msra.mxu0 0.0
        %1440 = vmatprep.subr.mxu0 0.0
        %1441 = vmatpush1.msra.mxu0 0.0
        %1442 = vmatprep.subr.mxu0 0.0
        %1443 = vmatpush1.msra.mxu0 0.0
        %1444 = vmatprep.subr.mxu0 0.0
        %1445 = vmatpush1.msra.mxu0 0.0
        %1446 = vmatprep.subr.mxu0 0.0
        %1447 = vmatpush1.msra.mxu0 0.0
        %1448 = vmatprep.subr.mxu0 0.0
        %1449 = vmatpush1.msra.mxu0 0.0
        %1450 = vmatprep.subr.mxu0 0.0
        %1451 = vmatpush1.msra.mxu0 0.0
        %1452 = vmatprep.subr.mxu0 0.0
        %1453 = vmatpush1.msra.mxu0 0.0
        %1454 = vmatprep.subr.mxu0 0.0
        %1455 = vmatpush1.msra.mxu0 0.0
        %1456 = vmatprep.subr.mxu0 0.0
        %1457 = vmatpush1.msra.mxu0 0.0
        %1458 = vmatprep.subr.mxu0 0.0
        %1459 = vmatpush1.msra.mxu0 0.0
        %1460 = vmatprep.subr.mxu0 0.0
        %1461 = vmatpush1.msra.mxu0 0.0
        %1462 = vmatprep.subr.mxu0 0.0
        %1463 = vmatpush1.msra.mxu0 0.0
        %1464 = vmatprep.mubr.f32.mxu0 0.0
        %1465 = vmatmul.mubr.f32.gmra.mrb[0].mxu0 %v1395
        %v1466 = vpop.f32.mrb[0].mxu0
        %v1467 = vadd.f32 0.0, %v1466
        %v1468 = vpop.f32.mrb[0].mxu0
        %1469 = vmatprep.mubr.f32.mxu0 0.0
        %1470 = vmatmul.mubr.f32.gmra.mrb[0].mxu0 %v1398
        %v1471 = vpop.f32.mrb[0].mxu0
        %v1472 = vadd.f32 0.0, %v1471
        %v1473 = vpop.f32.mrb[0].mxu0
        %1474 = vdwg.mxu0
        %v1475 = vld [vmem:[#allocation16 + $0x20] sm:$0xff]
        %v1476 = vld [vmem:[#allocation16 + $0x28] sm:$0xff]
        %v1477 = vld [vmem:[#allocation16 + $0x30] sm:$0xff]
        %v1478 = vld [vmem:[#allocation16 + $0x38] sm:$0xff]
        %v1480 = vsel %vm1077, %v1467, 0
        %v1483 = vsel %vm1077, %v1472, 0
        %1485 = vmatprep.subr.mxu0 0.0
        %1486 = vmatpush1.msra.mxu0 %v1475
        %1487 = vmatprep.subr.mxu0 0.0
        %1488 = vmatpush1.msra.mxu0 %v1476
        %1489 = vmatprep.subr.mxu0 0.0
        %1490 = vmatpush1.msra.mxu0 %v1477
        %1491 = vmatprep.subr.mxu0 0.0
        %1492 = vmatpush1.msra.mxu0 %v1478
        %1493 = vmatprep.subr.mxu0 0.0
        %1494 = vmatpush1.msra.mxu0 0.0
        %1495 = vmatprep.subr.mxu0 0.0
        %1496 = vmatpush1.msra.mxu0 0.0
        %1497 = vmatprep.subr.mxu0 0.0
        %1498 = vmatpush1.msra.mxu0 0.0
        %1499 = vmatprep.subr.mxu0 0.0
        %1500 = vmatpush1.msra.mxu0 0.0
        %1501 = vmatprep.subr.mxu0 0.0
        %1502 = vmatpush1.msra.mxu0 0.0
        %1503 = vmatprep.subr.mxu0 0.0
        %1504 = vmatpush1.msra.mxu0 0.0
        %1505 = vmatprep.subr.mxu0 0.0
        %1506 = vmatpush1.msra.mxu0 0.0
        %1507 = vmatprep.subr.mxu0 0.0
        %1508 = vmatpush1.msra.mxu0 0.0
        %1509 = vmatprep.subr.mxu0 0.0
        %1510 = vmatpush1.msra.mxu0 0.0
        %1511 = vmatprep.subr.mxu0 0.0
        %1512 = vmatpush1.msra.mxu0 0.0
        %1513 = vmatprep.subr.mxu0 0.0
        %1514 = vmatpush1.msra.mxu0 0.0
        %1515 = vmatprep.subr.mxu0 0.0
        %1516 = vmatpush1.msra.mxu0 0.0
        %1517 = vmatprep.subr.mxu0 0.0
        %1518 = vmatpush1.msra.mxu0 0.0
        %1519 = vmatprep.subr.mxu0 0.0
        %1520 = vmatpush1.msra.mxu0 0.0
        %1521 = vmatprep.subr.mxu0 0.0
        %1522 = vmatpush1.msra.mxu0 0.0
        %1523 = vmatprep.subr.mxu0 0.0
        %1524 = vmatpush1.msra.mxu0 0.0
        %1525 = vmatprep.subr.mxu0 0.0
        %1526 = vmatpush1.msra.mxu0 0.0
        %1527 = vmatprep.subr.mxu0 0.0
        %1528 = vmatpush1.msra.mxu0 0.0
        %1529 = vmatprep.subr.mxu0 0.0
        %1530 = vmatpush1.msra.mxu0 0.0
        %1531 = vmatprep.subr.mxu0 0.0
        %1532 = vmatpush1.msra.mxu0 0.0
        %1533 = vmatprep.subr.mxu0 0.0
        %1534 = vmatpush1.msra.mxu0 0.0
        %1535 = vmatprep.subr.mxu0 0.0
        %1536 = vmatpush1.msra.mxu0 0.0
        %1537 = vmatprep.subr.mxu0 0.0
        %1538 = vmatpush1.msra.mxu0 0.0
        %1539 = vmatprep.subr.mxu0 0.0
        %1540 = vmatpush1.msra.mxu0 0.0
        %1541 = vmatprep.subr.mxu0 0.0
        %1542 = vmatpush1.msra.mxu0 0.0
        %1543 = vmatprep.subr.mxu0 0.0
        %1544 = vmatpush1.msra.mxu0 0.0
        %1545 = vmatprep.subr.mxu0 0.0
        %1546 = vmatpush1.msra.mxu0 0.0
        %1547 = vmatprep.subr.mxu0 0.0
        %1548 = vmatpush1.msra.mxu0 0.0
        %1549 = vmatprep.mubr.f32.mxu0 0.0
        %1550 = vmatmul.mubr.f32.gmra.mrb[0].mxu0 %v1480
        %v1551 = vpop.f32.mrb[0].mxu0
        %v1552 = vadd.f32 0.0, %v1551
        %v1553 = vpop.f32.mrb[0].mxu0
        %1554 = vmatprep.mubr.f32.mxu0 0.0
        %1555 = vmatmul.mubr.f32.gmra.mrb[0].mxu0 %v1483
        %v1556 = vpop.f32.mrb[0].mxu0
        %v1557 = vadd.f32 0.0, %v1556
        %v1558 = vpop.f32.mrb[0].mxu0
        %1559 = vdwg.mxu0
        %v1561 = vsel %vm1077, %v1261, 0
        %v1564 = vsel %vm1077, %v1266, 0
        %1566 = vmatprep.subr.mxu0 0.0
        %1567 = vmatpush1.msra.mxu0 %v1269
        %1568 = vmatprep.subr.mxu0 0.0
        %1569 = vmatpush1.msra.mxu0 %v1270
        %1570 = vmatprep.subr.mxu0 0.0
        %1571 = vmatpush1.msra.mxu0 %v1271
        %1572 = vmatprep.subr.mxu0 0.0
        %1573 = vmatpush1.msra.mxu0 %v1272
        %1574 = vmatprep.subr.mxu0 0.0
        %1575 = vmatpush1.msra.mxu0 0.0
        %1576 = vmatprep.subr.mxu0 0.0
        %1577 = vmatpush1.msra.mxu0 0.0
        %1578 = vmatprep.subr.mxu0 0.0
        %1579 = vmatpush1.msra.mxu0 0.0
        %1580 = vmatprep.subr.mxu0 0.0
        %1581 = vmatpush1.msra.mxu0 0.0
        %1582 = vmatprep.subr.mxu0 0.0
        %1583 = vmatpush1.msra.mxu0 0.0
        %1584 = vmatprep.subr.mxu0 0.0
        %1585 = vmatpush1.msra.mxu0 0.0
        %1586 = vmatprep.subr.mxu0 0.0
        %1587 = vmatpush1.msra.mxu0 0.0
        %1588 = vmatprep.subr.mxu0 0.0
        %1589 = vmatpush1.msra.mxu0 0.0
        %1590 = vmatprep.subr.mxu0 0.0
        %1591 = vmatpush1.msra.mxu0 0.0
        %1592 = vmatprep.subr.mxu0 0.0
        %1593 = vmatpush1.msra.mxu0 0.0
        %1594 = vmatprep.subr.mxu0 0.0
        %1595 = vmatpush1.msra.mxu0 0.0
        %1596 = vmatprep.subr.mxu0 0.0
        %1597 = vmatpush1.msra.mxu0 0.0
        %1598 = vmatprep.subr.mxu0 0.0
        %1599 = vmatpush1.msra.mxu0 0.0
        %1600 = vmatprep.subr.mxu0 0.0
        %1601 = vmatpush1.msra.mxu0 0.0
        %1602 = vmatprep.subr.mxu0 0.0
        %1603 = vmatpush1.msra.mxu0 0.0
        %1604 = vmatprep.subr.mxu0 0.0
        %1605 = vmatpush1.msra.mxu0 0.0
        %1606 = vmatprep.subr.mxu0 0.0
        %1607 = vmatpush1.msra.mxu0 0.0
        %1608 = vmatprep.subr.mxu0 0.0
        %1609 = vmatpush1.msra.mxu0 0.0
        %1610 = vmatprep.subr.mxu0 0.0
        %1611 = vmatpush1.msra.mxu0 0.0
        %1612 = vmatprep.subr.mxu0 0.0
        %1613 = vmatpush1.msra.mxu0 0.0
        %1614 = vmatprep.subr.mxu0 0.0
        %1615 = vmatpush1.msra.mxu0 0.0
        %1616 = vmatprep.subr.mxu0 0.0
        %1617 = vmatpush1.msra.mxu0 0.0
        %1618 = vmatprep.subr.mxu0 0.0
        %1619 = vmatpush1.msra.mxu0 0.0
        %1620 = vmatprep.subr.mxu0 0.0
        %1621 = vmatpush1.msra.mxu0 0.0
        %1622 = vmatprep.subr.mxu0 0.0
        %1623 = vmatpush1.msra.mxu0 0.0
        %1624 = vmatprep.subr.mxu0 0.0
        %1625 = vmatpush1.msra.mxu0 0.0
        %1626 = vmatprep.subr.mxu0 0.0
        %1627 = vmatpush1.msra.mxu0 0.0
        %1628 = vmatprep.subr.mxu0 0.0
        %1629 = vmatpush1.msra.mxu0 0.0
        %1630 = vmatprep.mubr.f32.mxu0 0.0
        %1631 = vmatmul.mubr.f32.gmra.mrb[0].mxu0 %v1561
        %v1632 = vpop.f32.mrb[0].mxu0
        %v1633 = vadd.f32 %v1552, %v1632
        %v1634 = vpop.f32.mrb[0].mxu0
        %1635 = vmatprep.mubr.f32.mxu0 0.0
        %1636 = vmatmul.mubr.f32.gmra.mrb[0].mxu0 %v1564
        %v1637 = vpop.f32.mrb[0].mxu0
        %v1638 = vadd.f32 %v1557, %v1637
        %v1639 = vpop.f32.mrb[0].mxu0
        %1640 = vdwg.mxu0
        %1641 = vrot.lane.b32.xlu0 %v1075, 64
        %v1642 = vpop.permute.xlu0 %1641
        %1643 = vrot.lane.b32.xlu0 %v1076, 64
        %v1644 = vpop.permute.xlu0 %1643
        %1645 = vrot.lane.b32.xlu0 %v941, 64
        %v1646 = vpop.permute.xlu0 %1645
        %1647 = vrot.lane.b32.xlu0 %v947, 64
        %v1648 = vpop.permute.xlu0 %1647
        %v1649 = vsel %vm1077, %v1642, 0
        %v1651 = vsel %vm1077, %v1644, 0
        %v1653 = vsel %vm1077, %v1646, 0
        %v1655 = vsel %vm1077, %v1648, 0
        %1657 = vmatprep.subr.mxu0 0.0
        %1658 = vmatpush1.xpose.msra.mxu0 %v1653
        %1659 = vmatprep.subr.mxu0 0.0
        %1660 = vmatpush1.xpose.msra.mxu0 %v1655
        %1661 = vmatprep.subr.mxu0 0.0
        %1662 = vmatpush1.xpose.msra.mxu0 0.0
        %1663 = vmatprep.subr.mxu0 0.0
        %1664 = vmatpush1.xpose.msra.mxu0 0.0
        %1665 = vmatprep.subr.mxu0 0.0
        %1666 = vmatpush1.xpose.msra.mxu0 0.0
        %1667 = vmatprep.subr.mxu0 0.0
        %1668 = vmatpush1.xpose.msra.mxu0 0.0
        %1669 = vmatprep.subr.mxu0 0.0
        %1670 = vmatpush1.xpose.msra.mxu0 0.0
        %1671 = vmatprep.subr.mxu0 0.0
        %1672 = vmatpush1.xpose.msra.mxu0 0.0
        %1673 = vmatprep.subr.mxu0 0.0
        %1674 = vmatpush1.xpose.msra.mxu0 0.0
        %1675 = vmatprep.subr.mxu0 0.0
        %1676 = vmatpush1.xpose.msra.mxu0 0.0
        %1677 = vmatprep.subr.mxu0 0.0
        %1678 = vmatpush1.xpose.msra.mxu0 0.0
        %1679 = vmatprep.subr.mxu0 0.0
        %1680 = vmatpush1.xpose.msra.mxu0 0.0
        %1681 = vmatprep.subr.mxu0 0.0
        %1682 = vmatpush1.xpose.msra.mxu0 0.0
        %1683 = vmatprep.subr.mxu0 0.0
        %1684 = vmatpush1.xpose.msra.mxu0 0.0
        %1685 = vmatprep.subr.mxu0 0.0
        %1686 = vmatpush1.xpose.msra.mxu0 0.0
        %1687 = vmatprep.subr.mxu0 0.0
        %1688 = vmatpush1.xpose.msra.mxu0 0.0
        %1689 = vmatprep.subr.mxu0 0.0
        %1690 = vmatpush1.xpose.msra.mxu0 0.0
        %1691 = vmatprep.subr.mxu0 0.0
        %1692 = vmatpush1.xpose.msra.mxu0 0.0
        %1693 = vmatprep.subr.mxu0 0.0
        %1694 = vmatpush1.xpose.msra.mxu0 0.0
        %1695 = vmatprep.subr.mxu0 0.0
        %1696 = vmatpush1.xpose.msra.mxu0 0.0
        %1697 = vmatprep.subr.mxu0 0.0
        %1698 = vmatpush1.xpose.msra.mxu0 0.0
        %1699 = vmatprep.subr.mxu0 0.0
        %1700 = vmatpush1.xpose.msra.mxu0 0.0
        %1701 = vmatprep.subr.mxu0 0.0
        %1702 = vmatpush1.xpose.msra.mxu0 0.0
        %1703 = vmatprep.subr.mxu0 0.0
        %1704 = vmatpush1.xpose.msra.mxu0 0.0
        %1705 = vmatprep.subr.mxu0 0.0
        %1706 = vmatpush1.xpose.msra.mxu0 0.0
        %1707 = vmatprep.subr.mxu0 0.0
        %1708 = vmatpush1.xpose.msra.mxu0 0.0
        %1709 = vmatprep.subr.mxu0 0.0
        %1710 = vmatpush1.xpose.msra.mxu0 0.0
        %1711 = vmatprep.subr.mxu0 0.0
        %1712 = vmatpush1.xpose.msra.mxu0 0.0
        %1713 = vmatprep.subr.mxu0 0.0
        %1714 = vmatpush1.xpose.msra.mxu0 0.0
        %1715 = vmatprep.subr.mxu0 0.0
        %1716 = vmatpush1.xpose.msra.mxu0 0.0
        %1717 = vmatprep.subr.mxu0 0.0
        %1718 = vmatpush1.xpose.msra.mxu0 0.0
        %1719 = vmatprep.subr.mxu0 0.0
        %1720 = vmatpush1.xpose.msra.mxu0 0.0
        %1721 = vmatprep.mubr.f32.mxu0 0.0
        %1722 = vmatmul.mubr.f32.gmra.mrb[0].mxu0 %v1649
        %v1723 = vpop.f32.mrb[0].mxu0
        %v1724 = vadd.f32 0.0, %v1723
        %v1725 = vpop.f32.mrb[0].mxu0
        %1726 = vmatprep.mubr.f32.mxu0 0.0
        %1727 = vmatmul.mubr.f32.gmra.mrb[0].mxu0 %v1651
        %v1728 = vpop.f32.mrb[0].mxu0
        %v1729 = vadd.f32 0.0, %v1728
        %v1730 = vpop.f32.mrb[0].mxu0
        %1731 = vdwg.mxu0
        %v1732 = vsel %vm1165, %v1724, -inf
        %1733 = vmax.xlane.f32.xlu0 %v1732
        %v1734 = vpop.xlane.xlu0 %1733
        %v1735 = vsel %vm1165, %v1729, -inf
        %1736 = vmax.xlane.f32.xlu0 %v1735
        %v1737 = vpop.xlane.xlu0 %1736
        %v1738 = vsub.f32 %v1724, %v1734
        %v1739 = vsub.f32 %v1729, %v1737
        %v1740 = vmul.f32 %v1738, 1.442695
        %v1741 = vpow.pop %v1740
        %v1742 = vmul.f32 %v1739, 1.442695
        %v1743 = vpow.pop %v1742
        %v1744 = vsel %vm1165, %v1741, 0.0
        %1745 = vadd.xlane.f32.xlu0 %v1744
        %v1746 = vpop.xlane.xlu0 %1745
        %v1747 = vsel %vm1165, %v1743, 0.0
        %1748 = vadd.xlane.f32.xlu0 %v1747
        %v1749 = vpop.xlane.xlu0 %1748
        %v1750 = vrcp.pop %v1746
        %v1751 = vrcp.pop %v1749
        %v1752 = vmul.f32 %v1741, %v1750
        %v1753 = vmul.f32 %v1743, %v1751
        %1754 = vrot.lane.b32.xlu0 %v943, 64
        %v1755 = vpop.permute.xlu0 %1754
        %1756 = vrot.lane.b32.xlu0 %v949, 64
        %v1757 = vpop.permute.xlu0 %1756
        %v1761 = vsel %vm1165, %v1752, 0
        %v1764 = vsel %vm1165, %v1753, 0
        %1766 = vmatprep.subr.mxu0 0.0
        %1767 = vmatpush1.msra.mxu0 %v1755
        %1768 = vmatprep.subr.mxu0 0.0
        %1769 = vmatpush1.msra.mxu0 %v1757
        %1770 = vmatprep.subr.mxu0 0.0
        %1771 = vmatpush1.msra.mxu0 0.0
        %1772 = vmatprep.subr.mxu0 0.0
        %1773 = vmatpush1.msra.mxu0 0.0
        %1774 = vmatprep.subr.mxu0 0.0
        %1775 = vmatpush1.msra.mxu0 0.0
        %1776 = vmatprep.subr.mxu0 0.0
        %1777 = vmatpush1.msra.mxu0 0.0
        %1778 = vmatprep.subr.mxu0 0.0
        %1779 = vmatpush1.msra.mxu0 0.0
        %1780 = vmatprep.subr.mxu0 0.0
        %1781 = vmatpush1.msra.mxu0 0.0
        %1782 = vmatprep.subr.mxu0 0.0
        %1783 = vmatpush1.msra.mxu0 0.0
        %1784 = vmatprep.subr.mxu0 0.0
        %1785 = vmatpush1.msra.mxu0 0.0
        %1786 = vmatprep.subr.mxu0 0.0
        %1787 = vmatpush1.msra.mxu0 0.0
        %1788 = vmatprep.subr.mxu0 0.0
        %1789 = vmatpush1.msra.mxu0 0.0
        %1790 = vmatprep.subr.mxu0 0.0
        %1791 = vmatpush1.msra.mxu0 0.0
        %1792 = vmatprep.subr.mxu0 0.0
        %1793 = vmatpush1.msra.mxu0 0.0
        %1794 = vmatprep.subr.mxu0 0.0
        %1795 = vmatpush1.msra.mxu0 0.0
        %1796 = vmatprep.subr.mxu0 0.0
        %1797 = vmatpush1.msra.mxu0 0.0
        %1798 = vmatprep.subr.mxu0 0.0
        %1799 = vmatpush1.msra.mxu0 0.0
        %1800 = vmatprep.subr.mxu0 0.0
        %1801 = vmatpush1.msra.mxu0 0.0
        %1802 = vmatprep.subr.mxu0 0.0
        %1803 = vmatpush1.msra.mxu0 0.0
        %1804 = vmatprep.subr.mxu0 0.0
        %1805 = vmatpush1.msra.mxu0 0.0
        %1806 = vmatprep.subr.mxu0 0.0
        %1807 = vmatpush1.msra.mxu0 0.0
        %1808 = vmatprep.subr.mxu0 0.0
        %1809 = vmatpush1.msra.mxu0 0.0
        %1810 = vmatprep.subr.mxu0 0.0
        %1811 = vmatpush1.msra.mxu0 0.0
        %1812 = vmatprep.subr.mxu0 0.0
        %1813 = vmatpush1.msra.mxu0 0.0
        %1814 = vmatprep.subr.mxu0 0.0
        %1815 = vmatpush1.msra.mxu0 0.0
        %1816 = vmatprep.subr.mxu0 0.0
        %1817 = vmatpush1.msra.mxu0 0.0
        %1818 = vmatprep.subr.mxu0 0.0
        %1819 = vmatpush1.msra.mxu0 0.0
        %1820 = vmatprep.subr.mxu0 0.0
        %1821 = vmatpush1.msra.mxu0 0.0
        %1822 = vmatprep.subr.mxu0 0.0
        %1823 = vmatpush1.msra.mxu0 0.0
        %1824 = vmatprep.subr.mxu0 0.0
        %1825 = vmatpush1.msra.mxu0 0.0
        %1826 = vmatprep.subr.mxu0 0.0
        %1827 = vmatpush1.msra.mxu0 0.0
        %1828 = vmatprep.subr.mxu0 0.0
        %1829 = vmatpush1.msra.mxu0 0.0
        %1830 = vmatprep.mubr.f32.mxu0 0.0
        %1831 = vmatmul.mubr.f32.gmra.mrb[0].mxu0 %v1761
        %v1832 = vpop.f32.mrb[0].mxu0
        %v1833 = vadd.f32 0.0, %v1832
        %v1834 = vpop.f32.mrb[0].mxu0
        %1835 = vmatprep.mubr.f32.mxu0 0.0
        %1836 = vmatmul.mubr.f32.gmra.mrb[0].mxu0 %v1764
        %v1837 = vpop.f32.mrb[0].mxu0
        %v1838 = vadd.f32 0.0, %v1837
        %v1839 = vpop.f32.mrb[0].mxu0
        %1840 = vdwg.mxu0
        %v1841 = vld [vmem:[#allocation16 + $0x40] sm:$0xff]
        %v1842 = vld [vmem:[#allocation16 + $0x48] sm:$0xff]
        %v1843 = vld [vmem:[#allocation16 + $0x50] sm:$0xff]
        %v1844 = vld [vmem:[#allocation16 + $0x58] sm:$0xff]
        %v1846 = vsel %vm1077, %v1833, 0
        %v1849 = vsel %vm1077, %v1838, 0
        %1851 = vmatprep.subr.mxu0 0.0
        %1852 = vmatpush1.msra.mxu0 %v1841
        %1853 = vmatprep.subr.mxu0 0.0
        %1854 = vmatpush1.msra.mxu0 %v1842
        %1855 = vmatprep.subr.mxu0 0.0
        %1856 = vmatpush1.msra.mxu0 %v1843
        %1857 = vmatprep.subr.mxu0 0.0
        %1858 = vmatpush1.msra.mxu0 %v1844
        %1859 = vmatprep.subr.mxu0 0.0
        %1860 = vmatpush1.msra.mxu0 0.0
        %1861 = vmatprep.subr.mxu0 0.0
        %1862 = vmatpush1.msra.mxu0 0.0
        %1863 = vmatprep.subr.mxu0 0.0
        %1864 = vmatpush1.msra.mxu0 0.0
        %1865 = vmatprep.subr.mxu0 0.0
        %1866 = vmatpush1.msra.mxu0 0.0
        %1867 = vmatprep.subr.mxu0 0.0
        %1868 = vmatpush1.msra.mxu0 0.0
        %1869 = vmatprep.subr.mxu0 0.0
        %1870 = vmatpush1.msra.mxu0 0.0
        %1871 = vmatprep.subr.mxu0 0.0
        %1872 = vmatpush1.msra.mxu0 0.0
        %1873 = vmatprep.subr.mxu0 0.0
        %1874 = vmatpush1.msra.mxu0 0.0
        %1875 = vmatprep.subr.mxu0 0.0
        %1876 = vmatpush1.msra.mxu0 0.0
        %1877 = vmatprep.subr.mxu0 0.0
        %1878 = vmatpush1.msra.mxu0 0.0
        %1879 = vmatprep.subr.mxu0 0.0
        %1880 = vmatpush1.msra.mxu0 0.0
        %1881 = vmatprep.subr.mxu0 0.0
        %1882 = vmatpush1.msra.mxu0 0.0
        %1883 = vmatprep.subr.mxu0 0.0
        %1884 = vmatpush1.msra.mxu0 0.0
        %1885 = vmatprep.subr.mxu0 0.0
        %1886 = vmatpush1.msra.mxu0 0.0
        %1887 = vmatprep.subr.mxu0 0.0
        %1888 = vmatpush1.msra.mxu0 0.0
        %1889 = vmatprep.subr.mxu0 0.0
        %1890 = vmatpush1.msra.mxu0 0.0
        %1891 = vmatprep.subr.mxu0 0.0
        %1892 = vmatpush1.msra.mxu0 0.0
        %1893 = vmatprep.subr.mxu0 0.0
        %1894 = vmatpush1.msra.mxu0 0.0
        %1895 = vmatprep.subr.mxu0 0.0
        %1896 = vmatpush1.msra.mxu0 0.0
        %1897 = vmatprep.subr.mxu0 0.0
        %1898 = vmatpush1.msra.mxu0 0.0
        %1899 = vmatprep.subr.mxu0 0.0
        %1900 = vmatpush1.msra.mxu0 0.0
        %1901 = vmatprep.subr.mxu0 0.0
        %1902 = vmatpush1.msra.mxu0 0.0
        %1903 = vmatprep.subr.mxu0 0.0
        %1904 = vmatpush1.msra.mxu0 0.0
        %1905 = vmatprep.subr.mxu0 0.0
        %1906 = vmatpush1.msra.mxu0 0.0
        %1907 = vmatprep.subr.mxu0 0.0
        %1908 = vmatpush1.msra.mxu0 0.0
        %1909 = vmatprep.subr.mxu0 0.0
        %1910 = vmatpush1.msra.mxu0 0.0
        %1911 = vmatprep.subr.mxu0 0.0
        %1912 = vmatpush1.msra.mxu0 0.0
        %1913 = vmatprep.subr.mxu0 0.0
        %1914 = vmatpush1.msra.mxu0 0.0
        %1915 = vmatprep.mubr.f32.mxu0 0.0
        %1916 = vmatmul.mubr.f32.gmra.mrb[0].mxu0 %v1846
        %v1917 = vpop.f32.mrb[0].mxu0
        %v1918 = vadd.f32 0.0, %v1917
        %v1919 = vpop.f32.mrb[0].mxu0
        %1920 = vmatprep.mubr.f32.mxu0 0.0
        %1921 = vmatmul.mubr.f32.gmra.mrb[0].mxu0 %v1849
        %v1922 = vpop.f32.mrb[0].mxu0
        %v1923 = vadd.f32 0.0, %v1922
        %v1924 = vpop.f32.mrb[0].mxu0
        %1925 = vdwg.mxu0
        %v1926 = vadd.f32 %v1633, %v1918
        %v1927 = vadd.f32 %v1638, %v1923
        %1928 = vrot.lane.b32.xlu0 %v1075, 32
        %v1929 = vpop.permute.xlu0 %1928
        %1930 = vrot.lane.b32.xlu0 %v1076, 32
        %v1931 = vpop.permute.xlu0 %1930
        %1932 = vrot.lane.b32.xlu0 %v941, 32
        %v1933 = vpop.permute.xlu0 %1932
        %1934 = vrot.lane.b32.xlu0 %v947, 32
        %v1935 = vpop.permute.xlu0 %1934
        %v1936 = vsel %vm1077, %v1929, 0
        %v1938 = vsel %vm1077, %v1931, 0
        %v1940 = vsel %vm1077, %v1933, 0
        %v1942 = vsel %vm1077, %v1935, 0
        %1944 = vmatprep.subr.mxu0 0.0
        %1945 = vmatpush1.xpose.msra.mxu0 %v1940
        %1946 = vmatprep.subr.mxu0 0.0
        %1947 = vmatpush1.xpose.msra.mxu0 %v1942
        %1948 = vmatprep.subr.mxu0 0.0
        %1949 = vmatpush1.xpose.msra.mxu0 0.0
        %1950 = vmatprep.subr.mxu0 0.0
        %1951 = vmatpush1.xpose.msra.mxu0 0.0
        %1952 = vmatprep.subr.mxu0 0.0
        %1953 = vmatpush1.xpose.msra.mxu0 0.0
        %1954 = vmatprep.subr.mxu0 0.0
        %1955 = vmatpush1.xpose.msra.mxu0 0.0
        %1956 = vmatprep.subr.mxu0 0.0
        %1957 = vmatpush1.xpose.msra.mxu0 0.0
        %1958 = vmatprep.subr.mxu0 0.0
        %1959 = vmatpush1.xpose.msra.mxu0 0.0
        %1960 = vmatprep.subr.mxu0 0.0
        %1961 = vmatpush1.xpose.msra.mxu0 0.0
        %1962 = vmatprep.subr.mxu0 0.0
        %1963 = vmatpush1.xpose.msra.mxu0 0.0
        %1964 = vmatprep.subr.mxu0 0.0
        %1965 = vmatpush1.xpose.msra.mxu0 0.0
        %1966 = vmatprep.subr.mxu0 0.0
        %1967 = vmatpush1.xpose.msra.mxu0 0.0
        %1968 = vmatprep.subr.mxu0 0.0
        %1969 = vmatpush1.xpose.msra.mxu0 0.0
        %1970 = vmatprep.subr.mxu0 0.0
        %1971 = vmatpush1.xpose.msra.mxu0 0.0
        %1972 = vmatprep.subr.mxu0 0.0
        %1973 = vmatpush1.xpose.msra.mxu0 0.0
        %1974 = vmatprep.subr.mxu0 0.0
        %1975 = vmatpush1.xpose.msra.mxu0 0.0
        %1976 = vmatprep.subr.mxu0 0.0
        %1977 = vmatpush1.xpose.msra.mxu0 0.0
        %1978 = vmatprep.subr.mxu0 0.0
        %1979 = vmatpush1.xpose.msra.mxu0 0.0
        %1980 = vmatprep.subr.mxu0 0.0
        %1981 = vmatpush1.xpose.msra.mxu0 0.0
        %1982 = vmatprep.subr.mxu0 0.0
        %1983 = vmatpush1.xpose.msra.mxu0 0.0
        %1984 = vmatprep.subr.mxu0 0.0
        %1985 = vmatpush1.xpose.msra.mxu0 0.0
        %1986 = vmatprep.subr.mxu0 0.0
        %1987 = vmatpush1.xpose.msra.mxu0 0.0
        %1988 = vmatprep.subr.mxu0 0.0
        %1989 = vmatpush1.xpose.msra.mxu0 0.0
        %1990 = vmatprep.subr.mxu0 0.0
        %1991 = vmatpush1.xpose.msra.mxu0 0.0
        %1992 = vmatprep.subr.mxu0 0.0
        %1993 = vmatpush1.xpose.msra.mxu0 0.0
        %1994 = vmatprep.subr.mxu0 0.0
        %1995 = vmatpush1.xpose.msra.mxu0 0.0
        %1996 = vmatprep.subr.mxu0 0.0
        %1997 = vmatpush1.xpose.msra.mxu0 0.0
        %1998 = vmatprep.subr.mxu0 0.0
        %1999 = vmatpush1.xpose.msra.mxu0 0.0
        %2000 = vmatprep.subr.mxu0 0.0
        %2001 = vmatpush1.xpose.msra.mxu0 0.0
        %2002 = vmatprep.subr.mxu0 0.0
        %2003 = vmatpush1.xpose.msra.mxu0 0.0
        %2004 = vmatprep.subr.mxu0 0.0
        %2005 = vmatpush1.xpose.msra.mxu0 0.0
        %2006 = vmatprep.subr.mxu0 0.0
        %2007 = vmatpush1.xpose.msra.mxu0 0.0
        %2008 = vmatprep.mubr.f32.mxu0 0.0
        %2009 = vmatmul.mubr.f32.gmra.mrb[0].mxu0 %v1936
        %v2010 = vpop.f32.mrb[0].mxu0
        %v2011 = vadd.f32 0.0, %v2010
        %v2012 = vpop.f32.mrb[0].mxu0
        %2013 = vmatprep.mubr.f32.mxu0 0.0
        %2014 = vmatmul.mubr.f32.gmra.mrb[0].mxu0 %v1938
        %v2015 = vpop.f32.mrb[0].mxu0
        %v2016 = vadd.f32 0.0, %v2015
        %v2017 = vpop.f32.mrb[0].mxu0
        %2018 = vdwg.mxu0
        %v2019 = vsel %vm1165, %v2011, -inf
        %2020 = vmax.xlane.f32.xlu0 %v2019
        %v2021 = vpop.xlane.xlu0 %2020
        %v2022 = vsel %vm1165, %v2016, -inf
        %2023 = vmax.xlane.f32.xlu0 %v2022
        %v2024 = vpop.xlane.xlu0 %2023
        %v2025 = vsub.f32 %v2011, %v2021
        %v2026 = vsub.f32 %v2016, %v2024
        %v2027 = vmul.f32 %v2025, 1.442695
        %v2028 = vpow.pop %v2027
        %v2029 = vmul.f32 %v2026, 1.442695
        %v2030 = vpow.pop %v2029
        %v2031 = vsel %vm1165, %v2028, 0.0
        %2032 = vadd.xlane.f32.xlu0 %v2031
        %v2033 = vpop.xlane.xlu0 %2032
        %v2034 = vsel %vm1165, %v2030, 0.0
        %2035 = vadd.xlane.f32.xlu0 %v2034
        %v2036 = vpop.xlane.xlu0 %2035
        %v2037 = vrcp.pop %v2033
        %v2038 = vrcp.pop %v2036
        %v2039 = vmul.f32 %v2028, %v2037
        %v2040 = vmul.f32 %v2030, %v2038
        %2041 = vrot.lane.b32.xlu0 %v943, 32
        %v2042 = vpop.permute.xlu0 %2041
        %2043 = vrot.lane.b32.xlu0 %v949, 32
        %v2044 = vpop.permute.xlu0 %2043
        %v2048 = vsel %vm1165, %v2039, 0
        %v2051 = vsel %vm1165, %v2040, 0
        %2053 = vmatprep.subr.mxu0 0.0
        %2054 = vmatpush1.msra.mxu0 %v2042
        %2055 = vmatprep.subr.mxu0 0.0
        %2056 = vmatpush1.msra.mxu0 %v2044
        %2057 = vmatprep.subr.mxu0 0.0
        %2058 = vmatpush1.msra.mxu0 0.0
        %2059 = vmatprep.subr.mxu0 0.0
        %2060 = vmatpush1.msra.mxu0 0.0
        %2061 = vmatprep.subr.mxu0 0.0
        %2062 = vmatpush1.msra.mxu0 0.0
        %2063 = vmatprep.subr.mxu0 0.0
        %2064 = vmatpush1.msra.mxu0 0.0
        %2065 = vmatprep.subr.mxu0 0.0
        %2066 = vmatpush1.msra.mxu0 0.0
        %2067 = vmatprep.subr.mxu0 0.0
        %2068 = vmatpush1.msra.mxu0 0.0
        %2069 = vmatprep.subr.mxu0 0.0
        %2070 = vmatpush1.msra.mxu0 0.0
        %2071 = vmatprep.subr.mxu0 0.0
        %2072 = vmatpush1.msra.mxu0 0.0
        %2073 = vmatprep.subr.mxu0 0.0
        %2074 = vmatpush1.msra.mxu0 0.0
        %2075 = vmatprep.subr.mxu0 0.0
        %2076 = vmatpush1.msra.mxu0 0.0
        %2077 = vmatprep.subr.mxu0 0.0
        %2078 = vmatpush1.msra.mxu0 0.0
        %2079 = vmatprep.subr.mxu0 0.0
        %2080 = vmatpush1.msra.mxu0 0.0
        %2081 = vmatprep.subr.mxu0 0.0
        %2082 = vmatpush1.msra.mxu0 0.0
        %2083 = vmatprep.subr.mxu0 0.0
        %2084 = vmatpush1.msra.mxu0 0.0
        %2085 = vmatprep.subr.mxu0 0.0
        %2086 = vmatpush1.msra.mxu0 0.0
        %2087 = vmatprep.subr.mxu0 0.0
        %2088 = vmatpush1.msra.mxu0 0.0
        %2089 = vmatprep.subr.mxu0 0.0
        %2090 = vmatpush1.msra.mxu0 0.0
        %2091 = vmatprep.subr.mxu0 0.0
        %2092 = vmatpush1.msra.mxu0 0.0
        %2093 = vmatprep.subr.mxu0 0.0
        %2094 = vmatpush1.msra.mxu0 0.0
        %2095 = vmatprep.subr.mxu0 0.0
        %2096 = vmatpush1.msra.mxu0 0.0
        %2097 = vmatprep.subr.mxu0 0.0
        %2098 = vmatpush1.msra.mxu0 0.0
        %2099 = vmatprep.subr.mxu0 0.0
        %2100 = vmatpush1.msra.mxu0 0.0
        %2101 = vmatprep.subr.mxu0 0.0
        %2102 = vmatpush1.msra.mxu0 0.0
        %2103 = vmatprep.subr.mxu0 0.0
        %2104 = vmatpush1.msra.mxu0 0.0
        %2105 = vmatprep.subr.mxu0 0.0
        %2106 = vmatpush1.msra.mxu0 0.0
        %2107 = vmatprep.subr.mxu0 0.0
        %2108 = vmatpush1.msra.mxu0 0.0
        %2109 = vmatprep.subr.mxu0 0.0
        %2110 = vmatpush1.msra.mxu0 0.0
        %2111 = vmatprep.subr.mxu0 0.0
        %2112 = vmatpush1.msra.mxu0 0.0
        %2113 = vmatprep.subr.mxu0 0.0
        %2114 = vmatpush1.msra.mxu0 0.0
        %2115 = vmatprep.subr.mxu0 0.0
        %2116 = vmatpush1.msra.mxu0 0.0
        %2117 = vmatprep.mubr.f32.mxu0 0.0
        %2118 = vmatmul.mubr.f32.gmra.mrb[0].mxu0 %v2048
        %v2119 = vpop.f32.mrb[0].mxu0
        %v2120 = vadd.f32 0.0, %v2119
        %v2121 = vpop.f32.mrb[0].mxu0
        %2122 = vmatprep.mubr.f32.mxu0 0.0
        %2123 = vmatmul.mubr.f32.gmra.mrb[0].mxu0 %v2051
        %v2124 = vpop.f32.mrb[0].mxu0
        %v2125 = vadd.f32 0.0, %v2124
        %v2126 = vpop.f32.mrb[0].mxu0
        %2127 = vdwg.mxu0
        %v2128 = vld [vmem:[#allocation16 + $0x60] sm:$0xff]
        %v2129 = vld [vmem:[#allocation16 + $0x68] sm:$0xff]
        %v2130 = vld [vmem:[#allocation16 + $0x70] sm:$0xff]
        %v2131 = vld [vmem:[#allocation16 + $0x78] sm:$0xff]
        %v2133 = vsel %vm1077, %v2120, 0
        %v2136 = vsel %vm1077, %v2125, 0
        %2138 = vmatprep.subr.mxu0 0.0
        %2139 = vmatpush1.msra.mxu0 %v2128
        %2140 = vmatprep.subr.mxu0 0.0
        %2141 = vmatpush1.msra.mxu0 %v2129
        %2142 = vmatprep.subr.mxu0 0.0
        %2143 = vmatpush1.msra.mxu0 %v2130
        %2144 = vmatprep.subr.mxu0 0.0
        %2145 = vmatpush1.msra.mxu0 %v2131
        %2146 = vmatprep.subr.mxu0 0.0
        %2147 = vmatpush1.msra.mxu0 0.0
        %2148 = vmatprep.subr.mxu0 0.0
        %2149 = vmatpush1.msra.mxu0 0.0
        %2150 = vmatprep.subr.mxu0 0.0
        %2151 = vmatpush1.msra.mxu0 0.0
        %2152 = vmatprep.subr.mxu0 0.0
        %2153 = vmatpush1.msra.mxu0 0.0
        %2154 = vmatprep.subr.mxu0 0.0
        %2155 = vmatpush1.msra.mxu0 0.0
        %2156 = vmatprep.subr.mxu0 0.0
        %2157 = vmatpush1.msra.mxu0 0.0
        %2158 = vmatprep.subr.mxu0 0.0
        %2159 = vmatpush1.msra.mxu0 0.0
        %2160 = vmatprep.subr.mxu0 0.0
        %2161 = vmatpush1.msra.mxu0 0.0
        %2162 = vmatprep.subr.mxu0 0.0
        %2163 = vmatpush1.msra.mxu0 0.0
        %2164 = vmatprep.subr.mxu0 0.0
        %2165 = vmatpush1.msra.mxu0 0.0
        %2166 = vmatprep.subr.mxu0 0.0
        %2167 = vmatpush1.msra.mxu0 0.0
        %2168 = vmatprep.subr.mxu0 0.0
        %2169 = vmatpush1.msra.mxu0 0.0
        %2170 = vmatprep.subr.mxu0 0.0
        %2171 = vmatpush1.msra.mxu0 0.0
        %2172 = vmatprep.subr.mxu0 0.0
        %2173 = vmatpush1.msra.mxu0 0.0
        %2174 = vmatprep.subr.mxu0 0.0
        %2175 = vmatpush1.msra.mxu0 0.0
        %2176 = vmatprep.subr.mxu0 0.0
        %2177 = vmatpush1.msra.mxu0 0.0
        %2178 = vmatprep.subr.mxu0 0.0
        %2179 = vmatpush1.msra.mxu0 0.0
        %2180 = vmatprep.subr.mxu0 0.0
        %2181 = vmatpush1.msra.mxu0 0.0
        %2182 = vmatprep.subr.mxu0 0.0
        %2183 = vmatpush1.msra.mxu0 0.0
        %2184 = vmatprep.subr.mxu0 0.0
        %2185 = vmatpush1.msra.mxu0 0.0
        %2186 = vmatprep.subr.mxu0 0.0
        %2187 = vmatpush1.msra.mxu0 0.0
        %2188 = vmatprep.subr.mxu0 0.0
        %2189 = vmatpush1.msra.mxu0 0.0
        %2190 = vmatprep.subr.mxu0 0.0
        %2191 = vmatpush1.msra.mxu0 0.0
        %2192 = vmatprep.subr.mxu0 0.0
        %2193 = vmatpush1.msra.mxu0 0.0
        %2194 = vmatprep.subr.mxu0 0.0
        %2195 = vmatpush1.msra.mxu0 0.0
        %2196 = vmatprep.subr.mxu0 0.0
        %2197 = vmatpush1.msra.mxu0 0.0
        %2198 = vmatprep.subr.mxu0 0.0
        %2199 = vmatpush1.msra.mxu0 0.0
        %2200 = vmatprep.subr.mxu0 0.0
        %2201 = vmatpush1.msra.mxu0 0.0
        %2202 = vmatprep.mubr.f32.mxu0 0.0
        %2203 = vmatmul.mubr.f32.gmra.mrb[0].mxu0 %v2133
        %v2204 = vpop.f32.mrb[0].mxu0
        %v2205 = vadd.f32 0.0, %v2204
        %v2206 = vpop.f32.mrb[0].mxu0
        %2207 = vmatprep.mubr.f32.mxu0 0.0
        %2208 = vmatmul.mubr.f32.gmra.mrb[0].mxu0 %v2136
        %v2209 = vpop.f32.mrb[0].mxu0
        %v2210 = vadd.f32 0.0, %v2209
        %v2211 = vpop.f32.mrb[0].mxu0
        %2212 = vdwg.mxu0
        %v2213 = vadd.f32 %v1926, %v2205
        %v2214 = vadd.f32 %v1927, %v2210
        %v2215 = vadd.f32 %v785, %v2213
        %v2216 = vadd.f32 %v786, %v2214
        %v2217 = vld [vmem:[#allocation17] sm:$0x1]
        %v2219 = vlaneseq
        %v2220 = vshrl.u32 %v2219, 7
        %v2221 = vsub.s32 0, %v2220
        %v2222 = vrot.slane %v2217, %v2221
        %v2224 = vadd.f32 %v2215, %v2222
        %v2225 = vadd.f32 %v2216, %v2222
        %v2226 = vld [vmem:[#allocation19] sm:$0x1]
        %v2227 = vld [vmem:[#allocation20] sm:$0x1]
        %2228 = vadd.xlane.f32.xlu0 %v2224
        %v2229 = vpop.xlane.xlu0 %2228
        %2230 = vadd.xlane.f32.xlu0 %v2225
        %v2231 = vpop.xlane.xlu0 %2230
        %v2232 = vmul.f32 %v2229, %v795
        %v2233 = vmul.f32 %v2231, %v795
        %v2234 = vsub.f32 %v2224, %v2232
        %v2235 = vsub.f32 %v2225, %v2233
        %v2236 = vmul.f32 %v2234, %v2234
        %v2237 = vmul.f32 %v2235, %v2235
        %2238 = vadd.xlane.f32.xlu0 %v2236
        %v2239 = vpop.xlane.xlu0 %2238
        %2240 = vadd.xlane.f32.xlu0 %v2237
        %v2241 = vpop.xlane.xlu0 %2240
        %v2242 = vmul.f32 %v2239, %v795
        %v2243 = vmul.f32 %v2241, %v795
        %v2244 = vadd.f32 %v2242, 1e-05
        %v2245 = vadd.f32 %v2243, 1e-05
        %v2246 = vrsqrt.pop %v2244
        %v2247 = vrsqrt.pop %v2245
        %v2248 = vmul.f32 %v2234, %v2246
        %v2249 = vmul.f32 %v2235, %v2247
        %v2251 = vlaneseq
        %v2252 = vshrl.u32 %v2251, 7
        %v2253 = vsub.s32 0, %v2252
        %v2254 = vrot.slane %v2226, %v2253
        %v2256 = vmul.f32 %v2248, %v2254
        %v2257 = vmul.f32 %v2249, %v2254
        %v2259 = vlaneseq
        %v2260 = vshrl.u32 %v2259, 7
        %v2261 = vsub.s32 0, %v2260
        %v2262 = vrot.slane %v2227, %v2261
        %v2264 = vadd.f32 %v2256, %v2262
        %v2265 = vadd.f32 %v2257, %v2262
        %v2266 = vld [vmem:[#allocation22] sm:$0xff]
        %v2267 = vld [vmem:[#allocation22 + $0x8] sm:$0xff]
        %v2268 = vld [vmem:[#allocation22 + $0x10] sm:$0xff]
        %v2269 = vld [vmem:[#allocation22 + $0x18] sm:$0xff]
        %v2270 = vld [vmem:[#allocation22 + $0x20] sm:$0xff]
        %v2271 = vld [vmem:[#allocation22 + $0x28] sm:$0xff]
        %v2272 = vld [vmem:[#allocation22 + $0x30] sm:$0xff]
        %v2273 = vld [vmem:[#allocation22 + $0x38] sm:$0xff]
        %v2274 = vld [vmem:[#allocation22 + $0x40] sm:$0xff]
        %v2275 = vld [vmem:[#allocation22 + $0x48] sm:$0xff]
        %v2276 = vld [vmem:[#allocation22 + $0x50] sm:$0xff]
        %v2277 = vld [vmem:[#allocation22 + $0x58] sm:$0xff]
        %v2278 = vld [vmem:[#allocation22 + $0x60] sm:$0xff]
        %v2279 = vld [vmem:[#allocation22 + $0x68] sm:$0xff]
        %v2280 = vld [vmem:[#allocation22 + $0x70] sm:$0xff]
        %v2281 = vld [vmem:[#allocation22 + $0x78] sm:$0xff]
        %v2282 = vld [vmem:[#allocation22 + $0x80] sm:$0xff]
        %v2283 = vld [vmem:[#allocation22 + $0x88] sm:$0xff]
        %v2284 = vld [vmem:[#allocation22 + $0x90] sm:$0xff]
        %v2285 = vld [vmem:[#allocation22 + $0x98] sm:$0xff]
        %v2286 = vld [vmem:[#allocation22 + $0xa0] sm:$0xff]
        %v2287 = vld [vmem:[#allocation22 + $0xa8] sm:$0xff]
        %v2288 = vld [vmem:[#allocation22 + $0xb0] sm:$0xff]
        %v2289 = vld [vmem:[#allocation22 + $0xb8] sm:$0xff]
        %v2290 = vld [vmem:[#allocation22 + $0xc0] sm:$0xff]
        %v2291 = vld [vmem:[#allocation22 + $0xc8] sm:$0xff]
        %v2292 = vld [vmem:[#allocation22 + $0xd0] sm:$0xff]
        %v2293 = vld [vmem:[#allocation22 + $0xd8] sm:$0xff]
        %v2294 = vld [vmem:[#allocation22 + $0xe0] sm:$0xff]
        %v2295 = vld [vmem:[#allocation22 + $0xe8] sm:$0xff]
        %v2296 = vld [vmem:[#allocation22 + $0xf0] sm:$0xff]
        %v2297 = vld [vmem:[#allocation22 + $0xf8] sm:$0xff]
        %v2298 = vld [vmem:[#allocation23] sm:$0x3]
        %v2300 = vlaneseq
        %v2301 = vshrl.u32 %v2300, 7
        %v2302 = vsub.s32 0, %v2301
        %v2303 = vrot.slane %v2298, %v2302
        %v2304 = vlaneseq
        %v2305 = vshrl.u32 %v2304, 7
        %v2306 = vsub.s32 1, %v2305
        %v2307 = vrot.slane %v2298, %v2306
        %2310 = vmatprep.subr.mxu0 %v2267
        %2311 = vmatpush1.msra.mxu0 %v2266
        %2312 = vmatprep.subr.mxu0 %v2269
        %2313 = vmatpush1.msra.mxu0 %v2268
        %2314 = vmatprep.subr.mxu0 %v2271
        %2315 = vmatpush1.msra.mxu0 %v2270
        %2316 = vmatprep.subr.mxu0 %v2273
        %2317 = vmatpush1.msra.mxu0 %v2272
        %2318 = vmatprep.subr.mxu0 %v2275
        %2319 = vmatpush1.msra.mxu0 %v2274
        %2320 = vmatprep.subr.mxu0 %v2277
        %2321 = vmatpush1.msra.mxu0 %v2276
        %2322 = vmatprep.subr.mxu0 %v2279
        %2323 = vmatpush1.msra.mxu0 %v2278
        %2324 = vmatprep.subr.mxu0 %v2281
        %2325 = vmatpush1.msra.mxu0 %v2280
        %2326 = vmatprep.subr.mxu0 %v2283
        %2327 = vmatpush1.msra.mxu0 %v2282
        %2328 = vmatprep.subr.mxu0 %v2285
        %2329 = vmatpush1.msra.mxu0 %v2284
        %2330 = vmatprep.subr.mxu0 %v2287
        %2331 = vmatpush1.msra.mxu0 %v2286
        %2332 = vmatprep.subr.mxu0 %v2289
        %2333 = vmatpush1.msra.mxu0 %v2288
        %2334 = vmatprep.subr.mxu0 %v2291
        %2335 = vmatpush1.msra.mxu0 %v2290
        %2336 = vmatprep.subr.mxu0 %v2293
        %2337 = vmatpush1.msra.mxu0 %v2292
        %2338 = vmatprep.subr.mxu0 %v2295
        %2339 = vmatpush1.msra.mxu0 %v2294
        %2340 = vmatprep.subr.mxu0 %v2297
        %2341 = vmatpush1.msra.mxu0 %v2296
        %2342 = vmatprep.subr.mxu0 0.0
        %2343 = vmatpush1.msra.mxu0 0.0
        %2344 = vmatprep.subr.mxu0 0.0
        %2345 = vmatpush1.msra.mxu0 0.0
        %2346 = vmatprep.subr.mxu0 0.0
        %2347 = vmatpush1.msra.mxu0 0.0
        %2348 = vmatprep.subr.mxu0 0.0
        %2349 = vmatpush1.msra.mxu0 0.0
        %2350 = vmatprep.subr.mxu0 0.0
        %2351 = vmatpush1.msra.mxu0 0.0
        %2352 = vmatprep.subr.mxu0 0.0
        %2353 = vmatpush1.msra.mxu0 0.0
        %2354 = vmatprep.subr.mxu0 0.0
        %2355 = vmatpush1.msra.mxu0 0.0
        %2356 = vmatprep.subr.mxu0 0.0
        %2357 = vmatpush1.msra.mxu0 0.0
        %2358 = vmatprep.subr.mxu0 0.0
        %2359 = vmatpush1.msra.mxu0 0.0
        %2360 = vmatprep.subr.mxu0 0.0
        %2361 = vmatpush1.msra.mxu0 0.0
        %2362 = vmatprep.subr.mxu0 0.0
        %2363 = vmatpush1.msra.mxu0 0.0
        %2364 = vmatprep.subr.mxu0 0.0
        %2365 = vmatpush1.msra.mxu0 0.0
        %2366 = vmatprep.subr.mxu0 0.0
        %2367 = vmatpush1.msra.mxu0 0.0
        %2368 = vmatprep.subr.mxu0 0.0
        %2369 = vmatpush1.msra.mxu0 0.0
        %2370 = vmatprep.subr.mxu0 0.0
        %2371 = vmatpush1.msra.mxu0 0.0
        %2372 = vmatprep.subr.mxu0 0.0
        %2373 = vmatpush1.msra.mxu0 0.0
        %2374 = vmatprep.mubr.f32.mxu0 0.0
        %2375 = vmatmul.mubr.f32.gmra.mrb[0].mxu0 %v2264
        %v2376 = vpop.f32.mrb[0].mxu0
        %v2377 = vadd.f32 %v2303, %v2376
        %v2378 = vpop.f32.mrb[0].mxu0
        %v2379 = vadd.f32 %v2307, %v2378
        %2380 = vmatprep.mubr.f32.mxu0 0.0
        %2381 = vmatmul.mubr.f32.gmra.mrb[0].mxu0 %v2265
        %v2382 = vpop.f32.mrb[0].mxu0
        %v2383 = vadd.f32 %v2303, %v2382
        %v2384 = vpop.f32.mrb[0].mxu0
        %v2385 = vadd.f32 %v2307, %v2384
        %2386 = vdwg.mxu0
        %v2387 = vmul.f32 %v2377, 0.5
        %v2388 = vmul.f32 %v2379, 0.5
        %v2389 = vmul.f32 %v2383, 0.5
        %v2390 = vmul.f32 %v2385, 0.5
        %v2391 = vmul.f32 %v2377, 0.044715
        %v2392 = vmul.f32 %v2379, 0.044715
        %v2393 = vmul.f32 %v2383, 0.044715
        %v2394 = vmul.f32 %v2385, 0.044715
        %v2395 = vmul.f32 %v2391, %v2377
        %v2396 = vmul.f32 %v2392, %v2379
        %v2397 = vmul.f32 %v2393, %v2383
        %v2398 = vmul.f32 %v2394, %v2385
        %v2399 = vmul.f32 %v2395, %v2377
        %v2400 = vmul.f32 %v2396, %v2379
        %v2401 = vmul.f32 %v2397, %v2383
        %v2402 = vmul.f32 %v2398, %v2385
        %v2403 = vadd.f32 %v2377, %v2399
        %v2404 = vadd.f32 %v2379, %v2400
        %v2405 = vadd.f32 %v2383, %v2401
        %v2406 = vadd.f32 %v2385, %v2402
        %v2407 = vmul.f32 %v2403, 0.7978846
        %v2408 = vmul.f32 %v2404, 0.7978846
        %v2409 = vmul.f32 %v2405, 0.7978846
        %v2410 = vmul.f32 %v2406, 0.7978846
        %v2411 = vtanh.pop %v2407
        %v2412 = vtanh.pop %v2408
        %v2413 = vtanh.pop %v2409
        %v2414 = vtanh.pop %v2410
        %v2415 = vadd.f32 %v2411, 1.0
        %v2416 = vadd.f32 %v2412, 1.0
        %v2417 = vadd.f32 %v2413, 1.0
        %v2418 = vadd.f32 %v2414, 1.0
        %v2419 = vmul.f32 %v2387, %v2415
        %v2420 = vmul.f32 %v2388, %v2416
        %v2421 = vmul.f32 %v2389, %v2417
        %v2422 = vmul.f32 %v2390, %v2418
        %v2423 = vld [vmem:[#allocation25] sm:$0xff]
        %v2424 = vld [vmem:[#allocation25 + $0x8] sm:$0xff]
        %v2425 = vld [vmem:[#allocation25 + $0x10] sm:$0xff]
        %v2426 = vld [vmem:[#allocation25 + $0x18] sm:$0xff]
        %v2427 = vld [vmem:[#allocation25 + $0x20] sm:$0xff]
        %v2428 = vld [vmem:[#allocation25 + $0x28] sm:$0xff]
        %v2429 = vld [vmem:[#allocation25 + $0x30] sm:$0xff]
        %v2430 = vld [vmem:[#allocation25 + $0x38] sm:$0xff]
        %v2431 = vld [vmem:[#allocation25 + $0x40] sm:$0xff]
        %v2432 = vld [vmem:[#allocation25 + $0x48] sm:$0xff]
        %v2433 = vld [vmem:[#allocation25 + $0x50] sm:$0xff]
        %v2434 = vld [vmem:[#allocation25 + $0x58] sm:$0xff]
        %v2435 = vld [vmem:[#allocation25 + $0x60] sm:$0xff]
        %v2436 = vld [vmem:[#allocation25 + $0x68] sm:$0xff]
        %v2437 = vld [vmem:[#allocation25 + $0x70] sm:$0xff]
        %v2438 = vld [vmem:[#allocation25 + $0x78] sm:$0xff]
        %v2439 = vld [vmem:[#allocation25 + $0x80] sm:$0xff]
        %v2440 = vld [vmem:[#allocation25 + $0x88] sm:$0xff]
        %v2441 = vld [vmem:[#allocation25 + $0x90] sm:$0xff]
        %v2442 = vld [vmem:[#allocation25 + $0x98] sm:$0xff]
        %v2443 = vld [vmem:[#allocation25 + $0xa0] sm:$0xff]
        %v2444 = vld [vmem:[#allocation25 + $0xa8] sm:$0xff]
        %v2445 = vld [vmem:[#allocation25 + $0xb0] sm:$0xff]
        %v2446 = vld [vmem:[#allocation25 + $0xb8] sm:$0xff]
        %v2447 = vld [vmem:[#allocation25 + $0xc0] sm:$0xff]
        %v2448 = vld [vmem:[#allocation25 + $0xc8] sm:$0xff]
        %v2449 = vld [vmem:[#allocation25 + $0xd0] sm:$0xff]
        %v2450 = vld [vmem:[#allocation25 + $0xd8] sm:$0xff]
        %v2451 = vld [vmem:[#allocation25 + $0xe0] sm:$0xff]
        %v2452 = vld [vmem:[#allocation25 + $0xe8] sm:$0xff]
        %v2453 = vld [vmem:[#allocation25 + $0xf0] sm:$0xff]
        %v2454 = vld [vmem:[#allocation25 + $0xf8] sm:$0xff]
        %v2455 = vld [vmem:[#allocation26] sm:$0x1]
        %v2457 = vlaneseq
        %v2458 = vshrl.u32 %v2457, 7
        %v2459 = vsub.s32 0, %v2458
        %v2460 = vrot.slane %v2455, %v2459
        %2462 = vmatprep.subr.mxu0 0.0
        %2463 = vmatpush1.msra.mxu0 %v2423
        %2464 = vmatprep.subr.mxu0 0.0
        %2465 = vmatpush1.msra.mxu0 %v2424
        %2466 = vmatprep.subr.mxu0 0.0
        %2467 = vmatpush1.msra.mxu0 %v2425
        %2468 = vmatprep.subr.mxu0 0.0
        %2469 = vmatpush1.msra.mxu0 %v2426
        %2470 = vmatprep.subr.mxu0 0.0
        %2471 = vmatpush1.msra.mxu0 %v2427
        %2472 = vmatprep.subr.mxu0 0.0
        %2473 = vmatpush1.msra.mxu0 %v2428
        %2474 = vmatprep.subr.mxu0 0.0
        %2475 = vmatpush1.msra.mxu0 %v2429
        %2476 = vmatprep.subr.mxu0 0.0
        %2477 = vmatpush1.msra.mxu0 %v2430
        %2478 = vmatprep.subr.mxu0 0.0
        %2479 = vmatpush1.msra.mxu0 %v2431
        %2480 = vmatprep.subr.mxu0 0.0
        %2481 = vmatpush1.msra.mxu0 %v2432
        %2482 = vmatprep.subr.mxu0 0.0
        %2483 = vmatpush1.msra.mxu0 %v2433
        %2484 = vmatprep.subr.mxu0 0.0
        %2485 = vmatpush1.msra.mxu0 %v2434
        %2486 = vmatprep.subr.mxu0 0.0
        %2487 = vmatpush1.msra.mxu0 %v2435
        %2488 = vmatprep.subr.mxu0 0.0
        %2489 = vmatpush1.msra.mxu0 %v2436
        %2490 = vmatprep.subr.mxu0 0.0
        %2491 = vmatpush1.msra.mxu0 %v2437
        %2492 = vmatprep.subr.mxu0 0.0
        %2493 = vmatpush1.msra.mxu0 %v2438
        %2494 = vmatprep.subr.mxu0 0.0
        %2495 = vmatpush1.msra.mxu0 %v2439
        %2496 = vmatprep.subr.mxu0 0.0
        %2497 = vmatpush1.msra.mxu0 %v2440
        %2498 = vmatprep.subr.mxu0 0.0
        %2499 = vmatpush1.msra.mxu0 %v2441
        %2500 = vmatprep.subr.mxu0 0.0
        %2501 = vmatpush1.msra.mxu0 %v2442
        %2502 = vmatprep.subr.mxu0 0.0
        %2503 = vmatpush1.msra.mxu0 %v2443
        %2504 = vmatprep.subr.mxu0 0.0
        %2505 = vmatpush1.msra.mxu0 %v2444
        %2506 = vmatprep.subr.mxu0 0.0
        %2507 = vmatpush1.msra.mxu0 %v2445
        %2508 = vmatprep.subr.mxu0 0.0
        %2509 = vmatpush1.msra.mxu0 %v2446
        %2510 = vmatprep.subr.mxu0 0.0
        %2511 = vmatpush1.msra.mxu0 %v2447
        %2512 = vmatprep.subr.mxu0 0.0
        %2513 = vmatpush1.msra.mxu0 %v2448
        %2514 = vmatprep.subr.mxu0 0.0
        %2515 = vmatpush1.msra.mxu0 %v2449
        %2516 = vmatprep.subr.mxu0 0.0
        %2517 = vmatpush1.msra.mxu0 %v2450
        %2518 = vmatprep.subr.mxu0 0.0
        %2519 = vmatpush1.msra.mxu0 %v2451
        %2520 = vmatprep.subr.mxu0 0.0
        %2521 = vmatpush1.msra.mxu0 %v2452
        %2522 = vmatprep.subr.mxu0 0.0
        %2523 = vmatpush1.msra.mxu0 %v2453
        %2524 = vmatprep.subr.mxu0 0.0
        %2525 = vmatpush1.msra.mxu0 %v2454
        %2526 = vmatprep.mubr.f32.mxu0 %v2420
        %2527 = vmatmul.mubr.f32.gmra.mrb[0].mxu0 %v2419
        %v2528 = vpop.f32.mrb[0].mxu0
        %v2529 = vadd.f32 %v2460, %v2528
        %v2530 = vpop.f32.mrb[0].mxu0
        %2531 = vmatprep.mubr.f32.mxu0 %v2422
        %2532 = vmatmul.mubr.f32.gmra.mrb[0].mxu0 %v2421
        %v2533 = vpop.f32.mrb[0].mxu0
        %v2534 = vadd.f32 %v2460, %v2533
        %v2535 = vpop.f32.mrb[0].mxu0
        %2536 = vdwg.mxu0
        %v2537 = vadd.f32 %v2224, %v2529
        %v2538 = vadd.f32 %v2225, %v2534
        %2539 = vst [vmem:[%s782] sm:$0xff] %v2537
        %2540 = vst [vmem:[%s782 + $0x8] sm:$0xff] %v2538
        %s2541 = sand.u32 %s413, 1
        %s2542 = scalar_lea.sflag [#allocation4], %s2541
        %s2543 = sand.u32 %s413, 1
        %s2544 = smul.addr %s2543, 16
        %s2545 = scalar_lea.vmem [#allocation28], %s2544
        // Predicated region
        $region149: #{tpu_custom_call.1} parent=83 // pred_check
          %p2546 = pneg %p423
        $region150: #{tpu_custom_call.1} parent=83 // pred_check_branch
          %2548 = sbr.rel (%p2546) target = $region152
        $region151: #{tpu_custom_call.1} parent=83 // pred_region
          %s2549 = smul.u32 2, %s48
          %s2551 = ssub.s32 256, 256
          %2552 = vsyncadd %s2542, %s2551
          %s2553 = smul.addr %s47, 2
          %s2554 = sadd.s32 %s2549, %s2553
          %s2555 = smul.addr %s2554, 128
          %s2556 = scalar_lea.hbm %s16, %s2555
          %s2557 = sshll.u32 %s2545, 4
          %s2558 = int_to_ptr.vmem [resolvable:$true] %s2557
          %2563 = dma.vmem_to_hbm [thread:$0]  %s2558, 256, %s2556, %s2542, 128, 128, 8
        $region152: #{tpu_custom_call.1} parent=83 // pred_fallthru
          _
      $region84: #{tpu_custom_call.1} parent=5 // pred_fallthru
        _
      %p2564 = scmp.le.s32.totalorder 2, %s38
      // Predicated region
      $region153: #{tpu_custom_call.1} parent=5 // pred_check
        %p2565 = pneg %p2564
      $region154: #{tpu_custom_call.1} parent=5 // pred_check_branch
        %2567 = sbr.rel (%p2565) target = $region156
      $region155: #{tpu_custom_call.1} parent=5 // pred_region
        %s2568 = ssub.s32 %s38, 2
        // Predicated region
        $region157: #{tpu_custom_call.1} parent=155 // pred_check
          %p2569 = pneg %p429
        $region158: #{tpu_custom_call.1} parent=155 // pred_check_branch
          %2571 = sbr.rel (%p2569) target = $region160
        $region159: #{tpu_custom_call.1} parent=155 // pred_region
          %s2572 = sand.u32 %s414, 1
          %s2573 = scalar_lea.sflag [#allocation4], %s2572
          %s2574 = sand.u32 %s414, 1
          %s2575 = smul.addr %s2574, 16
          %s2576 = scalar_lea.vmem [#allocation28], %s2575
          %2577 = dma.done %s2573, 256
        $region160: #{tpu_custom_call.1} parent=155 // pred_fallthru
          _
      $region156: #{tpu_custom_call.1} parent=5 // pred_fallthru
        _
    $region6: #{tpu_custom_call.1} parent=1 // loop_footer
      %s42 = sadd.s32 1, %s38
    $region7: #{tpu_custom_call.1} parent=1 // loop_footer_branch
      %37 = sbr.rel target = $region3
    $region8: #{tpu_custom_call.1} parent=1 // loop_exit
      _
    %2578 = vsyncpa [#allocation3], 1
    %s2579 = scalar_lea.sflag [#allocation3], 1
    %2580 = vsyncpa %s2579, 1
    %2581 = vsyncpa [#allocation6], 1
    %s2582 = scalar_lea.sflag [#allocation6], 1
    %2583 = vsyncpa %s2582, 1
    %2584 = vsyncpa [#allocation9], 1
    %2585 = vsyncpa [#allocation12], 1
    %2586 = vsyncpa [#allocation15], 1
    %2587 = vsyncpa [#allocation18], 1
    %2588 = vsyncpa [#allocation21], 1
    %2589 = vsyncpa [#allocation24], 1
    %2590 = vsyncpa [#allocation27], 1
    %2591 = vsyncpa [#allocation4], 1
    %s2592 = scalar_lea.sflag [#allocation4], 1
    %2593 = vsyncpa %s2592, 1

</llo_original>
